<compile_context>
chip_gen: v6e
topology: v6e:2x2x1
jax: 0.10.0
libtpu: 0.0.40
codegen_flags: <defaults>
</compile_context>

<pallas_src>
import math
import numpy as np
import jax
import jax.numpy as jnp
from jax import lax
from jax.experimental import pallas as pl
from jax.experimental.pallas import tpu as pltpu


def _round_up(x, m):
    return ((x + m - 1) // m) * m


def make_bilstm_kernel(T, B, nInP, Hp, nOutP, matmul_dtype):
    """Build the Pallas kernel body for fixed static (padded) shapes."""
    G = 4 * Hp

    def kernel(x_ref,                        # (T, B, nInP)          f32
               wihf_ref, whhf_ref, bf_ref,   # (nInP,G),(Hp,G),(1,G) fwd
               wihb_ref, whhb_ref, bb_ref,   # (nInP,G),(Hp,G),(1,G) bwd
               wembf_ref, wembb_ref,         # (Hp, nOutP) each
               bemb_ref,                     # (1, nOutP)
               out_ref,                      # (T, B, nOutP)         f32
               ginf_sc, ginb_sc,             # (T, B, G) f32 scratch
               recf_sc, recb_sc):            # (T, B, Hp) f32 scratch

        f32 = jnp.float32

        # ---- hoisted input projection: one big MXU matmul per direction ----
        xb = x_ref[...].reshape(T * B, nInP).astype(matmul_dtype)
        ginf_sc[...] = (jnp.dot(xb, wihf_ref[...], preferred_element_type=f32)
                        + bf_ref[...]).reshape(T, B, G)
        ginb_sc[...] = (jnp.dot(xb, wihb_ref[...], preferred_element_type=f32)
                        + bb_ref[...]).reshape(T, B, G)

        def cell(gates, c):
            # PyTorch LSTM gate order: i, f, g, o -- each a 128-lane-aligned slice.
            i_g = jax.nn.sigmoid(gates[:, 0 * Hp:1 * Hp])
            f_g = jax.nn.sigmoid(gates[:, 1 * Hp:2 * Hp])
            g_g = jnp.tanh(gates[:, 2 * Hp:3 * Hp])
            o_g = jax.nn.sigmoid(gates[:, 3 * Hp:4 * Hp])
            c_new = f_g * c + i_g * g_g
            h_new = o_g * jnp.tanh(c_new)
            return h_new, c_new

        def body(s, carry):
            h_f, c_f, h_b, c_b = carry
            # Only the recurrent matmul remains on the serial critical path.
            gf = ginf_sc[s] + jnp.dot(h_f.astype(matmul_dtype), whhf_ref[...],
                                      preferred_element_type=f32)
            gb = ginb_sc[T - 1 - s] + jnp.dot(h_b.astype(matmul_dtype), whhb_ref[...],
                                              preferred_element_type=f32)
            h_f, c_f = cell(gf, c_f)
            h_b, c_b = cell(gb, c_b)
            recf_sc[s] = h_f
            recb_sc[T - 1 - s] = h_b
            return h_f, c_f, h_b, c_b

        z = jnp.zeros((B, Hp), f32)
        lax.fori_loop(0, T, body, (z, z, z, z), unroll=True)

        # ---- embedding: out = rec_f @ W_f + rec_b @ W_b + b  (no concat) ----
        rf = recf_sc[...].reshape(T * B, Hp).astype(matmul_dtype)
        rb = recb_sc[...].reshape(T * B, Hp).astype(matmul_dtype)
        out = (jnp.dot(rf, wembf_ref[...], preferred_element_type=f32)
               + jnp.dot(rb, wembb_ref[...], preferred_element_type=f32)
               + bemb_ref[...])
        out_ref[...] = out.reshape(T, B, nOutP)

    return kernel


def bidirectional_lstm(x, params, matmul_dtype=jnp.bfloat16):
    """x: (T, B, nIn) float32.  params: dict of PyTorch-convention weights."""
    T, B, nIn = x.shape
    H = params["weight_hh_l0"].shape[1]
    nOut = params["emb_w"].shape[0]

    Hp = _round_up(H, 128)
    nInP = _round_up(nIn, 128)
    nOutP = _round_up(nOut, 128)

    # ---- glue: pad/transpose weights so each gate owns a 128-lane block ----
    def pack_ih(w):  # torch (4H, nIn) -> (nInP, 4Hp)
        out = jnp.zeros((nInP, 4 * Hp), jnp.float32)
        for k in range(4):
            out = out.at[:nIn, k * Hp:k * Hp + H].set(w[k * H:(k + 1) * H, :].T)
        return out.astype(matmul_dtype)

    def pack_hh(w):  # torch (4H, H) -> (Hp, 4Hp)
        out = jnp.zeros((Hp, 4 * Hp), jnp.float32)
        for k in range(4):
            out = out.at[:H, k * Hp:k * Hp + H].set(w[k * H:(k + 1) * H, :].T)
        return out.astype(matmul_dtype)

    def pack_bias(b_ih, b_hh):  # -> (1, 4Hp) f32, zeros in padded lanes
        b = (b_ih + b_hh).astype(jnp.float32)
        out = jnp.zeros((1, 4 * Hp), jnp.float32)
        for k in range(4):
            out = out.at[0, k * Hp:k * Hp + H].set(b[k * H:(k + 1) * H])
        return out

    wihf = pack_ih(params["weight_ih_l0"])
    whhf = pack_hh(params["weight_hh_l0"])
    bf = pack_bias(params["bias_ih_l0"], params["bias_hh_l0"])
    wihb = pack_ih(params["weight_ih_l0_reverse"])
    whhb = pack_hh(params["weight_hh_l0_reverse"])
    bb = pack_bias(params["bias_ih_l0_reverse"], params["bias_hh_l0_reverse"])

    # Embedding split by direction: (nOut, 2H) -> two (Hp, nOutP) halves.
    wembf = (jnp.zeros((Hp, nOutP), jnp.float32)
             .at[:H, :nOut].set(params["emb_w"][:, :H].T).astype(matmul_dtype))
    wembb = (jnp.zeros((Hp, nOutP), jnp.float32)
             .at[:H, :nOut].set(params["emb_w"][:, H:].T).astype(matmul_dtype))
    bemb = jnp.zeros((1, nOutP), jnp.float32).at[0, :nOut].set(params["emb_b"])

    x_p = jnp.pad(x.astype(jnp.float32), ((0, 0), (0, 0), (0, nInP - nIn)))

    kernel = make_bilstm_kernel(T, B, nInP, Hp, nOutP, matmul_dtype)
    vmem = pl.BlockSpec(memory_space=pltpu.MemorySpace.VMEM)

    out_p = pl.pallas_call(
        kernel,
        out_shape=jax.ShapeDtypeStruct((T, B, nOutP), jnp.float32),
        in_specs=[vmem] * 10,
        out_specs=vmem,
        scratch_shapes=[
            pltpu.VMEM((T, B, 4 * Hp), jnp.float32),   # fwd gate inputs
            pltpu.VMEM((T, B, 4 * Hp), jnp.float32),   # bwd gate inputs
            pltpu.VMEM((T, B, Hp), jnp.float32),       # fwd hidden states
            pltpu.VMEM((T, B, Hp), jnp.float32),       # bwd hidden states
        ],
    )(x_p, wihf, whhf, bf, wihb, whhb, bb, wembf, wembb, bemb)

    return out_p[:, :, :nOut]


def bidirectional_lstm_ref(x, params, matmul_dtype=jnp.float32):
    """Pure-JAX reference (torch.nn.LSTM(bidirectional) + Linear semantics).

    matmul_dtype=jnp.float32 reproduces the PyTorch math exactly;
    matmul_dtype=jnp.bfloat16 applies the same operand rounding as the kernel
    (bf16 matmul operands, f32 accumulation, f32 cell state).
    """
    T, B, nIn = x.shape
    H = params["weight_hh_l0"].shape[1]
    md = matmul_dtype

    def run_dir(xs, wih, whh, b_ih, b_hh):
        bias = (b_ih + b_hh).astype(jnp.float32)
        wih_t = wih.T.astype(md)
        whh_t = whh.T.astype(md)
        gin = (jnp.dot(xs.reshape(T * B, nIn).astype(md), wih_t,
                       preferred_element_type=jnp.float32)
               .reshape(T, B, 4 * H) + bias)

        def cell(carry, g_in):
            h, c = carry
            gates = g_in + jnp.dot(h.astype(md), whh_t,
                                   preferred_element_type=jnp.float32)
            i_g = jax.nn.sigmoid(gates[:, 0 * H:1 * H])
            f_g = jax.nn.sigmoid(gates[:, 1 * H:2 * H])
            g_g = jnp.tanh(gates[:, 2 * H:3 * H])
            o_g = jax.nn.sigmoid(gates[:, 3 * H:4 * H])
            c_new = f_g * c + i_g * g_g
            h_new = o_g * jnp.tanh(c_new)
            return (h_new, c_new), h_new

        h0 = jnp.zeros((B, H), jnp.float32)
        c0 = jnp.zeros((B, H), jnp.float32)
        _, hs = lax.scan(cell, (h0, c0), gin)
        return hs

    fwd = run_dir(x, params["weight_ih_l0"], params["weight_hh_l0"],
                  params["bias_ih_l0"], params["bias_hh_l0"])
    bwd = run_dir(x[::-1], params["weight_ih_l0_reverse"],
                  params["weight_hh_l0_reverse"],
                  params["bias_ih_l0_reverse"], params["bias_hh_l0_reverse"])[::-1]
    wf = params["emb_w"][:, :H].T.astype(md)
    wb = params["emb_w"][:, H:].T.astype(md)
    out = (jnp.dot(fwd.reshape(T * B, H).astype(md), wf,
                   preferred_element_type=jnp.float32)
           + jnp.dot(bwd.reshape(T * B, H).astype(md), wb,
                     preferred_element_type=jnp.float32)
           + params["emb_b"])
    return out.reshape(T, B, -1)


def init_params(key, nIn, H, nOut):
    """Deterministic PyTorch-style init (uniform(-1/sqrt(fan), 1/sqrt(fan)))."""
    keys = jax.random.split(key, 10)
    k_lstm = 1.0 / math.sqrt(H)
    k_emb = 1.0 / math.sqrt(2 * H)
    u = lambda k, shape, b: jax.random.uniform(k, shape, jnp.float32, -b, b)
    return {
        "weight_ih_l0": u(keys[0], (4 * H, nIn), k_lstm),
        "weight_hh_l0": u(keys[1], (4 * H, H), k_lstm),
        "bias_ih_l0": u(keys[2], (4 * H,), k_lstm),
        "bias_hh_l0": u(keys[3], (4 * H,), k_lstm),
        "weight_ih_l0_reverse": u(keys[4], (4 * H, nIn), k_lstm),
        "weight_hh_l0_reverse": u(keys[5], (4 * H, H), k_lstm),
        "bias_ih_l0_reverse": u(keys[6], (4 * H,), k_lstm),
        "bias_hh_l0_reverse": u(keys[7], (4 * H,), k_lstm),
        "emb_w": u(keys[8], (nOut, 2 * H), k_emb),
        "emb_b": u(keys[9], (nOut,), k_emb),
    }


if __name__ == "__main__":
    T, B, nIn, H, nOut = 8, 2, 32, 32, 16

    root = jax.random.PRNGKey(0)
    kx, kp = jax.random.split(root)
    x = jax.random.normal(kx, (T, B, nIn), jnp.float32)
    params = init_params(kp, nIn, H, nOut)

    out = jax.block_until_ready(bidirectional_lstm(x, params))
    assert out.shape == (T, B, nOut)

    # Reference with matched bf16 operand rounding (tight check of kernel logic).
    ref_matched = jax.block_until_ready(
        bidirectional_lstm_ref(x, params, matmul_dtype=jnp.bfloat16))
    err_matched = float(jnp.max(jnp.abs(out - ref_matched)))
    assert np.isfinite(err_matched) and err_matched < 5e-3, \
        f"mismatch vs bf16-matched reference: {err_matched}"

    # Full-f32 PyTorch-semantics reference (loose bound for bf16 matmul noise).
    ref_f32 = jax.block_until_ready(
        bidirectional_lstm_ref(x, params, matmul_dtype=jnp.float32))
    err_f32 = float(jnp.max(jnp.abs(out - ref_f32)))
    assert np.isfinite(err_f32) and err_f32 < 1e-1, \
        f"mismatch vs float32 reference: {err_f32}"

    print("KERNEL_OK")
</pallas_src>

<mosaic_0001>
module attributes {stable_mosaic.version = 11 : i64} {
  func.func @kernel(%arg0: memref<8x2x128xf32, #tpu.memory_space<vmem>>, %arg1: memref<128x512xbf16, #tpu.memory_space<vmem>>, %arg2: memref<128x512xbf16, #tpu.memory_space<vmem>>, %arg3: memref<1x512xf32, #tpu.memory_space<vmem>>, %arg4: memref<128x512xbf16, #tpu.memory_space<vmem>>, %arg5: memref<128x512xbf16, #tpu.memory_space<vmem>>, %arg6: memref<1x512xf32, #tpu.memory_space<vmem>>, %arg7: memref<128x128xbf16, #tpu.memory_space<vmem>>, %arg8: memref<128x128xbf16, #tpu.memory_space<vmem>>, %arg9: memref<1x128xf32, #tpu.memory_space<vmem>>, %arg10: memref<8x2x128xf32, #tpu.memory_space<vmem>>, %arg11: memref<8x2x512xf32, #tpu.memory_space<vmem>>, %arg12: memref<8x2x512xf32, #tpu.memory_space<vmem>>, %arg13: memref<8x2x128xf32, #tpu.memory_space<vmem>>, %arg14: memref<8x2x128xf32, #tpu.memory_space<vmem>>) attributes {dimension_semantics = [], scalar_prefetch = 0 : i64, scratch_operands = 4 : i64, tpu.core_type = #tpu.core_type<tc>} {
    %c0 = arith.constant 0 : index
    %c0_0 = arith.constant 0 : index
    %c0_1 = arith.constant 0 : index
    %0 = vector.load %arg0[%c0, %c0_0, %c0_1] : memref<8x2x128xf32, #tpu.memory_space<vmem>>, vector<8x2x128xf32>
    %1 = vector.shape_cast %0 : vector<8x2x128xf32> to vector<16x128xf32>
    %2 = arith.truncf %1 : vector<16x128xf32> to vector<16x128xbf16>
    %c0_2 = arith.constant 0 : index
    %c0_3 = arith.constant 0 : index
    %3 = vector.load %arg1[%c0_2, %c0_3] : memref<128x512xbf16, #tpu.memory_space<vmem>>, vector<128x512xbf16>
    %cst = arith.constant dense<0.000000e+00> : vector<16x512xf32>
    %4 = tpu.matmul %2, %3, %cst {dimension_numbers = #tpu.dot_dimension_numbers<[1], [0], [0], [1], [0, 0, 1, 1], [], []>} : vector<16x128xbf16>, vector<128x512xbf16>, vector<16x512xf32> -> vector<16x512xf32>
    %c0_4 = arith.constant 0 : index
    %c0_5 = arith.constant 0 : index
    %5 = vector.load %arg3[%c0_4, %c0_5] : memref<1x512xf32, #tpu.memory_space<vmem>>, vector<1x512xf32>
    %6 = vector.broadcast %5 : vector<1x512xf32> to vector<16x512xf32>
    %7 = arith.addf %4, %6 : vector<16x512xf32>
    %8 = vector.shape_cast %7 : vector<16x512xf32> to vector<8x2x512xf32>
    %c0_6 = arith.constant 0 : index
    %c0_7 = arith.constant 0 : index
    %c0_8 = arith.constant 0 : index
    %9 = vector.load %arg11[%c0_6, %c0_7, %c0_8] : memref<8x2x512xf32, #tpu.memory_space<vmem>>, vector<8x2x512xf32>
    tpu.vector_store %arg11[%c0_6, %c0_7, %c0_8], %8 {strides = array<i32>} : memref<8x2x512xf32, #tpu.memory_space<vmem>>, vector<8x2x512xf32>,
    %c0_9 = arith.constant 0 : index
    %c0_10 = arith.constant 0 : index
    %10 = vector.load %arg4[%c0_9, %c0_10] : memref<128x512xbf16, #tpu.memory_space<vmem>>, vector<128x512xbf16>
    %cst_11 = arith.constant dense<0.000000e+00> : vector<16x512xf32>
    %11 = tpu.matmul %2, %10, %cst_11 {dimension_numbers = #tpu.dot_dimension_numbers<[1], [0], [0], [1], [0, 0, 1, 1], [], []>} : vector<16x128xbf16>, vector<128x512xbf16>, vector<16x512xf32> -> vector<16x512xf32>
    %c0_12 = arith.constant 0 : index
    %c0_13 = arith.constant 0 : index
    %12 = vector.load %arg6[%c0_12, %c0_13] : memref<1x512xf32, #tpu.memory_space<vmem>>, vector<1x512xf32>
    %13 = vector.broadcast %12 : vector<1x512xf32> to vector<16x512xf32>
    %14 = arith.addf %11, %13 : vector<16x512xf32>
    %15 = vector.shape_cast %14 : vector<16x512xf32> to vector<8x2x512xf32>
    %c0_14 = arith.constant 0 : index
    %c0_15 = arith.constant 0 : index
    %c0_16 = arith.constant 0 : index
    %16 = vector.load %arg12[%c0_14, %c0_15, %c0_16] : memref<8x2x512xf32, #tpu.memory_space<vmem>>, vector<8x2x512xf32>
    tpu.vector_store %arg12[%c0_14, %c0_15, %c0_16], %15 {strides = array<i32>} : memref<8x2x512xf32, #tpu.memory_space<vmem>>, vector<8x2x512xf32>,
    %cst_17 = arith.constant 0.000000e+00 : f32
    %17 = vector.broadcast %cst_17 : f32 to vector<2x128xf32>
    %c0_i32 = arith.constant 0 : i32
    %18 = arith.index_cast %c0_i32 : i32 to index
    %c0_18 = arith.constant 0 : index
    %c0_19 = arith.constant 0 : index
    %19 = vector.load %arg11[%18, %c0_18, %c0_19] : memref<8x2x512xf32, #tpu.memory_space<vmem>>, vector<1x2x512xf32>
    %20 = vector.shape_cast %19 : vector<1x2x512xf32> to vector<2x512xf32>
    %21 = arith.truncf %17 : vector<2x128xf32> to vector<2x128xbf16>
    %c0_20 = arith.constant 0 : index
    %c0_21 = arith.constant 0 : index
    %22 = vector.load %arg2[%c0_20, %c0_21] : memref<128x512xbf16, #tpu.memory_space<vmem>>, vector<128x512xbf16>
    %cst_22 = arith.constant dense<0.000000e+00> : vector<2x512xf32>
    %23 = tpu.matmul %21, %22, %cst_22 {dimension_numbers = #tpu.dot_dimension_numbers<[1], [0], [0], [1], [0, 0, 1, 1], [], []>} : vector<2x128xbf16>, vector<128x512xbf16>, vector<2x512xf32> -> vector<2x512xf32>
    %24 = arith.addf %20, %23 : vector<2x512xf32>
    %c7_i32 = arith.constant 7 : i32
    %25 = arith.subi %c7_i32, %c0_i32 : i32
    %26 = arith.index_cast %25 : i32 to index
    %c0_23 = arith.constant 0 : index
    %c0_24 = arith.constant 0 : index
    %27 = vector.load %arg12[%26, %c0_23, %c0_24] : memref<8x2x512xf32, #tpu.memory_space<vmem>>, vector<1x2x512xf32>
    %28 = vector.shape_cast %27 : vector<1x2x512xf32> to vector<2x512xf32>
    %29 = arith.truncf %17 : vector<2x128xf32> to vector<2x128xbf16>
    %c0_25 = arith.constant 0 : index
    %c0_26 = arith.constant 0 : index
    %30 = vector.load %arg5[%c0_25, %c0_26] : memref<128x512xbf16, #tpu.memory_space<vmem>>, vector<128x512xbf16>
    %cst_27 = arith.constant dense<0.000000e+00> : vector<2x512xf32>
    %31 = tpu.matmul %29, %30, %cst_27 {dimension_numbers = #tpu.dot_dimension_numbers<[1], [0], [0], [1], [0, 0, 1, 1], [], []>} : vector<2x128xbf16>, vector<128x512xbf16>, vector<2x512xf32> -> vector<2x512xf32>
    %32 = arith.addf %28, %31 : vector<2x512xf32>
    %33 = vector.extract_strided_slice %24 {offsets = [0, 0], sizes = [2, 128], strides = [1, 1]} : vector<2x512xf32> to vector<2x128xf32>
    %34 = arith.negf %33 : vector<2x128xf32>
    %35 = math.exp %34 : vector<2x128xf32>
    %cst_28 = arith.constant 1.000000e+00 : f32
    %36 = vector.broadcast %cst_28 : f32 to vector<2x128xf32>
    %37 = arith.addf %36, %35 : vector<2x128xf32>
    %38 = arith.divf %36, %37 : vector<2x128xf32>
    %39 = vector.extract_strided_slice %24 {offsets = [0, 128], sizes = [2, 128], strides = [1, 1]} : vector<2x512xf32> to vector<2x128xf32>
    %40 = arith.negf %39 : vector<2x128xf32>
    %41 = math.exp %40 : vector<2x128xf32>
    %cst_29 = arith.constant 1.000000e+00 : f32
    %42 = vector.broadcast %cst_29 : f32 to vector<2x128xf32>
    %43 = arith.addf %42, %41 : vector<2x128xf32>
    %44 = arith.divf %42, %43 : vector<2x128xf32>
    %45 = vector.extract_strided_slice %24 {offsets = [0, 256], sizes = [2, 128], strides = [1, 1]} : vector<2x512xf32> to vector<2x128xf32>
    %46 = math.tanh %45 : vector<2x128xf32>
    %47 = vector.extract_strided_slice %24 {offsets = [0, 384], sizes = [2, 128], strides = [1, 1]} : vector<2x512xf32> to vector<2x128xf32>
    %48 = arith.negf %47 : vector<2x128xf32>
    %49 = math.exp %48 : vector<2x128xf32>
    %cst_30 = arith.constant 1.000000e+00 : f32
    %50 = vector.broadcast %cst_30 : f32 to vector<2x128xf32>
    %51 = arith.addf %50, %49 : vector<2x128xf32>
    %52 = arith.divf %50, %51 : vector<2x128xf32>
    %53 = arith.mulf %44, %17 : vector<2x128xf32>
    %54 = arith.mulf %38, %46 : vector<2x128xf32>
    %55 = arith.addf %53, %54 : vector<2x128xf32>
    %56 = math.tanh %55 : vector<2x128xf32>
    %57 = arith.mulf %52, %56 : vector<2x128xf32>
    %58 = vector.extract_strided_slice %32 {offsets = [0, 0], sizes = [2, 128], strides = [1, 1]} : vector<2x512xf32> to vector<2x128xf32>
    %59 = arith.negf %58 : vector<2x128xf32>
    %60 = math.exp %59 : vector<2x128xf32>
    %cst_31 = arith.constant 1.000000e+00 : f32
    %61 = vector.broadcast %cst_31 : f32 to vector<2x128xf32>
    %62 = arith.addf %61, %60 : vector<2x128xf32>
    %63 = arith.divf %61, %62 : vector<2x128xf32>
    %64 = vector.extract_strided_slice %32 {offsets = [0, 128], sizes = [2, 128], strides = [1, 1]} : vector<2x512xf32> to vector<2x128xf32>
    %65 = arith.negf %64 : vector<2x128xf32>
    %66 = math.exp %65 : vector<2x128xf32>
    %cst_32 = arith.constant 1.000000e+00 : f32
    %67 = vector.broadcast %cst_32 : f32 to vector<2x128xf32>
    %68 = arith.addf %67, %66 : vector<2x128xf32>
    %69 = arith.divf %67, %68 : vector<2x128xf32>
    %70 = vector.extract_strided_slice %32 {offsets = [0, 256], sizes = [2, 128], strides = [1, 1]} : vector<2x512xf32> to vector<2x128xf32>
    %71 = math.tanh %70 : vector<2x128xf32>
    %72 = vector.extract_strided_slice %32 {offsets = [0, 384], sizes = [2, 128], strides = [1, 1]} : vector<2x512xf32> to vector<2x128xf32>
    %73 = arith.negf %72 : vector<2x128xf32>
    %74 = math.exp %73 : vector<2x128xf32>
    %cst_33 = arith.constant 1.000000e+00 : f32
    %75 = vector.broadcast %cst_33 : f32 to vector<2x128xf32>
    %76 = arith.addf %75, %74 : vector<2x128xf32>
    %77 = arith.divf %75, %76 : vector<2x128xf32>
    %78 = arith.mulf %69, %17 : vector<2x128xf32>
    %79 = arith.mulf %63, %71 : vector<2x128xf32>
    %80 = arith.addf %78, %79 : vector<2x128xf32>
    %81 = math.tanh %80 : vector<2x128xf32>
    %82 = arith.mulf %77, %81 : vector<2x128xf32>
    %83 = arith.index_cast %c0_i32 : i32 to index
    %c0_34 = arith.constant 0 : index
    %c0_35 = arith.constant 0 : index
    %84 = vector.load %arg13[%83, %c0_34, %c0_35] : memref<8x2x128xf32, #tpu.memory_space<vmem>>, vector<1x2x128xf32>
    %85 = vector.shape_cast %84 : vector<1x2x128xf32> to vector<2x128xf32>
    %86 = vector.shape_cast %57 : vector<2x128xf32> to vector<1x2x128xf32>
    tpu.vector_store %arg13[%83, %c0_34, %c0_35], %86 {strides = array<i32>} : memref<8x2x128xf32, #tpu.memory_space<vmem>>, vector<1x2x128xf32>,
    %c7_i32_36 = arith.constant 7 : i32
    %87 = arith.subi %c7_i32_36, %c0_i32 : i32
    %88 = arith.index_cast %87 : i32 to index
    %c0_37 = arith.constant 0 : index
    %c0_38 = arith.constant 0 : index
    %89 = vector.load %arg14[%88, %c0_37, %c0_38] : memref<8x2x128xf32, #tpu.memory_space<vmem>>, vector<1x2x128xf32>
    %90 = vector.shape_cast %89 : vector<1x2x128xf32> to vector<2x128xf32>
    %91 = vector.shape_cast %82 : vector<2x128xf32> to vector<1x2x128xf32>
    tpu.vector_store %arg14[%88, %c0_37, %c0_38], %91 {strides = array<i32>} : memref<8x2x128xf32, #tpu.memory_space<vmem>>, vector<1x2x128xf32>,
    %c1_i32 = arith.constant 1 : i32
    %92 = arith.index_cast %c1_i32 : i32 to index
    %c0_39 = arith.constant 0 : index
    %c0_40 = arith.constant 0 : index
    %93 = vector.load %arg11[%92, %c0_39, %c0_40] : memref<8x2x512xf32, #tpu.memory_space<vmem>>, vector<1x2x512xf32>
    %94 = vector.shape_cast %93 : vector<1x2x512xf32> to vector<2x512xf32>
    %95 = arith.truncf %57 : vector<2x128xf32> to vector<2x128xbf16>
    %c0_41 = arith.constant 0 : index
    %c0_42 = arith.constant 0 : index
    %96 = vector.load %arg2[%c0_41, %c0_42] : memref<128x512xbf16, #tpu.memory_space<vmem>>, vector<128x512xbf16>
    %cst_43 = arith.constant dense<0.000000e+00> : vector<2x512xf32>
    %97 = tpu.matmul %95, %96, %cst_43 {dimension_numbers = #tpu.dot_dimension_numbers<[1], [0], [0], [1], [0, 0, 1, 1], [], []>} : vector<2x128xbf16>, vector<128x512xbf16>, vector<2x512xf32> -> vector<2x512xf32>
    %98 = arith.addf %94, %97 : vector<2x512xf32>
    %c7_i32_44 = arith.constant 7 : i32
    %99 = arith.subi %c7_i32_44, %c1_i32 : i32
    %100 = arith.index_cast %99 : i32 to index
    %c0_45 = arith.constant 0 : index
    %c0_46 = arith.constant 0 : index
    %101 = vector.load %arg12[%100, %c0_45, %c0_46] : memref<8x2x512xf32, #tpu.memory_space<vmem>>, vector<1x2x512xf32>
    %102 = vector.shape_cast %101 : vector<1x2x512xf32> to vector<2x512xf32>
    %103 = arith.truncf %82 : vector<2x128xf32> to vector<2x128xbf16>
    %c0_47 = arith.constant 0 : index
    %c0_48 = arith.constant 0 : index
    %104 = vector.load %arg5[%c0_47, %c0_48] : memref<128x512xbf16, #tpu.memory_space<vmem>>, vector<128x512xbf16>
    %cst_49 = arith.constant dense<0.000000e+00> : vector<2x512xf32>
    %105 = tpu.matmul %103, %104, %cst_49 {dimension_numbers = #tpu.dot_dimension_numbers<[1], [0], [0], [1], [0, 0, 1, 1], [], []>} : vector<2x128xbf16>, vector<128x512xbf16>, vector<2x512xf32> -> vector<2x512xf32>
    %106 = arith.addf %102, %105 : vector<2x512xf32>
    %107 = vector.extract_strided_slice %98 {offsets = [0, 0], sizes = [2, 128], strides = [1, 1]} : vector<2x512xf32> to vector<2x128xf32>
    %108 = arith.negf %107 : vector<2x128xf32>
    %109 = math.exp %108 : vector<2x128xf32>
    %cst_50 = arith.constant 1.000000e+00 : f32
    %110 = vector.broadcast %cst_50 : f32 to vector<2x128xf32>
    %111 = arith.addf %110, %109 : vector<2x128xf32>
    %112 = arith.divf %110, %111 : vector<2x128xf32>
    %113 = vector.extract_strided_slice %98 {offsets = [0, 128], sizes = [2, 128], strides = [1, 1]} : vector<2x512xf32> to vector<2x128xf32>
    %114 = arith.negf %113 : vector<2x128xf32>
    %115 = math.exp %114 : vector<2x128xf32>
    %cst_51 = arith.constant 1.000000e+00 : f32
    %116 = vector.broadcast %cst_51 : f32 to vector<2x128xf32>
    %117 = arith.addf %116, %115 : vector<2x128xf32>
    %118 = arith.divf %116, %117 : vector<2x128xf32>
    %119 = vector.extract_strided_slice %98 {offsets = [0, 256], sizes = [2, 128], strides = [1, 1]} : vector<2x512xf32> to vector<2x128xf32>
    %120 = math.tanh %119 : vector<2x128xf32>
    %121 = vector.extract_strided_slice %98 {offsets = [0, 384], sizes = [2, 128], strides = [1, 1]} : vector<2x512xf32> to vector<2x128xf32>
    %122 = arith.negf %121 : vector<2x128xf32>
    %123 = math.exp %122 : vector<2x128xf32>
    %cst_52 = arith.constant 1.000000e+00 : f32
    %124 = vector.broadcast %cst_52 : f32 to vector<2x128xf32>
    %125 = arith.addf %124, %123 : vector<2x128xf32>
    %126 = arith.divf %124, %125 : vector<2x128xf32>
    %127 = arith.mulf %118, %55 : vector<2x128xf32>
    %128 = arith.mulf %112, %120 : vector<2x128xf32>
    %129 = arith.addf %127, %128 : vector<2x128xf32>
    %130 = math.tanh %129 : vector<2x128xf32>
    %131 = arith.mulf %126, %130 : vector<2x128xf32>
    %132 = vector.extract_strided_slice %106 {offsets = [0, 0], sizes = [2, 128], strides = [1, 1]} : vector<2x512xf32> to vector<2x128xf32>
    %133 = arith.negf %132 : vector<2x128xf32>
    %134 = math.exp %133 : vector<2x128xf32>
    %cst_53 = arith.constant 1.000000e+00 : f32
    %135 = vector.broadcast %cst_53 : f32 to vector<2x128xf32>
    %136 = arith.addf %135, %134 : vector<2x128xf32>
    %137 = arith.divf %135, %136 : vector<2x128xf32>
    %138 = vector.extract_strided_slice %106 {offsets = [0, 128], sizes = [2, 128], strides = [1, 1]} : vector<2x512xf32> to vector<2x128xf32>
    %139 = arith.negf %138 : vector<2x128xf32>
    %140 = math.exp %139 : vector<2x128xf32>
    %cst_54 = arith.constant 1.000000e+00 : f32
    %141 = vector.broadcast %cst_54 : f32 to vector<2x128xf32>
    %142 = arith.addf %141, %140 : vector<2x128xf32>
    %143 = arith.divf %141, %142 : vector<2x128xf32>
    %144 = vector.extract_strided_slice %106 {offsets = [0, 256], sizes = [2, 128], strides = [1, 1]} : vector<2x512xf32> to vector<2x128xf32>
    %145 = math.tanh %144 : vector<2x128xf32>
    %146 = vector.extract_strided_slice %106 {offsets = [0, 384], sizes = [2, 128], strides = [1, 1]} : vector<2x512xf32> to vector<2x128xf32>
    %147 = arith.negf %146 : vector<2x128xf32>
    %148 = math.exp %147 : vector<2x128xf32>
    %cst_55 = arith.constant 1.000000e+00 : f32
    %149 = vector.broadcast %cst_55 : f32 to vector<2x128xf32>
    %150 = arith.addf %149, %148 : vector<2x128xf32>
    %151 = arith.divf %149, %150 : vector<2x128xf32>
    %152 = arith.mulf %143, %80 : vector<2x128xf32>
    %153 = arith.mulf %137, %145 : vector<2x128xf32>
    %154 = arith.addf %152, %153 : vector<2x128xf32>
    %155 = math.tanh %154 : vector<2x128xf32>
    %156 = arith.mulf %151, %155 : vector<2x128xf32>
    %157 = arith.index_cast %c1_i32 : i32 to index
    %c0_56 = arith.constant 0 : index
    %c0_57 = arith.constant 0 : index
    %158 = vector.load %arg13[%157, %c0_56, %c0_57] : memref<8x2x128xf32, #tpu.memory_space<vmem>>, vector<1x2x128xf32>
    %159 = vector.shape_cast %158 : vector<1x2x128xf32> to vector<2x128xf32>
    %160 = vector.shape_cast %131 : vector<2x128xf32> to vector<1x2x128xf32>
    tpu.vector_store %arg13[%157, %c0_56, %c0_57], %160 {strides = array<i32>} : memref<8x2x128xf32, #tpu.memory_space<vmem>>, vector<1x2x128xf32>,
    %c7_i32_58 = arith.constant 7 : i32
    %161 = arith.subi %c7_i32_58, %c1_i32 : i32
    %162 = arith.index_cast %161 : i32 to index
    %c0_59 = arith.constant 0 : index
    %c0_60 = arith.constant 0 : index
    %163 = vector.load %arg14[%162, %c0_59, %c0_60] : memref<8x2x128xf32, #tpu.memory_space<vmem>>, vector<1x2x128xf32>
    %164 = vector.shape_cast %163 : vector<1x2x128xf32> to vector<2x128xf32>
    %165 = vector.shape_cast %156 : vector<2x128xf32> to vector<1x2x128xf32>
    tpu.vector_store %arg14[%162, %c0_59, %c0_60], %165 {strides = array<i32>} : memref<8x2x128xf32, #tpu.memory_space<vmem>>, vector<1x2x128xf32>,
    %c2_i32 = arith.constant 2 : i32
    %166 = arith.index_cast %c2_i32 : i32 to index
    %c0_61 = arith.constant 0 : index
    %c0_62 = arith.constant 0 : index
    %167 = vector.load %arg11[%166, %c0_61, %c0_62] : memref<8x2x512xf32, #tpu.memory_space<vmem>>, vector<1x2x512xf32>
    %168 = vector.shape_cast %167 : vector<1x2x512xf32> to vector<2x512xf32>
    %169 = arith.truncf %131 : vector<2x128xf32> to vector<2x128xbf16>
    %c0_63 = arith.constant 0 : index
    %c0_64 = arith.constant 0 : index
    %170 = vector.load %arg2[%c0_63, %c0_64] : memref<128x512xbf16, #tpu.memory_space<vmem>>, vector<128x512xbf16>
    %cst_65 = arith.constant dense<0.000000e+00> : vector<2x512xf32>
    %171 = tpu.matmul %169, %170, %cst_65 {dimension_numbers = #tpu.dot_dimension_numbers<[1], [0], [0], [1], [0, 0, 1, 1], [], []>} : vector<2x128xbf16>, vector<128x512xbf16>, vector<2x512xf32> -> vector<2x512xf32>
    %172 = arith.addf %168, %171 : vector<2x512xf32>
    %c7_i32_66 = arith.constant 7 : i32
    %173 = arith.subi %c7_i32_66, %c2_i32 : i32
    %174 = arith.index_cast %173 : i32 to index
    %c0_67 = arith.constant 0 : index
    %c0_68 = arith.constant 0 : index
    %175 = vector.load %arg12[%174, %c0_67, %c0_68] : memref<8x2x512xf32, #tpu.memory_space<vmem>>, vector<1x2x512xf32>
    %176 = vector.shape_cast %175 : vector<1x2x512xf32> to vector<2x512xf32>
    %177 = arith.truncf %156 : vector<2x128xf32> to vector<2x128xbf16>
    %c0_69 = arith.constant 0 : index
    %c0_70 = arith.constant 0 : index
    %178 = vector.load %arg5[%c0_69, %c0_70] : memref<128x512xbf16, #tpu.memory_space<vmem>>, vector<128x512xbf16>
    %cst_71 = arith.constant dense<0.000000e+00> : vector<2x512xf32>
    %179 = tpu.matmul %177, %178, %cst_71 {dimension_numbers = #tpu.dot_dimension_numbers<[1], [0], [0], [1], [0, 0, 1, 1], [], []>} : vector<2x128xbf16>, vector<128x512xbf16>, vector<2x512xf32> -> vector<2x512xf32>
    %180 = arith.addf %176, %179 : vector<2x512xf32>
    %181 = vector.extract_strided_slice %172 {offsets = [0, 0], sizes = [2, 128], strides = [1, 1]} : vector<2x512xf32> to vector<2x128xf32>
    %182 = arith.negf %181 : vector<2x128xf32>
    %183 = math.exp %182 : vector<2x128xf32>
    %cst_72 = arith.constant 1.000000e+00 : f32
    %184 = vector.broadcast %cst_72 : f32 to vector<2x128xf32>
    %185 = arith.addf %184, %183 : vector<2x128xf32>
    %186 = arith.divf %184, %185 : vector<2x128xf32>
    %187 = vector.extract_strided_slice %172 {offsets = [0, 128], sizes = [2, 128], strides = [1, 1]} : vector<2x512xf32> to vector<2x128xf32>
    %188 = arith.negf %187 : vector<2x128xf32>
    %189 = math.exp %188 : vector<2x128xf32>
    %cst_73 = arith.constant 1.000000e+00 : f32
    %190 = vector.broadcast %cst_73 : f32 to vector<2x128xf32>
    %191 = arith.addf %190, %189 : vector<2x128xf32>
    %192 = arith.divf %190, %191 : vector<2x128xf32>
    %193 = vector.extract_strided_slice %172 {offsets = [0, 256], sizes = [2, 128], strides = [1, 1]} : vector<2x512xf32> to vector<2x128xf32>
    %194 = math.tanh %193 : vector<2x128xf32>
    %195 = vector.extract_strided_slice %172 {offsets = [0, 384], sizes = [2, 128], strides = [1, 1]} : vector<2x512xf32> to vector<2x128xf32>
    %196 = arith.negf %195 : vector<2x128xf32>
    %197 = math.exp %196 : vector<2x128xf32>
    %cst_74 = arith.constant 1.000000e+00 : f32
    %198 = vector.broadcast %cst_74 : f32 to vector<2x128xf32>
    %199 = arith.addf %198, %197 : vector<2x128xf32>
    %200 = arith.divf %198, %199 : vector<2x128xf32>
    %201 = arith.mulf %192, %129 : vector<2x128xf32>
    %202 = arith.mulf %186, %194 : vector<2x128xf32>
    %203 = arith.addf %201, %202 : vector<2x128xf32>
    %204 = math.tanh %203 : vector<2x128xf32>
    %205 = arith.mulf %200, %204 : vector<2x128xf32>
    %206 = vector.extract_strided_slice %180 {offsets = [0, 0], sizes = [2, 128], strides = [1, 1]} : vector<2x512xf32> to vector<2x128xf32>
    %207 = arith.negf %206 : vector<2x128xf32>
    %208 = math.exp %207 : vector<2x128xf32>
    %cst_75 = arith.constant 1.000000e+00 : f32
    %209 = vector.broadcast %cst_75 : f32 to vector<2x128xf32>
    %210 = arith.addf %209, %208 : vector<2x128xf32>
    %211 = arith.divf %209, %210 : vector<2x128xf32>
    %212 = vector.extract_strided_slice %180 {offsets = [0, 128], sizes = [2, 128], strides = [1, 1]} : vector<2x512xf32> to vector<2x128xf32>
    %213 = arith.negf %212 : vector<2x128xf32>
    %214 = math.exp %213 : vector<2x128xf32>
    %cst_76 = arith.constant 1.000000e+00 : f32
    %215 = vector.broadcast %cst_76 : f32 to vector<2x128xf32>
    %216 = arith.addf %215, %214 : vector<2x128xf32>
    %217 = arith.divf %215, %216 : vector<2x128xf32>
    %218 = vector.extract_strided_slice %180 {offsets = [0, 256], sizes = [2, 128], strides = [1, 1]} : vector<2x512xf32> to vector<2x128xf32>
    %219 = math.tanh %218 : vector<2x128xf32>
    %220 = vector.extract_strided_slice %180 {offsets = [0, 384], sizes = [2, 128], strides = [1, 1]} : vector<2x512xf32> to vector<2x128xf32>
    %221 = arith.negf %220 : vector<2x128xf32>
    %222 = math.exp %221 : vector<2x128xf32>
    %cst_77 = arith.constant 1.000000e+00 : f32
    %223 = vector.broadcast %cst_77 : f32 to vector<2x128xf32>
    %224 = arith.addf %223, %222 : vector<2x128xf32>
    %225 = arith.divf %223, %224 : vector<2x128xf32>
    %226 = arith.mulf %217, %154 : vector<2x128xf32>
    %227 = arith.mulf %211, %219 : vector<2x128xf32>
    %228 = arith.addf %226, %227 : vector<2x128xf32>
    %229 = math.tanh %228 : vector<2x128xf32>
    %230 = arith.mulf %225, %229 : vector<2x128xf32>
    %231 = arith.index_cast %c2_i32 : i32 to index
    %c0_78 = arith.constant 0 : index
    %c0_79 = arith.constant 0 : index
    %232 = vector.load %arg13[%231, %c0_78, %c0_79] : memref<8x2x128xf32, #tpu.memory_space<vmem>>, vector<1x2x128xf32>
    %233 = vector.shape_cast %232 : vector<1x2x128xf32> to vector<2x128xf32>
    %234 = vector.shape_cast %205 : vector<2x128xf32> to vector<1x2x128xf32>
    tpu.vector_store %arg13[%231, %c0_78, %c0_79], %234 {strides = array<i32>} : memref<8x2x128xf32, #tpu.memory_space<vmem>>, vector<1x2x128xf32>,
    %c7_i32_80 = arith.constant 7 : i32
    %235 = arith.subi %c7_i32_80, %c2_i32 : i32
    %236 = arith.index_cast %235 : i32 to index
    %c0_81 = arith.constant 0 : index
    %c0_82 = arith.constant 0 : index
    %237 = vector.load %arg14[%236, %c0_81, %c0_82] : memref<8x2x128xf32, #tpu.memory_space<vmem>>, vector<1x2x128xf32>
    %238 = vector.shape_cast %237 : vector<1x2x128xf32> to vector<2x128xf32>
    %239 = vector.shape_cast %230 : vector<2x128xf32> to vector<1x2x128xf32>
    tpu.vector_store %arg14[%236, %c0_81, %c0_82], %239 {strides = array<i32>} : memref<8x2x128xf32, #tpu.memory_space<vmem>>, vector<1x2x128xf32>,
    %c3_i32 = arith.constant 3 : i32
    %240 = arith.index_cast %c3_i32 : i32 to index
    %c0_83 = arith.constant 0 : index
    %c0_84 = arith.constant 0 : index
    %241 = vector.load %arg11[%240, %c0_83, %c0_84] : memref<8x2x512xf32, #tpu.memory_space<vmem>>, vector<1x2x512xf32>
    %242 = vector.shape_cast %241 : vector<1x2x512xf32> to vector<2x512xf32>
    %243 = arith.truncf %205 : vector<2x128xf32> to vector<2x128xbf16>
    %c0_85 = arith.constant 0 : index
    %c0_86 = arith.constant 0 : index
    %244 = vector.load %arg2[%c0_85, %c0_86] : memref<128x512xbf16, #tpu.memory_space<vmem>>, vector<128x512xbf16>
    %cst_87 = arith.constant dense<0.000000e+00> : vector<2x512xf32>
    %245 = tpu.matmul %243, %244, %cst_87 {dimension_numbers = #tpu.dot_dimension_numbers<[1], [0], [0], [1], [0, 0, 1, 1], [], []>} : vector<2x128xbf16>, vector<128x512xbf16>, vector<2x512xf32> -> vector<2x512xf32>
    %246 = arith.addf %242, %245 : vector<2x512xf32>
    %c7_i32_88 = arith.constant 7 : i32
    %247 = arith.subi %c7_i32_88, %c3_i32 : i32
    %248 = arith.index_cast %247 : i32 to index
    %c0_89 = arith.constant 0 : index
    %c0_90 = arith.constant 0 : index
    %249 = vector.load %arg12[%248, %c0_89, %c0_90] : memref<8x2x512xf32, #tpu.memory_space<vmem>>, vector<1x2x512xf32>
    %250 = vector.shape_cast %249 : vector<1x2x512xf32> to vector<2x512xf32>
    %251 = arith.truncf %230 : vector<2x128xf32> to vector<2x128xbf16>
    %c0_91 = arith.constant 0 : index
    %c0_92 = arith.constant 0 : index
    %252 = vector.load %arg5[%c0_91, %c0_92] : memref<128x512xbf16, #tpu.memory_space<vmem>>, vector<128x512xbf16>
    %cst_93 = arith.constant dense<0.000000e+00> : vector<2x512xf32>
    %253 = tpu.matmul %251, %252, %cst_93 {dimension_numbers = #tpu.dot_dimension_numbers<[1], [0], [0], [1], [0, 0, 1, 1], [], []>} : vector<2x128xbf16>, vector<128x512xbf16>, vector<2x512xf32> -> vector<2x512xf32>
    %254 = arith.addf %250, %253 : vector<2x512xf32>
    %255 = vector.extract_strided_slice %246 {offsets = [0, 0], sizes = [2, 128], strides = [1, 1]} : vector<2x512xf32> to vector<2x128xf32>
    %256 = arith.negf %255 : vector<2x128xf32>
    %257 = math.exp %256 : vector<2x128xf32>
    %cst_94 = arith.constant 1.000000e+00 : f32
    %258 = vector.broadcast %cst_94 : f32 to vector<2x128xf32>
    %259 = arith.addf %258, %257 : vector<2x128xf32>
    %260 = arith.divf %258, %259 : vector<2x128xf32>
    %261 = vector.extract_strided_slice %246 {offsets = [0, 128], sizes = [2, 128], strides = [1, 1]} : vector<2x512xf32> to vector<2x128xf32>
    %262 = arith.negf %261 : vector<2x128xf32>
    %263 = math.exp %262 : vector<2x128xf32>
    %cst_95 = arith.constant 1.000000e+00 : f32
    %264 = vector.broadcast %cst_95 : f32 to vector<2x128xf32>
    %265 = arith.addf %264, %263 : vector<2x128xf32>
    %266 = arith.divf %264, %265 : vector<2x128xf32>
    %267 = vector.extract_strided_slice %246 {offsets = [0, 256], sizes = [2, 128], strides = [1, 1]} : vector<2x512xf32> to vector<2x128xf32>
    %268 = math.tanh %267 : vector<2x128xf32>
    %269 = vector.extract_strided_slice %246 {offsets = [0, 384], sizes = [2, 128], strides = [1, 1]} : vector<2x512xf32> to vector<2x128xf32>
    %270 = arith.negf %269 : vector<2x128xf32>
    %271 = math.exp %270 : vector<2x128xf32>
    %cst_96 = arith.constant 1.000000e+00 : f32
    %272 = vector.broadcast %cst_96 : f32 to vector<2x128xf32>
    %273 = arith.addf %272, %271 : vector<2x128xf32>
    %274 = arith.divf %272, %273 : vector<2x128xf32>
    %275 = arith.mulf %266, %203 : vector<2x128xf32>
    %276 = arith.mulf %260, %268 : vector<2x128xf32>
    %277 = arith.addf %275, %276 : vector<2x128xf32>
    %278 = math.tanh %277 : vector<2x128xf32>
    %279 = arith.mulf %274, %278 : vector<2x128xf32>
    %280 = vector.extract_strided_slice %254 {offsets = [0, 0], sizes = [2, 128], strides = [1, 1]} : vector<2x512xf32> to vector<2x128xf32>
    %281 = arith.negf %280 : vector<2x128xf32>
    %282 = math.exp %281 : vector<2x128xf32>
    %cst_97 = arith.constant 1.000000e+00 : f32
    %283 = vector.broadcast %cst_97 : f32 to vector<2x128xf32>
    %284 = arith.addf %283, %282 : vector<2x128xf32>
    %285 = arith.divf %283, %284 : vector<2x128xf32>
    %286 = vector.extract_strided_slice %254 {offsets = [0, 128], sizes = [2, 128], strides = [1, 1]} : vector<2x512xf32> to vector<2x128xf32>
    %287 = arith.negf %286 : vector<2x128xf32>
    %288 = math.exp %287 : vector<2x128xf32>
    %cst_98 = arith.constant 1.000000e+00 : f32
    %289 = vector.broadcast %cst_98 : f32 to vector<2x128xf32>
    %290 = arith.addf %289, %288 : vector<2x128xf32>
    %291 = arith.divf %289, %290 : vector<2x128xf32>
    %292 = vector.extract_strided_slice %254 {offsets = [0, 256], sizes = [2, 128], strides = [1, 1]} : vector<2x512xf32> to vector<2x128xf32>
    %293 = math.tanh %292 : vector<2x128xf32>
    %294 = vector.extract_strided_slice %254 {offsets = [0, 384], sizes = [2, 128], strides = [1, 1]} : vector<2x512xf32> to vector<2x128xf32>
    %295 = arith.negf %294 : vector<2x128xf32>
    %296 = math.exp %295 : vector<2x128xf32>
    %cst_99 = arith.constant 1.000000e+00 : f32
    %297 = vector.broadcast %cst_99 : f32 to vector<2x128xf32>
    %298 = arith.addf %297, %296 : vector<2x128xf32>
    %299 = arith.divf %297, %298 : vector<2x128xf32>
    %300 = arith.mulf %291, %228 : vector<2x128xf32>
    %301 = arith.mulf %285, %293 : vector<2x128xf32>
    %302 = arith.addf %300, %301 : vector<2x128xf32>
    %303 = math.tanh %302 : vector<2x128xf32>
    %304 = arith.mulf %299, %303 : vector<2x128xf32>
    %305 = arith.index_cast %c3_i32 : i32 to index
    %c0_100 = arith.constant 0 : index
    %c0_101 = arith.constant 0 : index
    %306 = vector.load %arg13[%305, %c0_100, %c0_101] : memref<8x2x128xf32, #tpu.memory_space<vmem>>, vector<1x2x128xf32>
    %307 = vector.shape_cast %306 : vector<1x2x128xf32> to vector<2x128xf32>
    %308 = vector.shape_cast %279 : vector<2x128xf32> to vector<1x2x128xf32>
    tpu.vector_store %arg13[%305, %c0_100, %c0_101], %308 {strides = array<i32>} : memref<8x2x128xf32, #tpu.memory_space<vmem>>, vector<1x2x128xf32>,
    %c7_i32_102 = arith.constant 7 : i32
    %309 = arith.subi %c7_i32_102, %c3_i32 : i32
    %310 = arith.index_cast %309 : i32 to index
    %c0_103 = arith.constant 0 : index
    %c0_104 = arith.constant 0 : index
    %311 = vector.load %arg14[%310, %c0_103, %c0_104] : memref<8x2x128xf32, #tpu.memory_space<vmem>>, vector<1x2x128xf32>
    %312 = vector.shape_cast %311 : vector<1x2x128xf32> to vector<2x128xf32>
    %313 = vector.shape_cast %304 : vector<2x128xf32> to vector<1x2x128xf32>
    tpu.vector_store %arg14[%310, %c0_103, %c0_104], %313 {strides = array<i32>} : memref<8x2x128xf32, #tpu.memory_space<vmem>>, vector<1x2x128xf32>,
    %c4_i32 = arith.constant 4 : i32
    %314 = arith.index_cast %c4_i32 : i32 to index
    %c0_105 = arith.constant 0 : index
    %c0_106 = arith.constant 0 : index
    %315 = vector.load %arg11[%314, %c0_105, %c0_106] : memref<8x2x512xf32, #tpu.memory_space<vmem>>, vector<1x2x512xf32>
    %316 = vector.shape_cast %315 : vector<1x2x512xf32> to vector<2x512xf32>
    %317 = arith.truncf %279 : vector<2x128xf32> to vector<2x128xbf16>
    %c0_107 = arith.constant 0 : index
    %c0_108 = arith.constant 0 : index
    %318 = vector.load %arg2[%c0_107, %c0_108] : memref<128x512xbf16, #tpu.memory_space<vmem>>, vector<128x512xbf16>
    %cst_109 = arith.constant dense<0.000000e+00> : vector<2x512xf32>
    %319 = tpu.matmul %317, %318, %cst_109 {dimension_numbers = #tpu.dot_dimension_numbers<[1], [0], [0], [1], [0, 0, 1, 1], [], []>} : vector<2x128xbf16>, vector<128x512xbf16>, vector<2x512xf32> -> vector<2x512xf32>
    %320 = arith.addf %316, %319 : vector<2x512xf32>
    %c7_i32_110 = arith.constant 7 : i32
    %321 = arith.subi %c7_i32_110, %c4_i32 : i32
    %322 = arith.index_cast %321 : i32 to index
    %c0_111 = arith.constant 0 : index
    %c0_112 = arith.constant 0 : index
    %323 = vector.load %arg12[%322, %c0_111, %c0_112] : memref<8x2x512xf32, #tpu.memory_space<vmem>>, vector<1x2x512xf32>
    %324 = vector.shape_cast %323 : vector<1x2x512xf32> to vector<2x512xf32>
    %325 = arith.truncf %304 : vector<2x128xf32> to vector<2x128xbf16>
    %c0_113 = arith.constant 0 : index
    %c0_114 = arith.constant 0 : index
    %326 = vector.load %arg5[%c0_113, %c0_114] : memref<128x512xbf16, #tpu.memory_space<vmem>>, vector<128x512xbf16>
    %cst_115 = arith.constant dense<0.000000e+00> : vector<2x512xf32>
    %327 = tpu.matmul %325, %326, %cst_115 {dimension_numbers = #tpu.dot_dimension_numbers<[1], [0], [0], [1], [0, 0, 1, 1], [], []>} : vector<2x128xbf16>, vector<128x512xbf16>, vector<2x512xf32> -> vector<2x512xf32>
    %328 = arith.addf %324, %327 : vector<2x512xf32>
    %329 = vector.extract_strided_slice %320 {offsets = [0, 0], sizes = [2, 128], strides = [1, 1]} : vector<2x512xf32> to vector<2x128xf32>
    %330 = arith.negf %329 : vector<2x128xf32>
    %331 = math.exp %330 : vector<2x128xf32>
    %cst_116 = arith.constant 1.000000e+00 : f32
    %332 = vector.broadcast %cst_116 : f32 to vector<2x128xf32>
    %333 = arith.addf %332, %331 : vector<2x128xf32>
    %334 = arith.divf %332, %333 : vector<2x128xf32>
    %335 = vector.extract_strided_slice %320 {offsets = [0, 128], sizes = [2, 128], strides = [1, 1]} : vector<2x512xf32> to vector<2x128xf32>
    %336 = arith.negf %335 : vector<2x128xf32>
    %337 = math.exp %336 : vector<2x128xf32>
    %cst_117 = arith.constant 1.000000e+00 : f32
    %338 = vector.broadcast %cst_117 : f32 to vector<2x128xf32>
    %339 = arith.addf %338, %337 : vector<2x128xf32>
    %340 = arith.divf %338, %339 : vector<2x128xf32>
    %341 = vector.extract_strided_slice %320 {offsets = [0, 256], sizes = [2, 128], strides = [1, 1]} : vector<2x512xf32> to vector<2x128xf32>
    %342 = math.tanh %341 : vector<2x128xf32>
    %343 = vector.extract_strided_slice %320 {offsets = [0, 384], sizes = [2, 128], strides = [1, 1]} : vector<2x512xf32> to vector<2x128xf32>
    %344 = arith.negf %343 : vector<2x128xf32>
    %345 = math.exp %344 : vector<2x128xf32>
    %cst_118 = arith.constant 1.000000e+00 : f32
    %346 = vector.broadcast %cst_118 : f32 to vector<2x128xf32>
    %347 = arith.addf %346, %345 : vector<2x128xf32>
    %348 = arith.divf %346, %347 : vector<2x128xf32>
    %349 = arith.mulf %340, %277 : vector<2x128xf32>
    %350 = arith.mulf %334, %342 : vector<2x128xf32>
    %351 = arith.addf %349, %350 : vector<2x128xf32>
    %352 = math.tanh %351 : vector<2x128xf32>
    %353 = arith.mulf %348, %352 : vector<2x128xf32>
    %354 = vector.extract_strided_slice %328 {offsets = [0, 0], sizes = [2, 128], strides = [1, 1]} : vector<2x512xf32> to vector<2x128xf32>
    %355 = arith.negf %354 : vector<2x128xf32>
    %356 = math.exp %355 : vector<2x128xf32>
    %cst_119 = arith.constant 1.000000e+00 : f32
    %357 = vector.broadcast %cst_119 : f32 to vector<2x128xf32>
    %358 = arith.addf %357, %356 : vector<2x128xf32>
    %359 = arith.divf %357, %358 : vector<2x128xf32>
    %360 = vector.extract_strided_slice %328 {offsets = [0, 128], sizes = [2, 128], strides = [1, 1]} : vector<2x512xf32> to vector<2x128xf32>
    %361 = arith.negf %360 : vector<2x128xf32>
    %362 = math.exp %361 : vector<2x128xf32>
    %cst_120 = arith.constant 1.000000e+00 : f32
    %363 = vector.broadcast %cst_120 : f32 to vector<2x128xf32>
    %364 = arith.addf %363, %362 : vector<2x128xf32>
    %365 = arith.divf %363, %364 : vector<2x128xf32>
    %366 = vector.extract_strided_slice %328 {offsets = [0, 256], sizes = [2, 128], strides = [1, 1]} : vector<2x512xf32> to vector<2x128xf32>
    %367 = math.tanh %366 : vector<2x128xf32>
    %368 = vector.extract_strided_slice %328 {offsets = [0, 384], sizes = [2, 128], strides = [1, 1]} : vector<2x512xf32> to vector<2x128xf32>
    %369 = arith.negf %368 : vector<2x128xf32>
    %370 = math.exp %369 : vector<2x128xf32>
    %cst_121 = arith.constant 1.000000e+00 : f32
    %371 = vector.broadcast %cst_121 : f32 to vector<2x128xf32>
    %372 = arith.addf %371, %370 : vector<2x128xf32>
    %373 = arith.divf %371, %372 : vector<2x128xf32>
    %374 = arith.mulf %365, %302 : vector<2x128xf32>
    %375 = arith.mulf %359, %367 : vector<2x128xf32>
    %376 = arith.addf %374, %375 : vector<2x128xf32>
    %377 = math.tanh %376 : vector<2x128xf32>
    %378 = arith.mulf %373, %377 : vector<2x128xf32>
    %379 = arith.index_cast %c4_i32 : i32 to index
    %c0_122 = arith.constant 0 : index
    %c0_123 = arith.constant 0 : index
    %380 = vector.load %arg13[%379, %c0_122, %c0_123] : memref<8x2x128xf32, #tpu.memory_space<vmem>>, vector<1x2x128xf32>
    %381 = vector.shape_cast %380 : vector<1x2x128xf32> to vector<2x128xf32>
    %382 = vector.shape_cast %353 : vector<2x128xf32> to vector<1x2x128xf32>
    tpu.vector_store %arg13[%379, %c0_122, %c0_123], %382 {strides = array<i32>} : memref<8x2x128xf32, #tpu.memory_space<vmem>>, vector<1x2x128xf32>,
    %c7_i32_124 = arith.constant 7 : i32
    %383 = arith.subi %c7_i32_124, %c4_i32 : i32
    %384 = arith.index_cast %383 : i32 to index
    %c0_125 = arith.constant 0 : index
    %c0_126 = arith.constant 0 : index
    %385 = vector.load %arg14[%384, %c0_125, %c0_126] : memref<8x2x128xf32, #tpu.memory_space<vmem>>, vector<1x2x128xf32>
    %386 = vector.shape_cast %385 : vector<1x2x128xf32> to vector<2x128xf32>
    %387 = vector.shape_cast %378 : vector<2x128xf32> to vector<1x2x128xf32>
    tpu.vector_store %arg14[%384, %c0_125, %c0_126], %387 {strides = array<i32>} : memref<8x2x128xf32, #tpu.memory_space<vmem>>, vector<1x2x128xf32>,
    %c5_i32 = arith.constant 5 : i32
    %388 = arith.index_cast %c5_i32 : i32 to index
    %c0_127 = arith.constant 0 : index
    %c0_128 = arith.constant 0 : index
    %389 = vector.load %arg11[%388, %c0_127, %c0_128] : memref<8x2x512xf32, #tpu.memory_space<vmem>>, vector<1x2x512xf32>
    %390 = vector.shape_cast %389 : vector<1x2x512xf32> to vector<2x512xf32>
    %391 = arith.truncf %353 : vector<2x128xf32> to vector<2x128xbf16>
    %c0_129 = arith.constant 0 : index
    %c0_130 = arith.constant 0 : index
    %392 = vector.load %arg2[%c0_129, %c0_130] : memref<128x512xbf16, #tpu.memory_space<vmem>>, vector<128x512xbf16>
    %cst_131 = arith.constant dense<0.000000e+00> : vector<2x512xf32>
    %393 = tpu.matmul %391, %392, %cst_131 {dimension_numbers = #tpu.dot_dimension_numbers<[1], [0], [0], [1], [0, 0, 1, 1], [], []>} : vector<2x128xbf16>, vector<128x512xbf16>, vector<2x512xf32> -> vector<2x512xf32>
    %394 = arith.addf %390, %393 : vector<2x512xf32>
    %c7_i32_132 = arith.constant 7 : i32
    %395 = arith.subi %c7_i32_132, %c5_i32 : i32
    %396 = arith.index_cast %395 : i32 to index
    %c0_133 = arith.constant 0 : index
    %c0_134 = arith.constant 0 : index
    %397 = vector.load %arg12[%396, %c0_133, %c0_134] : memref<8x2x512xf32, #tpu.memory_space<vmem>>, vector<1x2x512xf32>
    %398 = vector.shape_cast %397 : vector<1x2x512xf32> to vector<2x512xf32>
    %399 = arith.truncf %378 : vector<2x128xf32> to vector<2x128xbf16>
    %c0_135 = arith.constant 0 : index
    %c0_136 = arith.constant 0 : index
    %400 = vector.load %arg5[%c0_135, %c0_136] : memref<128x512xbf16, #tpu.memory_space<vmem>>, vector<128x512xbf16>
    %cst_137 = arith.constant dense<0.000000e+00> : vector<2x512xf32>
    %401 = tpu.matmul %399, %400, %cst_137 {dimension_numbers = #tpu.dot_dimension_numbers<[1], [0], [0], [1], [0, 0, 1, 1], [], []>} : vector<2x128xbf16>, vector<128x512xbf16>, vector<2x512xf32> -> vector<2x512xf32>
    %402 = arith.addf %398, %401 : vector<2x512xf32>
    %403 = vector.extract_strided_slice %394 {offsets = [0, 0], sizes = [2, 128], strides = [1, 1]} : vector<2x512xf32> to vector<2x128xf32>
    %404 = arith.negf %403 : vector<2x128xf32>
    %405 = math.exp %404 : vector<2x128xf32>
    %cst_138 = arith.constant 1.000000e+00 : f32
    %406 = vector.broadcast %cst_138 : f32 to vector<2x128xf32>
    %407 = arith.addf %406, %405 : vector<2x128xf32>
    %408 = arith.divf %406, %407 : vector<2x128xf32>
    %409 = vector.extract_strided_slice %394 {offsets = [0, 128], sizes = [2, 128], strides = [1, 1]} : vector<2x512xf32> to vector<2x128xf32>
    %410 = arith.negf %409 : vector<2x128xf32>
    %411 = math.exp %410 : vector<2x128xf32>
    %cst_139 = arith.constant 1.000000e+00 : f32
    %412 = vector.broadcast %cst_139 : f32 to vector<2x128xf32>
    %413 = arith.addf %412, %411 : vector<2x128xf32>
    %414 = arith.divf %412, %413 : vector<2x128xf32>
    %415 = vector.extract_strided_slice %394 {offsets = [0, 256], sizes = [2, 128], strides = [1, 1]} : vector<2x512xf32> to vector<2x128xf32>
    %416 = math.tanh %415 : vector<2x128xf32>
    %417 = vector.extract_strided_slice %394 {offsets = [0, 384], sizes = [2, 128], strides = [1, 1]} : vector<2x512xf32> to vector<2x128xf32>
    %418 = arith.negf %417 : vector<2x128xf32>
    %419 = math.exp %418 : vector<2x128xf32>
    %cst_140 = arith.constant 1.000000e+00 : f32
    %420 = vector.broadcast %cst_140 : f32 to vector<2x128xf32>
    %421 = arith.addf %420, %419 : vector<2x128xf32>
    %422 = arith.divf %420, %421 : vector<2x128xf32>
    %423 = arith.mulf %414, %351 : vector<2x128xf32>
    %424 = arith.mulf %408, %416 : vector<2x128xf32>
    %425 = arith.addf %423, %424 : vector<2x128xf32>
    %426 = math.tanh %425 : vector<2x128xf32>
    %427 = arith.mulf %422, %426 : vector<2x128xf32>
    %428 = vector.extract_strided_slice %402 {offsets = [0, 0], sizes = [2, 128], strides = [1, 1]} : vector<2x512xf32> to vector<2x128xf32>
    %429 = arith.negf %428 : vector<2x128xf32>
    %430 = math.exp %429 : vector<2x128xf32>
    %cst_141 = arith.constant 1.000000e+00 : f32
    %431 = vector.broadcast %cst_141 : f32 to vector<2x128xf32>
    %432 = arith.addf %431, %430 : vector<2x128xf32>
    %433 = arith.divf %431, %432 : vector<2x128xf32>
    %434 = vector.extract_strided_slice %402 {offsets = [0, 128], sizes = [2, 128], strides = [1, 1]} : vector<2x512xf32> to vector<2x128xf32>
    %435 = arith.negf %434 : vector<2x128xf32>
    %436 = math.exp %435 : vector<2x128xf32>
    %cst_142 = arith.constant 1.000000e+00 : f32
    %437 = vector.broadcast %cst_142 : f32 to vector<2x128xf32>
    %438 = arith.addf %437, %436 : vector<2x128xf32>
    %439 = arith.divf %437, %438 : vector<2x128xf32>
    %440 = vector.extract_strided_slice %402 {offsets = [0, 256], sizes = [2, 128], strides = [1, 1]} : vector<2x512xf32> to vector<2x128xf32>
    %441 = math.tanh %440 : vector<2x128xf32>
    %442 = vector.extract_strided_slice %402 {offsets = [0, 384], sizes = [2, 128], strides = [1, 1]} : vector<2x512xf32> to vector<2x128xf32>
    %443 = arith.negf %442 : vector<2x128xf32>
    %444 = math.exp %443 : vector<2x128xf32>
    %cst_143 = arith.constant 1.000000e+00 : f32
    %445 = vector.broadcast %cst_143 : f32 to vector<2x128xf32>
    %446 = arith.addf %445, %444 : vector<2x128xf32>
    %447 = arith.divf %445, %446 : vector<2x128xf32>
    %448 = arith.mulf %439, %376 : vector<2x128xf32>
    %449 = arith.mulf %433, %441 : vector<2x128xf32>
    %450 = arith.addf %448, %449 : vector<2x128xf32>
    %451 = math.tanh %450 : vector<2x128xf32>
    %452 = arith.mulf %447, %451 : vector<2x128xf32>
    %453 = arith.index_cast %c5_i32 : i32 to index
    %c0_144 = arith.constant 0 : index
    %c0_145 = arith.constant 0 : index
    %454 = vector.load %arg13[%453, %c0_144, %c0_145] : memref<8x2x128xf32, #tpu.memory_space<vmem>>, vector<1x2x128xf32>
    %455 = vector.shape_cast %454 : vector<1x2x128xf32> to vector<2x128xf32>
    %456 = vector.shape_cast %427 : vector<2x128xf32> to vector<1x2x128xf32>
    tpu.vector_store %arg13[%453, %c0_144, %c0_145], %456 {strides = array<i32>} : memref<8x2x128xf32, #tpu.memory_space<vmem>>, vector<1x2x128xf32>,
    %c7_i32_146 = arith.constant 7 : i32
    %457 = arith.subi %c7_i32_146, %c5_i32 : i32
    %458 = arith.index_cast %457 : i32 to index
    %c0_147 = arith.constant 0 : index
    %c0_148 = arith.constant 0 : index
    %459 = vector.load %arg14[%458, %c0_147, %c0_148] : memref<8x2x128xf32, #tpu.memory_space<vmem>>, vector<1x2x128xf32>
    %460 = vector.shape_cast %459 : vector<1x2x128xf32> to vector<2x128xf32>
    %461 = vector.shape_cast %452 : vector<2x128xf32> to vector<1x2x128xf32>
    tpu.vector_store %arg14[%458, %c0_147, %c0_148], %461 {strides = array<i32>} : memref<8x2x128xf32, #tpu.memory_space<vmem>>, vector<1x2x128xf32>,
    %c6_i32 = arith.constant 6 : i32
    %462 = arith.index_cast %c6_i32 : i32 to index
    %c0_149 = arith.constant 0 : index
    %c0_150 = arith.constant 0 : index
    %463 = vector.load %arg11[%462, %c0_149, %c0_150] : memref<8x2x512xf32, #tpu.memory_space<vmem>>, vector<1x2x512xf32>
    %464 = vector.shape_cast %463 : vector<1x2x512xf32> to vector<2x512xf32>
    %465 = arith.truncf %427 : vector<2x128xf32> to vector<2x128xbf16>
    %c0_151 = arith.constant 0 : index
    %c0_152 = arith.constant 0 : index
    %466 = vector.load %arg2[%c0_151, %c0_152] : memref<128x512xbf16, #tpu.memory_space<vmem>>, vector<128x512xbf16>
    %cst_153 = arith.constant dense<0.000000e+00> : vector<2x512xf32>
    %467 = tpu.matmul %465, %466, %cst_153 {dimension_numbers = #tpu.dot_dimension_numbers<[1], [0], [0], [1], [0, 0, 1, 1], [], []>} : vector<2x128xbf16>, vector<128x512xbf16>, vector<2x512xf32> -> vector<2x512xf32>
    %468 = arith.addf %464, %467 : vector<2x512xf32>
    %c7_i32_154 = arith.constant 7 : i32
    %469 = arith.subi %c7_i32_154, %c6_i32 : i32
    %470 = arith.index_cast %469 : i32 to index
    %c0_155 = arith.constant 0 : index
    %c0_156 = arith.constant 0 : index
    %471 = vector.load %arg12[%470, %c0_155, %c0_156] : memref<8x2x512xf32, #tpu.memory_space<vmem>>, vector<1x2x512xf32>
    %472 = vector.shape_cast %471 : vector<1x2x512xf32> to vector<2x512xf32>
    %473 = arith.truncf %452 : vector<2x128xf32> to vector<2x128xbf16>
    %c0_157 = arith.constant 0 : index
    %c0_158 = arith.constant 0 : index
    %474 = vector.load %arg5[%c0_157, %c0_158] : memref<128x512xbf16, #tpu.memory_space<vmem>>, vector<128x512xbf16>
    %cst_159 = arith.constant dense<0.000000e+00> : vector<2x512xf32>
    %475 = tpu.matmul %473, %474, %cst_159 {dimension_numbers = #tpu.dot_dimension_numbers<[1], [0], [0], [1], [0, 0, 1, 1], [], []>} : vector<2x128xbf16>, vector<128x512xbf16>, vector<2x512xf32> -> vector<2x512xf32>
    %476 = arith.addf %472, %475 : vector<2x512xf32>
    %477 = vector.extract_strided_slice %468 {offsets = [0, 0], sizes = [2, 128], strides = [1, 1]} : vector<2x512xf32> to vector<2x128xf32>
    %478 = arith.negf %477 : vector<2x128xf32>
    %479 = math.exp %478 : vector<2x128xf32>
    %cst_160 = arith.constant 1.000000e+00 : f32
    %480 = vector.broadcast %cst_160 : f32 to vector<2x128xf32>
    %481 = arith.addf %480, %479 : vector<2x128xf32>
    %482 = arith.divf %480, %481 : vector<2x128xf32>
    %483 = vector.extract_strided_slice %468 {offsets = [0, 128], sizes = [2, 128], strides = [1, 1]} : vector<2x512xf32> to vector<2x128xf32>
    %484 = arith.negf %483 : vector<2x128xf32>
    %485 = math.exp %484 : vector<2x128xf32>
    %cst_161 = arith.constant 1.000000e+00 : f32
    %486 = vector.broadcast %cst_161 : f32 to vector<2x128xf32>
    %487 = arith.addf %486, %485 : vector<2x128xf32>
    %488 = arith.divf %486, %487 : vector<2x128xf32>
    %489 = vector.extract_strided_slice %468 {offsets = [0, 256], sizes = [2, 128], strides = [1, 1]} : vector<2x512xf32> to vector<2x128xf32>
    %490 = math.tanh %489 : vector<2x128xf32>
    %491 = vector.extract_strided_slice %468 {offsets = [0, 384], sizes = [2, 128], strides = [1, 1]} : vector<2x512xf32> to vector<2x128xf32>
    %492 = arith.negf %491 : vector<2x128xf32>
    %493 = math.exp %492 : vector<2x128xf32>
    %cst_162 = arith.constant 1.000000e+00 : f32
    %494 = vector.broadcast %cst_162 : f32 to vector<2x128xf32>
    %495 = arith.addf %494, %493 : vector<2x128xf32>
    %496 = arith.divf %494, %495 : vector<2x128xf32>
    %497 = arith.mulf %488, %425 : vector<2x128xf32>
    %498 = arith.mulf %482, %490 : vector<2x128xf32>
    %499 = arith.addf %497, %498 : vector<2x128xf32>
    %500 = math.tanh %499 : vector<2x128xf32>
    %501 = arith.mulf %496, %500 : vector<2x128xf32>
    %502 = vector.extract_strided_slice %476 {offsets = [0, 0], sizes = [2, 128], strides = [1, 1]} : vector<2x512xf32> to vector<2x128xf32>
    %503 = arith.negf %502 : vector<2x128xf32>
    %504 = math.exp %503 : vector<2x128xf32>
    %cst_163 = arith.constant 1.000000e+00 : f32
    %505 = vector.broadcast %cst_163 : f32 to vector<2x128xf32>
    %506 = arith.addf %505, %504 : vector<2x128xf32>
    %507 = arith.divf %505, %506 : vector<2x128xf32>
    %508 = vector.extract_strided_slice %476 {offsets = [0, 128], sizes = [2, 128], strides = [1, 1]} : vector<2x512xf32> to vector<2x128xf32>
    %509 = arith.negf %508 : vector<2x128xf32>
    %510 = math.exp %509 : vector<2x128xf32>
    %cst_164 = arith.constant 1.000000e+00 : f32
    %511 = vector.broadcast %cst_164 : f32 to vector<2x128xf32>
    %512 = arith.addf %511, %510 : vector<2x128xf32>
    %513 = arith.divf %511, %512 : vector<2x128xf32>
    %514 = vector.extract_strided_slice %476 {offsets = [0, 256], sizes = [2, 128], strides = [1, 1]} : vector<2x512xf32> to vector<2x128xf32>
    %515 = math.tanh %514 : vector<2x128xf32>
    %516 = vector.extract_strided_slice %476 {offsets = [0, 384], sizes = [2, 128], strides = [1, 1]} : vector<2x512xf32> to vector<2x128xf32>
    %517 = arith.negf %516 : vector<2x128xf32>
    %518 = math.exp %517 : vector<2x128xf32>
    %cst_165 = arith.constant 1.000000e+00 : f32
    %519 = vector.broadcast %cst_165 : f32 to vector<2x128xf32>
    %520 = arith.addf %519, %518 : vector<2x128xf32>
    %521 = arith.divf %519, %520 : vector<2x128xf32>
    %522 = arith.mulf %513, %450 : vector<2x128xf32>
    %523 = arith.mulf %507, %515 : vector<2x128xf32>
    %524 = arith.addf %522, %523 : vector<2x128xf32>
    %525 = math.tanh %524 : vector<2x128xf32>
    %526 = arith.mulf %521, %525 : vector<2x128xf32>
    %527 = arith.index_cast %c6_i32 : i32 to index
    %c0_166 = arith.constant 0 : index
    %c0_167 = arith.constant 0 : index
    %528 = vector.load %arg13[%527, %c0_166, %c0_167] : memref<8x2x128xf32, #tpu.memory_space<vmem>>, vector<1x2x128xf32>
    %529 = vector.shape_cast %528 : vector<1x2x128xf32> to vector<2x128xf32>
    %530 = vector.shape_cast %501 : vector<2x128xf32> to vector<1x2x128xf32>
    tpu.vector_store %arg13[%527, %c0_166, %c0_167], %530 {strides = array<i32>} : memref<8x2x128xf32, #tpu.memory_space<vmem>>, vector<1x2x128xf32>,
    %c7_i32_168 = arith.constant 7 : i32
    %531 = arith.subi %c7_i32_168, %c6_i32 : i32
    %532 = arith.index_cast %531 : i32 to index
    %c0_169 = arith.constant 0 : index
    %c0_170 = arith.constant 0 : index
    %533 = vector.load %arg14[%532, %c0_169, %c0_170] : memref<8x2x128xf32, #tpu.memory_space<vmem>>, vector<1x2x128xf32>
    %534 = vector.shape_cast %533 : vector<1x2x128xf32> to vector<2x128xf32>
    %535 = vector.shape_cast %526 : vector<2x128xf32> to vector<1x2x128xf32>
    tpu.vector_store %arg14[%532, %c0_169, %c0_170], %535 {strides = array<i32>} : memref<8x2x128xf32, #tpu.memory_space<vmem>>, vector<1x2x128xf32>,
    %c7_i32_171 = arith.constant 7 : i32
    %536 = arith.index_cast %c7_i32_171 : i32 to index
    %c0_172 = arith.constant 0 : index
    %c0_173 = arith.constant 0 : index
    %537 = vector.load %arg11[%536, %c0_172, %c0_173] : memref<8x2x512xf32, #tpu.memory_space<vmem>>, vector<1x2x512xf32>
    %538 = vector.shape_cast %537 : vector<1x2x512xf32> to vector<2x512xf32>
    %539 = arith.truncf %501 : vector<2x128xf32> to vector<2x128xbf16>
    %c0_174 = arith.constant 0 : index
    %c0_175 = arith.constant 0 : index
    %540 = vector.load %arg2[%c0_174, %c0_175] : memref<128x512xbf16, #tpu.memory_space<vmem>>, vector<128x512xbf16>
    %cst_176 = arith.constant dense<0.000000e+00> : vector<2x512xf32>
    %541 = tpu.matmul %539, %540, %cst_176 {dimension_numbers = #tpu.dot_dimension_numbers<[1], [0], [0], [1], [0, 0, 1, 1], [], []>} : vector<2x128xbf16>, vector<128x512xbf16>, vector<2x512xf32> -> vector<2x512xf32>
    %542 = arith.addf %538, %541 : vector<2x512xf32>
    %c7_i32_177 = arith.constant 7 : i32
    %543 = arith.subi %c7_i32_177, %c7_i32_171 : i32
    %544 = arith.index_cast %543 : i32 to index
    %c0_178 = arith.constant 0 : index
    %c0_179 = arith.constant 0 : index
    %545 = vector.load %arg12[%544, %c0_178, %c0_179] : memref<8x2x512xf32, #tpu.memory_space<vmem>>, vector<1x2x512xf32>
    %546 = vector.shape_cast %545 : vector<1x2x512xf32> to vector<2x512xf32>
    %547 = arith.truncf %526 : vector<2x128xf32> to vector<2x128xbf16>
    %c0_180 = arith.constant 0 : index
    %c0_181 = arith.constant 0 : index
    %548 = vector.load %arg5[%c0_180, %c0_181] : memref<128x512xbf16, #tpu.memory_space<vmem>>, vector<128x512xbf16>
    %cst_182 = arith.constant dense<0.000000e+00> : vector<2x512xf32>
    %549 = tpu.matmul %547, %548, %cst_182 {dimension_numbers = #tpu.dot_dimension_numbers<[1], [0], [0], [1], [0, 0, 1, 1], [], []>} : vector<2x128xbf16>, vector<128x512xbf16>, vector<2x512xf32> -> vector<2x512xf32>
    %550 = arith.addf %546, %549 : vector<2x512xf32>
    %551 = vector.extract_strided_slice %542 {offsets = [0, 0], sizes = [2, 128], strides = [1, 1]} : vector<2x512xf32> to vector<2x128xf32>
    %552 = arith.negf %551 : vector<2x128xf32>
    %553 = math.exp %552 : vector<2x128xf32>
    %cst_183 = arith.constant 1.000000e+00 : f32
    %554 = vector.broadcast %cst_183 : f32 to vector<2x128xf32>
    %555 = arith.addf %554, %553 : vector<2x128xf32>
    %556 = arith.divf %554, %555 : vector<2x128xf32>
    %557 = vector.extract_strided_slice %542 {offsets = [0, 128], sizes = [2, 128], strides = [1, 1]} : vector<2x512xf32> to vector<2x128xf32>
    %558 = arith.negf %557 : vector<2x128xf32>
    %559 = math.exp %558 : vector<2x128xf32>
    %cst_184 = arith.constant 1.000000e+00 : f32
    %560 = vector.broadcast %cst_184 : f32 to vector<2x128xf32>
    %561 = arith.addf %560, %559 : vector<2x128xf32>
    %562 = arith.divf %560, %561 : vector<2x128xf32>
    %563 = vector.extract_strided_slice %542 {offsets = [0, 256], sizes = [2, 128], strides = [1, 1]} : vector<2x512xf32> to vector<2x128xf32>
    %564 = math.tanh %563 : vector<2x128xf32>
    %565 = vector.extract_strided_slice %542 {offsets = [0, 384], sizes = [2, 128], strides = [1, 1]} : vector<2x512xf32> to vector<2x128xf32>
    %566 = arith.negf %565 : vector<2x128xf32>
    %567 = math.exp %566 : vector<2x128xf32>
    %cst_185 = arith.constant 1.000000e+00 : f32
    %568 = vector.broadcast %cst_185 : f32 to vector<2x128xf32>
    %569 = arith.addf %568, %567 : vector<2x128xf32>
    %570 = arith.divf %568, %569 : vector<2x128xf32>
    %571 = arith.mulf %562, %499 : vector<2x128xf32>
    %572 = arith.mulf %556, %564 : vector<2x128xf32>
    %573 = arith.addf %571, %572 : vector<2x128xf32>
    %574 = math.tanh %573 : vector<2x128xf32>
    %575 = arith.mulf %570, %574 : vector<2x128xf32>
    %576 = vector.extract_strided_slice %550 {offsets = [0, 0], sizes = [2, 128], strides = [1, 1]} : vector<2x512xf32> to vector<2x128xf32>
    %577 = arith.negf %576 : vector<2x128xf32>
    %578 = math.exp %577 : vector<2x128xf32>
    %cst_186 = arith.constant 1.000000e+00 : f32
    %579 = vector.broadcast %cst_186 : f32 to vector<2x128xf32>
    %580 = arith.addf %579, %578 : vector<2x128xf32>
    %581 = arith.divf %579, %580 : vector<2x128xf32>
    %582 = vector.extract_strided_slice %550 {offsets = [0, 128], sizes = [2, 128], strides = [1, 1]} : vector<2x512xf32> to vector<2x128xf32>
    %583 = arith.negf %582 : vector<2x128xf32>
    %584 = math.exp %583 : vector<2x128xf32>
    %cst_187 = arith.constant 1.000000e+00 : f32
    %585 = vector.broadcast %cst_187 : f32 to vector<2x128xf32>
    %586 = arith.addf %585, %584 : vector<2x128xf32>
    %587 = arith.divf %585, %586 : vector<2x128xf32>
    %588 = vector.extract_strided_slice %550 {offsets = [0, 256], sizes = [2, 128], strides = [1, 1]} : vector<2x512xf32> to vector<2x128xf32>
    %589 = math.tanh %588 : vector<2x128xf32>
    %590 = vector.extract_strided_slice %550 {offsets = [0, 384], sizes = [2, 128], strides = [1, 1]} : vector<2x512xf32> to vector<2x128xf32>
    %591 = arith.negf %590 : vector<2x128xf32>
    %592 = math.exp %591 : vector<2x128xf32>
    %cst_188 = arith.constant 1.000000e+00 : f32
    %593 = vector.broadcast %cst_188 : f32 to vector<2x128xf32>
    %594 = arith.addf %593, %592 : vector<2x128xf32>
    %595 = arith.divf %593, %594 : vector<2x128xf32>
    %596 = arith.mulf %587, %524 : vector<2x128xf32>
    %597 = arith.mulf %581, %589 : vector<2x128xf32>
    %598 = arith.addf %596, %597 : vector<2x128xf32>
    %599 = math.tanh %598 : vector<2x128xf32>
    %600 = arith.mulf %595, %599 : vector<2x128xf32>
    %601 = arith.index_cast %c7_i32_171 : i32 to index
    %c0_189 = arith.constant 0 : index
    %c0_190 = arith.constant 0 : index
    %602 = vector.load %arg13[%601, %c0_189, %c0_190] : memref<8x2x128xf32, #tpu.memory_space<vmem>>, vector<1x2x128xf32>
    %603 = vector.shape_cast %602 : vector<1x2x128xf32> to vector<2x128xf32>
    %604 = vector.shape_cast %575 : vector<2x128xf32> to vector<1x2x128xf32>
    tpu.vector_store %arg13[%601, %c0_189, %c0_190], %604 {strides = array<i32>} : memref<8x2x128xf32, #tpu.memory_space<vmem>>, vector<1x2x128xf32>,
    %c7_i32_191 = arith.constant 7 : i32
    %605 = arith.subi %c7_i32_191, %c7_i32_171 : i32
    %606 = arith.index_cast %605 : i32 to index
    %c0_192 = arith.constant 0 : index
    %c0_193 = arith.constant 0 : index
    %607 = vector.load %arg14[%606, %c0_192, %c0_193] : memref<8x2x128xf32, #tpu.memory_space<vmem>>, vector<1x2x128xf32>
    %608 = vector.shape_cast %607 : vector<1x2x128xf32> to vector<2x128xf32>
    %609 = vector.shape_cast %600 : vector<2x128xf32> to vector<1x2x128xf32>
    tpu.vector_store %arg14[%606, %c0_192, %c0_193], %609 {strides = array<i32>} : memref<8x2x128xf32, #tpu.memory_space<vmem>>, vector<1x2x128xf32>,
    %c8_i32 = arith.constant 8 : i32
    %c0_194 = arith.constant 0 : index
    %c0_195 = arith.constant 0 : index
    %c0_196 = arith.constant 0 : index
    %610 = vector.load %arg13[%c0_194, %c0_195, %c0_196] : memref<8x2x128xf32, #tpu.memory_space<vmem>>, vector<8x2x128xf32>
    %611 = vector.shape_cast %610 : vector<8x2x128xf32> to vector<16x128xf32>
    %612 = arith.truncf %611 : vector<16x128xf32> to vector<16x128xbf16>
    %c0_197 = arith.constant 0 : index
    %c0_198 = arith.constant 0 : index
    %c0_199 = arith.constant 0 : index
    %613 = vector.load %arg14[%c0_197, %c0_198, %c0_199] : memref<8x2x128xf32, #tpu.memory_space<vmem>>, vector<8x2x128xf32>
    %614 = vector.shape_cast %613 : vector<8x2x128xf32> to vector<16x128xf32>
    %615 = arith.truncf %614 : vector<16x128xf32> to vector<16x128xbf16>
    %c0_200 = arith.constant 0 : index
    %c0_201 = arith.constant 0 : index
    %616 = vector.load %arg7[%c0_200, %c0_201] : memref<128x128xbf16, #tpu.memory_space<vmem>>, vector<128x128xbf16>
    %cst_202 = arith.constant dense<0.000000e+00> : vector<16x128xf32>
    %617 = tpu.matmul %612, %616, %cst_202 {dimension_numbers = #tpu.dot_dimension_numbers<[1], [0], [0], [1], [0, 0, 1, 1], [], []>} : vector<16x128xbf16>, vector<128x128xbf16>, vector<16x128xf32> -> vector<16x128xf32>
    %c0_203 = arith.constant 0 : index
    %c0_204 = arith.constant 0 : index
    %618 = vector.load %arg8[%c0_203, %c0_204] : memref<128x128xbf16, #tpu.memory_space<vmem>>, vector<128x128xbf16>
    %cst_205 = arith.constant dense<0.000000e+00> : vector<16x128xf32>
    %619 = tpu.matmul %615, %618, %cst_205 {dimension_numbers = #tpu.dot_dimension_numbers<[1], [0], [0], [1], [0, 0, 1, 1], [], []>} : vector<16x128xbf16>, vector<128x128xbf16>, vector<16x128xf32> -> vector<16x128xf32>
    %620 = arith.addf %617, %619 : vector<16x128xf32>
    %c0_206 = arith.constant 0 : index
    %c0_207 = arith.constant 0 : index
    %621 = vector.load %arg9[%c0_206, %c0_207] : memref<1x128xf32, #tpu.memory_space<vmem>>, vector<1x128xf32>
    %622 = vector.broadcast %621 : vector<1x128xf32> to vector<16x128xf32>
    %623 = arith.addf %620, %622 : vector<16x128xf32>
    %624 = vector.shape_cast %623 : vector<16x128xf32> to vector<8x2x128xf32>
    %c0_208 = arith.constant 0 : index
    %c0_209 = arith.constant 0 : index
    %c0_210 = arith.constant 0 : index
    %625 = vector.load %arg10[%c0_208, %c0_209, %c0_210] : memref<8x2x128xf32, #tpu.memory_space<vmem>>, vector<8x2x128xf32>
    tpu.vector_store %arg10[%c0_208, %c0_209, %c0_210], %624 {strides = array<i32>} : memref<8x2x128xf32, #tpu.memory_space<vmem>>, vector<8x2x128xf32>,
    return
  }
}

</mosaic_0001>

<llo_original>
// kernel: tpu_custom_call.1
$region0: #{tpu_custom_call.1}
  #allocation0 [shape = 'u32[]', space=smem, size = 0x4, offset = 0x4, fixed_abs, tag = 'smem constant byte address 0x4 - core index']
  #allocation1 [shape = 'u32[144,128]{1,0:T(1,128)}', space=vmem, size = 0x12000, scoped, tag = 'internal scratch']
  #allocation2 [shape = 'f32[8,2,512]{2,1,0:T(2,128)}', space=vmem, size = 0x8000, scoped, tag = 'scratch operand']
  #allocation3 [shape = 'f32[8,2,512]{2,1,0:T(2,128)}', space=vmem, size = 0x8000, scoped, tag = 'scratch operand']
  #allocation4 [shape = 'f32[8,2,128]{2,1,0:T(2,128)}', space=vmem, size = 0x2000, scoped, tag = 'scratch operand']
  #allocation5 [shape = 'f32[8,2,128]{2,1,0:T(2,128)}', space=vmem, size = 0x2000, scoped, tag = 'scratch operand']
  %s0 = inlined_call_operand.hbm [shape: f32[8,2,128], index: 0, kind: input, shape index: {}]
  %s1 = inlined_call_operand.hbm [shape: bf16[128,512], index: 1, kind: input, shape index: {}]
  %s2 = inlined_call_operand.hbm [shape: bf16[128,512], index: 2, kind: input, shape index: {}]
  %s3 = inlined_call_operand.vmem [shape: f32[1,512], index: 3, kind: input, shape index: {}]
  %s4 = inlined_call_operand.hbm [shape: bf16[128,512], index: 4, kind: input, shape index: {}]
  %s5 = inlined_call_operand.hbm [shape: bf16[128,512], index: 5, kind: input, shape index: {}]
  %s6 = inlined_call_operand.vmem [shape: f32[1,512], index: 6, kind: input, shape index: {}]
  %s7 = inlined_call_operand.hbm [shape: bf16[128,128], index: 7, kind: input, shape index: {}]
  %s8 = inlined_call_operand.hbm [shape: bf16[128,128], index: 8, kind: input, shape index: {}]
  %s9 = inlined_call_operand.vmem [shape: f32[1,128], index: 9, kind: input, shape index: {}]
  %s10 = inlined_call_operand.hbm [shape: f32[8,2,128], index: 10, kind: output, shape index: {}]
  %s11 = sld [smem:[#allocation0]]
  $region78: #{tpu_custom_call.1} parent=0
    _
  %s13 = ssub.s32 1, %s11
  %s14 = scalar_select 0, %s13, %s11
  $region1: #{tpu_custom_call.1} parent=0
    #allocation6 [shape = 'u8[8192]{0}', space=vmem, size = 0x2000, scoped, tag = 'input window, operand 0, single buffered']
    #allocation7 [shape = 's32[1]{0}', space=sflag, size = 0x4, scoped, tag = 'scoped memory for tpu_custom_call.1']
    #allocation8 [shape = 's32[1]{0}', space=sflag, size = 0x4, scoped, tag = 'scoped memory for tpu_custom_call.1']
    #allocation9 [shape = 'u8[131072]{0}', space=vmem, size = 0x20000, scoped, tag = 'input window, operand 1, single buffered']
    #allocation10 [shape = 's32[1]{0}', space=sflag, size = 0x4, scoped, tag = 'scoped memory for tpu_custom_call.1']
    #allocation11 [shape = 'u8[131072]{0}', space=vmem, size = 0x20000, scoped, tag = 'input window, operand 2, single buffered']
    #allocation12 [shape = 'u8[131072]{0}', space=vmem, size = 0x20000, scoped, tag = 'input window, operand 4, single buffered']
    #allocation13 [shape = 's32[1]{0}', space=sflag, size = 0x4, scoped, tag = 'scoped memory for tpu_custom_call.1']
    #allocation14 [shape = 'u8[131072]{0}', space=vmem, size = 0x20000, scoped, tag = 'input window, operand 5, single buffered']
    #allocation15 [shape = 'u8[32768]{0}', space=vmem, size = 0x8000, scoped, tag = 'input window, operand 7, single buffered']
    #allocation16 [shape = 's32[1]{0}', space=sflag, size = 0x4, scoped, tag = 'scoped memory for tpu_custom_call.1']
    #allocation17 [shape = 'u8[32768]{0}', space=vmem, size = 0x8000, scoped, tag = 'input window, operand 8, single buffered']
    #allocation18 [shape = 'u8[8192]{0}', space=vmem, size = 0x2000, scoped, tag = 'output window, operand 0, single buffered']
    %15 = vsyncpa [#allocation7], 0
    %16 = vsyncpa [#allocation10], 0
    %17 = vsyncpa [#allocation13], 0
    %18 = vsyncpa [#allocation16], 0
    %19 = vsyncpa [#allocation8], 0
    // Predicated region
    $region2: #{tpu_custom_call.1} parent=1 // pred_check
      _
    $region3: #{tpu_custom_call.1} parent=1 // pred_check_branch
      %21 = sbr.rel (0) target = $region5
    $region4: #{tpu_custom_call.1} parent=1 // pred_region
      %s23 = ssub.s32 256, 256
      %24 = vsyncadd [#allocation7], %s23
      %s25 = sshll.u32 [#allocation6], 4
      %s26 = int_to_ptr.vmem [resolvable:$true] %s25
      %31 = dma.hbm_to_vmem [thread:$0]  %s0, 256, %s26, [#allocation7], 32, 32, 2
    $region5: #{tpu_custom_call.1} parent=1 // pred_fallthru
      _
    // Predicated region
    $region6: #{tpu_custom_call.1} parent=1 // pred_check
      _
    $region7: #{tpu_custom_call.1} parent=1 // pred_check_branch
      %33 = sbr.rel (0) target = $region9
    $region8: #{tpu_custom_call.1} parent=1 // pred_region
      %s35 = ssub.s32 4096, 4096
      %36 = vsyncadd [#allocation10], %s35
      %s37 = sshll.u32 [#allocation9], 4
      %s38 = int_to_ptr.vmem [resolvable:$true] %s37
      %43 = dma.hbm_to_vmem [thread:$0]  %s1, 4096, %s38, [#allocation10], 256, 256, 16
    $region9: #{tpu_custom_call.1} parent=1 // pred_fallthru
      _
    // Predicated region
    $region10: #{tpu_custom_call.1} parent=1 // pred_check
      _
    $region11: #{tpu_custom_call.1} parent=1 // pred_check_branch
      %45 = sbr.rel (0) target = $region13
    $region12: #{tpu_custom_call.1} parent=1 // pred_region
      %s47 = ssub.s32 4096, 4096
      %48 = vsyncadd [#allocation10], %s47
      %s49 = sshll.u32 [#allocation11], 4
      %s50 = int_to_ptr.vmem [resolvable:$true] %s49
      %55 = dma.hbm_to_vmem [thread:$0]  %s2, 4096, %s50, [#allocation10], 256, 256, 16
    $region13: #{tpu_custom_call.1} parent=1 // pred_fallthru
      _
    // Predicated region
    $region14: #{tpu_custom_call.1} parent=1 // pred_check
      _
    $region15: #{tpu_custom_call.1} parent=1 // pred_check_branch
      %57 = sbr.rel (0) target = $region17
    $region16: #{tpu_custom_call.1} parent=1 // pred_region
      _
    $region17: #{tpu_custom_call.1} parent=1 // pred_fallthru
      _
    // Predicated region
    $region18: #{tpu_custom_call.1} parent=1 // pred_check
      _
    $region19: #{tpu_custom_call.1} parent=1 // pred_check_branch
      %59 = sbr.rel (0) target = $region21
    $region20: #{tpu_custom_call.1} parent=1 // pred_region
      %s61 = ssub.s32 4096, 4096
      %62 = vsyncadd [#allocation13], %s61
      %s63 = sshll.u32 [#allocation12], 4
      %s64 = int_to_ptr.vmem [resolvable:$true] %s63
      %69 = dma.hbm_to_vmem [thread:$0]  %s4, 4096, %s64, [#allocation13], 256, 256, 16
    $region21: #{tpu_custom_call.1} parent=1 // pred_fallthru
      _
    // Predicated region
    $region22: #{tpu_custom_call.1} parent=1 // pred_check
      _
    $region23: #{tpu_custom_call.1} parent=1 // pred_check_branch
      %71 = sbr.rel (0) target = $region25
    $region24: #{tpu_custom_call.1} parent=1 // pred_region
      %s73 = ssub.s32 4096, 4096
      %74 = vsyncadd [#allocation13], %s73
      %s75 = sshll.u32 [#allocation14], 4
      %s76 = int_to_ptr.vmem [resolvable:$true] %s75
      %81 = dma.hbm_to_vmem [thread:$0]  %s5, 4096, %s76, [#allocation13], 256, 256, 16
    $region25: #{tpu_custom_call.1} parent=1 // pred_fallthru
      _
    // Predicated region
    $region26: #{tpu_custom_call.1} parent=1 // pred_check
      _
    $region27: #{tpu_custom_call.1} parent=1 // pred_check_branch
      %83 = sbr.rel (0) target = $region29
    $region28: #{tpu_custom_call.1} parent=1 // pred_region
      _
    $region29: #{tpu_custom_call.1} parent=1 // pred_fallthru
      _
    // Predicated region
    $region30: #{tpu_custom_call.1} parent=1 // pred_check
      _
    $region31: #{tpu_custom_call.1} parent=1 // pred_check_branch
      %85 = sbr.rel (0) target = $region33
    $region32: #{tpu_custom_call.1} parent=1 // pred_region
      %s87 = ssub.s32 1024, 1024
      %88 = vsyncadd [#allocation16], %s87
      %s89 = sshll.u32 [#allocation15], 4
      %s90 = int_to_ptr.vmem [resolvable:$true] %s89
      %95 = dma.hbm_to_vmem [thread:$0]  %s7, 1024, %s90, [#allocation16], 64, 64, 4
    $region33: #{tpu_custom_call.1} parent=1 // pred_fallthru
      _
    // Predicated region
    $region34: #{tpu_custom_call.1} parent=1 // pred_check
      _
    $region35: #{tpu_custom_call.1} parent=1 // pred_check_branch
      %97 = sbr.rel (0) target = $region37
    $region36: #{tpu_custom_call.1} parent=1 // pred_region
      %s99 = ssub.s32 1024, 1024
      %100 = vsyncadd [#allocation16], %s99
      %s101 = sshll.u32 [#allocation17], 4
      %s102 = int_to_ptr.vmem [resolvable:$true] %s101
      %107 = dma.hbm_to_vmem [thread:$0]  %s8, 1024, %s102, [#allocation16], 64, 64, 4
    $region37: #{tpu_custom_call.1} parent=1 // pred_fallthru
      _
    // Predicated region
    $region38: #{tpu_custom_call.1} parent=1 // pred_check
      _
    $region39: #{tpu_custom_call.1} parent=1 // pred_check_branch
      %109 = sbr.rel (0) target = $region41
    $region40: #{tpu_custom_call.1} parent=1 // pred_region
      _
    $region41: #{tpu_custom_call.1} parent=1 // pred_fallthru
      _
    // Predicated region
    $region42: #{tpu_custom_call.1} parent=1 // pred_check
      _
    $region43: #{tpu_custom_call.1} parent=1 // pred_check_branch
      %111 = sbr.rel (0) target = $region45
    $region44: #{tpu_custom_call.1} parent=1 // pred_region
      %112 = dma.done [#allocation7], 256
    $region45: #{tpu_custom_call.1} parent=1 // pred_fallthru
      _
    // Predicated region
    $region46: #{tpu_custom_call.1} parent=1 // pred_check
      _
    $region47: #{tpu_custom_call.1} parent=1 // pred_check_branch
      %114 = sbr.rel (0) target = $region49
    $region48: #{tpu_custom_call.1} parent=1 // pred_region
      %115 = dma.done [#allocation10], 4096
    $region49: #{tpu_custom_call.1} parent=1 // pred_fallthru
      _
    // Predicated region
    $region50: #{tpu_custom_call.1} parent=1 // pred_check
      _
    $region51: #{tpu_custom_call.1} parent=1 // pred_check_branch
      %117 = sbr.rel (0) target = $region53
    $region52: #{tpu_custom_call.1} parent=1 // pred_region
      %118 = dma.done [#allocation10], 4096
    $region53: #{tpu_custom_call.1} parent=1 // pred_fallthru
      _
    // Predicated region
    $region54: #{tpu_custom_call.1} parent=1 // pred_check
      _
    $region55: #{tpu_custom_call.1} parent=1 // pred_check_branch
      %120 = sbr.rel (0) target = $region57
    $region56: #{tpu_custom_call.1} parent=1 // pred_region
      %121 = dma.done [#allocation13], 4096
    $region57: #{tpu_custom_call.1} parent=1 // pred_fallthru
      _
    // Predicated region
    $region58: #{tpu_custom_call.1} parent=1 // pred_check
      _
    $region59: #{tpu_custom_call.1} parent=1 // pred_check_branch
      %123 = sbr.rel (0) target = $region61
    $region60: #{tpu_custom_call.1} parent=1 // pred_region
      %124 = dma.done [#allocation13], 4096
    $region61: #{tpu_custom_call.1} parent=1 // pred_fallthru
      _
    // Predicated region
    $region62: #{tpu_custom_call.1} parent=1 // pred_check
      _
    $region63: #{tpu_custom_call.1} parent=1 // pred_check_branch
      %126 = sbr.rel (0) target = $region65
    $region64: #{tpu_custom_call.1} parent=1 // pred_region
      %127 = dma.done [#allocation16], 1024
    $region65: #{tpu_custom_call.1} parent=1 // pred_fallthru
      _
    // Predicated region
    $region66: #{tpu_custom_call.1} parent=1 // pred_check
      _
    $region67: #{tpu_custom_call.1} parent=1 // pred_check_branch
      %129 = sbr.rel (0) target = $region69
    $region68: #{tpu_custom_call.1} parent=1 // pred_region
      %130 = dma.done [#allocation16], 1024
    $region69: #{tpu_custom_call.1} parent=1 // pred_fallthru
      _
    %v132 = vld [vmem:[#allocation6] sm:$0x3]
    %v133 = vld [vmem:[#allocation6 + $0x2] sm:$0x3]
    %v134 = vld [vmem:[#allocation6 + $0x4] sm:$0x3]
    %v135 = vld [vmem:[#allocation6 + $0x6] sm:$0x3]
    %v136 = vld [vmem:[#allocation6 + $0x8] sm:$0x3]
    %v137 = vld [vmem:[#allocation6 + $0xa] sm:$0x3]
    %v138 = vld [vmem:[#allocation6 + $0xc] sm:$0x3]
    %v139 = vld [vmem:[#allocation6 + $0xe] sm:$0x3]
    %v148 = vcombine.low %v132, %v133
    %v149 = vcombine.low %v134, %v135
    %v151 = vunpack.c.l.s4 1983009808
    %v152 = vunpack.c.0.s8 %v151
    %v153 = vlaneseq
    %v154 = vshrl.u32 %v153, 7
    %v155 = vsub.s32 %v152, %v154
    %v156 = vrot.slane %v148, %v155
    %v158 = vunpack.c.l.s4 1983009808
    %v159 = vunpack.c.0.s8 %v158
    %v160 = vlaneseq
    %v161 = vshrl.u32 %v160, 7
    %v162 = vsub.s32 %v159, %v161
    %v163 = vrot.slane %v149, %v162
    %v164 = vcombine.low %v156, %v163
    %v165 = vcombine.low %v136, %v137
    %v166 = vcombine.low %v138, %v139
    %v168 = vunpack.c.l.s4 1983009808
    %v169 = vunpack.c.0.s8 %v168
    %v170 = vlaneseq
    %v171 = vshrl.u32 %v170, 7
    %v172 = vsub.s32 %v169, %v171
    %v173 = vrot.slane %v165, %v172
    %v175 = vunpack.c.l.s4 1983009808
    %v176 = vunpack.c.0.s8 %v175
    %v177 = vlaneseq
    %v178 = vshrl.u32 %v177, 7
    %v179 = vsub.s32 %v176, %v178
    %v180 = vrot.slane %v166, %v179
    %v181 = vcombine.low %v173, %v180
    %v184 = vpack.c.bf16 %v181, %v164
    %v185 = vld [vmem:[#allocation9] sm:$0xff]
    %v186 = vld [vmem:[#allocation9 + $0x8] sm:$0xff]
    %v187 = vld [vmem:[#allocation9 + $0x10] sm:$0xff]
    %v188 = vld [vmem:[#allocation9 + $0x18] sm:$0xff]
    %v189 = vld [vmem:[#allocation9 + $0x20] sm:$0xff]
    %v190 = vld [vmem:[#allocation9 + $0x28] sm:$0xff]
    %v191 = vld [vmem:[#allocation9 + $0x30] sm:$0xff]
    %v192 = vld [vmem:[#allocation9 + $0x38] sm:$0xff]
    %v193 = vld [vmem:[#allocation9 + $0x40] sm:$0xff]
    %v194 = vld [vmem:[#allocation9 + $0x48] sm:$0xff]
    %v195 = vld [vmem:[#allocation9 + $0x50] sm:$0xff]
    %v196 = vld [vmem:[#allocation9 + $0x58] sm:$0xff]
    %v197 = vld [vmem:[#allocation9 + $0x60] sm:$0xff]
    %v198 = vld [vmem:[#allocation9 + $0x68] sm:$0xff]
    %v199 = vld [vmem:[#allocation9 + $0x70] sm:$0xff]
    %v200 = vld [vmem:[#allocation9 + $0x78] sm:$0xff]
    %v201 = vld [vmem:[#allocation9 + $0x80] sm:$0xff]
    %v202 = vld [vmem:[#allocation9 + $0x88] sm:$0xff]
    %v203 = vld [vmem:[#allocation9 + $0x90] sm:$0xff]
    %v204 = vld [vmem:[#allocation9 + $0x98] sm:$0xff]
    %v205 = vld [vmem:[#allocation9 + $0xa0] sm:$0xff]
    %v206 = vld [vmem:[#allocation9 + $0xa8] sm:$0xff]
    %v207 = vld [vmem:[#allocation9 + $0xb0] sm:$0xff]
    %v208 = vld [vmem:[#allocation9 + $0xb8] sm:$0xff]
    %v209 = vld [vmem:[#allocation9 + $0xc0] sm:$0xff]
    %v210 = vld [vmem:[#allocation9 + $0xc8] sm:$0xff]
    %v211 = vld [vmem:[#allocation9 + $0xd0] sm:$0xff]
    %v212 = vld [vmem:[#allocation9 + $0xd8] sm:$0xff]
    %v213 = vld [vmem:[#allocation9 + $0xe0] sm:$0xff]
    %v214 = vld [vmem:[#allocation9 + $0xe8] sm:$0xff]
    %v215 = vld [vmem:[#allocation9 + $0xf0] sm:$0xff]
    %v216 = vld [vmem:[#allocation9 + $0xf8] sm:$0xff]
    %v217 = vld [vmem:[%s3] sm:$0xf]
    %v219 = vlaneseq
    %v220 = vshrl.u32 %v219, 7
    %v221 = vsub.s32 0, %v220
    %v222 = vrot.slane %v217, %v221
    %v223 = vlaneseq
    %v224 = vshrl.u32 %v223, 7
    %v225 = vsub.s32 1, %v224
    %v226 = vrot.slane %v217, %v225
    %v227 = vlaneseq
    %v228 = vshrl.u32 %v227, 7
    %v229 = vsub.s32 2, %v228
    %v230 = vrot.slane %v217, %v229
    %v231 = vlaneseq
    %v232 = vshrl.u32 %v231, 7
    %v233 = vsub.s32 3, %v232
    %v234 = vrot.slane %v217, %v233
    %v271 = vunpack.c.l.b16 %v185
    %v272 = vunpack.c.h.b16 %v185
    %v273 = vunpack.c.l.b16 %v186
    %v274 = vunpack.c.h.b16 %v186
    %v275 = vunpack.c.l.b16 %v187
    %v276 = vunpack.c.h.b16 %v187
    %v277 = vunpack.c.l.b16 %v188
    %v278 = vunpack.c.h.b16 %v188
    %v279 = vunpack.c.l.b16 %v189
    %v280 = vunpack.c.h.b16 %v189
    %v281 = vunpack.c.l.b16 %v190
    %v282 = vunpack.c.h.b16 %v190
    %v283 = vunpack.c.l.b16 %v191
    %v284 = vunpack.c.h.b16 %v191
    %v285 = vunpack.c.l.b16 %v192
    %v286 = vunpack.c.h.b16 %v192
    %v287 = vunpack.c.l.b16 %v193
    %v288 = vunpack.c.h.b16 %v193
    %v289 = vunpack.c.l.b16 %v194
    %v290 = vunpack.c.h.b16 %v194
    %v291 = vunpack.c.l.b16 %v195
    %v292 = vunpack.c.h.b16 %v195
    %v293 = vunpack.c.l.b16 %v196
    %v294 = vunpack.c.h.b16 %v196
    %v295 = vunpack.c.l.b16 %v197
    %v296 = vunpack.c.h.b16 %v197
    %v297 = vunpack.c.l.b16 %v198
    %v298 = vunpack.c.h.b16 %v198
    %v299 = vunpack.c.l.b16 %v199
    %v300 = vunpack.c.h.b16 %v199
    %v301 = vunpack.c.l.b16 %v200
    %v302 = vunpack.c.h.b16 %v200
    %v303 = vunpack.c.l.b16 %v201
    %v304 = vunpack.c.h.b16 %v201
    %v305 = vunpack.c.l.b16 %v202
    %v306 = vunpack.c.h.b16 %v202
    %v307 = vunpack.c.l.b16 %v203
    %v308 = vunpack.c.h.b16 %v203
    %v309 = vunpack.c.l.b16 %v204
    %v310 = vunpack.c.h.b16 %v204
    %v311 = vunpack.c.l.b16 %v205
    %v312 = vunpack.c.h.b16 %v205
    %v313 = vunpack.c.l.b16 %v206
    %v314 = vunpack.c.h.b16 %v206
    %v315 = vunpack.c.l.b16 %v207
    %v316 = vunpack.c.h.b16 %v207
    %v317 = vunpack.c.l.b16 %v208
    %v318 = vunpack.c.h.b16 %v208
    %v319 = vunpack.c.l.b16 %v209
    %v320 = vunpack.c.h.b16 %v209
    %v321 = vunpack.c.l.b16 %v210
    %v322 = vunpack.c.h.b16 %v210
    %v323 = vunpack.c.l.b16 %v211
    %v324 = vunpack.c.h.b16 %v211
    %v325 = vunpack.c.l.b16 %v212
    %v326 = vunpack.c.h.b16 %v212
    %v327 = vunpack.c.l.b16 %v213
    %v328 = vunpack.c.h.b16 %v213
    %v329 = vunpack.c.l.b16 %v214
    %v330 = vunpack.c.h.b16 %v214
    %v331 = vunpack.c.l.b16 %v215
    %v332 = vunpack.c.h.b16 %v215
    %v333 = vunpack.c.l.b16 %v216
    %v334 = vunpack.c.h.b16 %v216
    %v335 = vpack.c.b16 %v275, %v271
    %v336 = vpack.c.b16 %v276, %v272
    %v337 = vpack.c.b16 %v277, %v273
    %v338 = vpack.c.b16 %v278, %v274
    %v339 = vpack.c.b16 %v283, %v279
    %v340 = vpack.c.b16 %v284, %v280
    %v341 = vpack.c.b16 %v285, %v281
    %v342 = vpack.c.b16 %v286, %v282
    %v343 = vpack.c.b16 %v291, %v287
    %v344 = vpack.c.b16 %v292, %v288
    %v345 = vpack.c.b16 %v293, %v289
    %v346 = vpack.c.b16 %v294, %v290
    %v347 = vpack.c.b16 %v299, %v295
    %v348 = vpack.c.b16 %v300, %v296
    %v349 = vpack.c.b16 %v301, %v297
    %v350 = vpack.c.b16 %v302, %v298
    %v351 = vpack.c.b16 %v307, %v303
    %v352 = vpack.c.b16 %v308, %v304
    %v353 = vpack.c.b16 %v309, %v305
    %v354 = vpack.c.b16 %v310, %v306
    %v355 = vpack.c.b16 %v315, %v311
    %v356 = vpack.c.b16 %v316, %v312
    %v357 = vpack.c.b16 %v317, %v313
    %v358 = vpack.c.b16 %v318, %v314
    %v359 = vpack.c.b16 %v323, %v319
    %v360 = vpack.c.b16 %v324, %v320
    %v361 = vpack.c.b16 %v325, %v321
    %v362 = vpack.c.b16 %v326, %v322
    %v363 = vpack.c.b16 %v331, %v327
    %v364 = vpack.c.b16 %v332, %v328
    %v365 = vpack.c.b16 %v333, %v329
    %v366 = vpack.c.b16 %v334, %v330
    %399 = vmatprep.subr.bf16.mxu0 %v364
    %400 = vmatpush1.bf16.msra.mxu0 %v363
    %401 = vmatprep.subr.bf16.mxu0 %v360
    %402 = vmatpush1.bf16.msra.mxu0 %v359
    %403 = vmatprep.subr.bf16.mxu0 %v356
    %404 = vmatpush1.bf16.msra.mxu0 %v355
    %405 = vmatprep.subr.bf16.mxu0 %v352
    %406 = vmatpush1.bf16.msra.mxu0 %v351
    %407 = vmatprep.subr.bf16.mxu0 %v348
    %408 = vmatpush1.bf16.msra.mxu0 %v347
    %409 = vmatprep.subr.bf16.mxu0 %v344
    %410 = vmatpush1.bf16.msra.mxu0 %v343
    %411 = vmatprep.subr.bf16.mxu0 %v340
    %412 = vmatpush1.bf16.msra.mxu0 %v339
    %413 = vmatprep.subr.bf16.mxu0 %v336
    %414 = vmatpush1.bf16.msra.mxu0 %v335
    %415 = vmatprep.subr.bf16.mxu0 0
    %416 = vmatpush2.bf16.msra.mxu0 0
    %417 = vmatprep.subr.bf16.mxu0 0
    %418 = vmatpush2.bf16.msra.mxu0 0
    %419 = vmatprep.subr.bf16.mxu0 0
    %420 = vmatpush2.bf16.msra.mxu0 0
    %421 = vmatprep.subr.bf16.mxu0 0
    %422 = vmatpush2.bf16.msra.mxu0 0
    %423 = vmatprep.subr.bf16.mxu0 0
    %424 = vmatpush2.bf16.msra.mxu0 0
    %425 = vmatprep.subr.bf16.mxu0 0
    %426 = vmatpush2.bf16.msra.mxu0 0
    %427 = vmatprep.subr.bf16.mxu0 0
    %428 = vmatpush2.bf16.msra.mxu0 0
    %429 = vmatprep.subr.bf16.mxu0 0
    %430 = vmatpush2.bf16.msra.mxu0 0
    %431 = vmatprep.mubr.bf16.mxu0 0
    %432 = vmatmul.mubr.bf16.gmra.mxu0 %v184
    %v433 = vpop.f32.mrf.mxu0
    %v434 = vadd.f32 %v222, %v433
    %v435 = vpop.f32.mrf.mxu0
    %v436 = vadd.f32 %v226, %v435
    %v437 = vpop.f32.mrf.mxu0
    %v438 = vadd.f32 %v222, %v437
    %v439 = vpop.f32.mrf.mxu0
    %v440 = vadd.f32 %v226, %v439
    %441 = vdwg.mxu0
    %442 = vmatprep.subr.bf16.mxu0 %v366
    %443 = vmatpush1.bf16.msra.mxu0 %v365
    %444 = vmatprep.subr.bf16.mxu0 %v362
    %445 = vmatpush1.bf16.msra.mxu0 %v361
    %446 = vmatprep.subr.bf16.mxu0 %v358
    %447 = vmatpush1.bf16.msra.mxu0 %v357
    %448 = vmatprep.subr.bf16.mxu0 %v354
    %449 = vmatpush1.bf16.msra.mxu0 %v353
    %450 = vmatprep.subr.bf16.mxu0 %v350
    %451 = vmatpush1.bf16.msra.mxu0 %v349
    %452 = vmatprep.subr.bf16.mxu0 %v346
    %453 = vmatpush1.bf16.msra.mxu0 %v345
    %454 = vmatprep.subr.bf16.mxu0 %v342
    %455 = vmatpush1.bf16.msra.mxu0 %v341
    %456 = vmatprep.subr.bf16.mxu0 %v338
    %457 = vmatpush1.bf16.msra.mxu0 %v337
    %458 = vmatprep.subr.bf16.mxu0 0
    %459 = vmatpush2.bf16.msra.mxu0 0
    %460 = vmatprep.subr.bf16.mxu0 0
    %461 = vmatpush2.bf16.msra.mxu0 0
    %462 = vmatprep.subr.bf16.mxu0 0
    %463 = vmatpush2.bf16.msra.mxu0 0
    %464 = vmatprep.subr.bf16.mxu0 0
    %465 = vmatpush2.bf16.msra.mxu0 0
    %466 = vmatprep.subr.bf16.mxu0 0
    %467 = vmatpush2.bf16.msra.mxu0 0
    %468 = vmatprep.subr.bf16.mxu0 0
    %469 = vmatpush2.bf16.msra.mxu0 0
    %470 = vmatprep.subr.bf16.mxu0 0
    %471 = vmatpush2.bf16.msra.mxu0 0
    %472 = vmatprep.subr.bf16.mxu0 0
    %473 = vmatpush2.bf16.msra.mxu0 0
    %474 = vmatprep.mubr.bf16.mxu0 0
    %475 = vmatmul.mubr.bf16.gmra.mxu0 %v184
    %v476 = vpop.f32.mrf.mxu0
    %v477 = vadd.f32 %v230, %v476
    %v478 = vpop.f32.mrf.mxu0
    %v479 = vadd.f32 %v234, %v478
    %v480 = vpop.f32.mrf.mxu0
    %v481 = vadd.f32 %v230, %v480
    %v482 = vpop.f32.mrf.mxu0
    %v483 = vadd.f32 %v234, %v482
    %484 = vdwg.mxu0
    %v493 = vcombine.low %v434, %v436
    %v494 = vcombine.high %v434, %v436
    %v495 = vcombine.low %v477, %v479
    %v496 = vcombine.high %v477, %v479
    %v498 = vunpack.c.l.s4 1983009808
    %v499 = vunpack.c.0.s8 %v498
    %v500 = vlaneseq
    %v501 = vshrl.u32 %v500, 7
    %v502 = vsub.s32 %v499, %v501
    %v503 = vrot.slane %v493, %v502
    %v505 = vunpack.c.l.s4 1983009808
    %v506 = vunpack.c.0.s8 %v505
    %v507 = vlaneseq
    %v508 = vshrl.u32 %v507, 7
    %v509 = vsub.s32 %v506, %v508
    %v510 = vrot.slane %v494, %v509
    %v512 = vunpack.c.l.s4 1983009808
    %v513 = vunpack.c.0.s8 %v512
    %v514 = vlaneseq
    %v515 = vshrl.u32 %v514, 7
    %v516 = vsub.s32 %v513, %v515
    %v517 = vrot.slane %v495, %v516
    %v519 = vunpack.c.l.s4 1983009808
    %v520 = vunpack.c.0.s8 %v519
    %v521 = vlaneseq
    %v522 = vshrl.u32 %v521, 7
    %v523 = vsub.s32 %v520, %v522
    %v524 = vrot.slane %v496, %v523
    %v525 = vcombine.low %v503, %v517
    %v526 = vcombine.high %v503, %v517
    %v527 = vcombine.low %v510, %v524
    %v528 = vcombine.high %v510, %v524
    %v529 = vcombine.low %v438, %v440
    %v530 = vcombine.high %v438, %v440
    %v531 = vcombine.low %v481, %v483
    %v532 = vcombine.high %v481, %v483
    %v534 = vunpack.c.l.s4 1983009808
    %v535 = vunpack.c.0.s8 %v534
    %v536 = vlaneseq
    %v537 = vshrl.u32 %v536, 7
    %v538 = vsub.s32 %v535, %v537
    %v539 = vrot.slane %v529, %v538
    %v541 = vunpack.c.l.s4 1983009808
    %v542 = vunpack.c.0.s8 %v541
    %v543 = vlaneseq
    %v544 = vshrl.u32 %v543, 7
    %v545 = vsub.s32 %v542, %v544
    %v546 = vrot.slane %v530, %v545
    %v548 = vunpack.c.l.s4 1983009808
    %v549 = vunpack.c.0.s8 %v548
    %v550 = vlaneseq
    %v551 = vshrl.u32 %v550, 7
    %v552 = vsub.s32 %v549, %v551
    %v553 = vrot.slane %v531, %v552
    %v555 = vunpack.c.l.s4 1983009808
    %v556 = vunpack.c.0.s8 %v555
    %v557 = vlaneseq
    %v558 = vshrl.u32 %v557, 7
    %v559 = vsub.s32 %v556, %v558
    %v560 = vrot.slane %v532, %v559
    %v561 = vcombine.low %v539, %v553
    %v562 = vcombine.high %v539, %v553
    %v563 = vcombine.low %v546, %v560
    %v564 = vcombine.high %v546, %v560
    %573 = vst [vmem:[#allocation2] sm:$0xff] %v525
    %574 = vst [vmem:[#allocation2 + $0x8] sm:$0xff] %v526
    %575 = vst [vmem:[#allocation2 + $0x10] sm:$0xff] %v527
    %576 = vst [vmem:[#allocation2 + $0x18] sm:$0xff] %v528
    %577 = vst [vmem:[#allocation2 + $0x20] sm:$0xff] %v561
    %578 = vst [vmem:[#allocation2 + $0x28] sm:$0xff] %v562
    %579 = vst [vmem:[#allocation2 + $0x30] sm:$0xff] %v563
    %580 = vst [vmem:[#allocation2 + $0x38] sm:$0xff] %v564
    %v581 = vld [vmem:[#allocation12] sm:$0xff]
    %v582 = vld [vmem:[#allocation12 + $0x8] sm:$0xff]
    %v583 = vld [vmem:[#allocation12 + $0x10] sm:$0xff]
    %v584 = vld [vmem:[#allocation12 + $0x18] sm:$0xff]
    %v585 = vld [vmem:[#allocation12 + $0x20] sm:$0xff]
    %v586 = vld [vmem:[#allocation12 + $0x28] sm:$0xff]
    %v587 = vld [vmem:[#allocation12 + $0x30] sm:$0xff]
    %v588 = vld [vmem:[#allocation12 + $0x38] sm:$0xff]
    %v589 = vld [vmem:[#allocation12 + $0x40] sm:$0xff]
    %v590 = vld [vmem:[#allocation12 + $0x48] sm:$0xff]
    %v591 = vld [vmem:[#allocation12 + $0x50] sm:$0xff]
    %v592 = vld [vmem:[#allocation12 + $0x58] sm:$0xff]
    %v593 = vld [vmem:[#allocation12 + $0x60] sm:$0xff]
    %v594 = vld [vmem:[#allocation12 + $0x68] sm:$0xff]
    %v595 = vld [vmem:[#allocation12 + $0x70] sm:$0xff]
    %v596 = vld [vmem:[#allocation12 + $0x78] sm:$0xff]
    %v597 = vld [vmem:[#allocation12 + $0x80] sm:$0xff]
    %v598 = vld [vmem:[#allocation12 + $0x88] sm:$0xff]
    %v599 = vld [vmem:[#allocation12 + $0x90] sm:$0xff]
    %v600 = vld [vmem:[#allocation12 + $0x98] sm:$0xff]
    %v601 = vld [vmem:[#allocation12 + $0xa0] sm:$0xff]
    %v602 = vld [vmem:[#allocation12 + $0xa8] sm:$0xff]
    %v603 = vld [vmem:[#allocation12 + $0xb0] sm:$0xff]
    %v604 = vld [vmem:[#allocation12 + $0xb8] sm:$0xff]
    %v605 = vld [vmem:[#allocation12 + $0xc0] sm:$0xff]
    %v606 = vld [vmem:[#allocation12 + $0xc8] sm:$0xff]
    %v607 = vld [vmem:[#allocation12 + $0xd0] sm:$0xff]
    %v608 = vld [vmem:[#allocation12 + $0xd8] sm:$0xff]
    %v609 = vld [vmem:[#allocation12 + $0xe0] sm:$0xff]
    %v610 = vld [vmem:[#allocation12 + $0xe8] sm:$0xff]
    %v611 = vld [vmem:[#allocation12 + $0xf0] sm:$0xff]
    %v612 = vld [vmem:[#allocation12 + $0xf8] sm:$0xff]
    %v613 = vld [vmem:[%s6] sm:$0xf]
    %v615 = vlaneseq
    %v616 = vshrl.u32 %v615, 7
    %v617 = vsub.s32 0, %v616
    %v618 = vrot.slane %v613, %v617
    %v619 = vlaneseq
    %v620 = vshrl.u32 %v619, 7
    %v621 = vsub.s32 1, %v620
    %v622 = vrot.slane %v613, %v621
    %v623 = vlaneseq
    %v624 = vshrl.u32 %v623, 7
    %v625 = vsub.s32 2, %v624
    %v626 = vrot.slane %v613, %v625
    %v627 = vlaneseq
    %v628 = vshrl.u32 %v627, 7
    %v629 = vsub.s32 3, %v628
    %v630 = vrot.slane %v613, %v629
    %v667 = vunpack.c.l.b16 %v581
    %v668 = vunpack.c.h.b16 %v581
    %v669 = vunpack.c.l.b16 %v582
    %v670 = vunpack.c.h.b16 %v582
    %v671 = vunpack.c.l.b16 %v583
    %v672 = vunpack.c.h.b16 %v583
    %v673 = vunpack.c.l.b16 %v584
    %v674 = vunpack.c.h.b16 %v584
    %v675 = vunpack.c.l.b16 %v585
    %v676 = vunpack.c.h.b16 %v585
    %v677 = vunpack.c.l.b16 %v586
    %v678 = vunpack.c.h.b16 %v586
    %v679 = vunpack.c.l.b16 %v587
    %v680 = vunpack.c.h.b16 %v587
    %v681 = vunpack.c.l.b16 %v588
    %v682 = vunpack.c.h.b16 %v588
    %v683 = vunpack.c.l.b16 %v589
    %v684 = vunpack.c.h.b16 %v589
    %v685 = vunpack.c.l.b16 %v590
    %v686 = vunpack.c.h.b16 %v590
    %v687 = vunpack.c.l.b16 %v591
    %v688 = vunpack.c.h.b16 %v591
    %v689 = vunpack.c.l.b16 %v592
    %v690 = vunpack.c.h.b16 %v592
    %v691 = vunpack.c.l.b16 %v593
    %v692 = vunpack.c.h.b16 %v593
    %v693 = vunpack.c.l.b16 %v594
    %v694 = vunpack.c.h.b16 %v594
    %v695 = vunpack.c.l.b16 %v595
    %v696 = vunpack.c.h.b16 %v595
    %v697 = vunpack.c.l.b16 %v596
    %v698 = vunpack.c.h.b16 %v596
    %v699 = vunpack.c.l.b16 %v597
    %v700 = vunpack.c.h.b16 %v597
    %v701 = vunpack.c.l.b16 %v598
    %v702 = vunpack.c.h.b16 %v598
    %v703 = vunpack.c.l.b16 %v599
    %v704 = vunpack.c.h.b16 %v599
    %v705 = vunpack.c.l.b16 %v600
    %v706 = vunpack.c.h.b16 %v600
    %v707 = vunpack.c.l.b16 %v601
    %v708 = vunpack.c.h.b16 %v601
    %v709 = vunpack.c.l.b16 %v602
    %v710 = vunpack.c.h.b16 %v602
    %v711 = vunpack.c.l.b16 %v603
    %v712 = vunpack.c.h.b16 %v603
    %v713 = vunpack.c.l.b16 %v604
    %v714 = vunpack.c.h.b16 %v604
    %v715 = vunpack.c.l.b16 %v605
    %v716 = vunpack.c.h.b16 %v605
    %v717 = vunpack.c.l.b16 %v606
    %v718 = vunpack.c.h.b16 %v606
    %v719 = vunpack.c.l.b16 %v607
    %v720 = vunpack.c.h.b16 %v607
    %v721 = vunpack.c.l.b16 %v608
    %v722 = vunpack.c.h.b16 %v608
    %v723 = vunpack.c.l.b16 %v609
    %v724 = vunpack.c.h.b16 %v609
    %v725 = vunpack.c.l.b16 %v610
    %v726 = vunpack.c.h.b16 %v610
    %v727 = vunpack.c.l.b16 %v611
    %v728 = vunpack.c.h.b16 %v611
    %v729 = vunpack.c.l.b16 %v612
    %v730 = vunpack.c.h.b16 %v612
    %v731 = vpack.c.b16 %v671, %v667
    %v732 = vpack.c.b16 %v672, %v668
    %v733 = vpack.c.b16 %v673, %v669
    %v734 = vpack.c.b16 %v674, %v670
    %v735 = vpack.c.b16 %v679, %v675
    %v736 = vpack.c.b16 %v680, %v676
    %v737 = vpack.c.b16 %v681, %v677
    %v738 = vpack.c.b16 %v682, %v678
    %v739 = vpack.c.b16 %v687, %v683
    %v740 = vpack.c.b16 %v688, %v684
    %v741 = vpack.c.b16 %v689, %v685
    %v742 = vpack.c.b16 %v690, %v686
    %v743 = vpack.c.b16 %v695, %v691
    %v744 = vpack.c.b16 %v696, %v692
    %v745 = vpack.c.b16 %v697, %v693
    %v746 = vpack.c.b16 %v698, %v694
    %v747 = vpack.c.b16 %v703, %v699
    %v748 = vpack.c.b16 %v704, %v700
    %v749 = vpack.c.b16 %v705, %v701
    %v750 = vpack.c.b16 %v706, %v702
    %v751 = vpack.c.b16 %v711, %v707
    %v752 = vpack.c.b16 %v712, %v708
    %v753 = vpack.c.b16 %v713, %v709
    %v754 = vpack.c.b16 %v714, %v710
    %v755 = vpack.c.b16 %v719, %v715
    %v756 = vpack.c.b16 %v720, %v716
    %v757 = vpack.c.b16 %v721, %v717
    %v758 = vpack.c.b16 %v722, %v718
    %v759 = vpack.c.b16 %v727, %v723
    %v760 = vpack.c.b16 %v728, %v724
    %v761 = vpack.c.b16 %v729, %v725
    %v762 = vpack.c.b16 %v730, %v726
    %795 = vmatprep.subr.bf16.mxu0 %v760
    %796 = vmatpush1.bf16.msra.mxu0 %v759
    %797 = vmatprep.subr.bf16.mxu0 %v756
    %798 = vmatpush1.bf16.msra.mxu0 %v755
    %799 = vmatprep.subr.bf16.mxu0 %v752
    %800 = vmatpush1.bf16.msra.mxu0 %v751
    %801 = vmatprep.subr.bf16.mxu0 %v748
    %802 = vmatpush1.bf16.msra.mxu0 %v747
    %803 = vmatprep.subr.bf16.mxu0 %v744
    %804 = vmatpush1.bf16.msra.mxu0 %v743
    %805 = vmatprep.subr.bf16.mxu0 %v740
    %806 = vmatpush1.bf16.msra.mxu0 %v739
    %807 = vmatprep.subr.bf16.mxu0 %v736
    %808 = vmatpush1.bf16.msra.mxu0 %v735
    %809 = vmatprep.subr.bf16.mxu0 %v732
    %810 = vmatpush1.bf16.msra.mxu0 %v731
    %811 = vmatprep.subr.bf16.mxu0 0
    %812 = vmatpush2.bf16.msra.mxu0 0
    %813 = vmatprep.subr.bf16.mxu0 0
    %814 = vmatpush2.bf16.msra.mxu0 0
    %815 = vmatprep.subr.bf16.mxu0 0
    %816 = vmatpush2.bf16.msra.mxu0 0
    %817 = vmatprep.subr.bf16.mxu0 0
    %818 = vmatpush2.bf16.msra.mxu0 0
    %819 = vmatprep.subr.bf16.mxu0 0
    %820 = vmatpush2.bf16.msra.mxu0 0
    %821 = vmatprep.subr.bf16.mxu0 0
    %822 = vmatpush2.bf16.msra.mxu0 0
    %823 = vmatprep.subr.bf16.mxu0 0
    %824 = vmatpush2.bf16.msra.mxu0 0
    %825 = vmatprep.subr.bf16.mxu0 0
    %826 = vmatpush2.bf16.msra.mxu0 0
    %827 = vmatprep.mubr.bf16.mxu0 0
    %828 = vmatmul.mubr.bf16.gmra.mxu0 %v184
    %v829 = vpop.f32.mrf.mxu0
    %v830 = vadd.f32 %v618, %v829
    %v831 = vpop.f32.mrf.mxu0
    %v832 = vadd.f32 %v622, %v831
    %v833 = vpop.f32.mrf.mxu0
    %v834 = vadd.f32 %v618, %v833
    %v835 = vpop.f32.mrf.mxu0
    %v836 = vadd.f32 %v622, %v835
    %837 = vdwg.mxu0
    %838 = vmatprep.subr.bf16.mxu0 %v762
    %839 = vmatpush1.bf16.msra.mxu0 %v761
    %840 = vmatprep.subr.bf16.mxu0 %v758
    %841 = vmatpush1.bf16.msra.mxu0 %v757
    %842 = vmatprep.subr.bf16.mxu0 %v754
    %843 = vmatpush1.bf16.msra.mxu0 %v753
    %844 = vmatprep.subr.bf16.mxu0 %v750
    %845 = vmatpush1.bf16.msra.mxu0 %v749
    %846 = vmatprep.subr.bf16.mxu0 %v746
    %847 = vmatpush1.bf16.msra.mxu0 %v745
    %848 = vmatprep.subr.bf16.mxu0 %v742
    %849 = vmatpush1.bf16.msra.mxu0 %v741
    %850 = vmatprep.subr.bf16.mxu0 %v738
    %851 = vmatpush1.bf16.msra.mxu0 %v737
    %852 = vmatprep.subr.bf16.mxu0 %v734
    %853 = vmatpush1.bf16.msra.mxu0 %v733
    %854 = vmatprep.subr.bf16.mxu0 0
    %855 = vmatpush2.bf16.msra.mxu0 0
    %856 = vmatprep.subr.bf16.mxu0 0
    %857 = vmatpush2.bf16.msra.mxu0 0
    %858 = vmatprep.subr.bf16.mxu0 0
    %859 = vmatpush2.bf16.msra.mxu0 0
    %860 = vmatprep.subr.bf16.mxu0 0
    %861 = vmatpush2.bf16.msra.mxu0 0
    %862 = vmatprep.subr.bf16.mxu0 0
    %863 = vmatpush2.bf16.msra.mxu0 0
    %864 = vmatprep.subr.bf16.mxu0 0
    %865 = vmatpush2.bf16.msra.mxu0 0
    %866 = vmatprep.subr.bf16.mxu0 0
    %867 = vmatpush2.bf16.msra.mxu0 0
    %868 = vmatprep.subr.bf16.mxu0 0
    %869 = vmatpush2.bf16.msra.mxu0 0
    %870 = vmatprep.mubr.bf16.mxu0 0
    %871 = vmatmul.mubr.bf16.gmra.mxu0 %v184
    %v872 = vpop.f32.mrf.mxu0
    %v873 = vadd.f32 %v626, %v872
    %v874 = vpop.f32.mrf.mxu0
    %v875 = vadd.f32 %v630, %v874
    %v876 = vpop.f32.mrf.mxu0
    %v877 = vadd.f32 %v626, %v876
    %v878 = vpop.f32.mrf.mxu0
    %v879 = vadd.f32 %v630, %v878
    %880 = vdwg.mxu0
    %v889 = vcombine.low %v830, %v832
    %v890 = vcombine.high %v830, %v832
    %v891 = vcombine.low %v873, %v875
    %v892 = vcombine.high %v873, %v875
    %v894 = vunpack.c.l.s4 1983009808
    %v895 = vunpack.c.0.s8 %v894
    %v896 = vlaneseq
    %v897 = vshrl.u32 %v896, 7
    %v898 = vsub.s32 %v895, %v897
    %v899 = vrot.slane %v889, %v898
    %v901 = vunpack.c.l.s4 1983009808
    %v902 = vunpack.c.0.s8 %v901
    %v903 = vlaneseq
    %v904 = vshrl.u32 %v903, 7
    %v905 = vsub.s32 %v902, %v904
    %v906 = vrot.slane %v890, %v905
    %v908 = vunpack.c.l.s4 1983009808
    %v909 = vunpack.c.0.s8 %v908
    %v910 = vlaneseq
    %v911 = vshrl.u32 %v910, 7
    %v912 = vsub.s32 %v909, %v911
    %v913 = vrot.slane %v891, %v912
    %v915 = vunpack.c.l.s4 1983009808
    %v916 = vunpack.c.0.s8 %v915
    %v917 = vlaneseq
    %v918 = vshrl.u32 %v917, 7
    %v919 = vsub.s32 %v916, %v918
    %v920 = vrot.slane %v892, %v919
    %v921 = vcombine.low %v899, %v913
    %v922 = vcombine.high %v899, %v913
    %v923 = vcombine.low %v906, %v920
    %v924 = vcombine.high %v906, %v920
    %v925 = vcombine.low %v834, %v836
    %v926 = vcombine.high %v834, %v836
    %v927 = vcombine.low %v877, %v879
    %v928 = vcombine.high %v877, %v879
    %v930 = vunpack.c.l.s4 1983009808
    %v931 = vunpack.c.0.s8 %v930
    %v932 = vlaneseq
    %v933 = vshrl.u32 %v932, 7
    %v934 = vsub.s32 %v931, %v933
    %v935 = vrot.slane %v925, %v934
    %v937 = vunpack.c.l.s4 1983009808
    %v938 = vunpack.c.0.s8 %v937
    %v939 = vlaneseq
    %v940 = vshrl.u32 %v939, 7
    %v941 = vsub.s32 %v938, %v940
    %v942 = vrot.slane %v926, %v941
    %v944 = vunpack.c.l.s4 1983009808
    %v945 = vunpack.c.0.s8 %v944
    %v946 = vlaneseq
    %v947 = vshrl.u32 %v946, 7
    %v948 = vsub.s32 %v945, %v947
    %v949 = vrot.slane %v927, %v948
    %v951 = vunpack.c.l.s4 1983009808
    %v952 = vunpack.c.0.s8 %v951
    %v953 = vlaneseq
    %v954 = vshrl.u32 %v953, 7
    %v955 = vsub.s32 %v952, %v954
    %v956 = vrot.slane %v928, %v955
    %v957 = vcombine.low %v935, %v949
    %v958 = vcombine.high %v935, %v949
    %v959 = vcombine.low %v942, %v956
    %v960 = vcombine.high %v942, %v956
    %969 = vst [vmem:[#allocation3] sm:$0xff] %v921
    %970 = vst [vmem:[#allocation3 + $0x8] sm:$0xff] %v922
    %971 = vst [vmem:[#allocation3 + $0x10] sm:$0xff] %v923
    %972 = vst [vmem:[#allocation3 + $0x18] sm:$0xff] %v924
    %973 = vst [vmem:[#allocation3 + $0x20] sm:$0xff] %v957
    %974 = vst [vmem:[#allocation3 + $0x28] sm:$0xff] %v958
    %975 = vst [vmem:[#allocation3 + $0x30] sm:$0xff] %v959
    %976 = vst [vmem:[#allocation3 + $0x38] sm:$0xff] %v960
    %v977 = vld [vmem:[#allocation2] sm:$0xff]
    %v978 = vld [vmem:[#allocation11] sm:$0xff]
    %v979 = vld [vmem:[#allocation11 + $0x8] sm:$0xff]
    %v980 = vld [vmem:[#allocation11 + $0x10] sm:$0xff]
    %v981 = vld [vmem:[#allocation11 + $0x18] sm:$0xff]
    %v982 = vld [vmem:[#allocation11 + $0x20] sm:$0xff]
    %v983 = vld [vmem:[#allocation11 + $0x28] sm:$0xff]
    %v984 = vld [vmem:[#allocation11 + $0x30] sm:$0xff]
    %v985 = vld [vmem:[#allocation11 + $0x38] sm:$0xff]
    %v986 = vld [vmem:[#allocation11 + $0x40] sm:$0xff]
    %v987 = vld [vmem:[#allocation11 + $0x48] sm:$0xff]
    %v988 = vld [vmem:[#allocation11 + $0x50] sm:$0xff]
    %v989 = vld [vmem:[#allocation11 + $0x58] sm:$0xff]
    %v990 = vld [vmem:[#allocation11 + $0x60] sm:$0xff]
    %v991 = vld [vmem:[#allocation11 + $0x68] sm:$0xff]
    %v992 = vld [vmem:[#allocation11 + $0x70] sm:$0xff]
    %v993 = vld [vmem:[#allocation11 + $0x78] sm:$0xff]
    %v994 = vld [vmem:[#allocation11 + $0x80] sm:$0xff]
    %v995 = vld [vmem:[#allocation11 + $0x88] sm:$0xff]
    %v996 = vld [vmem:[#allocation11 + $0x90] sm:$0xff]
    %v997 = vld [vmem:[#allocation11 + $0x98] sm:$0xff]
    %v998 = vld [vmem:[#allocation11 + $0xa0] sm:$0xff]
    %v999 = vld [vmem:[#allocation11 + $0xa8] sm:$0xff]
    %v1000 = vld [vmem:[#allocation11 + $0xb0] sm:$0xff]
    %v1001 = vld [vmem:[#allocation11 + $0xb8] sm:$0xff]
    %v1002 = vld [vmem:[#allocation11 + $0xc0] sm:$0xff]
    %v1003 = vld [vmem:[#allocation11 + $0xc8] sm:$0xff]
    %v1004 = vld [vmem:[#allocation11 + $0xd0] sm:$0xff]
    %v1005 = vld [vmem:[#allocation11 + $0xd8] sm:$0xff]
    %v1006 = vld [vmem:[#allocation11 + $0xe0] sm:$0xff]
    %v1007 = vld [vmem:[#allocation11 + $0xe8] sm:$0xff]
    %v1008 = vld [vmem:[#allocation11 + $0xf0] sm:$0xff]
    %v1009 = vld [vmem:[#allocation11 + $0xf8] sm:$0xff]
    %v1042 = vunpack.c.l.b16 %v978
    %v1043 = vunpack.c.h.b16 %v978
    %v1044 = vunpack.c.l.b16 %v979
    %v1045 = vunpack.c.h.b16 %v979
    %v1046 = vunpack.c.l.b16 %v980
    %v1047 = vunpack.c.h.b16 %v980
    %v1048 = vunpack.c.l.b16 %v981
    %v1049 = vunpack.c.h.b16 %v981
    %v1050 = vunpack.c.l.b16 %v982
    %v1051 = vunpack.c.h.b16 %v982
    %v1052 = vunpack.c.l.b16 %v983
    %v1053 = vunpack.c.h.b16 %v983
    %v1054 = vunpack.c.l.b16 %v984
    %v1055 = vunpack.c.h.b16 %v984
    %v1056 = vunpack.c.l.b16 %v985
    %v1057 = vunpack.c.h.b16 %v985
    %v1058 = vunpack.c.l.b16 %v986
    %v1059 = vunpack.c.h.b16 %v986
    %v1060 = vunpack.c.l.b16 %v987
    %v1061 = vunpack.c.h.b16 %v987
    %v1062 = vunpack.c.l.b16 %v988
    %v1063 = vunpack.c.h.b16 %v988
    %v1064 = vunpack.c.l.b16 %v989
    %v1065 = vunpack.c.h.b16 %v989
    %v1066 = vunpack.c.l.b16 %v990
    %v1067 = vunpack.c.h.b16 %v990
    %v1068 = vunpack.c.l.b16 %v991
    %v1069 = vunpack.c.h.b16 %v991
    %v1070 = vunpack.c.l.b16 %v992
    %v1071 = vunpack.c.h.b16 %v992
    %v1072 = vunpack.c.l.b16 %v993
    %v1073 = vunpack.c.h.b16 %v993
    %v1074 = vunpack.c.l.b16 %v994
    %v1075 = vunpack.c.h.b16 %v994
    %v1076 = vunpack.c.l.b16 %v995
    %v1077 = vunpack.c.h.b16 %v995
    %v1078 = vunpack.c.l.b16 %v996
    %v1079 = vunpack.c.h.b16 %v996
    %v1080 = vunpack.c.l.b16 %v997
    %v1081 = vunpack.c.h.b16 %v997
    %v1082 = vunpack.c.l.b16 %v998
    %v1083 = vunpack.c.h.b16 %v998
    %v1084 = vunpack.c.l.b16 %v999
    %v1085 = vunpack.c.h.b16 %v999
    %v1086 = vunpack.c.l.b16 %v1000
    %v1087 = vunpack.c.h.b16 %v1000
    %v1088 = vunpack.c.l.b16 %v1001
    %v1089 = vunpack.c.h.b16 %v1001
    %v1090 = vunpack.c.l.b16 %v1002
    %v1091 = vunpack.c.h.b16 %v1002
    %v1092 = vunpack.c.l.b16 %v1003
    %v1093 = vunpack.c.h.b16 %v1003
    %v1094 = vunpack.c.l.b16 %v1004
    %v1095 = vunpack.c.h.b16 %v1004
    %v1096 = vunpack.c.l.b16 %v1005
    %v1097 = vunpack.c.h.b16 %v1005
    %v1098 = vunpack.c.l.b16 %v1006
    %v1099 = vunpack.c.h.b16 %v1006
    %v1100 = vunpack.c.l.b16 %v1007
    %v1101 = vunpack.c.h.b16 %v1007
    %v1102 = vunpack.c.l.b16 %v1008
    %v1103 = vunpack.c.h.b16 %v1008
    %v1104 = vunpack.c.l.b16 %v1009
    %v1105 = vunpack.c.h.b16 %v1009
    %v1106 = vpack.c.b16 %v1046, %v1042
    %v1107 = vpack.c.b16 %v1047, %v1043
    %v1108 = vpack.c.b16 %v1048, %v1044
    %v1109 = vpack.c.b16 %v1049, %v1045
    %v1110 = vpack.c.b16 %v1054, %v1050
    %v1111 = vpack.c.b16 %v1055, %v1051
    %v1112 = vpack.c.b16 %v1056, %v1052
    %v1113 = vpack.c.b16 %v1057, %v1053
    %v1114 = vpack.c.b16 %v1062, %v1058
    %v1115 = vpack.c.b16 %v1063, %v1059
    %v1116 = vpack.c.b16 %v1064, %v1060
    %v1117 = vpack.c.b16 %v1065, %v1061
    %v1118 = vpack.c.b16 %v1070, %v1066
    %v1119 = vpack.c.b16 %v1071, %v1067
    %v1120 = vpack.c.b16 %v1072, %v1068
    %v1121 = vpack.c.b16 %v1073, %v1069
    %v1122 = vpack.c.b16 %v1078, %v1074
    %v1123 = vpack.c.b16 %v1079, %v1075
    %v1124 = vpack.c.b16 %v1080, %v1076
    %v1125 = vpack.c.b16 %v1081, %v1077
    %v1126 = vpack.c.b16 %v1086, %v1082
    %v1127 = vpack.c.b16 %v1087, %v1083
    %v1128 = vpack.c.b16 %v1088, %v1084
    %v1129 = vpack.c.b16 %v1089, %v1085
    %v1130 = vpack.c.b16 %v1094, %v1090
    %v1131 = vpack.c.b16 %v1095, %v1091
    %v1132 = vpack.c.b16 %v1096, %v1092
    %v1133 = vpack.c.b16 %v1097, %v1093
    %v1134 = vpack.c.b16 %v1102, %v1098
    %v1135 = vpack.c.b16 %v1103, %v1099
    %v1136 = vpack.c.b16 %v1104, %v1100
    %v1137 = vpack.c.b16 %v1105, %v1101
    %1170 = vmatprep.subr.bf16.mxu0 %v1135
    %1171 = vmatpush1.bf16.msra.mxu0 %v1134
    %1172 = vmatprep.subr.bf16.mxu0 %v1131
    %1173 = vmatpush1.bf16.msra.mxu0 %v1130
    %1174 = vmatprep.subr.bf16.mxu0 %v1127
    %1175 = vmatpush1.bf16.msra.mxu0 %v1126
    %1176 = vmatprep.subr.bf16.mxu0 %v1123
    %1177 = vmatpush1.bf16.msra.mxu0 %v1122
    %1178 = vmatprep.subr.bf16.mxu0 %v1119
    %1179 = vmatpush1.bf16.msra.mxu0 %v1118
    %1180 = vmatprep.subr.bf16.mxu0 %v1115
    %1181 = vmatpush1.bf16.msra.mxu0 %v1114
    %1182 = vmatprep.subr.bf16.mxu0 %v1111
    %1183 = vmatpush1.bf16.msra.mxu0 %v1110
    %1184 = vmatprep.subr.bf16.mxu0 %v1107
    %1185 = vmatpush1.bf16.msra.mxu0 %v1106
    %1186 = vmatprep.subr.bf16.mxu0 0
    %1187 = vmatpush2.bf16.msra.mxu0 0
    %1188 = vmatprep.subr.bf16.mxu0 0
    %1189 = vmatpush2.bf16.msra.mxu0 0
    %1190 = vmatprep.subr.bf16.mxu0 0
    %1191 = vmatpush2.bf16.msra.mxu0 0
    %1192 = vmatprep.subr.bf16.mxu0 0
    %1193 = vmatpush2.bf16.msra.mxu0 0
    %1194 = vmatprep.subr.bf16.mxu0 0
    %1195 = vmatpush2.bf16.msra.mxu0 0
    %1196 = vmatprep.subr.bf16.mxu0 0
    %1197 = vmatpush2.bf16.msra.mxu0 0
    %1198 = vmatprep.subr.bf16.mxu0 0
    %1199 = vmatpush2.bf16.msra.mxu0 0
    %1200 = vmatprep.subr.bf16.mxu0 0
    %1201 = vmatpush2.bf16.msra.mxu0 0
    %1202 = vmatprep.mubr.bf16.mxu0 0
    %1203 = vmatmul.mubr.bf16.gmra.mxu0 0
    %v1204 = vpop.f32.mrf.mxu0
    %v1205 = vadd.f32 0.0, %v1204
    %v1206 = vpop.f32.mrf.mxu0
    %v1207 = vadd.f32 0.0, %v1206
    %v1208 = vpop.f32.mrf.mxu0
    %v1209 = vpop.f32.mrf.mxu0
    %1210 = vdwg.mxu0
    %1211 = vmatprep.subr.bf16.mxu0 %v1137
    %1212 = vmatpush1.bf16.msra.mxu0 %v1136
    %1213 = vmatprep.subr.bf16.mxu0 %v1133
    %1214 = vmatpush1.bf16.msra.mxu0 %v1132
    %1215 = vmatprep.subr.bf16.mxu0 %v1129
    %1216 = vmatpush1.bf16.msra.mxu0 %v1128
    %1217 = vmatprep.subr.bf16.mxu0 %v1125
    %1218 = vmatpush1.bf16.msra.mxu0 %v1124
    %1219 = vmatprep.subr.bf16.mxu0 %v1121
    %1220 = vmatpush1.bf16.msra.mxu0 %v1120
    %1221 = vmatprep.subr.bf16.mxu0 %v1117
    %1222 = vmatpush1.bf16.msra.mxu0 %v1116
    %1223 = vmatprep.subr.bf16.mxu0 %v1113
    %1224 = vmatpush1.bf16.msra.mxu0 %v1112
    %1225 = vmatprep.subr.bf16.mxu0 %v1109
    %1226 = vmatpush1.bf16.msra.mxu0 %v1108
    %1227 = vmatprep.subr.bf16.mxu0 0
    %1228 = vmatpush2.bf16.msra.mxu0 0
    %1229 = vmatprep.subr.bf16.mxu0 0
    %1230 = vmatpush2.bf16.msra.mxu0 0
    %1231 = vmatprep.subr.bf16.mxu0 0
    %1232 = vmatpush2.bf16.msra.mxu0 0
    %1233 = vmatprep.subr.bf16.mxu0 0
    %1234 = vmatpush2.bf16.msra.mxu0 0
    %1235 = vmatprep.subr.bf16.mxu0 0
    %1236 = vmatpush2.bf16.msra.mxu0 0
    %1237 = vmatprep.subr.bf16.mxu0 0
    %1238 = vmatpush2.bf16.msra.mxu0 0
    %1239 = vmatprep.subr.bf16.mxu0 0
    %1240 = vmatpush2.bf16.msra.mxu0 0
    %1241 = vmatprep.subr.bf16.mxu0 0
    %1242 = vmatpush2.bf16.msra.mxu0 0
    %1243 = vmatprep.mubr.bf16.mxu0 0
    %1244 = vmatmul.mubr.bf16.gmra.mxu0 0
    %v1245 = vpop.f32.mrf.mxu0
    %v1246 = vadd.f32 0.0, %v1245
    %v1247 = vpop.f32.mrf.mxu0
    %v1248 = vadd.f32 0.0, %v1247
    %v1249 = vpop.f32.mrf.mxu0
    %v1250 = vpop.f32.mrf.mxu0
    %1251 = vdwg.mxu0
    %v1256 = vcombine.low %v1205, %v1207
    %v1257 = vcombine.low %v1246, %v1248
    %v1259 = vunpack.c.l.s4 1983009808
    %v1260 = vunpack.c.0.s8 %v1259
    %v1261 = vlaneseq
    %v1262 = vshrl.u32 %v1261, 7
    %v1263 = vsub.s32 %v1260, %v1262
    %v1264 = vrot.slane %v1256, %v1263
    %v1266 = vunpack.c.l.s4 1983009808
    %v1267 = vunpack.c.0.s8 %v1266
    %v1268 = vlaneseq
    %v1269 = vshrl.u32 %v1268, 7
    %v1270 = vsub.s32 %v1267, %v1269
    %v1271 = vrot.slane %v1257, %v1270
    %v1272 = vcombine.low %v1264, %v1271
    %v1274 = vadd.f32 %v977, %v1272
    %s1275 = scalar_lea.vmem [#allocation3], 56
    %v1276 = vld [vmem:[%s1275] sm:$0xff]
    %v1277 = vld [vmem:[#allocation14] sm:$0xff]
    %v1278 = vld [vmem:[#allocation14 + $0x8] sm:$0xff]
    %v1279 = vld [vmem:[#allocation14 + $0x10] sm:$0xff]
    %v1280 = vld [vmem:[#allocation14 + $0x18] sm:$0xff]
    %v1281 = vld [vmem:[#allocation14 + $0x20] sm:$0xff]
    %v1282 = vld [vmem:[#allocation14 + $0x28] sm:$0xff]
    %v1283 = vld [vmem:[#allocation14 + $0x30] sm:$0xff]
    %v1284 = vld [vmem:[#allocation14 + $0x38] sm:$0xff]
    %v1285 = vld [vmem:[#allocation14 + $0x40] sm:$0xff]
    %v1286 = vld [vmem:[#allocation14 + $0x48] sm:$0xff]
    %v1287 = vld [vmem:[#allocation14 + $0x50] sm:$0xff]
    %v1288 = vld [vmem:[#allocation14 + $0x58] sm:$0xff]
    %v1289 = vld [vmem:[#allocation14 + $0x60] sm:$0xff]
    %v1290 = vld [vmem:[#allocation14 + $0x68] sm:$0xff]
    %v1291 = vld [vmem:[#allocation14 + $0x70] sm:$0xff]
    %v1292 = vld [vmem:[#allocation14 + $0x78] sm:$0xff]
    %v1293 = vld [vmem:[#allocation14 + $0x80] sm:$0xff]
    %v1294 = vld [vmem:[#allocation14 + $0x88] sm:$0xff]
    %v1295 = vld [vmem:[#allocation14 + $0x90] sm:$0xff]
    %v1296 = vld [vmem:[#allocation14 + $0x98] sm:$0xff]
    %v1297 = vld [vmem:[#allocation14 + $0xa0] sm:$0xff]
    %v1298 = vld [vmem:[#allocation14 + $0xa8] sm:$0xff]
    %v1299 = vld [vmem:[#allocation14 + $0xb0] sm:$0xff]
    %v1300 = vld [vmem:[#allocation14 + $0xb8] sm:$0xff]
    %v1301 = vld [vmem:[#allocation14 + $0xc0] sm:$0xff]
    %v1302 = vld [vmem:[#allocation14 + $0xc8] sm:$0xff]
    %v1303 = vld [vmem:[#allocation14 + $0xd0] sm:$0xff]
    %v1304 = vld [vmem:[#allocation14 + $0xd8] sm:$0xff]
    %v1305 = vld [vmem:[#allocation14 + $0xe0] sm:$0xff]
    %v1306 = vld [vmem:[#allocation14 + $0xe8] sm:$0xff]
    %v1307 = vld [vmem:[#allocation14 + $0xf0] sm:$0xff]
    %v1308 = vld [vmem:[#allocation14 + $0xf8] sm:$0xff]
    %v1341 = vunpack.c.l.b16 %v1277
    %v1342 = vunpack.c.h.b16 %v1277
    %v1343 = vunpack.c.l.b16 %v1278
    %v1344 = vunpack.c.h.b16 %v1278
    %v1345 = vunpack.c.l.b16 %v1279
    %v1346 = vunpack.c.h.b16 %v1279
    %v1347 = vunpack.c.l.b16 %v1280
    %v1348 = vunpack.c.h.b16 %v1280
    %v1349 = vunpack.c.l.b16 %v1281
    %v1350 = vunpack.c.h.b16 %v1281
    %v1351 = vunpack.c.l.b16 %v1282
    %v1352 = vunpack.c.h.b16 %v1282
    %v1353 = vunpack.c.l.b16 %v1283
    %v1354 = vunpack.c.h.b16 %v1283
    %v1355 = vunpack.c.l.b16 %v1284
    %v1356 = vunpack.c.h.b16 %v1284
    %v1357 = vunpack.c.l.b16 %v1285
    %v1358 = vunpack.c.h.b16 %v1285
    %v1359 = vunpack.c.l.b16 %v1286
    %v1360 = vunpack.c.h.b16 %v1286
    %v1361 = vunpack.c.l.b16 %v1287
    %v1362 = vunpack.c.h.b16 %v1287
    %v1363 = vunpack.c.l.b16 %v1288
    %v1364 = vunpack.c.h.b16 %v1288
    %v1365 = vunpack.c.l.b16 %v1289
    %v1366 = vunpack.c.h.b16 %v1289
    %v1367 = vunpack.c.l.b16 %v1290
    %v1368 = vunpack.c.h.b16 %v1290
    %v1369 = vunpack.c.l.b16 %v1291
    %v1370 = vunpack.c.h.b16 %v1291
    %v1371 = vunpack.c.l.b16 %v1292
    %v1372 = vunpack.c.h.b16 %v1292
    %v1373 = vunpack.c.l.b16 %v1293
    %v1374 = vunpack.c.h.b16 %v1293
    %v1375 = vunpack.c.l.b16 %v1294
    %v1376 = vunpack.c.h.b16 %v1294
    %v1377 = vunpack.c.l.b16 %v1295
    %v1378 = vunpack.c.h.b16 %v1295
    %v1379 = vunpack.c.l.b16 %v1296
    %v1380 = vunpack.c.h.b16 %v1296
    %v1381 = vunpack.c.l.b16 %v1297
    %v1382 = vunpack.c.h.b16 %v1297
    %v1383 = vunpack.c.l.b16 %v1298
    %v1384 = vunpack.c.h.b16 %v1298
    %v1385 = vunpack.c.l.b16 %v1299
    %v1386 = vunpack.c.h.b16 %v1299
    %v1387 = vunpack.c.l.b16 %v1300
    %v1388 = vunpack.c.h.b16 %v1300
    %v1389 = vunpack.c.l.b16 %v1301
    %v1390 = vunpack.c.h.b16 %v1301
    %v1391 = vunpack.c.l.b16 %v1302
    %v1392 = vunpack.c.h.b16 %v1302
    %v1393 = vunpack.c.l.b16 %v1303
    %v1394 = vunpack.c.h.b16 %v1303
    %v1395 = vunpack.c.l.b16 %v1304
    %v1396 = vunpack.c.h.b16 %v1304
    %v1397 = vunpack.c.l.b16 %v1305
    %v1398 = vunpack.c.h.b16 %v1305
    %v1399 = vunpack.c.l.b16 %v1306
    %v1400 = vunpack.c.h.b16 %v1306
    %v1401 = vunpack.c.l.b16 %v1307
    %v1402 = vunpack.c.h.b16 %v1307
    %v1403 = vunpack.c.l.b16 %v1308
    %v1404 = vunpack.c.h.b16 %v1308
    %v1405 = vpack.c.b16 %v1345, %v1341
    %v1406 = vpack.c.b16 %v1346, %v1342
    %v1407 = vpack.c.b16 %v1347, %v1343
    %v1408 = vpack.c.b16 %v1348, %v1344
    %v1409 = vpack.c.b16 %v1353, %v1349
    %v1410 = vpack.c.b16 %v1354, %v1350
    %v1411 = vpack.c.b16 %v1355, %v1351
    %v1412 = vpack.c.b16 %v1356, %v1352
    %v1413 = vpack.c.b16 %v1361, %v1357
    %v1414 = vpack.c.b16 %v1362, %v1358
    %v1415 = vpack.c.b16 %v1363, %v1359
    %v1416 = vpack.c.b16 %v1364, %v1360
    %v1417 = vpack.c.b16 %v1369, %v1365
    %v1418 = vpack.c.b16 %v1370, %v1366
    %v1419 = vpack.c.b16 %v1371, %v1367
    %v1420 = vpack.c.b16 %v1372, %v1368
    %v1421 = vpack.c.b16 %v1377, %v1373
    %v1422 = vpack.c.b16 %v1378, %v1374
    %v1423 = vpack.c.b16 %v1379, %v1375
    %v1424 = vpack.c.b16 %v1380, %v1376
    %v1425 = vpack.c.b16 %v1385, %v1381
    %v1426 = vpack.c.b16 %v1386, %v1382
    %v1427 = vpack.c.b16 %v1387, %v1383
    %v1428 = vpack.c.b16 %v1388, %v1384
    %v1429 = vpack.c.b16 %v1393, %v1389
    %v1430 = vpack.c.b16 %v1394, %v1390
    %v1431 = vpack.c.b16 %v1395, %v1391
    %v1432 = vpack.c.b16 %v1396, %v1392
    %v1433 = vpack.c.b16 %v1401, %v1397
    %v1434 = vpack.c.b16 %v1402, %v1398
    %v1435 = vpack.c.b16 %v1403, %v1399
    %v1436 = vpack.c.b16 %v1404, %v1400
    %1469 = vmatprep.subr.bf16.mxu0 %v1434
    %1470 = vmatpush1.bf16.msra.mxu0 %v1433
    %1471 = vmatprep.subr.bf16.mxu0 %v1430
    %1472 = vmatpush1.bf16.msra.mxu0 %v1429
    %1473 = vmatprep.subr.bf16.mxu0 %v1426
    %1474 = vmatpush1.bf16.msra.mxu0 %v1425
    %1475 = vmatprep.subr.bf16.mxu0 %v1422
    %1476 = vmatpush1.bf16.msra.mxu0 %v1421
    %1477 = vmatprep.subr.bf16.mxu0 %v1418
    %1478 = vmatpush1.bf16.msra.mxu0 %v1417
    %1479 = vmatprep.subr.bf16.mxu0 %v1414
    %1480 = vmatpush1.bf16.msra.mxu0 %v1413
    %1481 = vmatprep.subr.bf16.mxu0 %v1410
    %1482 = vmatpush1.bf16.msra.mxu0 %v1409
    %1483 = vmatprep.subr.bf16.mxu0 %v1406
    %1484 = vmatpush1.bf16.msra.mxu0 %v1405
    %1485 = vmatprep.subr.bf16.mxu0 0
    %1486 = vmatpush2.bf16.msra.mxu0 0
    %1487 = vmatprep.subr.bf16.mxu0 0
    %1488 = vmatpush2.bf16.msra.mxu0 0
    %1489 = vmatprep.subr.bf16.mxu0 0
    %1490 = vmatpush2.bf16.msra.mxu0 0
    %1491 = vmatprep.subr.bf16.mxu0 0
    %1492 = vmatpush2.bf16.msra.mxu0 0
    %1493 = vmatprep.subr.bf16.mxu0 0
    %1494 = vmatpush2.bf16.msra.mxu0 0
    %1495 = vmatprep.subr.bf16.mxu0 0
    %1496 = vmatpush2.bf16.msra.mxu0 0
    %1497 = vmatprep.subr.bf16.mxu0 0
    %1498 = vmatpush2.bf16.msra.mxu0 0
    %1499 = vmatprep.subr.bf16.mxu0 0
    %1500 = vmatpush2.bf16.msra.mxu0 0
    %1501 = vmatprep.mubr.bf16.mxu0 0
    %1502 = vmatmul.mubr.bf16.gmra.mxu0 0
    %v1503 = vpop.f32.mrf.mxu0
    %v1504 = vadd.f32 0.0, %v1503
    %v1505 = vpop.f32.mrf.mxu0
    %v1506 = vadd.f32 0.0, %v1505
    %v1507 = vpop.f32.mrf.mxu0
    %v1508 = vpop.f32.mrf.mxu0
    %1509 = vdwg.mxu0
    %1510 = vmatprep.subr.bf16.mxu0 %v1436
    %1511 = vmatpush1.bf16.msra.mxu0 %v1435
    %1512 = vmatprep.subr.bf16.mxu0 %v1432
    %1513 = vmatpush1.bf16.msra.mxu0 %v1431
    %1514 = vmatprep.subr.bf16.mxu0 %v1428
    %1515 = vmatpush1.bf16.msra.mxu0 %v1427
    %1516 = vmatprep.subr.bf16.mxu0 %v1424
    %1517 = vmatpush1.bf16.msra.mxu0 %v1423
    %1518 = vmatprep.subr.bf16.mxu0 %v1420
    %1519 = vmatpush1.bf16.msra.mxu0 %v1419
    %1520 = vmatprep.subr.bf16.mxu0 %v1416
    %1521 = vmatpush1.bf16.msra.mxu0 %v1415
    %1522 = vmatprep.subr.bf16.mxu0 %v1412
    %1523 = vmatpush1.bf16.msra.mxu0 %v1411
    %1524 = vmatprep.subr.bf16.mxu0 %v1408
    %1525 = vmatpush1.bf16.msra.mxu0 %v1407
    %1526 = vmatprep.subr.bf16.mxu0 0
    %1527 = vmatpush2.bf16.msra.mxu0 0
    %1528 = vmatprep.subr.bf16.mxu0 0
    %1529 = vmatpush2.bf16.msra.mxu0 0
    %1530 = vmatprep.subr.bf16.mxu0 0
    %1531 = vmatpush2.bf16.msra.mxu0 0
    %1532 = vmatprep.subr.bf16.mxu0 0
    %1533 = vmatpush2.bf16.msra.mxu0 0
    %1534 = vmatprep.subr.bf16.mxu0 0
    %1535 = vmatpush2.bf16.msra.mxu0 0
    %1536 = vmatprep.subr.bf16.mxu0 0
    %1537 = vmatpush2.bf16.msra.mxu0 0
    %1538 = vmatprep.subr.bf16.mxu0 0
    %1539 = vmatpush2.bf16.msra.mxu0 0
    %1540 = vmatprep.subr.bf16.mxu0 0
    %1541 = vmatpush2.bf16.msra.mxu0 0
    %1542 = vmatprep.mubr.bf16.mxu0 0
    %1543 = vmatmul.mubr.bf16.gmra.mxu0 0
    %v1544 = vpop.f32.mrf.mxu0
    %v1545 = vadd.f32 0.0, %v1544
    %v1546 = vpop.f32.mrf.mxu0
    %v1547 = vadd.f32 0.0, %v1546
    %v1548 = vpop.f32.mrf.mxu0
    %v1549 = vpop.f32.mrf.mxu0
    %1550 = vdwg.mxu0
    %v1555 = vcombine.low %v1504, %v1506
    %v1556 = vcombine.low %v1545, %v1547
    %v1558 = vunpack.c.l.s4 1983009808
    %v1559 = vunpack.c.0.s8 %v1558
    %v1560 = vlaneseq
    %v1561 = vshrl.u32 %v1560, 7
    %v1562 = vsub.s32 %v1559, %v1561
    %v1563 = vrot.slane %v1555, %v1562
    %v1565 = vunpack.c.l.s4 1983009808
    %v1566 = vunpack.c.0.s8 %v1565
    %v1567 = vlaneseq
    %v1568 = vshrl.u32 %v1567, 7
    %v1569 = vsub.s32 %v1566, %v1568
    %v1570 = vrot.slane %v1556, %v1569
    %v1571 = vcombine.low %v1563, %v1570
    %v1573 = vadd.f32 %v1276, %v1571
    %v1574 = vxor.u32 %v1274, 2147483648
    %v1575 = vmul.f32 %v1574, 1.442695
    %v1576 = vpow.pop %v1575
    %v1577 = vadd.f32 %v1576, 1.0
    %v1578 = vrcp.pop %v1577
    %v1579 = vmul.f32 1.0, %v1578
    %v1581 = vrot.slane %v1274, 2
    %v1583 = vxor.u32 %v1581, 2147483648
    %v1584 = vmul.f32 %v1583, 1.442695
    %v1585 = vpow.pop %v1584
    %v1586 = vadd.f32 %v1585, 1.0
    %v1587 = vrcp.pop %v1586
    %v1588 = vmul.f32 1.0, %v1587
    %v1589 = vrot.slane %v1274, 4
    %v1591 = vtanh.pop %v1589
    %v1592 = vrot.slane %v1274, 6
    %v1594 = vxor.u32 %v1592, 2147483648
    %v1595 = vmul.f32 %v1594, 1.442695
    %v1596 = vpow.pop %v1595
    %v1597 = vadd.f32 %v1596, 1.0
    %v1598 = vrcp.pop %v1597
    %v1599 = vmul.f32 1.0, %v1598
    %v1600 = vmul.f32 %v1588, 0.0
    %v1601 = vmul.f32 %v1579, %v1591
    %v1602 = vadd.f32 %v1600, %v1601
    %v1603 = vtanh.pop %v1602
    %v1604 = vmul.f32 %v1599, %v1603
    %v1605 = vxor.u32 %v1573, 2147483648
    %v1606 = vmul.f32 %v1605, 1.442695
    %v1607 = vpow.pop %v1606
    %v1608 = vadd.f32 %v1607, 1.0
    %v1609 = vrcp.pop %v1608
    %v1610 = vmul.f32 1.0, %v1609
    %v1612 = vrot.slane %v1573, 2
    %v1614 = vxor.u32 %v1612, 2147483648
    %v1615 = vmul.f32 %v1614, 1.442695
    %v1616 = vpow.pop %v1615
    %v1617 = vadd.f32 %v1616, 1.0
    %v1618 = vrcp.pop %v1617
    %v1619 = vmul.f32 1.0, %v1618
    %v1620 = vrot.slane %v1573, 4
    %v1622 = vtanh.pop %v1620
    %v1623 = vrot.slane %v1573, 6
    %v1625 = vxor.u32 %v1623, 2147483648
    %v1626 = vmul.f32 %v1625, 1.442695
    %v1627 = vpow.pop %v1626
    %v1628 = vadd.f32 %v1627, 1.0
    %v1629 = vrcp.pop %v1628
    %v1630 = vmul.f32 1.0, %v1629
    %v1631 = vmul.f32 %v1619, 0.0
    %v1632 = vmul.f32 %v1610, %v1622
    %v1633 = vadd.f32 %v1631, %v1632
    %v1634 = vtanh.pop %v1633
    %v1635 = vmul.f32 %v1630, %v1634
    %1636 = vst [vmem:[#allocation4] sm:$0x3] %v1604
    %s1637 = scalar_lea.vmem [#allocation5], 14
    %1638 = vst [vmem:[%s1637] sm:$0x3] %v1635
    %s1639 = scalar_lea.vmem [#allocation2], 8
    %v1640 = vld [vmem:[%s1639] sm:$0xff]
    %v1641 = vpack.c.bf16 %v1604, %v1604
    %v1642 = vld [vmem:[#allocation11] sm:$0xff]
    %v1643 = vld [vmem:[#allocation11 + $0x8] sm:$0xff]
    %v1644 = vld [vmem:[#allocation11 + $0x10] sm:$0xff]
    %v1645 = vld [vmem:[#allocation11 + $0x18] sm:$0xff]
    %v1646 = vld [vmem:[#allocation11 + $0x20] sm:$0xff]
    %v1647 = vld [vmem:[#allocation11 + $0x28] sm:$0xff]
    %v1648 = vld [vmem:[#allocation11 + $0x30] sm:$0xff]
    %v1649 = vld [vmem:[#allocation11 + $0x38] sm:$0xff]
    %v1650 = vld [vmem:[#allocation11 + $0x40] sm:$0xff]
    %v1651 = vld [vmem:[#allocation11 + $0x48] sm:$0xff]
    %v1652 = vld [vmem:[#allocation11 + $0x50] sm:$0xff]
    %v1653 = vld [vmem:[#allocation11 + $0x58] sm:$0xff]
    %v1654 = vld [vmem:[#allocation11 + $0x60] sm:$0xff]
    %v1655 = vld [vmem:[#allocation11 + $0x68] sm:$0xff]
    %v1656 = vld [vmem:[#allocation11 + $0x70] sm:$0xff]
    %v1657 = vld [vmem:[#allocation11 + $0x78] sm:$0xff]
    %v1658 = vld [vmem:[#allocation11 + $0x80] sm:$0xff]
    %v1659 = vld [vmem:[#allocation11 + $0x88] sm:$0xff]
    %v1660 = vld [vmem:[#allocation11 + $0x90] sm:$0xff]
    %v1661 = vld [vmem:[#allocation11 + $0x98] sm:$0xff]
    %v1662 = vld [vmem:[#allocation11 + $0xa0] sm:$0xff]
    %v1663 = vld [vmem:[#allocation11 + $0xa8] sm:$0xff]
    %v1664 = vld [vmem:[#allocation11 + $0xb0] sm:$0xff]
    %v1665 = vld [vmem:[#allocation11 + $0xb8] sm:$0xff]
    %v1666 = vld [vmem:[#allocation11 + $0xc0] sm:$0xff]
    %v1667 = vld [vmem:[#allocation11 + $0xc8] sm:$0xff]
    %v1668 = vld [vmem:[#allocation11 + $0xd0] sm:$0xff]
    %v1669 = vld [vmem:[#allocation11 + $0xd8] sm:$0xff]
    %v1670 = vld [vmem:[#allocation11 + $0xe0] sm:$0xff]
    %v1671 = vld [vmem:[#allocation11 + $0xe8] sm:$0xff]
    %v1672 = vld [vmem:[#allocation11 + $0xf0] sm:$0xff]
    %v1673 = vld [vmem:[#allocation11 + $0xf8] sm:$0xff]
    %v1706 = vunpack.c.l.b16 %v1642
    %v1707 = vunpack.c.h.b16 %v1642
    %v1708 = vunpack.c.l.b16 %v1643
    %v1709 = vunpack.c.h.b16 %v1643
    %v1710 = vunpack.c.l.b16 %v1644
    %v1711 = vunpack.c.h.b16 %v1644
    %v1712 = vunpack.c.l.b16 %v1645
    %v1713 = vunpack.c.h.b16 %v1645
    %v1714 = vunpack.c.l.b16 %v1646
    %v1715 = vunpack.c.h.b16 %v1646
    %v1716 = vunpack.c.l.b16 %v1647
    %v1717 = vunpack.c.h.b16 %v1647
    %v1718 = vunpack.c.l.b16 %v1648
    %v1719 = vunpack.c.h.b16 %v1648
    %v1720 = vunpack.c.l.b16 %v1649
    %v1721 = vunpack.c.h.b16 %v1649
    %v1722 = vunpack.c.l.b16 %v1650
    %v1723 = vunpack.c.h.b16 %v1650
    %v1724 = vunpack.c.l.b16 %v1651
    %v1725 = vunpack.c.h.b16 %v1651
    %v1726 = vunpack.c.l.b16 %v1652
    %v1727 = vunpack.c.h.b16 %v1652
    %v1728 = vunpack.c.l.b16 %v1653
    %v1729 = vunpack.c.h.b16 %v1653
    %v1730 = vunpack.c.l.b16 %v1654
    %v1731 = vunpack.c.h.b16 %v1654
    %v1732 = vunpack.c.l.b16 %v1655
    %v1733 = vunpack.c.h.b16 %v1655
    %v1734 = vunpack.c.l.b16 %v1656
    %v1735 = vunpack.c.h.b16 %v1656
    %v1736 = vunpack.c.l.b16 %v1657
    %v1737 = vunpack.c.h.b16 %v1657
    %v1738 = vunpack.c.l.b16 %v1658
    %v1739 = vunpack.c.h.b16 %v1658
    %v1740 = vunpack.c.l.b16 %v1659
    %v1741 = vunpack.c.h.b16 %v1659
    %v1742 = vunpack.c.l.b16 %v1660
    %v1743 = vunpack.c.h.b16 %v1660
    %v1744 = vunpack.c.l.b16 %v1661
    %v1745 = vunpack.c.h.b16 %v1661
    %v1746 = vunpack.c.l.b16 %v1662
    %v1747 = vunpack.c.h.b16 %v1662
    %v1748 = vunpack.c.l.b16 %v1663
    %v1749 = vunpack.c.h.b16 %v1663
    %v1750 = vunpack.c.l.b16 %v1664
    %v1751 = vunpack.c.h.b16 %v1664
    %v1752 = vunpack.c.l.b16 %v1665
    %v1753 = vunpack.c.h.b16 %v1665
    %v1754 = vunpack.c.l.b16 %v1666
    %v1755 = vunpack.c.h.b16 %v1666
    %v1756 = vunpack.c.l.b16 %v1667
    %v1757 = vunpack.c.h.b16 %v1667
    %v1758 = vunpack.c.l.b16 %v1668
    %v1759 = vunpack.c.h.b16 %v1668
    %v1760 = vunpack.c.l.b16 %v1669
    %v1761 = vunpack.c.h.b16 %v1669
    %v1762 = vunpack.c.l.b16 %v1670
    %v1763 = vunpack.c.h.b16 %v1670
    %v1764 = vunpack.c.l.b16 %v1671
    %v1765 = vunpack.c.h.b16 %v1671
    %v1766 = vunpack.c.l.b16 %v1672
    %v1767 = vunpack.c.h.b16 %v1672
    %v1768 = vunpack.c.l.b16 %v1673
    %v1769 = vunpack.c.h.b16 %v1673
    %v1770 = vpack.c.b16 %v1710, %v1706
    %v1771 = vpack.c.b16 %v1711, %v1707
    %v1772 = vpack.c.b16 %v1712, %v1708
    %v1773 = vpack.c.b16 %v1713, %v1709
    %v1774 = vpack.c.b16 %v1718, %v1714
    %v1775 = vpack.c.b16 %v1719, %v1715
    %v1776 = vpack.c.b16 %v1720, %v1716
    %v1777 = vpack.c.b16 %v1721, %v1717
    %v1778 = vpack.c.b16 %v1726, %v1722
    %v1779 = vpack.c.b16 %v1727, %v1723
    %v1780 = vpack.c.b16 %v1728, %v1724
    %v1781 = vpack.c.b16 %v1729, %v1725
    %v1782 = vpack.c.b16 %v1734, %v1730
    %v1783 = vpack.c.b16 %v1735, %v1731
    %v1784 = vpack.c.b16 %v1736, %v1732
    %v1785 = vpack.c.b16 %v1737, %v1733
    %v1786 = vpack.c.b16 %v1742, %v1738
    %v1787 = vpack.c.b16 %v1743, %v1739
    %v1788 = vpack.c.b16 %v1744, %v1740
    %v1789 = vpack.c.b16 %v1745, %v1741
    %v1790 = vpack.c.b16 %v1750, %v1746
    %v1791 = vpack.c.b16 %v1751, %v1747
    %v1792 = vpack.c.b16 %v1752, %v1748
    %v1793 = vpack.c.b16 %v1753, %v1749
    %v1794 = vpack.c.b16 %v1758, %v1754
    %v1795 = vpack.c.b16 %v1759, %v1755
    %v1796 = vpack.c.b16 %v1760, %v1756
    %v1797 = vpack.c.b16 %v1761, %v1757
    %v1798 = vpack.c.b16 %v1766, %v1762
    %v1799 = vpack.c.b16 %v1767, %v1763
    %v1800 = vpack.c.b16 %v1768, %v1764
    %v1801 = vpack.c.b16 %v1769, %v1765
    %1834 = vmatprep.subr.bf16.mxu0 %v1799
    %1835 = vmatpush1.bf16.msra.mxu0 %v1798
    %1836 = vmatprep.subr.bf16.mxu0 %v1795
    %1837 = vmatpush1.bf16.msra.mxu0 %v1794
    %1838 = vmatprep.subr.bf16.mxu0 %v1791
    %1839 = vmatpush1.bf16.msra.mxu0 %v1790
    %1840 = vmatprep.subr.bf16.mxu0 %v1787
    %1841 = vmatpush1.bf16.msra.mxu0 %v1786
    %1842 = vmatprep.subr.bf16.mxu0 %v1783
    %1843 = vmatpush1.bf16.msra.mxu0 %v1782
    %1844 = vmatprep.subr.bf16.mxu0 %v1779
    %1845 = vmatpush1.bf16.msra.mxu0 %v1778
    %1846 = vmatprep.subr.bf16.mxu0 %v1775
    %1847 = vmatpush1.bf16.msra.mxu0 %v1774
    %1848 = vmatprep.subr.bf16.mxu0 %v1771
    %1849 = vmatpush1.bf16.msra.mxu0 %v1770
    %1850 = vmatprep.subr.bf16.mxu0 0
    %1851 = vmatpush2.bf16.msra.mxu0 0
    %1852 = vmatprep.subr.bf16.mxu0 0
    %1853 = vmatpush2.bf16.msra.mxu0 0
    %1854 = vmatprep.subr.bf16.mxu0 0
    %1855 = vmatpush2.bf16.msra.mxu0 0
    %1856 = vmatprep.subr.bf16.mxu0 0
    %1857 = vmatpush2.bf16.msra.mxu0 0
    %1858 = vmatprep.subr.bf16.mxu0 0
    %1859 = vmatpush2.bf16.msra.mxu0 0
    %1860 = vmatprep.subr.bf16.mxu0 0
    %1861 = vmatpush2.bf16.msra.mxu0 0
    %1862 = vmatprep.subr.bf16.mxu0 0
    %1863 = vmatpush2.bf16.msra.mxu0 0
    %1864 = vmatprep.subr.bf16.mxu0 0
    %1865 = vmatpush2.bf16.msra.mxu0 0
    %1866 = vmatprep.mubr.bf16.mxu0 0
    %1867 = vmatmul.mubr.bf16.gmra.mxu0 %v1641
    %v1868 = vpop.f32.mrf.mxu0
    %v1869 = vadd.f32 0.0, %v1868
    %v1870 = vpop.f32.mrf.mxu0
    %v1871 = vadd.f32 0.0, %v1870
    %v1872 = vpop.f32.mrf.mxu0
    %v1873 = vpop.f32.mrf.mxu0
    %1874 = vdwg.mxu0
    %1875 = vmatprep.subr.bf16.mxu0 %v1801
    %1876 = vmatpush1.bf16.msra.mxu0 %v1800
    %1877 = vmatprep.subr.bf16.mxu0 %v1797
    %1878 = vmatpush1.bf16.msra.mxu0 %v1796
    %1879 = vmatprep.subr.bf16.mxu0 %v1793
    %1880 = vmatpush1.bf16.msra.mxu0 %v1792
    %1881 = vmatprep.subr.bf16.mxu0 %v1789
    %1882 = vmatpush1.bf16.msra.mxu0 %v1788
    %1883 = vmatprep.subr.bf16.mxu0 %v1785
    %1884 = vmatpush1.bf16.msra.mxu0 %v1784
    %1885 = vmatprep.subr.bf16.mxu0 %v1781
    %1886 = vmatpush1.bf16.msra.mxu0 %v1780
    %1887 = vmatprep.subr.bf16.mxu0 %v1777
    %1888 = vmatpush1.bf16.msra.mxu0 %v1776
    %1889 = vmatprep.subr.bf16.mxu0 %v1773
    %1890 = vmatpush1.bf16.msra.mxu0 %v1772
    %1891 = vmatprep.subr.bf16.mxu0 0
    %1892 = vmatpush2.bf16.msra.mxu0 0
    %1893 = vmatprep.subr.bf16.mxu0 0
    %1894 = vmatpush2.bf16.msra.mxu0 0
    %1895 = vmatprep.subr.bf16.mxu0 0
    %1896 = vmatpush2.bf16.msra.mxu0 0
    %1897 = vmatprep.subr.bf16.mxu0 0
    %1898 = vmatpush2.bf16.msra.mxu0 0
    %1899 = vmatprep.subr.bf16.mxu0 0
    %1900 = vmatpush2.bf16.msra.mxu0 0
    %1901 = vmatprep.subr.bf16.mxu0 0
    %1902 = vmatpush2.bf16.msra.mxu0 0
    %1903 = vmatprep.subr.bf16.mxu0 0
    %1904 = vmatpush2.bf16.msra.mxu0 0
    %1905 = vmatprep.subr.bf16.mxu0 0
    %1906 = vmatpush2.bf16.msra.mxu0 0
    %1907 = vmatprep.mubr.bf16.mxu0 0
    %1908 = vmatmul.mubr.bf16.gmra.mxu0 %v1641
    %v1909 = vpop.f32.mrf.mxu0
    %v1910 = vadd.f32 0.0, %v1909
    %v1911 = vpop.f32.mrf.mxu0
    %v1912 = vadd.f32 0.0, %v1911
    %v1913 = vpop.f32.mrf.mxu0
    %v1914 = vpop.f32.mrf.mxu0
    %1915 = vdwg.mxu0
    %v1920 = vcombine.low %v1869, %v1871
    %v1921 = vcombine.low %v1910, %v1912
    %v1923 = vunpack.c.l.s4 1983009808
    %v1924 = vunpack.c.0.s8 %v1923
    %v1925 = vlaneseq
    %v1926 = vshrl.u32 %v1925, 7
    %v1927 = vsub.s32 %v1924, %v1926
    %v1928 = vrot.slane %v1920, %v1927
    %v1930 = vunpack.c.l.s4 1983009808
    %v1931 = vunpack.c.0.s8 %v1930
    %v1932 = vlaneseq
    %v1933 = vshrl.u32 %v1932, 7
    %v1934 = vsub.s32 %v1931, %v1933
    %v1935 = vrot.slane %v1921, %v1934
    %v1936 = vcombine.low %v1928, %v1935
    %v1938 = vadd.f32 %v1640, %v1936
    %s1939 = scalar_lea.vmem [#allocation3], 48
    %v1940 = vld [vmem:[%s1939] sm:$0xff]
    %v1941 = vpack.c.bf16 %v1635, %v1635
    %v1942 = vld [vmem:[#allocation14] sm:$0xff]
    %v1943 = vld [vmem:[#allocation14 + $0x8] sm:$0xff]
    %v1944 = vld [vmem:[#allocation14 + $0x10] sm:$0xff]
    %v1945 = vld [vmem:[#allocation14 + $0x18] sm:$0xff]
    %v1946 = vld [vmem:[#allocation14 + $0x20] sm:$0xff]
    %v1947 = vld [vmem:[#allocation14 + $0x28] sm:$0xff]
    %v1948 = vld [vmem:[#allocation14 + $0x30] sm:$0xff]
    %v1949 = vld [vmem:[#allocation14 + $0x38] sm:$0xff]
    %v1950 = vld [vmem:[#allocation14 + $0x40] sm:$0xff]
    %v1951 = vld [vmem:[#allocation14 + $0x48] sm:$0xff]
    %v1952 = vld [vmem:[#allocation14 + $0x50] sm:$0xff]
    %v1953 = vld [vmem:[#allocation14 + $0x58] sm:$0xff]
    %v1954 = vld [vmem:[#allocation14 + $0x60] sm:$0xff]
    %v1955 = vld [vmem:[#allocation14 + $0x68] sm:$0xff]
    %v1956 = vld [vmem:[#allocation14 + $0x70] sm:$0xff]
    %v1957 = vld [vmem:[#allocation14 + $0x78] sm:$0xff]
    %v1958 = vld [vmem:[#allocation14 + $0x80] sm:$0xff]
    %v1959 = vld [vmem:[#allocation14 + $0x88] sm:$0xff]
    %v1960 = vld [vmem:[#allocation14 + $0x90] sm:$0xff]
    %v1961 = vld [vmem:[#allocation14 + $0x98] sm:$0xff]
    %v1962 = vld [vmem:[#allocation14 + $0xa0] sm:$0xff]
    %v1963 = vld [vmem:[#allocation14 + $0xa8] sm:$0xff]
    %v1964 = vld [vmem:[#allocation14 + $0xb0] sm:$0xff]
    %v1965 = vld [vmem:[#allocation14 + $0xb8] sm:$0xff]
    %v1966 = vld [vmem:[#allocation14 + $0xc0] sm:$0xff]
    %v1967 = vld [vmem:[#allocation14 + $0xc8] sm:$0xff]
    %v1968 = vld [vmem:[#allocation14 + $0xd0] sm:$0xff]
    %v1969 = vld [vmem:[#allocation14 + $0xd8] sm:$0xff]
    %v1970 = vld [vmem:[#allocation14 + $0xe0] sm:$0xff]
    %v1971 = vld [vmem:[#allocation14 + $0xe8] sm:$0xff]
    %v1972 = vld [vmem:[#allocation14 + $0xf0] sm:$0xff]
    %v1973 = vld [vmem:[#allocation14 + $0xf8] sm:$0xff]
    %v2006 = vunpack.c.l.b16 %v1942
    %v2007 = vunpack.c.h.b16 %v1942
    %v2008 = vunpack.c.l.b16 %v1943
    %v2009 = vunpack.c.h.b16 %v1943
    %v2010 = vunpack.c.l.b16 %v1944
    %v2011 = vunpack.c.h.b16 %v1944
    %v2012 = vunpack.c.l.b16 %v1945
    %v2013 = vunpack.c.h.b16 %v1945
    %v2014 = vunpack.c.l.b16 %v1946
    %v2015 = vunpack.c.h.b16 %v1946
    %v2016 = vunpack.c.l.b16 %v1947
    %v2017 = vunpack.c.h.b16 %v1947
    %v2018 = vunpack.c.l.b16 %v1948
    %v2019 = vunpack.c.h.b16 %v1948
    %v2020 = vunpack.c.l.b16 %v1949
    %v2021 = vunpack.c.h.b16 %v1949
    %v2022 = vunpack.c.l.b16 %v1950
    %v2023 = vunpack.c.h.b16 %v1950
    %v2024 = vunpack.c.l.b16 %v1951
    %v2025 = vunpack.c.h.b16 %v1951
    %v2026 = vunpack.c.l.b16 %v1952
    %v2027 = vunpack.c.h.b16 %v1952
    %v2028 = vunpack.c.l.b16 %v1953
    %v2029 = vunpack.c.h.b16 %v1953
    %v2030 = vunpack.c.l.b16 %v1954
    %v2031 = vunpack.c.h.b16 %v1954
    %v2032 = vunpack.c.l.b16 %v1955
    %v2033 = vunpack.c.h.b16 %v1955
    %v2034 = vunpack.c.l.b16 %v1956
    %v2035 = vunpack.c.h.b16 %v1956
    %v2036 = vunpack.c.l.b16 %v1957
    %v2037 = vunpack.c.h.b16 %v1957
    %v2038 = vunpack.c.l.b16 %v1958
    %v2039 = vunpack.c.h.b16 %v1958
    %v2040 = vunpack.c.l.b16 %v1959
    %v2041 = vunpack.c.h.b16 %v1959
    %v2042 = vunpack.c.l.b16 %v1960
    %v2043 = vunpack.c.h.b16 %v1960
    %v2044 = vunpack.c.l.b16 %v1961
    %v2045 = vunpack.c.h.b16 %v1961
    %v2046 = vunpack.c.l.b16 %v1962
    %v2047 = vunpack.c.h.b16 %v1962
    %v2048 = vunpack.c.l.b16 %v1963
    %v2049 = vunpack.c.h.b16 %v1963
    %v2050 = vunpack.c.l.b16 %v1964
    %v2051 = vunpack.c.h.b16 %v1964
    %v2052 = vunpack.c.l.b16 %v1965
    %v2053 = vunpack.c.h.b16 %v1965
    %v2054 = vunpack.c.l.b16 %v1966
    %v2055 = vunpack.c.h.b16 %v1966
    %v2056 = vunpack.c.l.b16 %v1967
    %v2057 = vunpack.c.h.b16 %v1967
    %v2058 = vunpack.c.l.b16 %v1968
    %v2059 = vunpack.c.h.b16 %v1968
    %v2060 = vunpack.c.l.b16 %v1969
    %v2061 = vunpack.c.h.b16 %v1969
    %v2062 = vunpack.c.l.b16 %v1970
    %v2063 = vunpack.c.h.b16 %v1970
    %v2064 = vunpack.c.l.b16 %v1971
    %v2065 = vunpack.c.h.b16 %v1971
    %v2066 = vunpack.c.l.b16 %v1972
    %v2067 = vunpack.c.h.b16 %v1972
    %v2068 = vunpack.c.l.b16 %v1973
    %v2069 = vunpack.c.h.b16 %v1973
    %v2070 = vpack.c.b16 %v2010, %v2006
    %v2071 = vpack.c.b16 %v2011, %v2007
    %v2072 = vpack.c.b16 %v2012, %v2008
    %v2073 = vpack.c.b16 %v2013, %v2009
    %v2074 = vpack.c.b16 %v2018, %v2014
    %v2075 = vpack.c.b16 %v2019, %v2015
    %v2076 = vpack.c.b16 %v2020, %v2016
    %v2077 = vpack.c.b16 %v2021, %v2017
    %v2078 = vpack.c.b16 %v2026, %v2022
    %v2079 = vpack.c.b16 %v2027, %v2023
    %v2080 = vpack.c.b16 %v2028, %v2024
    %v2081 = vpack.c.b16 %v2029, %v2025
    %v2082 = vpack.c.b16 %v2034, %v2030
    %v2083 = vpack.c.b16 %v2035, %v2031
    %v2084 = vpack.c.b16 %v2036, %v2032
    %v2085 = vpack.c.b16 %v2037, %v2033
    %v2086 = vpack.c.b16 %v2042, %v2038
    %v2087 = vpack.c.b16 %v2043, %v2039
    %v2088 = vpack.c.b16 %v2044, %v2040
    %v2089 = vpack.c.b16 %v2045, %v2041
    %v2090 = vpack.c.b16 %v2050, %v2046
    %v2091 = vpack.c.b16 %v2051, %v2047
    %v2092 = vpack.c.b16 %v2052, %v2048
    %v2093 = vpack.c.b16 %v2053, %v2049
    %v2094 = vpack.c.b16 %v2058, %v2054
    %v2095 = vpack.c.b16 %v2059, %v2055
    %v2096 = vpack.c.b16 %v2060, %v2056
    %v2097 = vpack.c.b16 %v2061, %v2057
    %v2098 = vpack.c.b16 %v2066, %v2062
    %v2099 = vpack.c.b16 %v2067, %v2063
    %v2100 = vpack.c.b16 %v2068, %v2064
    %v2101 = vpack.c.b16 %v2069, %v2065
    %2134 = vmatprep.subr.bf16.mxu0 %v2099
    %2135 = vmatpush1.bf16.msra.mxu0 %v2098
    %2136 = vmatprep.subr.bf16.mxu0 %v2095
    %2137 = vmatpush1.bf16.msra.mxu0 %v2094
    %2138 = vmatprep.subr.bf16.mxu0 %v2091
    %2139 = vmatpush1.bf16.msra.mxu0 %v2090
    %2140 = vmatprep.subr.bf16.mxu0 %v2087
    %2141 = vmatpush1.bf16.msra.mxu0 %v2086
    %2142 = vmatprep.subr.bf16.mxu0 %v2083
    %2143 = vmatpush1.bf16.msra.mxu0 %v2082
    %2144 = vmatprep.subr.bf16.mxu0 %v2079
    %2145 = vmatpush1.bf16.msra.mxu0 %v2078
    %2146 = vmatprep.subr.bf16.mxu0 %v2075
    %2147 = vmatpush1.bf16.msra.mxu0 %v2074
    %2148 = vmatprep.subr.bf16.mxu0 %v2071
    %2149 = vmatpush1.bf16.msra.mxu0 %v2070
    %2150 = vmatprep.subr.bf16.mxu0 0
    %2151 = vmatpush2.bf16.msra.mxu0 0
    %2152 = vmatprep.subr.bf16.mxu0 0
    %2153 = vmatpush2.bf16.msra.mxu0 0
    %2154 = vmatprep.subr.bf16.mxu0 0
    %2155 = vmatpush2.bf16.msra.mxu0 0
    %2156 = vmatprep.subr.bf16.mxu0 0
    %2157 = vmatpush2.bf16.msra.mxu0 0
    %2158 = vmatprep.subr.bf16.mxu0 0
    %2159 = vmatpush2.bf16.msra.mxu0 0
    %2160 = vmatprep.subr.bf16.mxu0 0
    %2161 = vmatpush2.bf16.msra.mxu0 0
    %2162 = vmatprep.subr.bf16.mxu0 0
    %2163 = vmatpush2.bf16.msra.mxu0 0
    %2164 = vmatprep.subr.bf16.mxu0 0
    %2165 = vmatpush2.bf16.msra.mxu0 0
    %2166 = vmatprep.mubr.bf16.mxu0 0
    %2167 = vmatmul.mubr.bf16.gmra.mxu0 %v1941
    %v2168 = vpop.f32.mrf.mxu0
    %v2169 = vadd.f32 0.0, %v2168
    %v2170 = vpop.f32.mrf.mxu0
    %v2171 = vadd.f32 0.0, %v2170
    %v2172 = vpop.f32.mrf.mxu0
    %v2173 = vpop.f32.mrf.mxu0
    %2174 = vdwg.mxu0
    %2175 = vmatprep.subr.bf16.mxu0 %v2101
    %2176 = vmatpush1.bf16.msra.mxu0 %v2100
    %2177 = vmatprep.subr.bf16.mxu0 %v2097
    %2178 = vmatpush1.bf16.msra.mxu0 %v2096
    %2179 = vmatprep.subr.bf16.mxu0 %v2093
    %2180 = vmatpush1.bf16.msra.mxu0 %v2092
    %2181 = vmatprep.subr.bf16.mxu0 %v2089
    %2182 = vmatpush1.bf16.msra.mxu0 %v2088
    %2183 = vmatprep.subr.bf16.mxu0 %v2085
    %2184 = vmatpush1.bf16.msra.mxu0 %v2084
    %2185 = vmatprep.subr.bf16.mxu0 %v2081
    %2186 = vmatpush1.bf16.msra.mxu0 %v2080
    %2187 = vmatprep.subr.bf16.mxu0 %v2077
    %2188 = vmatpush1.bf16.msra.mxu0 %v2076
    %2189 = vmatprep.subr.bf16.mxu0 %v2073
    %2190 = vmatpush1.bf16.msra.mxu0 %v2072
    %2191 = vmatprep.subr.bf16.mxu0 0
    %2192 = vmatpush2.bf16.msra.mxu0 0
    %2193 = vmatprep.subr.bf16.mxu0 0
    %2194 = vmatpush2.bf16.msra.mxu0 0
    %2195 = vmatprep.subr.bf16.mxu0 0
    %2196 = vmatpush2.bf16.msra.mxu0 0
    %2197 = vmatprep.subr.bf16.mxu0 0
    %2198 = vmatpush2.bf16.msra.mxu0 0
    %2199 = vmatprep.subr.bf16.mxu0 0
    %2200 = vmatpush2.bf16.msra.mxu0 0
    %2201 = vmatprep.subr.bf16.mxu0 0
    %2202 = vmatpush2.bf16.msra.mxu0 0
    %2203 = vmatprep.subr.bf16.mxu0 0
    %2204 = vmatpush2.bf16.msra.mxu0 0
    %2205 = vmatprep.subr.bf16.mxu0 0
    %2206 = vmatpush2.bf16.msra.mxu0 0
    %2207 = vmatprep.mubr.bf16.mxu0 0
    %2208 = vmatmul.mubr.bf16.gmra.mxu0 %v1941
    %v2209 = vpop.f32.mrf.mxu0
    %v2210 = vadd.f32 0.0, %v2209
    %v2211 = vpop.f32.mrf.mxu0
    %v2212 = vadd.f32 0.0, %v2211
    %v2213 = vpop.f32.mrf.mxu0
    %v2214 = vpop.f32.mrf.mxu0
    %2215 = vdwg.mxu0
    %v2220 = vcombine.low %v2169, %v2171
    %v2221 = vcombine.low %v2210, %v2212
    %v2223 = vunpack.c.l.s4 1983009808
    %v2224 = vunpack.c.0.s8 %v2223
    %v2225 = vlaneseq
    %v2226 = vshrl.u32 %v2225, 7
    %v2227 = vsub.s32 %v2224, %v2226
    %v2228 = vrot.slane %v2220, %v2227
    %v2230 = vunpack.c.l.s4 1983009808
    %v2231 = vunpack.c.0.s8 %v2230
    %v2232 = vlaneseq
    %v2233 = vshrl.u32 %v2232, 7
    %v2234 = vsub.s32 %v2231, %v2233
    %v2235 = vrot.slane %v2221, %v2234
    %v2236 = vcombine.low %v2228, %v2235
    %v2238 = vadd.f32 %v1940, %v2236
    %v2239 = vxor.u32 %v1938, 2147483648
    %v2240 = vmul.f32 %v2239, 1.442695
    %v2241 = vpow.pop %v2240
    %v2242 = vadd.f32 %v2241, 1.0
    %v2243 = vrcp.pop %v2242
    %v2244 = vmul.f32 1.0, %v2243
    %v2246 = vrot.slane %v1938, 2
    %v2248 = vxor.u32 %v2246, 2147483648
    %v2249 = vmul.f32 %v2248, 1.442695
    %v2250 = vpow.pop %v2249
    %v2251 = vadd.f32 %v2250, 1.0
    %v2252 = vrcp.pop %v2251
    %v2253 = vmul.f32 1.0, %v2252
    %v2254 = vrot.slane %v1938, 4
    %v2256 = vtanh.pop %v2254
    %v2257 = vrot.slane %v1938, 6
    %v2259 = vxor.u32 %v2257, 2147483648
    %v2260 = vmul.f32 %v2259, 1.442695
    %v2261 = vpow.pop %v2260
    %v2262 = vadd.f32 %v2261, 1.0
    %v2263 = vrcp.pop %v2262
    %v2264 = vmul.f32 1.0, %v2263
    %v2265 = vmul.f32 %v2253, %v1602
    %v2266 = vmul.f32 %v2244, %v2256
    %v2267 = vadd.f32 %v2265, %v2266
    %v2268 = vtanh.pop %v2267
    %v2269 = vmul.f32 %v2264, %v2268
    %v2270 = vxor.u32 %v2238, 2147483648
    %v2271 = vmul.f32 %v2270, 1.442695
    %v2272 = vpow.pop %v2271
    %v2273 = vadd.f32 %v2272, 1.0
    %v2274 = vrcp.pop %v2273
    %v2275 = vmul.f32 1.0, %v2274
    %v2277 = vrot.slane %v2238, 2
    %v2279 = vxor.u32 %v2277, 2147483648
    %v2280 = vmul.f32 %v2279, 1.442695
    %v2281 = vpow.pop %v2280
    %v2282 = vadd.f32 %v2281, 1.0
    %v2283 = vrcp.pop %v2282
    %v2284 = vmul.f32 1.0, %v2283
    %v2285 = vrot.slane %v2238, 4
    %v2287 = vtanh.pop %v2285
    %v2288 = vrot.slane %v2238, 6
    %v2290 = vxor.u32 %v2288, 2147483648
    %v2291 = vmul.f32 %v2290, 1.442695
    %v2292 = vpow.pop %v2291
    %v2293 = vadd.f32 %v2292, 1.0
    %v2294 = vrcp.pop %v2293
    %v2295 = vmul.f32 1.0, %v2294
    %v2296 = vmul.f32 %v2284, %v1633
    %v2297 = vmul.f32 %v2275, %v2287
    %v2298 = vadd.f32 %v2296, %v2297
    %v2299 = vtanh.pop %v2298
    %v2300 = vmul.f32 %v2295, %v2299
    %s2301 = scalar_lea.vmem [#allocation4], 2
    %2302 = vst [vmem:[%s2301] sm:$0x3] %v2269
    %s2303 = scalar_lea.vmem [#allocation5], 12
    %2304 = vst [vmem:[%s2303] sm:$0x3] %v2300
    %s2305 = scalar_lea.vmem [#allocation2], 16
    %v2306 = vld [vmem:[%s2305] sm:$0xff]
    %v2307 = vpack.c.bf16 %v2269, %v2269
    %v2308 = vld [vmem:[#allocation11] sm:$0xff]
    %v2309 = vld [vmem:[#allocation11 + $0x8] sm:$0xff]
    %v2310 = vld [vmem:[#allocation11 + $0x10] sm:$0xff]
    %v2311 = vld [vmem:[#allocation11 + $0x18] sm:$0xff]
    %v2312 = vld [vmem:[#allocation11 + $0x20] sm:$0xff]
    %v2313 = vld [vmem:[#allocation11 + $0x28] sm:$0xff]
    %v2314 = vld [vmem:[#allocation11 + $0x30] sm:$0xff]
    %v2315 = vld [vmem:[#allocation11 + $0x38] sm:$0xff]
    %v2316 = vld [vmem:[#allocation11 + $0x40] sm:$0xff]
    %v2317 = vld [vmem:[#allocation11 + $0x48] sm:$0xff]
    %v2318 = vld [vmem:[#allocation11 + $0x50] sm:$0xff]
    %v2319 = vld [vmem:[#allocation11 + $0x58] sm:$0xff]
    %v2320 = vld [vmem:[#allocation11 + $0x60] sm:$0xff]
    %v2321 = vld [vmem:[#allocation11 + $0x68] sm:$0xff]
    %v2322 = vld [vmem:[#allocation11 + $0x70] sm:$0xff]
    %v2323 = vld [vmem:[#allocation11 + $0x78] sm:$0xff]
    %v2324 = vld [vmem:[#allocation11 + $0x80] sm:$0xff]
    %v2325 = vld [vmem:[#allocation11 + $0x88] sm:$0xff]
    %v2326 = vld [vmem:[#allocation11 + $0x90] sm:$0xff]
    %v2327 = vld [vmem:[#allocation11 + $0x98] sm:$0xff]
    %v2328 = vld [vmem:[#allocation11 + $0xa0] sm:$0xff]
    %v2329 = vld [vmem:[#allocation11 + $0xa8] sm:$0xff]
    %v2330 = vld [vmem:[#allocation11 + $0xb0] sm:$0xff]
    %v2331 = vld [vmem:[#allocation11 + $0xb8] sm:$0xff]
    %v2332 = vld [vmem:[#allocation11 + $0xc0] sm:$0xff]
    %v2333 = vld [vmem:[#allocation11 + $0xc8] sm:$0xff]
    %v2334 = vld [vmem:[#allocation11 + $0xd0] sm:$0xff]
    %v2335 = vld [vmem:[#allocation11 + $0xd8] sm:$0xff]
    %v2336 = vld [vmem:[#allocation11 + $0xe0] sm:$0xff]
    %v2337 = vld [vmem:[#allocation11 + $0xe8] sm:$0xff]
    %v2338 = vld [vmem:[#allocation11 + $0xf0] sm:$0xff]
    %v2339 = vld [vmem:[#allocation11 + $0xf8] sm:$0xff]
    %v2372 = vunpack.c.l.b16 %v2308
    %v2373 = vunpack.c.h.b16 %v2308
    %v2374 = vunpack.c.l.b16 %v2309
    %v2375 = vunpack.c.h.b16 %v2309
    %v2376 = vunpack.c.l.b16 %v2310
    %v2377 = vunpack.c.h.b16 %v2310
    %v2378 = vunpack.c.l.b16 %v2311
    %v2379 = vunpack.c.h.b16 %v2311
    %v2380 = vunpack.c.l.b16 %v2312
    %v2381 = vunpack.c.h.b16 %v2312
    %v2382 = vunpack.c.l.b16 %v2313
    %v2383 = vunpack.c.h.b16 %v2313
    %v2384 = vunpack.c.l.b16 %v2314
    %v2385 = vunpack.c.h.b16 %v2314
    %v2386 = vunpack.c.l.b16 %v2315
    %v2387 = vunpack.c.h.b16 %v2315
    %v2388 = vunpack.c.l.b16 %v2316
    %v2389 = vunpack.c.h.b16 %v2316
    %v2390 = vunpack.c.l.b16 %v2317
    %v2391 = vunpack.c.h.b16 %v2317
    %v2392 = vunpack.c.l.b16 %v2318
    %v2393 = vunpack.c.h.b16 %v2318
    %v2394 = vunpack.c.l.b16 %v2319
    %v2395 = vunpack.c.h.b16 %v2319
    %v2396 = vunpack.c.l.b16 %v2320
    %v2397 = vunpack.c.h.b16 %v2320
    %v2398 = vunpack.c.l.b16 %v2321
    %v2399 = vunpack.c.h.b16 %v2321
    %v2400 = vunpack.c.l.b16 %v2322
    %v2401 = vunpack.c.h.b16 %v2322
    %v2402 = vunpack.c.l.b16 %v2323
    %v2403 = vunpack.c.h.b16 %v2323
    %v2404 = vunpack.c.l.b16 %v2324
    %v2405 = vunpack.c.h.b16 %v2324
    %v2406 = vunpack.c.l.b16 %v2325
    %v2407 = vunpack.c.h.b16 %v2325
    %v2408 = vunpack.c.l.b16 %v2326
    %v2409 = vunpack.c.h.b16 %v2326
    %v2410 = vunpack.c.l.b16 %v2327
    %v2411 = vunpack.c.h.b16 %v2327
    %v2412 = vunpack.c.l.b16 %v2328
    %v2413 = vunpack.c.h.b16 %v2328
    %v2414 = vunpack.c.l.b16 %v2329
    %v2415 = vunpack.c.h.b16 %v2329
    %v2416 = vunpack.c.l.b16 %v2330
    %v2417 = vunpack.c.h.b16 %v2330
    %v2418 = vunpack.c.l.b16 %v2331
    %v2419 = vunpack.c.h.b16 %v2331
    %v2420 = vunpack.c.l.b16 %v2332
    %v2421 = vunpack.c.h.b16 %v2332
    %v2422 = vunpack.c.l.b16 %v2333
    %v2423 = vunpack.c.h.b16 %v2333
    %v2424 = vunpack.c.l.b16 %v2334
    %v2425 = vunpack.c.h.b16 %v2334
    %v2426 = vunpack.c.l.b16 %v2335
    %v2427 = vunpack.c.h.b16 %v2335
    %v2428 = vunpack.c.l.b16 %v2336
    %v2429 = vunpack.c.h.b16 %v2336
    %v2430 = vunpack.c.l.b16 %v2337
    %v2431 = vunpack.c.h.b16 %v2337
    %v2432 = vunpack.c.l.b16 %v2338
    %v2433 = vunpack.c.h.b16 %v2338
    %v2434 = vunpack.c.l.b16 %v2339
    %v2435 = vunpack.c.h.b16 %v2339
    %v2436 = vpack.c.b16 %v2376, %v2372
    %v2437 = vpack.c.b16 %v2377, %v2373
    %v2438 = vpack.c.b16 %v2378, %v2374
    %v2439 = vpack.c.b16 %v2379, %v2375
    %v2440 = vpack.c.b16 %v2384, %v2380
    %v2441 = vpack.c.b16 %v2385, %v2381
    %v2442 = vpack.c.b16 %v2386, %v2382
    %v2443 = vpack.c.b16 %v2387, %v2383
    %v2444 = vpack.c.b16 %v2392, %v2388
    %v2445 = vpack.c.b16 %v2393, %v2389
    %v2446 = vpack.c.b16 %v2394, %v2390
    %v2447 = vpack.c.b16 %v2395, %v2391
    %v2448 = vpack.c.b16 %v2400, %v2396
    %v2449 = vpack.c.b16 %v2401, %v2397
    %v2450 = vpack.c.b16 %v2402, %v2398
    %v2451 = vpack.c.b16 %v2403, %v2399
    %v2452 = vpack.c.b16 %v2408, %v2404
    %v2453 = vpack.c.b16 %v2409, %v2405
    %v2454 = vpack.c.b16 %v2410, %v2406
    %v2455 = vpack.c.b16 %v2411, %v2407
    %v2456 = vpack.c.b16 %v2416, %v2412
    %v2457 = vpack.c.b16 %v2417, %v2413
    %v2458 = vpack.c.b16 %v2418, %v2414
    %v2459 = vpack.c.b16 %v2419, %v2415
    %v2460 = vpack.c.b16 %v2424, %v2420
    %v2461 = vpack.c.b16 %v2425, %v2421
    %v2462 = vpack.c.b16 %v2426, %v2422
    %v2463 = vpack.c.b16 %v2427, %v2423
    %v2464 = vpack.c.b16 %v2432, %v2428
    %v2465 = vpack.c.b16 %v2433, %v2429
    %v2466 = vpack.c.b16 %v2434, %v2430
    %v2467 = vpack.c.b16 %v2435, %v2431
    %2500 = vmatprep.subr.bf16.mxu0 %v2465
    %2501 = vmatpush1.bf16.msra.mxu0 %v2464
    %2502 = vmatprep.subr.bf16.mxu0 %v2461
    %2503 = vmatpush1.bf16.msra.mxu0 %v2460
    %2504 = vmatprep.subr.bf16.mxu0 %v2457
    %2505 = vmatpush1.bf16.msra.mxu0 %v2456
    %2506 = vmatprep.subr.bf16.mxu0 %v2453
    %2507 = vmatpush1.bf16.msra.mxu0 %v2452
    %2508 = vmatprep.subr.bf16.mxu0 %v2449
    %2509 = vmatpush1.bf16.msra.mxu0 %v2448
    %2510 = vmatprep.subr.bf16.mxu0 %v2445
    %2511 = vmatpush1.bf16.msra.mxu0 %v2444
    %2512 = vmatprep.subr.bf16.mxu0 %v2441
    %2513 = vmatpush1.bf16.msra.mxu0 %v2440
    %2514 = vmatprep.subr.bf16.mxu0 %v2437
    %2515 = vmatpush1.bf16.msra.mxu0 %v2436
    %2516 = vmatprep.subr.bf16.mxu0 0
    %2517 = vmatpush2.bf16.msra.mxu0 0
    %2518 = vmatprep.subr.bf16.mxu0 0
    %2519 = vmatpush2.bf16.msra.mxu0 0
    %2520 = vmatprep.subr.bf16.mxu0 0
    %2521 = vmatpush2.bf16.msra.mxu0 0
    %2522 = vmatprep.subr.bf16.mxu0 0
    %2523 = vmatpush2.bf16.msra.mxu0 0
    %2524 = vmatprep.subr.bf16.mxu0 0
    %2525 = vmatpush2.bf16.msra.mxu0 0
    %2526 = vmatprep.subr.bf16.mxu0 0
    %2527 = vmatpush2.bf16.msra.mxu0 0
    %2528 = vmatprep.subr.bf16.mxu0 0
    %2529 = vmatpush2.bf16.msra.mxu0 0
    %2530 = vmatprep.subr.bf16.mxu0 0
    %2531 = vmatpush2.bf16.msra.mxu0 0
    %2532 = vmatprep.mubr.bf16.mxu0 0
    %2533 = vmatmul.mubr.bf16.gmra.mxu0 %v2307
    %v2534 = vpop.f32.mrf.mxu0
    %v2535 = vadd.f32 0.0, %v2534
    %v2536 = vpop.f32.mrf.mxu0
    %v2537 = vadd.f32 0.0, %v2536
    %v2538 = vpop.f32.mrf.mxu0
    %v2539 = vpop.f32.mrf.mxu0
    %2540 = vdwg.mxu0
    %2541 = vmatprep.subr.bf16.mxu0 %v2467
    %2542 = vmatpush1.bf16.msra.mxu0 %v2466
    %2543 = vmatprep.subr.bf16.mxu0 %v2463
    %2544 = vmatpush1.bf16.msra.mxu0 %v2462
    %2545 = vmatprep.subr.bf16.mxu0 %v2459
    %2546 = vmatpush1.bf16.msra.mxu0 %v2458
    %2547 = vmatprep.subr.bf16.mxu0 %v2455
    %2548 = vmatpush1.bf16.msra.mxu0 %v2454
    %2549 = vmatprep.subr.bf16.mxu0 %v2451
    %2550 = vmatpush1.bf16.msra.mxu0 %v2450
    %2551 = vmatprep.subr.bf16.mxu0 %v2447
    %2552 = vmatpush1.bf16.msra.mxu0 %v2446
    %2553 = vmatprep.subr.bf16.mxu0 %v2443
    %2554 = vmatpush1.bf16.msra.mxu0 %v2442
    %2555 = vmatprep.subr.bf16.mxu0 %v2439
    %2556 = vmatpush1.bf16.msra.mxu0 %v2438
    %2557 = vmatprep.subr.bf16.mxu0 0
    %2558 = vmatpush2.bf16.msra.mxu0 0
    %2559 = vmatprep.subr.bf16.mxu0 0
    %2560 = vmatpush2.bf16.msra.mxu0 0
    %2561 = vmatprep.subr.bf16.mxu0 0
    %2562 = vmatpush2.bf16.msra.mxu0 0
    %2563 = vmatprep.subr.bf16.mxu0 0
    %2564 = vmatpush2.bf16.msra.mxu0 0
    %2565 = vmatprep.subr.bf16.mxu0 0
    %2566 = vmatpush2.bf16.msra.mxu0 0
    %2567 = vmatprep.subr.bf16.mxu0 0
    %2568 = vmatpush2.bf16.msra.mxu0 0
    %2569 = vmatprep.subr.bf16.mxu0 0
    %2570 = vmatpush2.bf16.msra.mxu0 0
    %2571 = vmatprep.subr.bf16.mxu0 0
    %2572 = vmatpush2.bf16.msra.mxu0 0
    %2573 = vmatprep.mubr.bf16.mxu0 0
    %2574 = vmatmul.mubr.bf16.gmra.mxu0 %v2307
    %v2575 = vpop.f32.mrf.mxu0
    %v2576 = vadd.f32 0.0, %v2575
    %v2577 = vpop.f32.mrf.mxu0
    %v2578 = vadd.f32 0.0, %v2577
    %v2579 = vpop.f32.mrf.mxu0
    %v2580 = vpop.f32.mrf.mxu0
    %2581 = vdwg.mxu0
    %v2586 = vcombine.low %v2535, %v2537
    %v2587 = vcombine.low %v2576, %v2578
    %v2589 = vunpack.c.l.s4 1983009808
    %v2590 = vunpack.c.0.s8 %v2589
    %v2591 = vlaneseq
    %v2592 = vshrl.u32 %v2591, 7
    %v2593 = vsub.s32 %v2590, %v2592
    %v2594 = vrot.slane %v2586, %v2593
    %v2596 = vunpack.c.l.s4 1983009808
    %v2597 = vunpack.c.0.s8 %v2596
    %v2598 = vlaneseq
    %v2599 = vshrl.u32 %v2598, 7
    %v2600 = vsub.s32 %v2597, %v2599
    %v2601 = vrot.slane %v2587, %v2600
    %v2602 = vcombine.low %v2594, %v2601
    %v2604 = vadd.f32 %v2306, %v2602
    %s2605 = scalar_lea.vmem [#allocation3], 40
    %v2606 = vld [vmem:[%s2605] sm:$0xff]
    %v2607 = vpack.c.bf16 %v2300, %v2300
    %v2608 = vld [vmem:[#allocation14] sm:$0xff]
    %v2609 = vld [vmem:[#allocation14 + $0x8] sm:$0xff]
    %v2610 = vld [vmem:[#allocation14 + $0x10] sm:$0xff]
    %v2611 = vld [vmem:[#allocation14 + $0x18] sm:$0xff]
    %v2612 = vld [vmem:[#allocation14 + $0x20] sm:$0xff]
    %v2613 = vld [vmem:[#allocation14 + $0x28] sm:$0xff]
    %v2614 = vld [vmem:[#allocation14 + $0x30] sm:$0xff]
    %v2615 = vld [vmem:[#allocation14 + $0x38] sm:$0xff]
    %v2616 = vld [vmem:[#allocation14 + $0x40] sm:$0xff]
    %v2617 = vld [vmem:[#allocation14 + $0x48] sm:$0xff]
    %v2618 = vld [vmem:[#allocation14 + $0x50] sm:$0xff]
    %v2619 = vld [vmem:[#allocation14 + $0x58] sm:$0xff]
    %v2620 = vld [vmem:[#allocation14 + $0x60] sm:$0xff]
    %v2621 = vld [vmem:[#allocation14 + $0x68] sm:$0xff]
    %v2622 = vld [vmem:[#allocation14 + $0x70] sm:$0xff]
    %v2623 = vld [vmem:[#allocation14 + $0x78] sm:$0xff]
    %v2624 = vld [vmem:[#allocation14 + $0x80] sm:$0xff]
    %v2625 = vld [vmem:[#allocation14 + $0x88] sm:$0xff]
    %v2626 = vld [vmem:[#allocation14 + $0x90] sm:$0xff]
    %v2627 = vld [vmem:[#allocation14 + $0x98] sm:$0xff]
    %v2628 = vld [vmem:[#allocation14 + $0xa0] sm:$0xff]
    %v2629 = vld [vmem:[#allocation14 + $0xa8] sm:$0xff]
    %v2630 = vld [vmem:[#allocation14 + $0xb0] sm:$0xff]
    %v2631 = vld [vmem:[#allocation14 + $0xb8] sm:$0xff]
    %v2632 = vld [vmem:[#allocation14 + $0xc0] sm:$0xff]
    %v2633 = vld [vmem:[#allocation14 + $0xc8] sm:$0xff]
    %v2634 = vld [vmem:[#allocation14 + $0xd0] sm:$0xff]
    %v2635 = vld [vmem:[#allocation14 + $0xd8] sm:$0xff]
    %v2636 = vld [vmem:[#allocation14 + $0xe0] sm:$0xff]
    %v2637 = vld [vmem:[#allocation14 + $0xe8] sm:$0xff]
    %v2638 = vld [vmem:[#allocation14 + $0xf0] sm:$0xff]
    %v2639 = vld [vmem:[#allocation14 + $0xf8] sm:$0xff]
    %v2672 = vunpack.c.l.b16 %v2608
    %v2673 = vunpack.c.h.b16 %v2608
    %v2674 = vunpack.c.l.b16 %v2609
    %v2675 = vunpack.c.h.b16 %v2609
    %v2676 = vunpack.c.l.b16 %v2610
    %v2677 = vunpack.c.h.b16 %v2610
    %v2678 = vunpack.c.l.b16 %v2611
    %v2679 = vunpack.c.h.b16 %v2611
    %v2680 = vunpack.c.l.b16 %v2612
    %v2681 = vunpack.c.h.b16 %v2612
    %v2682 = vunpack.c.l.b16 %v2613
    %v2683 = vunpack.c.h.b16 %v2613
    %v2684 = vunpack.c.l.b16 %v2614
    %v2685 = vunpack.c.h.b16 %v2614
    %v2686 = vunpack.c.l.b16 %v2615
    %v2687 = vunpack.c.h.b16 %v2615
    %v2688 = vunpack.c.l.b16 %v2616
    %v2689 = vunpack.c.h.b16 %v2616
    %v2690 = vunpack.c.l.b16 %v2617
    %v2691 = vunpack.c.h.b16 %v2617
    %v2692 = vunpack.c.l.b16 %v2618
    %v2693 = vunpack.c.h.b16 %v2618
    %v2694 = vunpack.c.l.b16 %v2619
    %v2695 = vunpack.c.h.b16 %v2619
    %v2696 = vunpack.c.l.b16 %v2620
    %v2697 = vunpack.c.h.b16 %v2620
    %v2698 = vunpack.c.l.b16 %v2621
    %v2699 = vunpack.c.h.b16 %v2621
    %v2700 = vunpack.c.l.b16 %v2622
    %v2701 = vunpack.c.h.b16 %v2622
    %v2702 = vunpack.c.l.b16 %v2623
    %v2703 = vunpack.c.h.b16 %v2623
    %v2704 = vunpack.c.l.b16 %v2624
    %v2705 = vunpack.c.h.b16 %v2624
    %v2706 = vunpack.c.l.b16 %v2625
    %v2707 = vunpack.c.h.b16 %v2625
    %v2708 = vunpack.c.l.b16 %v2626
    %v2709 = vunpack.c.h.b16 %v2626
    %v2710 = vunpack.c.l.b16 %v2627
    %v2711 = vunpack.c.h.b16 %v2627
    %v2712 = vunpack.c.l.b16 %v2628
    %v2713 = vunpack.c.h.b16 %v2628
    %v2714 = vunpack.c.l.b16 %v2629
    %v2715 = vunpack.c.h.b16 %v2629
    %v2716 = vunpack.c.l.b16 %v2630
    %v2717 = vunpack.c.h.b16 %v2630
    %v2718 = vunpack.c.l.b16 %v2631
    %v2719 = vunpack.c.h.b16 %v2631
    %v2720 = vunpack.c.l.b16 %v2632
    %v2721 = vunpack.c.h.b16 %v2632
    %v2722 = vunpack.c.l.b16 %v2633
    %v2723 = vunpack.c.h.b16 %v2633
    %v2724 = vunpack.c.l.b16 %v2634
    %v2725 = vunpack.c.h.b16 %v2634
    %v2726 = vunpack.c.l.b16 %v2635
    %v2727 = vunpack.c.h.b16 %v2635
    %v2728 = vunpack.c.l.b16 %v2636
    %v2729 = vunpack.c.h.b16 %v2636
    %v2730 = vunpack.c.l.b16 %v2637
    %v2731 = vunpack.c.h.b16 %v2637
    %v2732 = vunpack.c.l.b16 %v2638
    %v2733 = vunpack.c.h.b16 %v2638
    %v2734 = vunpack.c.l.b16 %v2639
    %v2735 = vunpack.c.h.b16 %v2639
    %v2736 = vpack.c.b16 %v2676, %v2672
    %v2737 = vpack.c.b16 %v2677, %v2673
    %v2738 = vpack.c.b16 %v2678, %v2674
    %v2739 = vpack.c.b16 %v2679, %v2675
    %v2740 = vpack.c.b16 %v2684, %v2680
    %v2741 = vpack.c.b16 %v2685, %v2681
    %v2742 = vpack.c.b16 %v2686, %v2682
    %v2743 = vpack.c.b16 %v2687, %v2683
    %v2744 = vpack.c.b16 %v2692, %v2688
    %v2745 = vpack.c.b16 %v2693, %v2689
    %v2746 = vpack.c.b16 %v2694, %v2690
    %v2747 = vpack.c.b16 %v2695, %v2691
    %v2748 = vpack.c.b16 %v2700, %v2696
    %v2749 = vpack.c.b16 %v2701, %v2697
    %v2750 = vpack.c.b16 %v2702, %v2698
    %v2751 = vpack.c.b16 %v2703, %v2699
    %v2752 = vpack.c.b16 %v2708, %v2704
    %v2753 = vpack.c.b16 %v2709, %v2705
    %v2754 = vpack.c.b16 %v2710, %v2706
    %v2755 = vpack.c.b16 %v2711, %v2707
    %v2756 = vpack.c.b16 %v2716, %v2712
    %v2757 = vpack.c.b16 %v2717, %v2713
    %v2758 = vpack.c.b16 %v2718, %v2714
    %v2759 = vpack.c.b16 %v2719, %v2715
    %v2760 = vpack.c.b16 %v2724, %v2720
    %v2761 = vpack.c.b16 %v2725, %v2721
    %v2762 = vpack.c.b16 %v2726, %v2722
    %v2763 = vpack.c.b16 %v2727, %v2723
    %v2764 = vpack.c.b16 %v2732, %v2728
    %v2765 = vpack.c.b16 %v2733, %v2729
    %v2766 = vpack.c.b16 %v2734, %v2730
    %v2767 = vpack.c.b16 %v2735, %v2731
    %2800 = vmatprep.subr.bf16.mxu0 %v2765
    %2801 = vmatpush1.bf16.msra.mxu0 %v2764
    %2802 = vmatprep.subr.bf16.mxu0 %v2761
    %2803 = vmatpush1.bf16.msra.mxu0 %v2760
    %2804 = vmatprep.subr.bf16.mxu0 %v2757
    %2805 = vmatpush1.bf16.msra.mxu0 %v2756
    %2806 = vmatprep.subr.bf16.mxu0 %v2753
    %2807 = vmatpush1.bf16.msra.mxu0 %v2752
    %2808 = vmatprep.subr.bf16.mxu0 %v2749
    %2809 = vmatpush1.bf16.msra.mxu0 %v2748
    %2810 = vmatprep.subr.bf16.mxu0 %v2745
    %2811 = vmatpush1.bf16.msra.mxu0 %v2744
    %2812 = vmatprep.subr.bf16.mxu0 %v2741
    %2813 = vmatpush1.bf16.msra.mxu0 %v2740
    %2814 = vmatprep.subr.bf16.mxu0 %v2737
    %2815 = vmatpush1.bf16.msra.mxu0 %v2736
    %2816 = vmatprep.subr.bf16.mxu0 0
    %2817 = vmatpush2.bf16.msra.mxu0 0
    %2818 = vmatprep.subr.bf16.mxu0 0
    %2819 = vmatpush2.bf16.msra.mxu0 0
    %2820 = vmatprep.subr.bf16.mxu0 0
    %2821 = vmatpush2.bf16.msra.mxu0 0
    %2822 = vmatprep.subr.bf16.mxu0 0
    %2823 = vmatpush2.bf16.msra.mxu0 0
    %2824 = vmatprep.subr.bf16.mxu0 0
    %2825 = vmatpush2.bf16.msra.mxu0 0
    %2826 = vmatprep.subr.bf16.mxu0 0
    %2827 = vmatpush2.bf16.msra.mxu0 0
    %2828 = vmatprep.subr.bf16.mxu0 0
    %2829 = vmatpush2.bf16.msra.mxu0 0
    %2830 = vmatprep.subr.bf16.mxu0 0
    %2831 = vmatpush2.bf16.msra.mxu0 0
    %2832 = vmatprep.mubr.bf16.mxu0 0
    %2833 = vmatmul.mubr.bf16.gmra.mxu0 %v2607
    %v2834 = vpop.f32.mrf.mxu0
    %v2835 = vadd.f32 0.0, %v2834
    %v2836 = vpop.f32.mrf.mxu0
    %v2837 = vadd.f32 0.0, %v2836
    %v2838 = vpop.f32.mrf.mxu0
    %v2839 = vpop.f32.mrf.mxu0
    %2840 = vdwg.mxu0
    %2841 = vmatprep.subr.bf16.mxu0 %v2767
    %2842 = vmatpush1.bf16.msra.mxu0 %v2766
    %2843 = vmatprep.subr.bf16.mxu0 %v2763
    %2844 = vmatpush1.bf16.msra.mxu0 %v2762
    %2845 = vmatprep.subr.bf16.mxu0 %v2759
    %2846 = vmatpush1.bf16.msra.mxu0 %v2758
    %2847 = vmatprep.subr.bf16.mxu0 %v2755
    %2848 = vmatpush1.bf16.msra.mxu0 %v2754
    %2849 = vmatprep.subr.bf16.mxu0 %v2751
    %2850 = vmatpush1.bf16.msra.mxu0 %v2750
    %2851 = vmatprep.subr.bf16.mxu0 %v2747
    %2852 = vmatpush1.bf16.msra.mxu0 %v2746
    %2853 = vmatprep.subr.bf16.mxu0 %v2743
    %2854 = vmatpush1.bf16.msra.mxu0 %v2742
    %2855 = vmatprep.subr.bf16.mxu0 %v2739
    %2856 = vmatpush1.bf16.msra.mxu0 %v2738
    %2857 = vmatprep.subr.bf16.mxu0 0
    %2858 = vmatpush2.bf16.msra.mxu0 0
    %2859 = vmatprep.subr.bf16.mxu0 0
    %2860 = vmatpush2.bf16.msra.mxu0 0
    %2861 = vmatprep.subr.bf16.mxu0 0
    %2862 = vmatpush2.bf16.msra.mxu0 0
    %2863 = vmatprep.subr.bf16.mxu0 0
    %2864 = vmatpush2.bf16.msra.mxu0 0
    %2865 = vmatprep.subr.bf16.mxu0 0
    %2866 = vmatpush2.bf16.msra.mxu0 0
    %2867 = vmatprep.subr.bf16.mxu0 0
    %2868 = vmatpush2.bf16.msra.mxu0 0
    %2869 = vmatprep.subr.bf16.mxu0 0
    %2870 = vmatpush2.bf16.msra.mxu0 0
    %2871 = vmatprep.subr.bf16.mxu0 0
    %2872 = vmatpush2.bf16.msra.mxu0 0
    %2873 = vmatprep.mubr.bf16.mxu0 0
    %2874 = vmatmul.mubr.bf16.gmra.mxu0 %v2607
    %v2875 = vpop.f32.mrf.mxu0
    %v2876 = vadd.f32 0.0, %v2875
    %v2877 = vpop.f32.mrf.mxu0
    %v2878 = vadd.f32 0.0, %v2877
    %v2879 = vpop.f32.mrf.mxu0
    %v2880 = vpop.f32.mrf.mxu0
    %2881 = vdwg.mxu0
    %v2886 = vcombine.low %v2835, %v2837
    %v2887 = vcombine.low %v2876, %v2878
    %v2889 = vunpack.c.l.s4 1983009808
    %v2890 = vunpack.c.0.s8 %v2889
    %v2891 = vlaneseq
    %v2892 = vshrl.u32 %v2891, 7
    %v2893 = vsub.s32 %v2890, %v2892
    %v2894 = vrot.slane %v2886, %v2893
    %v2896 = vunpack.c.l.s4 1983009808
    %v2897 = vunpack.c.0.s8 %v2896
    %v2898 = vlaneseq
    %v2899 = vshrl.u32 %v2898, 7
    %v2900 = vsub.s32 %v2897, %v2899
    %v2901 = vrot.slane %v2887, %v2900
    %v2902 = vcombine.low %v2894, %v2901
    %v2904 = vadd.f32 %v2606, %v2902
    %v2905 = vxor.u32 %v2604, 2147483648
    %v2906 = vmul.f32 %v2905, 1.442695
    %v2907 = vpow.pop %v2906
    %v2908 = vadd.f32 %v2907, 1.0
    %v2909 = vrcp.pop %v2908
    %v2910 = vmul.f32 1.0, %v2909
    %v2912 = vrot.slane %v2604, 2
    %v2914 = vxor.u32 %v2912, 2147483648
    %v2915 = vmul.f32 %v2914, 1.442695
    %v2916 = vpow.pop %v2915
    %v2917 = vadd.f32 %v2916, 1.0
    %v2918 = vrcp.pop %v2917
    %v2919 = vmul.f32 1.0, %v2918
    %v2920 = vrot.slane %v2604, 4
    %v2922 = vtanh.pop %v2920
    %v2923 = vrot.slane %v2604, 6
    %v2925 = vxor.u32 %v2923, 2147483648
    %v2926 = vmul.f32 %v2925, 1.442695
    %v2927 = vpow.pop %v2926
    %v2928 = vadd.f32 %v2927, 1.0
    %v2929 = vrcp.pop %v2928
    %v2930 = vmul.f32 1.0, %v2929
    %v2931 = vmul.f32 %v2919, %v2267
    %v2932 = vmul.f32 %v2910, %v2922
    %v2933 = vadd.f32 %v2931, %v2932
    %v2934 = vtanh.pop %v2933
    %v2935 = vmul.f32 %v2930, %v2934
    %v2936 = vxor.u32 %v2904, 2147483648
    %v2937 = vmul.f32 %v2936, 1.442695
    %v2938 = vpow.pop %v2937
    %v2939 = vadd.f32 %v2938, 1.0
    %v2940 = vrcp.pop %v2939
    %v2941 = vmul.f32 1.0, %v2940
    %v2943 = vrot.slane %v2904, 2
    %v2945 = vxor.u32 %v2943, 2147483648
    %v2946 = vmul.f32 %v2945, 1.442695
    %v2947 = vpow.pop %v2946
    %v2948 = vadd.f32 %v2947, 1.0
    %v2949 = vrcp.pop %v2948
    %v2950 = vmul.f32 1.0, %v2949
    %v2951 = vrot.slane %v2904, 4
    %v2953 = vtanh.pop %v2951
    %v2954 = vrot.slane %v2904, 6
    %v2956 = vxor.u32 %v2954, 2147483648
    %v2957 = vmul.f32 %v2956, 1.442695
    %v2958 = vpow.pop %v2957
    %v2959 = vadd.f32 %v2958, 1.0
    %v2960 = vrcp.pop %v2959
    %v2961 = vmul.f32 1.0, %v2960
    %v2962 = vmul.f32 %v2950, %v2298
    %v2963 = vmul.f32 %v2941, %v2953
    %v2964 = vadd.f32 %v2962, %v2963
    %v2965 = vtanh.pop %v2964
    %v2966 = vmul.f32 %v2961, %v2965
    %s2967 = scalar_lea.vmem [#allocation4], 4
    %2968 = vst [vmem:[%s2967] sm:$0x3] %v2935
    %s2969 = scalar_lea.vmem [#allocation5], 10
    %2970 = vst [vmem:[%s2969] sm:$0x3] %v2966
    %s2971 = scalar_lea.vmem [#allocation2], 24
    %v2972 = vld [vmem:[%s2971] sm:$0xff]
    %v2973 = vpack.c.bf16 %v2935, %v2935
    %v2974 = vld [vmem:[#allocation11] sm:$0xff]
    %v2975 = vld [vmem:[#allocation11 + $0x8] sm:$0xff]
    %v2976 = vld [vmem:[#allocation11 + $0x10] sm:$0xff]
    %v2977 = vld [vmem:[#allocation11 + $0x18] sm:$0xff]
    %v2978 = vld [vmem:[#allocation11 + $0x20] sm:$0xff]
    %v2979 = vld [vmem:[#allocation11 + $0x28] sm:$0xff]
    %v2980 = vld [vmem:[#allocation11 + $0x30] sm:$0xff]
    %v2981 = vld [vmem:[#allocation11 + $0x38] sm:$0xff]
    %v2982 = vld [vmem:[#allocation11 + $0x40] sm:$0xff]
    %v2983 = vld [vmem:[#allocation11 + $0x48] sm:$0xff]
    %v2984 = vld [vmem:[#allocation11 + $0x50] sm:$0xff]
    %v2985 = vld [vmem:[#allocation11 + $0x58] sm:$0xff]
    %v2986 = vld [vmem:[#allocation11 + $0x60] sm:$0xff]
    %v2987 = vld [vmem:[#allocation11 + $0x68] sm:$0xff]
    %v2988 = vld [vmem:[#allocation11 + $0x70] sm:$0xff]
    %v2989 = vld [vmem:[#allocation11 + $0x78] sm:$0xff]
    %v2990 = vld [vmem:[#allocation11 + $0x80] sm:$0xff]
    %v2991 = vld [vmem:[#allocation11 + $0x88] sm:$0xff]
    %v2992 = vld [vmem:[#allocation11 + $0x90] sm:$0xff]
    %v2993 = vld [vmem:[#allocation11 + $0x98] sm:$0xff]
    %v2994 = vld [vmem:[#allocation11 + $0xa0] sm:$0xff]
    %v2995 = vld [vmem:[#allocation11 + $0xa8] sm:$0xff]
    %v2996 = vld [vmem:[#allocation11 + $0xb0] sm:$0xff]
    %v2997 = vld [vmem:[#allocation11 + $0xb8] sm:$0xff]
    %v2998 = vld [vmem:[#allocation11 + $0xc0] sm:$0xff]
    %v2999 = vld [vmem:[#allocation11 + $0xc8] sm:$0xff]
    %v3000 = vld [vmem:[#allocation11 + $0xd0] sm:$0xff]
    %v3001 = vld [vmem:[#allocation11 + $0xd8] sm:$0xff]
    %v3002 = vld [vmem:[#allocation11 + $0xe0] sm:$0xff]
    %v3003 = vld [vmem:[#allocation11 + $0xe8] sm:$0xff]
    %v3004 = vld [vmem:[#allocation11 + $0xf0] sm:$0xff]
    %v3005 = vld [vmem:[#allocation11 + $0xf8] sm:$0xff]
    %v3038 = vunpack.c.l.b16 %v2974
    %v3039 = vunpack.c.h.b16 %v2974
    %v3040 = vunpack.c.l.b16 %v2975
    %v3041 = vunpack.c.h.b16 %v2975
    %v3042 = vunpack.c.l.b16 %v2976
    %v3043 = vunpack.c.h.b16 %v2976
    %v3044 = vunpack.c.l.b16 %v2977
    %v3045 = vunpack.c.h.b16 %v2977
    %v3046 = vunpack.c.l.b16 %v2978
    %v3047 = vunpack.c.h.b16 %v2978
    %v3048 = vunpack.c.l.b16 %v2979
    %v3049 = vunpack.c.h.b16 %v2979
    %v3050 = vunpack.c.l.b16 %v2980
    %v3051 = vunpack.c.h.b16 %v2980
    %v3052 = vunpack.c.l.b16 %v2981
    %v3053 = vunpack.c.h.b16 %v2981
    %v3054 = vunpack.c.l.b16 %v2982
    %v3055 = vunpack.c.h.b16 %v2982
    %v3056 = vunpack.c.l.b16 %v2983
    %v3057 = vunpack.c.h.b16 %v2983
    %v3058 = vunpack.c.l.b16 %v2984
    %v3059 = vunpack.c.h.b16 %v2984
    %v3060 = vunpack.c.l.b16 %v2985
    %v3061 = vunpack.c.h.b16 %v2985
    %v3062 = vunpack.c.l.b16 %v2986
    %v3063 = vunpack.c.h.b16 %v2986
    %v3064 = vunpack.c.l.b16 %v2987
    %v3065 = vunpack.c.h.b16 %v2987
    %v3066 = vunpack.c.l.b16 %v2988
    %v3067 = vunpack.c.h.b16 %v2988
    %v3068 = vunpack.c.l.b16 %v2989
    %v3069 = vunpack.c.h.b16 %v2989
    %v3070 = vunpack.c.l.b16 %v2990
    %v3071 = vunpack.c.h.b16 %v2990
    %v3072 = vunpack.c.l.b16 %v2991
    %v3073 = vunpack.c.h.b16 %v2991
    %v3074 = vunpack.c.l.b16 %v2992
    %v3075 = vunpack.c.h.b16 %v2992
    %v3076 = vunpack.c.l.b16 %v2993
    %v3077 = vunpack.c.h.b16 %v2993
    %v3078 = vunpack.c.l.b16 %v2994
    %v3079 = vunpack.c.h.b16 %v2994
    %v3080 = vunpack.c.l.b16 %v2995
    %v3081 = vunpack.c.h.b16 %v2995
    %v3082 = vunpack.c.l.b16 %v2996
    %v3083 = vunpack.c.h.b16 %v2996
    %v3084 = vunpack.c.l.b16 %v2997
    %v3085 = vunpack.c.h.b16 %v2997
    %v3086 = vunpack.c.l.b16 %v2998
    %v3087 = vunpack.c.h.b16 %v2998
    %v3088 = vunpack.c.l.b16 %v2999
    %v3089 = vunpack.c.h.b16 %v2999
    %v3090 = vunpack.c.l.b16 %v3000
    %v3091 = vunpack.c.h.b16 %v3000
    %v3092 = vunpack.c.l.b16 %v3001
    %v3093 = vunpack.c.h.b16 %v3001
    %v3094 = vunpack.c.l.b16 %v3002
    %v3095 = vunpack.c.h.b16 %v3002
    %v3096 = vunpack.c.l.b16 %v3003
    %v3097 = vunpack.c.h.b16 %v3003
    %v3098 = vunpack.c.l.b16 %v3004
    %v3099 = vunpack.c.h.b16 %v3004
    %v3100 = vunpack.c.l.b16 %v3005
    %v3101 = vunpack.c.h.b16 %v3005
    %v3102 = vpack.c.b16 %v3042, %v3038
    %v3103 = vpack.c.b16 %v3043, %v3039
    %v3104 = vpack.c.b16 %v3044, %v3040
    %v3105 = vpack.c.b16 %v3045, %v3041
    %v3106 = vpack.c.b16 %v3050, %v3046
    %v3107 = vpack.c.b16 %v3051, %v3047
    %v3108 = vpack.c.b16 %v3052, %v3048
    %v3109 = vpack.c.b16 %v3053, %v3049
    %v3110 = vpack.c.b16 %v3058, %v3054
    %v3111 = vpack.c.b16 %v3059, %v3055
    %v3112 = vpack.c.b16 %v3060, %v3056
    %v3113 = vpack.c.b16 %v3061, %v3057
    %v3114 = vpack.c.b16 %v3066, %v3062
    %v3115 = vpack.c.b16 %v3067, %v3063
    %v3116 = vpack.c.b16 %v3068, %v3064
    %v3117 = vpack.c.b16 %v3069, %v3065
    %v3118 = vpack.c.b16 %v3074, %v3070
    %v3119 = vpack.c.b16 %v3075, %v3071
    %v3120 = vpack.c.b16 %v3076, %v3072
    %v3121 = vpack.c.b16 %v3077, %v3073
    %v3122 = vpack.c.b16 %v3082, %v3078
    %v3123 = vpack.c.b16 %v3083, %v3079
    %v3124 = vpack.c.b16 %v3084, %v3080
    %v3125 = vpack.c.b16 %v3085, %v3081
    %v3126 = vpack.c.b16 %v3090, %v3086
    %v3127 = vpack.c.b16 %v3091, %v3087
    %v3128 = vpack.c.b16 %v3092, %v3088
    %v3129 = vpack.c.b16 %v3093, %v3089
    %v3130 = vpack.c.b16 %v3098, %v3094
    %v3131 = vpack.c.b16 %v3099, %v3095
    %v3132 = vpack.c.b16 %v3100, %v3096
    %v3133 = vpack.c.b16 %v3101, %v3097
    %3166 = vmatprep.subr.bf16.mxu0 %v3131
    %3167 = vmatpush1.bf16.msra.mxu0 %v3130
    %3168 = vmatprep.subr.bf16.mxu0 %v3127
    %3169 = vmatpush1.bf16.msra.mxu0 %v3126
    %3170 = vmatprep.subr.bf16.mxu0 %v3123
    %3171 = vmatpush1.bf16.msra.mxu0 %v3122
    %3172 = vmatprep.subr.bf16.mxu0 %v3119
    %3173 = vmatpush1.bf16.msra.mxu0 %v3118
    %3174 = vmatprep.subr.bf16.mxu0 %v3115
    %3175 = vmatpush1.bf16.msra.mxu0 %v3114
    %3176 = vmatprep.subr.bf16.mxu0 %v3111
    %3177 = vmatpush1.bf16.msra.mxu0 %v3110
    %3178 = vmatprep.subr.bf16.mxu0 %v3107
    %3179 = vmatpush1.bf16.msra.mxu0 %v3106
    %3180 = vmatprep.subr.bf16.mxu0 %v3103
    %3181 = vmatpush1.bf16.msra.mxu0 %v3102
    %3182 = vmatprep.subr.bf16.mxu0 0
    %3183 = vmatpush2.bf16.msra.mxu0 0
    %3184 = vmatprep.subr.bf16.mxu0 0
    %3185 = vmatpush2.bf16.msra.mxu0 0
    %3186 = vmatprep.subr.bf16.mxu0 0
    %3187 = vmatpush2.bf16.msra.mxu0 0
    %3188 = vmatprep.subr.bf16.mxu0 0
    %3189 = vmatpush2.bf16.msra.mxu0 0
    %3190 = vmatprep.subr.bf16.mxu0 0
    %3191 = vmatpush2.bf16.msra.mxu0 0
    %3192 = vmatprep.subr.bf16.mxu0 0
    %3193 = vmatpush2.bf16.msra.mxu0 0
    %3194 = vmatprep.subr.bf16.mxu0 0
    %3195 = vmatpush2.bf16.msra.mxu0 0
    %3196 = vmatprep.subr.bf16.mxu0 0
    %3197 = vmatpush2.bf16.msra.mxu0 0
    %3198 = vmatprep.mubr.bf16.mxu0 0
    %3199 = vmatmul.mubr.bf16.gmra.mxu0 %v2973
    %v3200 = vpop.f32.mrf.mxu0
    %v3201 = vadd.f32 0.0, %v3200
    %v3202 = vpop.f32.mrf.mxu0
    %v3203 = vadd.f32 0.0, %v3202
    %v3204 = vpop.f32.mrf.mxu0
    %v3205 = vpop.f32.mrf.mxu0
    %3206 = vdwg.mxu0
    %3207 = vmatprep.subr.bf16.mxu0 %v3133
    %3208 = vmatpush1.bf16.msra.mxu0 %v3132
    %3209 = vmatprep.subr.bf16.mxu0 %v3129
    %3210 = vmatpush1.bf16.msra.mxu0 %v3128
    %3211 = vmatprep.subr.bf16.mxu0 %v3125
    %3212 = vmatpush1.bf16.msra.mxu0 %v3124
    %3213 = vmatprep.subr.bf16.mxu0 %v3121
    %3214 = vmatpush1.bf16.msra.mxu0 %v3120
    %3215 = vmatprep.subr.bf16.mxu0 %v3117
    %3216 = vmatpush1.bf16.msra.mxu0 %v3116
    %3217 = vmatprep.subr.bf16.mxu0 %v3113
    %3218 = vmatpush1.bf16.msra.mxu0 %v3112
    %3219 = vmatprep.subr.bf16.mxu0 %v3109
    %3220 = vmatpush1.bf16.msra.mxu0 %v3108
    %3221 = vmatprep.subr.bf16.mxu0 %v3105
    %3222 = vmatpush1.bf16.msra.mxu0 %v3104
    %3223 = vmatprep.subr.bf16.mxu0 0
    %3224 = vmatpush2.bf16.msra.mxu0 0
    %3225 = vmatprep.subr.bf16.mxu0 0
    %3226 = vmatpush2.bf16.msra.mxu0 0
    %3227 = vmatprep.subr.bf16.mxu0 0
    %3228 = vmatpush2.bf16.msra.mxu0 0
    %3229 = vmatprep.subr.bf16.mxu0 0
    %3230 = vmatpush2.bf16.msra.mxu0 0
    %3231 = vmatprep.subr.bf16.mxu0 0
    %3232 = vmatpush2.bf16.msra.mxu0 0
    %3233 = vmatprep.subr.bf16.mxu0 0
    %3234 = vmatpush2.bf16.msra.mxu0 0
    %3235 = vmatprep.subr.bf16.mxu0 0
    %3236 = vmatpush2.bf16.msra.mxu0 0
    %3237 = vmatprep.subr.bf16.mxu0 0
    %3238 = vmatpush2.bf16.msra.mxu0 0
    %3239 = vmatprep.mubr.bf16.mxu0 0
    %3240 = vmatmul.mubr.bf16.gmra.mxu0 %v2973
    %v3241 = vpop.f32.mrf.mxu0
    %v3242 = vadd.f32 0.0, %v3241
    %v3243 = vpop.f32.mrf.mxu0
    %v3244 = vadd.f32 0.0, %v3243
    %v3245 = vpop.f32.mrf.mxu0
    %v3246 = vpop.f32.mrf.mxu0
    %3247 = vdwg.mxu0
    %v3252 = vcombine.low %v3201, %v3203
    %v3253 = vcombine.low %v3242, %v3244
    %v3255 = vunpack.c.l.s4 1983009808
    %v3256 = vunpack.c.0.s8 %v3255
    %v3257 = vlaneseq
    %v3258 = vshrl.u32 %v3257, 7
    %v3259 = vsub.s32 %v3256, %v3258
    %v3260 = vrot.slane %v3252, %v3259
    %v3262 = vunpack.c.l.s4 1983009808
    %v3263 = vunpack.c.0.s8 %v3262
    %v3264 = vlaneseq
    %v3265 = vshrl.u32 %v3264, 7
    %v3266 = vsub.s32 %v3263, %v3265
    %v3267 = vrot.slane %v3253, %v3266
    %v3268 = vcombine.low %v3260, %v3267
    %v3270 = vadd.f32 %v2972, %v3268
    %s3271 = scalar_lea.vmem [#allocation3], 32
    %v3272 = vld [vmem:[%s3271] sm:$0xff]
    %v3273 = vpack.c.bf16 %v2966, %v2966
    %v3274 = vld [vmem:[#allocation14] sm:$0xff]
    %v3275 = vld [vmem:[#allocation14 + $0x8] sm:$0xff]
    %v3276 = vld [vmem:[#allocation14 + $0x10] sm:$0xff]
    %v3277 = vld [vmem:[#allocation14 + $0x18] sm:$0xff]
    %v3278 = vld [vmem:[#allocation14 + $0x20] sm:$0xff]
    %v3279 = vld [vmem:[#allocation14 + $0x28] sm:$0xff]
    %v3280 = vld [vmem:[#allocation14 + $0x30] sm:$0xff]
    %v3281 = vld [vmem:[#allocation14 + $0x38] sm:$0xff]
    %v3282 = vld [vmem:[#allocation14 + $0x40] sm:$0xff]
    %v3283 = vld [vmem:[#allocation14 + $0x48] sm:$0xff]
    %v3284 = vld [vmem:[#allocation14 + $0x50] sm:$0xff]
    %v3285 = vld [vmem:[#allocation14 + $0x58] sm:$0xff]
    %v3286 = vld [vmem:[#allocation14 + $0x60] sm:$0xff]
    %v3287 = vld [vmem:[#allocation14 + $0x68] sm:$0xff]
    %v3288 = vld [vmem:[#allocation14 + $0x70] sm:$0xff]
    %v3289 = vld [vmem:[#allocation14 + $0x78] sm:$0xff]
    %v3290 = vld [vmem:[#allocation14 + $0x80] sm:$0xff]
    %v3291 = vld [vmem:[#allocation14 + $0x88] sm:$0xff]
    %v3292 = vld [vmem:[#allocation14 + $0x90] sm:$0xff]
    %v3293 = vld [vmem:[#allocation14 + $0x98] sm:$0xff]
    %v3294 = vld [vmem:[#allocation14 + $0xa0] sm:$0xff]
    %v3295 = vld [vmem:[#allocation14 + $0xa8] sm:$0xff]
    %v3296 = vld [vmem:[#allocation14 + $0xb0] sm:$0xff]
    %v3297 = vld [vmem:[#allocation14 + $0xb8] sm:$0xff]
    %v3298 = vld [vmem:[#allocation14 + $0xc0] sm:$0xff]
    %v3299 = vld [vmem:[#allocation14 + $0xc8] sm:$0xff]
    %v3300 = vld [vmem:[#allocation14 + $0xd0] sm:$0xff]
    %v3301 = vld [vmem:[#allocation14 + $0xd8] sm:$0xff]
    %v3302 = vld [vmem:[#allocation14 + $0xe0] sm:$0xff]
    %v3303 = vld [vmem:[#allocation14 + $0xe8] sm:$0xff]
    %v3304 = vld [vmem:[#allocation14 + $0xf0] sm:$0xff]
    %v3305 = vld [vmem:[#allocation14 + $0xf8] sm:$0xff]
    %v3338 = vunpack.c.l.b16 %v3274
    %v3339 = vunpack.c.h.b16 %v3274
    %v3340 = vunpack.c.l.b16 %v3275
    %v3341 = vunpack.c.h.b16 %v3275
    %v3342 = vunpack.c.l.b16 %v3276
    %v3343 = vunpack.c.h.b16 %v3276
    %v3344 = vunpack.c.l.b16 %v3277
    %v3345 = vunpack.c.h.b16 %v3277
    %v3346 = vunpack.c.l.b16 %v3278
    %v3347 = vunpack.c.h.b16 %v3278
    %v3348 = vunpack.c.l.b16 %v3279
    %v3349 = vunpack.c.h.b16 %v3279
    %v3350 = vunpack.c.l.b16 %v3280
    %v3351 = vunpack.c.h.b16 %v3280
    %v3352 = vunpack.c.l.b16 %v3281
    %v3353 = vunpack.c.h.b16 %v3281
    %v3354 = vunpack.c.l.b16 %v3282
    %v3355 = vunpack.c.h.b16 %v3282
    %v3356 = vunpack.c.l.b16 %v3283
    %v3357 = vunpack.c.h.b16 %v3283
    %v3358 = vunpack.c.l.b16 %v3284
    %v3359 = vunpack.c.h.b16 %v3284
    %v3360 = vunpack.c.l.b16 %v3285
    %v3361 = vunpack.c.h.b16 %v3285
    %v3362 = vunpack.c.l.b16 %v3286
    %v3363 = vunpack.c.h.b16 %v3286
    %v3364 = vunpack.c.l.b16 %v3287
    %v3365 = vunpack.c.h.b16 %v3287
    %v3366 = vunpack.c.l.b16 %v3288
    %v3367 = vunpack.c.h.b16 %v3288
    %v3368 = vunpack.c.l.b16 %v3289
    %v3369 = vunpack.c.h.b16 %v3289
    %v3370 = vunpack.c.l.b16 %v3290
    %v3371 = vunpack.c.h.b16 %v3290
    %v3372 = vunpack.c.l.b16 %v3291
    %v3373 = vunpack.c.h.b16 %v3291
    %v3374 = vunpack.c.l.b16 %v3292
    %v3375 = vunpack.c.h.b16 %v3292
    %v3376 = vunpack.c.l.b16 %v3293
    %v3377 = vunpack.c.h.b16 %v3293
    %v3378 = vunpack.c.l.b16 %v3294
    %v3379 = vunpack.c.h.b16 %v3294
    %v3380 = vunpack.c.l.b16 %v3295
    %v3381 = vunpack.c.h.b16 %v3295
    %v3382 = vunpack.c.l.b16 %v3296
    %v3383 = vunpack.c.h.b16 %v3296
    %v3384 = vunpack.c.l.b16 %v3297
    %v3385 = vunpack.c.h.b16 %v3297
    %v3386 = vunpack.c.l.b16 %v3298
    %v3387 = vunpack.c.h.b16 %v3298
    %v3388 = vunpack.c.l.b16 %v3299
    %v3389 = vunpack.c.h.b16 %v3299
    %v3390 = vunpack.c.l.b16 %v3300
    %v3391 = vunpack.c.h.b16 %v3300
    %v3392 = vunpack.c.l.b16 %v3301
    %v3393 = vunpack.c.h.b16 %v3301
    %v3394 = vunpack.c.l.b16 %v3302
    %v3395 = vunpack.c.h.b16 %v3302
    %v3396 = vunpack.c.l.b16 %v3303
    %v3397 = vunpack.c.h.b16 %v3303
    %v3398 = vunpack.c.l.b16 %v3304
    %v3399 = vunpack.c.h.b16 %v3304
    %v3400 = vunpack.c.l.b16 %v3305
    %v3401 = vunpack.c.h.b16 %v3305
    %v3402 = vpack.c.b16 %v3342, %v3338
    %v3403 = vpack.c.b16 %v3343, %v3339
    %v3404 = vpack.c.b16 %v3344, %v3340
    %v3405 = vpack.c.b16 %v3345, %v3341
    %v3406 = vpack.c.b16 %v3350, %v3346
    %v3407 = vpack.c.b16 %v3351, %v3347
    %v3408 = vpack.c.b16 %v3352, %v3348
    %v3409 = vpack.c.b16 %v3353, %v3349
    %v3410 = vpack.c.b16 %v3358, %v3354
    %v3411 = vpack.c.b16 %v3359, %v3355
    %v3412 = vpack.c.b16 %v3360, %v3356
    %v3413 = vpack.c.b16 %v3361, %v3357
    %v3414 = vpack.c.b16 %v3366, %v3362
    %v3415 = vpack.c.b16 %v3367, %v3363
    %v3416 = vpack.c.b16 %v3368, %v3364
    %v3417 = vpack.c.b16 %v3369, %v3365
    %v3418 = vpack.c.b16 %v3374, %v3370
    %v3419 = vpack.c.b16 %v3375, %v3371
    %v3420 = vpack.c.b16 %v3376, %v3372
    %v3421 = vpack.c.b16 %v3377, %v3373
    %v3422 = vpack.c.b16 %v3382, %v3378
    %v3423 = vpack.c.b16 %v3383, %v3379
    %v3424 = vpack.c.b16 %v3384, %v3380
    %v3425 = vpack.c.b16 %v3385, %v3381
    %v3426 = vpack.c.b16 %v3390, %v3386
    %v3427 = vpack.c.b16 %v3391, %v3387
    %v3428 = vpack.c.b16 %v3392, %v3388
    %v3429 = vpack.c.b16 %v3393, %v3389
    %v3430 = vpack.c.b16 %v3398, %v3394
    %v3431 = vpack.c.b16 %v3399, %v3395
    %v3432 = vpack.c.b16 %v3400, %v3396
    %v3433 = vpack.c.b16 %v3401, %v3397
    %3466 = vmatprep.subr.bf16.mxu0 %v3431
    %3467 = vmatpush1.bf16.msra.mxu0 %v3430
    %3468 = vmatprep.subr.bf16.mxu0 %v3427
    %3469 = vmatpush1.bf16.msra.mxu0 %v3426
    %3470 = vmatprep.subr.bf16.mxu0 %v3423
    %3471 = vmatpush1.bf16.msra.mxu0 %v3422
    %3472 = vmatprep.subr.bf16.mxu0 %v3419
    %3473 = vmatpush1.bf16.msra.mxu0 %v3418
    %3474 = vmatprep.subr.bf16.mxu0 %v3415
    %3475 = vmatpush1.bf16.msra.mxu0 %v3414
    %3476 = vmatprep.subr.bf16.mxu0 %v3411
    %3477 = vmatpush1.bf16.msra.mxu0 %v3410
    %3478 = vmatprep.subr.bf16.mxu0 %v3407
    %3479 = vmatpush1.bf16.msra.mxu0 %v3406
    %3480 = vmatprep.subr.bf16.mxu0 %v3403
    %3481 = vmatpush1.bf16.msra.mxu0 %v3402
    %3482 = vmatprep.subr.bf16.mxu0 0
    %3483 = vmatpush2.bf16.msra.mxu0 0
    %3484 = vmatprep.subr.bf16.mxu0 0
    %3485 = vmatpush2.bf16.msra.mxu0 0
    %3486 = vmatprep.subr.bf16.mxu0 0
    %3487 = vmatpush2.bf16.msra.mxu0 0
    %3488 = vmatprep.subr.bf16.mxu0 0
    %3489 = vmatpush2.bf16.msra.mxu0 0
    %3490 = vmatprep.subr.bf16.mxu0 0
    %3491 = vmatpush2.bf16.msra.mxu0 0
    %3492 = vmatprep.subr.bf16.mxu0 0
    %3493 = vmatpush2.bf16.msra.mxu0 0
    %3494 = vmatprep.subr.bf16.mxu0 0
    %3495 = vmatpush2.bf16.msra.mxu0 0
    %3496 = vmatprep.subr.bf16.mxu0 0
    %3497 = vmatpush2.bf16.msra.mxu0 0
    %3498 = vmatprep.mubr.bf16.mxu0 0
    %3499 = vmatmul.mubr.bf16.gmra.mxu0 %v3273
    %v3500 = vpop.f32.mrf.mxu0
    %v3501 = vadd.f32 0.0, %v3500
    %v3502 = vpop.f32.mrf.mxu0
    %v3503 = vadd.f32 0.0, %v3502
    %v3504 = vpop.f32.mrf.mxu0
    %v3505 = vpop.f32.mrf.mxu0
    %3506 = vdwg.mxu0
    %3507 = vmatprep.subr.bf16.mxu0 %v3433
    %3508 = vmatpush1.bf16.msra.mxu0 %v3432
    %3509 = vmatprep.subr.bf16.mxu0 %v3429
    %3510 = vmatpush1.bf16.msra.mxu0 %v3428
    %3511 = vmatprep.subr.bf16.mxu0 %v3425
    %3512 = vmatpush1.bf16.msra.mxu0 %v3424
    %3513 = vmatprep.subr.bf16.mxu0 %v3421
    %3514 = vmatpush1.bf16.msra.mxu0 %v3420
    %3515 = vmatprep.subr.bf16.mxu0 %v3417
    %3516 = vmatpush1.bf16.msra.mxu0 %v3416
    %3517 = vmatprep.subr.bf16.mxu0 %v3413
    %3518 = vmatpush1.bf16.msra.mxu0 %v3412
    %3519 = vmatprep.subr.bf16.mxu0 %v3409
    %3520 = vmatpush1.bf16.msra.mxu0 %v3408
    %3521 = vmatprep.subr.bf16.mxu0 %v3405
    %3522 = vmatpush1.bf16.msra.mxu0 %v3404
    %3523 = vmatprep.subr.bf16.mxu0 0
    %3524 = vmatpush2.bf16.msra.mxu0 0
    %3525 = vmatprep.subr.bf16.mxu0 0
    %3526 = vmatpush2.bf16.msra.mxu0 0
    %3527 = vmatprep.subr.bf16.mxu0 0
    %3528 = vmatpush2.bf16.msra.mxu0 0
    %3529 = vmatprep.subr.bf16.mxu0 0
    %3530 = vmatpush2.bf16.msra.mxu0 0
    %3531 = vmatprep.subr.bf16.mxu0 0
    %3532 = vmatpush2.bf16.msra.mxu0 0
    %3533 = vmatprep.subr.bf16.mxu0 0
    %3534 = vmatpush2.bf16.msra.mxu0 0
    %3535 = vmatprep.subr.bf16.mxu0 0
    %3536 = vmatpush2.bf16.msra.mxu0 0
    %3537 = vmatprep.subr.bf16.mxu0 0
    %3538 = vmatpush2.bf16.msra.mxu0 0
    %3539 = vmatprep.mubr.bf16.mxu0 0
    %3540 = vmatmul.mubr.bf16.gmra.mxu0 %v3273
    %v3541 = vpop.f32.mrf.mxu0
    %v3542 = vadd.f32 0.0, %v3541
    %v3543 = vpop.f32.mrf.mxu0
    %v3544 = vadd.f32 0.0, %v3543
    %v3545 = vpop.f32.mrf.mxu0
    %v3546 = vpop.f32.mrf.mxu0
    %3547 = vdwg.mxu0
    %v3552 = vcombine.low %v3501, %v3503
    %v3553 = vcombine.low %v3542, %v3544
    %v3555 = vunpack.c.l.s4 1983009808
    %v3556 = vunpack.c.0.s8 %v3555
    %v3557 = vlaneseq
    %v3558 = vshrl.u32 %v3557, 7
    %v3559 = vsub.s32 %v3556, %v3558
    %v3560 = vrot.slane %v3552, %v3559
    %v3562 = vunpack.c.l.s4 1983009808
    %v3563 = vunpack.c.0.s8 %v3562
    %v3564 = vlaneseq
    %v3565 = vshrl.u32 %v3564, 7
    %v3566 = vsub.s32 %v3563, %v3565
    %v3567 = vrot.slane %v3553, %v3566
    %v3568 = vcombine.low %v3560, %v3567
    %v3570 = vadd.f32 %v3272, %v3568
    %v3571 = vxor.u32 %v3270, 2147483648
    %v3572 = vmul.f32 %v3571, 1.442695
    %v3573 = vpow.pop %v3572
    %v3574 = vadd.f32 %v3573, 1.0
    %v3575 = vrcp.pop %v3574
    %v3576 = vmul.f32 1.0, %v3575
    %v3578 = vrot.slane %v3270, 2
    %v3580 = vxor.u32 %v3578, 2147483648
    %v3581 = vmul.f32 %v3580, 1.442695
    %v3582 = vpow.pop %v3581
    %v3583 = vadd.f32 %v3582, 1.0
    %v3584 = vrcp.pop %v3583
    %v3585 = vmul.f32 1.0, %v3584
    %v3586 = vrot.slane %v3270, 4
    %v3588 = vtanh.pop %v3586
    %v3589 = vrot.slane %v3270, 6
    %v3591 = vxor.u32 %v3589, 2147483648
    %v3592 = vmul.f32 %v3591, 1.442695
    %v3593 = vpow.pop %v3592
    %v3594 = vadd.f32 %v3593, 1.0
    %v3595 = vrcp.pop %v3594
    %v3596 = vmul.f32 1.0, %v3595
    %v3597 = vmul.f32 %v3585, %v2933
    %v3598 = vmul.f32 %v3576, %v3588
    %v3599 = vadd.f32 %v3597, %v3598
    %v3600 = vtanh.pop %v3599
    %v3601 = vmul.f32 %v3596, %v3600
    %v3602 = vxor.u32 %v3570, 2147483648
    %v3603 = vmul.f32 %v3602, 1.442695
    %v3604 = vpow.pop %v3603
    %v3605 = vadd.f32 %v3604, 1.0
    %v3606 = vrcp.pop %v3605
    %v3607 = vmul.f32 1.0, %v3606
    %v3609 = vrot.slane %v3570, 2
    %v3611 = vxor.u32 %v3609, 2147483648
    %v3612 = vmul.f32 %v3611, 1.442695
    %v3613 = vpow.pop %v3612
    %v3614 = vadd.f32 %v3613, 1.0
    %v3615 = vrcp.pop %v3614
    %v3616 = vmul.f32 1.0, %v3615
    %v3617 = vrot.slane %v3570, 4
    %v3619 = vtanh.pop %v3617
    %v3620 = vrot.slane %v3570, 6
    %v3622 = vxor.u32 %v3620, 2147483648
    %v3623 = vmul.f32 %v3622, 1.442695
    %v3624 = vpow.pop %v3623
    %v3625 = vadd.f32 %v3624, 1.0
    %v3626 = vrcp.pop %v3625
    %v3627 = vmul.f32 1.0, %v3626
    %v3628 = vmul.f32 %v3616, %v2964
    %v3629 = vmul.f32 %v3607, %v3619
    %v3630 = vadd.f32 %v3628, %v3629
    %v3631 = vtanh.pop %v3630
    %v3632 = vmul.f32 %v3627, %v3631
    %s3633 = scalar_lea.vmem [#allocation4], 6
    %3634 = vst [vmem:[%s3633] sm:$0x3] %v3601
    %s3635 = scalar_lea.vmem [#allocation5], 8
    %3636 = vst [vmem:[%s3635] sm:$0x3] %v3632
    %s3637 = scalar_lea.vmem [#allocation2], 32
    %v3638 = vld [vmem:[%s3637] sm:$0xff]
    %v3639 = vpack.c.bf16 %v3601, %v3601
    %v3640 = vld [vmem:[#allocation11] sm:$0xff]
    %v3641 = vld [vmem:[#allocation11 + $0x8] sm:$0xff]
    %v3642 = vld [vmem:[#allocation11 + $0x10] sm:$0xff]
    %v3643 = vld [vmem:[#allocation11 + $0x18] sm:$0xff]
    %v3644 = vld [vmem:[#allocation11 + $0x20] sm:$0xff]
    %v3645 = vld [vmem:[#allocation11 + $0x28] sm:$0xff]
    %v3646 = vld [vmem:[#allocation11 + $0x30] sm:$0xff]
    %v3647 = vld [vmem:[#allocation11 + $0x38] sm:$0xff]
    %v3648 = vld [vmem:[#allocation11 + $0x40] sm:$0xff]
    %v3649 = vld [vmem:[#allocation11 + $0x48] sm:$0xff]
    %v3650 = vld [vmem:[#allocation11 + $0x50] sm:$0xff]
    %v3651 = vld [vmem:[#allocation11 + $0x58] sm:$0xff]
    %v3652 = vld [vmem:[#allocation11 + $0x60] sm:$0xff]
    %v3653 = vld [vmem:[#allocation11 + $0x68] sm:$0xff]
    %v3654 = vld [vmem:[#allocation11 + $0x70] sm:$0xff]
    %v3655 = vld [vmem:[#allocation11 + $0x78] sm:$0xff]
    %v3656 = vld [vmem:[#allocation11 + $0x80] sm:$0xff]
    %v3657 = vld [vmem:[#allocation11 + $0x88] sm:$0xff]
    %v3658 = vld [vmem:[#allocation11 + $0x90] sm:$0xff]
    %v3659 = vld [vmem:[#allocation11 + $0x98] sm:$0xff]
    %v3660 = vld [vmem:[#allocation11 + $0xa0] sm:$0xff]
    %v3661 = vld [vmem:[#allocation11 + $0xa8] sm:$0xff]
    %v3662 = vld [vmem:[#allocation11 + $0xb0] sm:$0xff]
    %v3663 = vld [vmem:[#allocation11 + $0xb8] sm:$0xff]
    %v3664 = vld [vmem:[#allocation11 + $0xc0] sm:$0xff]
    %v3665 = vld [vmem:[#allocation11 + $0xc8] sm:$0xff]
    %v3666 = vld [vmem:[#allocation11 + $0xd0] sm:$0xff]
    %v3667 = vld [vmem:[#allocation11 + $0xd8] sm:$0xff]
    %v3668 = vld [vmem:[#allocation11 + $0xe0] sm:$0xff]
    %v3669 = vld [vmem:[#allocation11 + $0xe8] sm:$0xff]
    %v3670 = vld [vmem:[#allocation11 + $0xf0] sm:$0xff]
    %v3671 = vld [vmem:[#allocation11 + $0xf8] sm:$0xff]
    %v3704 = vunpack.c.l.b16 %v3640
    %v3705 = vunpack.c.h.b16 %v3640
    %v3706 = vunpack.c.l.b16 %v3641
    %v3707 = vunpack.c.h.b16 %v3641
    %v3708 = vunpack.c.l.b16 %v3642
    %v3709 = vunpack.c.h.b16 %v3642
    %v3710 = vunpack.c.l.b16 %v3643
    %v3711 = vunpack.c.h.b16 %v3643
    %v3712 = vunpack.c.l.b16 %v3644
    %v3713 = vunpack.c.h.b16 %v3644
    %v3714 = vunpack.c.l.b16 %v3645
    %v3715 = vunpack.c.h.b16 %v3645
    %v3716 = vunpack.c.l.b16 %v3646
    %v3717 = vunpack.c.h.b16 %v3646
    %v3718 = vunpack.c.l.b16 %v3647
    %v3719 = vunpack.c.h.b16 %v3647
    %v3720 = vunpack.c.l.b16 %v3648
    %v3721 = vunpack.c.h.b16 %v3648
    %v3722 = vunpack.c.l.b16 %v3649
    %v3723 = vunpack.c.h.b16 %v3649
    %v3724 = vunpack.c.l.b16 %v3650
    %v3725 = vunpack.c.h.b16 %v3650
    %v3726 = vunpack.c.l.b16 %v3651
    %v3727 = vunpack.c.h.b16 %v3651
    %v3728 = vunpack.c.l.b16 %v3652
    %v3729 = vunpack.c.h.b16 %v3652
    %v3730 = vunpack.c.l.b16 %v3653
    %v3731 = vunpack.c.h.b16 %v3653
    %v3732 = vunpack.c.l.b16 %v3654
    %v3733 = vunpack.c.h.b16 %v3654
    %v3734 = vunpack.c.l.b16 %v3655
    %v3735 = vunpack.c.h.b16 %v3655
    %v3736 = vunpack.c.l.b16 %v3656
    %v3737 = vunpack.c.h.b16 %v3656
    %v3738 = vunpack.c.l.b16 %v3657
    %v3739 = vunpack.c.h.b16 %v3657
    %v3740 = vunpack.c.l.b16 %v3658
    %v3741 = vunpack.c.h.b16 %v3658
    %v3742 = vunpack.c.l.b16 %v3659
    %v3743 = vunpack.c.h.b16 %v3659
    %v3744 = vunpack.c.l.b16 %v3660
    %v3745 = vunpack.c.h.b16 %v3660
    %v3746 = vunpack.c.l.b16 %v3661
    %v3747 = vunpack.c.h.b16 %v3661
    %v3748 = vunpack.c.l.b16 %v3662
    %v3749 = vunpack.c.h.b16 %v3662
    %v3750 = vunpack.c.l.b16 %v3663
    %v3751 = vunpack.c.h.b16 %v3663
    %v3752 = vunpack.c.l.b16 %v3664
    %v3753 = vunpack.c.h.b16 %v3664
    %v3754 = vunpack.c.l.b16 %v3665
    %v3755 = vunpack.c.h.b16 %v3665
    %v3756 = vunpack.c.l.b16 %v3666
    %v3757 = vunpack.c.h.b16 %v3666
    %v3758 = vunpack.c.l.b16 %v3667
    %v3759 = vunpack.c.h.b16 %v3667
    %v3760 = vunpack.c.l.b16 %v3668
    %v3761 = vunpack.c.h.b16 %v3668
    %v3762 = vunpack.c.l.b16 %v3669
    %v3763 = vunpack.c.h.b16 %v3669
    %v3764 = vunpack.c.l.b16 %v3670
    %v3765 = vunpack.c.h.b16 %v3670
    %v3766 = vunpack.c.l.b16 %v3671
    %v3767 = vunpack.c.h.b16 %v3671
    %v3768 = vpack.c.b16 %v3708, %v3704
    %v3769 = vpack.c.b16 %v3709, %v3705
    %v3770 = vpack.c.b16 %v3710, %v3706
    %v3771 = vpack.c.b16 %v3711, %v3707
    %v3772 = vpack.c.b16 %v3716, %v3712
    %v3773 = vpack.c.b16 %v3717, %v3713
    %v3774 = vpack.c.b16 %v3718, %v3714
    %v3775 = vpack.c.b16 %v3719, %v3715
    %v3776 = vpack.c.b16 %v3724, %v3720
    %v3777 = vpack.c.b16 %v3725, %v3721
    %v3778 = vpack.c.b16 %v3726, %v3722
    %v3779 = vpack.c.b16 %v3727, %v3723
    %v3780 = vpack.c.b16 %v3732, %v3728
    %v3781 = vpack.c.b16 %v3733, %v3729
    %v3782 = vpack.c.b16 %v3734, %v3730
    %v3783 = vpack.c.b16 %v3735, %v3731
    %v3784 = vpack.c.b16 %v3740, %v3736
    %v3785 = vpack.c.b16 %v3741, %v3737
    %v3786 = vpack.c.b16 %v3742, %v3738
    %v3787 = vpack.c.b16 %v3743, %v3739
    %v3788 = vpack.c.b16 %v3748, %v3744
    %v3789 = vpack.c.b16 %v3749, %v3745
    %v3790 = vpack.c.b16 %v3750, %v3746
    %v3791 = vpack.c.b16 %v3751, %v3747
    %v3792 = vpack.c.b16 %v3756, %v3752
    %v3793 = vpack.c.b16 %v3757, %v3753
    %v3794 = vpack.c.b16 %v3758, %v3754
    %v3795 = vpack.c.b16 %v3759, %v3755
    %v3796 = vpack.c.b16 %v3764, %v3760
    %v3797 = vpack.c.b16 %v3765, %v3761
    %v3798 = vpack.c.b16 %v3766, %v3762
    %v3799 = vpack.c.b16 %v3767, %v3763
    %3832 = vmatprep.subr.bf16.mxu0 %v3797
    %3833 = vmatpush1.bf16.msra.mxu0 %v3796
    %3834 = vmatprep.subr.bf16.mxu0 %v3793
    %3835 = vmatpush1.bf16.msra.mxu0 %v3792
    %3836 = vmatprep.subr.bf16.mxu0 %v3789
    %3837 = vmatpush1.bf16.msra.mxu0 %v3788
    %3838 = vmatprep.subr.bf16.mxu0 %v3785
    %3839 = vmatpush1.bf16.msra.mxu0 %v3784
    %3840 = vmatprep.subr.bf16.mxu0 %v3781
    %3841 = vmatpush1.bf16.msra.mxu0 %v3780
    %3842 = vmatprep.subr.bf16.mxu0 %v3777
    %3843 = vmatpush1.bf16.msra.mxu0 %v3776
    %3844 = vmatprep.subr.bf16.mxu0 %v3773
    %3845 = vmatpush1.bf16.msra.mxu0 %v3772
    %3846 = vmatprep.subr.bf16.mxu0 %v3769
    %3847 = vmatpush1.bf16.msra.mxu0 %v3768
    %3848 = vmatprep.subr.bf16.mxu0 0
    %3849 = vmatpush2.bf16.msra.mxu0 0
    %3850 = vmatprep.subr.bf16.mxu0 0
    %3851 = vmatpush2.bf16.msra.mxu0 0
    %3852 = vmatprep.subr.bf16.mxu0 0
    %3853 = vmatpush2.bf16.msra.mxu0 0
    %3854 = vmatprep.subr.bf16.mxu0 0
    %3855 = vmatpush2.bf16.msra.mxu0 0
    %3856 = vmatprep.subr.bf16.mxu0 0
    %3857 = vmatpush2.bf16.msra.mxu0 0
    %3858 = vmatprep.subr.bf16.mxu0 0
    %3859 = vmatpush2.bf16.msra.mxu0 0
    %3860 = vmatprep.subr.bf16.mxu0 0
    %3861 = vmatpush2.bf16.msra.mxu0 0
    %3862 = vmatprep.subr.bf16.mxu0 0
    %3863 = vmatpush2.bf16.msra.mxu0 0
    %3864 = vmatprep.mubr.bf16.mxu0 0
    %3865 = vmatmul.mubr.bf16.gmra.mxu0 %v3639
    %v3866 = vpop.f32.mrf.mxu0
    %v3867 = vadd.f32 0.0, %v3866
    %v3868 = vpop.f32.mrf.mxu0
    %v3869 = vadd.f32 0.0, %v3868
    %v3870 = vpop.f32.mrf.mxu0
    %v3871 = vpop.f32.mrf.mxu0
    %3872 = vdwg.mxu0
    %3873 = vmatprep.subr.bf16.mxu0 %v3799
    %3874 = vmatpush1.bf16.msra.mxu0 %v3798
    %3875 = vmatprep.subr.bf16.mxu0 %v3795
    %3876 = vmatpush1.bf16.msra.mxu0 %v3794
    %3877 = vmatprep.subr.bf16.mxu0 %v3791
    %3878 = vmatpush1.bf16.msra.mxu0 %v3790
    %3879 = vmatprep.subr.bf16.mxu0 %v3787
    %3880 = vmatpush1.bf16.msra.mxu0 %v3786
    %3881 = vmatprep.subr.bf16.mxu0 %v3783
    %3882 = vmatpush1.bf16.msra.mxu0 %v3782
    %3883 = vmatprep.subr.bf16.mxu0 %v3779
    %3884 = vmatpush1.bf16.msra.mxu0 %v3778
    %3885 = vmatprep.subr.bf16.mxu0 %v3775
    %3886 = vmatpush1.bf16.msra.mxu0 %v3774
    %3887 = vmatprep.subr.bf16.mxu0 %v3771
    %3888 = vmatpush1.bf16.msra.mxu0 %v3770
    %3889 = vmatprep.subr.bf16.mxu0 0
    %3890 = vmatpush2.bf16.msra.mxu0 0
    %3891 = vmatprep.subr.bf16.mxu0 0
    %3892 = vmatpush2.bf16.msra.mxu0 0
    %3893 = vmatprep.subr.bf16.mxu0 0
    %3894 = vmatpush2.bf16.msra.mxu0 0
    %3895 = vmatprep.subr.bf16.mxu0 0
    %3896 = vmatpush2.bf16.msra.mxu0 0
    %3897 = vmatprep.subr.bf16.mxu0 0
    %3898 = vmatpush2.bf16.msra.mxu0 0
    %3899 = vmatprep.subr.bf16.mxu0 0
    %3900 = vmatpush2.bf16.msra.mxu0 0
    %3901 = vmatprep.subr.bf16.mxu0 0
    %3902 = vmatpush2.bf16.msra.mxu0 0
    %3903 = vmatprep.subr.bf16.mxu0 0
    %3904 = vmatpush2.bf16.msra.mxu0 0
    %3905 = vmatprep.mubr.bf16.mxu0 0
    %3906 = vmatmul.mubr.bf16.gmra.mxu0 %v3639
    %v3907 = vpop.f32.mrf.mxu0
    %v3908 = vadd.f32 0.0, %v3907
    %v3909 = vpop.f32.mrf.mxu0
    %v3910 = vadd.f32 0.0, %v3909
    %v3911 = vpop.f32.mrf.mxu0
    %v3912 = vpop.f32.mrf.mxu0
    %3913 = vdwg.mxu0
    %v3918 = vcombine.low %v3867, %v3869
    %v3919 = vcombine.low %v3908, %v3910
    %v3921 = vunpack.c.l.s4 1983009808
    %v3922 = vunpack.c.0.s8 %v3921
    %v3923 = vlaneseq
    %v3924 = vshrl.u32 %v3923, 7
    %v3925 = vsub.s32 %v3922, %v3924
    %v3926 = vrot.slane %v3918, %v3925
    %v3928 = vunpack.c.l.s4 1983009808
    %v3929 = vunpack.c.0.s8 %v3928
    %v3930 = vlaneseq
    %v3931 = vshrl.u32 %v3930, 7
    %v3932 = vsub.s32 %v3929, %v3931
    %v3933 = vrot.slane %v3919, %v3932
    %v3934 = vcombine.low %v3926, %v3933
    %v3936 = vadd.f32 %v3638, %v3934
    %s3937 = scalar_lea.vmem [#allocation3], 24
    %v3938 = vld [vmem:[%s3937] sm:$0xff]
    %v3939 = vpack.c.bf16 %v3632, %v3632
    %v3940 = vld [vmem:[#allocation14] sm:$0xff]
    %v3941 = vld [vmem:[#allocation14 + $0x8] sm:$0xff]
    %v3942 = vld [vmem:[#allocation14 + $0x10] sm:$0xff]
    %v3943 = vld [vmem:[#allocation14 + $0x18] sm:$0xff]
    %v3944 = vld [vmem:[#allocation14 + $0x20] sm:$0xff]
    %v3945 = vld [vmem:[#allocation14 + $0x28] sm:$0xff]
    %v3946 = vld [vmem:[#allocation14 + $0x30] sm:$0xff]
    %v3947 = vld [vmem:[#allocation14 + $0x38] sm:$0xff]
    %v3948 = vld [vmem:[#allocation14 + $0x40] sm:$0xff]
    %v3949 = vld [vmem:[#allocation14 + $0x48] sm:$0xff]
    %v3950 = vld [vmem:[#allocation14 + $0x50] sm:$0xff]
    %v3951 = vld [vmem:[#allocation14 + $0x58] sm:$0xff]
    %v3952 = vld [vmem:[#allocation14 + $0x60] sm:$0xff]
    %v3953 = vld [vmem:[#allocation14 + $0x68] sm:$0xff]
    %v3954 = vld [vmem:[#allocation14 + $0x70] sm:$0xff]
    %v3955 = vld [vmem:[#allocation14 + $0x78] sm:$0xff]
    %v3956 = vld [vmem:[#allocation14 + $0x80] sm:$0xff]
    %v3957 = vld [vmem:[#allocation14 + $0x88] sm:$0xff]
    %v3958 = vld [vmem:[#allocation14 + $0x90] sm:$0xff]
    %v3959 = vld [vmem:[#allocation14 + $0x98] sm:$0xff]
    %v3960 = vld [vmem:[#allocation14 + $0xa0] sm:$0xff]
    %v3961 = vld [vmem:[#allocation14 + $0xa8] sm:$0xff]
    %v3962 = vld [vmem:[#allocation14 + $0xb0] sm:$0xff]
    %v3963 = vld [vmem:[#allocation14 + $0xb8] sm:$0xff]
    %v3964 = vld [vmem:[#allocation14 + $0xc0] sm:$0xff]
    %v3965 = vld [vmem:[#allocation14 + $0xc8] sm:$0xff]
    %v3966 = vld [vmem:[#allocation14 + $0xd0] sm:$0xff]
    %v3967 = vld [vmem:[#allocation14 + $0xd8] sm:$0xff]
    %v3968 = vld [vmem:[#allocation14 + $0xe0] sm:$0xff]
    %v3969 = vld [vmem:[#allocation14 + $0xe8] sm:$0xff]
    %v3970 = vld [vmem:[#allocation14 + $0xf0] sm:$0xff]
    %v3971 = vld [vmem:[#allocation14 + $0xf8] sm:$0xff]
    %v4004 = vunpack.c.l.b16 %v3940
    %v4005 = vunpack.c.h.b16 %v3940
    %v4006 = vunpack.c.l.b16 %v3941
    %v4007 = vunpack.c.h.b16 %v3941
    %v4008 = vunpack.c.l.b16 %v3942
    %v4009 = vunpack.c.h.b16 %v3942
    %v4010 = vunpack.c.l.b16 %v3943
    %v4011 = vunpack.c.h.b16 %v3943
    %v4012 = vunpack.c.l.b16 %v3944
    %v4013 = vunpack.c.h.b16 %v3944
    %v4014 = vunpack.c.l.b16 %v3945
    %v4015 = vunpack.c.h.b16 %v3945
    %v4016 = vunpack.c.l.b16 %v3946
    %v4017 = vunpack.c.h.b16 %v3946
    %v4018 = vunpack.c.l.b16 %v3947
    %v4019 = vunpack.c.h.b16 %v3947
    %v4020 = vunpack.c.l.b16 %v3948
    %v4021 = vunpack.c.h.b16 %v3948
    %v4022 = vunpack.c.l.b16 %v3949
    %v4023 = vunpack.c.h.b16 %v3949
    %v4024 = vunpack.c.l.b16 %v3950
    %v4025 = vunpack.c.h.b16 %v3950
    %v4026 = vunpack.c.l.b16 %v3951
    %v4027 = vunpack.c.h.b16 %v3951
    %v4028 = vunpack.c.l.b16 %v3952
    %v4029 = vunpack.c.h.b16 %v3952
    %v4030 = vunpack.c.l.b16 %v3953
    %v4031 = vunpack.c.h.b16 %v3953
    %v4032 = vunpack.c.l.b16 %v3954
    %v4033 = vunpack.c.h.b16 %v3954
    %v4034 = vunpack.c.l.b16 %v3955
    %v4035 = vunpack.c.h.b16 %v3955
    %v4036 = vunpack.c.l.b16 %v3956
    %v4037 = vunpack.c.h.b16 %v3956
    %v4038 = vunpack.c.l.b16 %v3957
    %v4039 = vunpack.c.h.b16 %v3957
    %v4040 = vunpack.c.l.b16 %v3958
    %v4041 = vunpack.c.h.b16 %v3958
    %v4042 = vunpack.c.l.b16 %v3959
    %v4043 = vunpack.c.h.b16 %v3959
    %v4044 = vunpack.c.l.b16 %v3960
    %v4045 = vunpack.c.h.b16 %v3960
    %v4046 = vunpack.c.l.b16 %v3961
    %v4047 = vunpack.c.h.b16 %v3961
    %v4048 = vunpack.c.l.b16 %v3962
    %v4049 = vunpack.c.h.b16 %v3962
    %v4050 = vunpack.c.l.b16 %v3963
    %v4051 = vunpack.c.h.b16 %v3963
    %v4052 = vunpack.c.l.b16 %v3964
    %v4053 = vunpack.c.h.b16 %v3964
    %v4054 = vunpack.c.l.b16 %v3965
    %v4055 = vunpack.c.h.b16 %v3965
    %v4056 = vunpack.c.l.b16 %v3966
    %v4057 = vunpack.c.h.b16 %v3966
    %v4058 = vunpack.c.l.b16 %v3967
    %v4059 = vunpack.c.h.b16 %v3967
    %v4060 = vunpack.c.l.b16 %v3968
    %v4061 = vunpack.c.h.b16 %v3968
    %v4062 = vunpack.c.l.b16 %v3969
    %v4063 = vunpack.c.h.b16 %v3969
    %v4064 = vunpack.c.l.b16 %v3970
    %v4065 = vunpack.c.h.b16 %v3970
    %v4066 = vunpack.c.l.b16 %v3971
    %v4067 = vunpack.c.h.b16 %v3971
    %v4068 = vpack.c.b16 %v4008, %v4004
    %v4069 = vpack.c.b16 %v4009, %v4005
    %v4070 = vpack.c.b16 %v4010, %v4006
    %v4071 = vpack.c.b16 %v4011, %v4007
    %v4072 = vpack.c.b16 %v4016, %v4012
    %v4073 = vpack.c.b16 %v4017, %v4013
    %v4074 = vpack.c.b16 %v4018, %v4014
    %v4075 = vpack.c.b16 %v4019, %v4015
    %v4076 = vpack.c.b16 %v4024, %v4020
    %v4077 = vpack.c.b16 %v4025, %v4021
    %v4078 = vpack.c.b16 %v4026, %v4022
    %v4079 = vpack.c.b16 %v4027, %v4023
    %v4080 = vpack.c.b16 %v4032, %v4028
    %v4081 = vpack.c.b16 %v4033, %v4029
    %v4082 = vpack.c.b16 %v4034, %v4030
    %v4083 = vpack.c.b16 %v4035, %v4031
    %v4084 = vpack.c.b16 %v4040, %v4036
    %v4085 = vpack.c.b16 %v4041, %v4037
    %v4086 = vpack.c.b16 %v4042, %v4038
    %v4087 = vpack.c.b16 %v4043, %v4039
    %v4088 = vpack.c.b16 %v4048, %v4044
    %v4089 = vpack.c.b16 %v4049, %v4045
    %v4090 = vpack.c.b16 %v4050, %v4046
    %v4091 = vpack.c.b16 %v4051, %v4047
    %v4092 = vpack.c.b16 %v4056, %v4052
    %v4093 = vpack.c.b16 %v4057, %v4053
    %v4094 = vpack.c.b16 %v4058, %v4054
    %v4095 = vpack.c.b16 %v4059, %v4055
    %v4096 = vpack.c.b16 %v4064, %v4060
    %v4097 = vpack.c.b16 %v4065, %v4061
    %v4098 = vpack.c.b16 %v4066, %v4062
    %v4099 = vpack.c.b16 %v4067, %v4063
    %4132 = vmatprep.subr.bf16.mxu0 %v4097
    %4133 = vmatpush1.bf16.msra.mxu0 %v4096
    %4134 = vmatprep.subr.bf16.mxu0 %v4093
    %4135 = vmatpush1.bf16.msra.mxu0 %v4092
    %4136 = vmatprep.subr.bf16.mxu0 %v4089
    %4137 = vmatpush1.bf16.msra.mxu0 %v4088
    %4138 = vmatprep.subr.bf16.mxu0 %v4085
    %4139 = vmatpush1.bf16.msra.mxu0 %v4084
    %4140 = vmatprep.subr.bf16.mxu0 %v4081
    %4141 = vmatpush1.bf16.msra.mxu0 %v4080
    %4142 = vmatprep.subr.bf16.mxu0 %v4077
    %4143 = vmatpush1.bf16.msra.mxu0 %v4076
    %4144 = vmatprep.subr.bf16.mxu0 %v4073
    %4145 = vmatpush1.bf16.msra.mxu0 %v4072
    %4146 = vmatprep.subr.bf16.mxu0 %v4069
    %4147 = vmatpush1.bf16.msra.mxu0 %v4068
    %4148 = vmatprep.subr.bf16.mxu0 0
    %4149 = vmatpush2.bf16.msra.mxu0 0
    %4150 = vmatprep.subr.bf16.mxu0 0
    %4151 = vmatpush2.bf16.msra.mxu0 0
    %4152 = vmatprep.subr.bf16.mxu0 0
    %4153 = vmatpush2.bf16.msra.mxu0 0
    %4154 = vmatprep.subr.bf16.mxu0 0
    %4155 = vmatpush2.bf16.msra.mxu0 0
    %4156 = vmatprep.subr.bf16.mxu0 0
    %4157 = vmatpush2.bf16.msra.mxu0 0
    %4158 = vmatprep.subr.bf16.mxu0 0
    %4159 = vmatpush2.bf16.msra.mxu0 0
    %4160 = vmatprep.subr.bf16.mxu0 0
    %4161 = vmatpush2.bf16.msra.mxu0 0
    %4162 = vmatprep.subr.bf16.mxu0 0
    %4163 = vmatpush2.bf16.msra.mxu0 0
    %4164 = vmatprep.mubr.bf16.mxu0 0
    %4165 = vmatmul.mubr.bf16.gmra.mxu0 %v3939
    %v4166 = vpop.f32.mrf.mxu0
    %v4167 = vadd.f32 0.0, %v4166
    %v4168 = vpop.f32.mrf.mxu0
    %v4169 = vadd.f32 0.0, %v4168
    %v4170 = vpop.f32.mrf.mxu0
    %v4171 = vpop.f32.mrf.mxu0
    %4172 = vdwg.mxu0
    %4173 = vmatprep.subr.bf16.mxu0 %v4099
    %4174 = vmatpush1.bf16.msra.mxu0 %v4098
    %4175 = vmatprep.subr.bf16.mxu0 %v4095
    %4176 = vmatpush1.bf16.msra.mxu0 %v4094
    %4177 = vmatprep.subr.bf16.mxu0 %v4091
    %4178 = vmatpush1.bf16.msra.mxu0 %v4090
    %4179 = vmatprep.subr.bf16.mxu0 %v4087
    %4180 = vmatpush1.bf16.msra.mxu0 %v4086
    %4181 = vmatprep.subr.bf16.mxu0 %v4083
    %4182 = vmatpush1.bf16.msra.mxu0 %v4082
    %4183 = vmatprep.subr.bf16.mxu0 %v4079
    %4184 = vmatpush1.bf16.msra.mxu0 %v4078
    %4185 = vmatprep.subr.bf16.mxu0 %v4075
    %4186 = vmatpush1.bf16.msra.mxu0 %v4074
    %4187 = vmatprep.subr.bf16.mxu0 %v4071
    %4188 = vmatpush1.bf16.msra.mxu0 %v4070
    %4189 = vmatprep.subr.bf16.mxu0 0
    %4190 = vmatpush2.bf16.msra.mxu0 0
    %4191 = vmatprep.subr.bf16.mxu0 0
    %4192 = vmatpush2.bf16.msra.mxu0 0
    %4193 = vmatprep.subr.bf16.mxu0 0
    %4194 = vmatpush2.bf16.msra.mxu0 0
    %4195 = vmatprep.subr.bf16.mxu0 0
    %4196 = vmatpush2.bf16.msra.mxu0 0
    %4197 = vmatprep.subr.bf16.mxu0 0
    %4198 = vmatpush2.bf16.msra.mxu0 0
    %4199 = vmatprep.subr.bf16.mxu0 0
    %4200 = vmatpush2.bf16.msra.mxu0 0
    %4201 = vmatprep.subr.bf16.mxu0 0
    %4202 = vmatpush2.bf16.msra.mxu0 0
    %4203 = vmatprep.subr.bf16.mxu0 0
    %4204 = vmatpush2.bf16.msra.mxu0 0
    %4205 = vmatprep.mubr.bf16.mxu0 0
    %4206 = vmatmul.mubr.bf16.gmra.mxu0 %v3939
    %v4207 = vpop.f32.mrf.mxu0
    %v4208 = vadd.f32 0.0, %v4207
    %v4209 = vpop.f32.mrf.mxu0
    %v4210 = vadd.f32 0.0, %v4209
    %v4211 = vpop.f32.mrf.mxu0
    %v4212 = vpop.f32.mrf.mxu0
    %4213 = vdwg.mxu0
    %v4218 = vcombine.low %v4167, %v4169
    %v4219 = vcombine.low %v4208, %v4210
    %v4221 = vunpack.c.l.s4 1983009808
    %v4222 = vunpack.c.0.s8 %v4221
    %v4223 = vlaneseq
    %v4224 = vshrl.u32 %v4223, 7
    %v4225 = vsub.s32 %v4222, %v4224
    %v4226 = vrot.slane %v4218, %v4225
    %v4228 = vunpack.c.l.s4 1983009808
    %v4229 = vunpack.c.0.s8 %v4228
    %v4230 = vlaneseq
    %v4231 = vshrl.u32 %v4230, 7
    %v4232 = vsub.s32 %v4229, %v4231
    %v4233 = vrot.slane %v4219, %v4232
    %v4234 = vcombine.low %v4226, %v4233
    %v4236 = vadd.f32 %v3938, %v4234
    %v4237 = vxor.u32 %v3936, 2147483648
    %v4238 = vmul.f32 %v4237, 1.442695
    %v4239 = vpow.pop %v4238
    %v4240 = vadd.f32 %v4239, 1.0
    %v4241 = vrcp.pop %v4240
    %v4242 = vmul.f32 1.0, %v4241
    %v4244 = vrot.slane %v3936, 2
    %v4246 = vxor.u32 %v4244, 2147483648
    %v4247 = vmul.f32 %v4246, 1.442695
    %v4248 = vpow.pop %v4247
    %v4249 = vadd.f32 %v4248, 1.0
    %v4250 = vrcp.pop %v4249
    %v4251 = vmul.f32 1.0, %v4250
    %v4252 = vrot.slane %v3936, 4
    %v4254 = vtanh.pop %v4252
    %v4255 = vrot.slane %v3936, 6
    %v4257 = vxor.u32 %v4255, 2147483648
    %v4258 = vmul.f32 %v4257, 1.442695
    %v4259 = vpow.pop %v4258
    %v4260 = vadd.f32 %v4259, 1.0
    %v4261 = vrcp.pop %v4260
    %v4262 = vmul.f32 1.0, %v4261
    %v4263 = vmul.f32 %v4251, %v3599
    %v4264 = vmul.f32 %v4242, %v4254
    %v4265 = vadd.f32 %v4263, %v4264
    %v4266 = vtanh.pop %v4265
    %v4267 = vmul.f32 %v4262, %v4266
    %v4268 = vxor.u32 %v4236, 2147483648
    %v4269 = vmul.f32 %v4268, 1.442695
    %v4270 = vpow.pop %v4269
    %v4271 = vadd.f32 %v4270, 1.0
    %v4272 = vrcp.pop %v4271
    %v4273 = vmul.f32 1.0, %v4272
    %v4275 = vrot.slane %v4236, 2
    %v4277 = vxor.u32 %v4275, 2147483648
    %v4278 = vmul.f32 %v4277, 1.442695
    %v4279 = vpow.pop %v4278
    %v4280 = vadd.f32 %v4279, 1.0
    %v4281 = vrcp.pop %v4280
    %v4282 = vmul.f32 1.0, %v4281
    %v4283 = vrot.slane %v4236, 4
    %v4285 = vtanh.pop %v4283
    %v4286 = vrot.slane %v4236, 6
    %v4288 = vxor.u32 %v4286, 2147483648
    %v4289 = vmul.f32 %v4288, 1.442695
    %v4290 = vpow.pop %v4289
    %v4291 = vadd.f32 %v4290, 1.0
    %v4292 = vrcp.pop %v4291
    %v4293 = vmul.f32 1.0, %v4292
    %v4294 = vmul.f32 %v4282, %v3630
    %v4295 = vmul.f32 %v4273, %v4285
    %v4296 = vadd.f32 %v4294, %v4295
    %v4297 = vtanh.pop %v4296
    %v4298 = vmul.f32 %v4293, %v4297
    %s4299 = scalar_lea.vmem [#allocation4], 8
    %4300 = vst [vmem:[%s4299] sm:$0x3] %v4267
    %s4301 = scalar_lea.vmem [#allocation5], 6
    %4302 = vst [vmem:[%s4301] sm:$0x3] %v4298
    %s4303 = scalar_lea.vmem [#allocation2], 40
    %v4304 = vld [vmem:[%s4303] sm:$0xff]
    %v4305 = vpack.c.bf16 %v4267, %v4267
    %v4306 = vld [vmem:[#allocation11] sm:$0xff]
    %v4307 = vld [vmem:[#allocation11 + $0x8] sm:$0xff]
    %v4308 = vld [vmem:[#allocation11 + $0x10] sm:$0xff]
    %v4309 = vld [vmem:[#allocation11 + $0x18] sm:$0xff]
    %v4310 = vld [vmem:[#allocation11 + $0x20] sm:$0xff]
    %v4311 = vld [vmem:[#allocation11 + $0x28] sm:$0xff]
    %v4312 = vld [vmem:[#allocation11 + $0x30] sm:$0xff]
    %v4313 = vld [vmem:[#allocation11 + $0x38] sm:$0xff]
    %v4314 = vld [vmem:[#allocation11 + $0x40] sm:$0xff]
    %v4315 = vld [vmem:[#allocation11 + $0x48] sm:$0xff]
    %v4316 = vld [vmem:[#allocation11 + $0x50] sm:$0xff]
    %v4317 = vld [vmem:[#allocation11 + $0x58] sm:$0xff]
    %v4318 = vld [vmem:[#allocation11 + $0x60] sm:$0xff]
    %v4319 = vld [vmem:[#allocation11 + $0x68] sm:$0xff]
    %v4320 = vld [vmem:[#allocation11 + $0x70] sm:$0xff]
    %v4321 = vld [vmem:[#allocation11 + $0x78] sm:$0xff]
    %v4322 = vld [vmem:[#allocation11 + $0x80] sm:$0xff]
    %v4323 = vld [vmem:[#allocation11 + $0x88] sm:$0xff]
    %v4324 = vld [vmem:[#allocation11 + $0x90] sm:$0xff]
    %v4325 = vld [vmem:[#allocation11 + $0x98] sm:$0xff]
    %v4326 = vld [vmem:[#allocation11 + $0xa0] sm:$0xff]
    %v4327 = vld [vmem:[#allocation11 + $0xa8] sm:$0xff]
    %v4328 = vld [vmem:[#allocation11 + $0xb0] sm:$0xff]
    %v4329 = vld [vmem:[#allocation11 + $0xb8] sm:$0xff]
    %v4330 = vld [vmem:[#allocation11 + $0xc0] sm:$0xff]
    %v4331 = vld [vmem:[#allocation11 + $0xc8] sm:$0xff]
    %v4332 = vld [vmem:[#allocation11 + $0xd0] sm:$0xff]
    %v4333 = vld [vmem:[#allocation11 + $0xd8] sm:$0xff]
    %v4334 = vld [vmem:[#allocation11 + $0xe0] sm:$0xff]
    %v4335 = vld [vmem:[#allocation11 + $0xe8] sm:$0xff]
    %v4336 = vld [vmem:[#allocation11 + $0xf0] sm:$0xff]
    %v4337 = vld [vmem:[#allocation11 + $0xf8] sm:$0xff]
    %v4370 = vunpack.c.l.b16 %v4306
    %v4371 = vunpack.c.h.b16 %v4306
    %v4372 = vunpack.c.l.b16 %v4307
    %v4373 = vunpack.c.h.b16 %v4307
    %v4374 = vunpack.c.l.b16 %v4308
    %v4375 = vunpack.c.h.b16 %v4308
    %v4376 = vunpack.c.l.b16 %v4309
    %v4377 = vunpack.c.h.b16 %v4309
    %v4378 = vunpack.c.l.b16 %v4310
    %v4379 = vunpack.c.h.b16 %v4310
    %v4380 = vunpack.c.l.b16 %v4311
    %v4381 = vunpack.c.h.b16 %v4311
    %v4382 = vunpack.c.l.b16 %v4312
    %v4383 = vunpack.c.h.b16 %v4312
    %v4384 = vunpack.c.l.b16 %v4313
    %v4385 = vunpack.c.h.b16 %v4313
    %v4386 = vunpack.c.l.b16 %v4314
    %v4387 = vunpack.c.h.b16 %v4314
    %v4388 = vunpack.c.l.b16 %v4315
    %v4389 = vunpack.c.h.b16 %v4315
    %v4390 = vunpack.c.l.b16 %v4316
    %v4391 = vunpack.c.h.b16 %v4316
    %v4392 = vunpack.c.l.b16 %v4317
    %v4393 = vunpack.c.h.b16 %v4317
    %v4394 = vunpack.c.l.b16 %v4318
    %v4395 = vunpack.c.h.b16 %v4318
    %v4396 = vunpack.c.l.b16 %v4319
    %v4397 = vunpack.c.h.b16 %v4319
    %v4398 = vunpack.c.l.b16 %v4320
    %v4399 = vunpack.c.h.b16 %v4320
    %v4400 = vunpack.c.l.b16 %v4321
    %v4401 = vunpack.c.h.b16 %v4321
    %v4402 = vunpack.c.l.b16 %v4322
    %v4403 = vunpack.c.h.b16 %v4322
    %v4404 = vunpack.c.l.b16 %v4323
    %v4405 = vunpack.c.h.b16 %v4323
    %v4406 = vunpack.c.l.b16 %v4324
    %v4407 = vunpack.c.h.b16 %v4324
    %v4408 = vunpack.c.l.b16 %v4325
    %v4409 = vunpack.c.h.b16 %v4325
    %v4410 = vunpack.c.l.b16 %v4326
    %v4411 = vunpack.c.h.b16 %v4326
    %v4412 = vunpack.c.l.b16 %v4327
    %v4413 = vunpack.c.h.b16 %v4327
    %v4414 = vunpack.c.l.b16 %v4328
    %v4415 = vunpack.c.h.b16 %v4328
    %v4416 = vunpack.c.l.b16 %v4329
    %v4417 = vunpack.c.h.b16 %v4329
    %v4418 = vunpack.c.l.b16 %v4330
    %v4419 = vunpack.c.h.b16 %v4330
    %v4420 = vunpack.c.l.b16 %v4331
    %v4421 = vunpack.c.h.b16 %v4331
    %v4422 = vunpack.c.l.b16 %v4332
    %v4423 = vunpack.c.h.b16 %v4332
    %v4424 = vunpack.c.l.b16 %v4333
    %v4425 = vunpack.c.h.b16 %v4333
    %v4426 = vunpack.c.l.b16 %v4334
    %v4427 = vunpack.c.h.b16 %v4334
    %v4428 = vunpack.c.l.b16 %v4335
    %v4429 = vunpack.c.h.b16 %v4335
    %v4430 = vunpack.c.l.b16 %v4336
    %v4431 = vunpack.c.h.b16 %v4336
    %v4432 = vunpack.c.l.b16 %v4337
    %v4433 = vunpack.c.h.b16 %v4337
    %v4434 = vpack.c.b16 %v4374, %v4370
    %v4435 = vpack.c.b16 %v4375, %v4371
    %v4436 = vpack.c.b16 %v4376, %v4372
    %v4437 = vpack.c.b16 %v4377, %v4373
    %v4438 = vpack.c.b16 %v4382, %v4378
    %v4439 = vpack.c.b16 %v4383, %v4379
    %v4440 = vpack.c.b16 %v4384, %v4380
    %v4441 = vpack.c.b16 %v4385, %v4381
    %v4442 = vpack.c.b16 %v4390, %v4386
    %v4443 = vpack.c.b16 %v4391, %v4387
    %v4444 = vpack.c.b16 %v4392, %v4388
    %v4445 = vpack.c.b16 %v4393, %v4389
    %v4446 = vpack.c.b16 %v4398, %v4394
    %v4447 = vpack.c.b16 %v4399, %v4395
    %v4448 = vpack.c.b16 %v4400, %v4396
    %v4449 = vpack.c.b16 %v4401, %v4397
    %v4450 = vpack.c.b16 %v4406, %v4402
    %v4451 = vpack.c.b16 %v4407, %v4403
    %v4452 = vpack.c.b16 %v4408, %v4404
    %v4453 = vpack.c.b16 %v4409, %v4405
    %v4454 = vpack.c.b16 %v4414, %v4410
    %v4455 = vpack.c.b16 %v4415, %v4411
    %v4456 = vpack.c.b16 %v4416, %v4412
    %v4457 = vpack.c.b16 %v4417, %v4413
    %v4458 = vpack.c.b16 %v4422, %v4418
    %v4459 = vpack.c.b16 %v4423, %v4419
    %v4460 = vpack.c.b16 %v4424, %v4420
    %v4461 = vpack.c.b16 %v4425, %v4421
    %v4462 = vpack.c.b16 %v4430, %v4426
    %v4463 = vpack.c.b16 %v4431, %v4427
    %v4464 = vpack.c.b16 %v4432, %v4428
    %v4465 = vpack.c.b16 %v4433, %v4429
    %4498 = vmatprep.subr.bf16.mxu0 %v4463
    %4499 = vmatpush1.bf16.msra.mxu0 %v4462
    %4500 = vmatprep.subr.bf16.mxu0 %v4459
    %4501 = vmatpush1.bf16.msra.mxu0 %v4458
    %4502 = vmatprep.subr.bf16.mxu0 %v4455
    %4503 = vmatpush1.bf16.msra.mxu0 %v4454
    %4504 = vmatprep.subr.bf16.mxu0 %v4451
    %4505 = vmatpush1.bf16.msra.mxu0 %v4450
    %4506 = vmatprep.subr.bf16.mxu0 %v4447
    %4507 = vmatpush1.bf16.msra.mxu0 %v4446
    %4508 = vmatprep.subr.bf16.mxu0 %v4443
    %4509 = vmatpush1.bf16.msra.mxu0 %v4442
    %4510 = vmatprep.subr.bf16.mxu0 %v4439
    %4511 = vmatpush1.bf16.msra.mxu0 %v4438
    %4512 = vmatprep.subr.bf16.mxu0 %v4435
    %4513 = vmatpush1.bf16.msra.mxu0 %v4434
    %4514 = vmatprep.subr.bf16.mxu0 0
    %4515 = vmatpush2.bf16.msra.mxu0 0
    %4516 = vmatprep.subr.bf16.mxu0 0
    %4517 = vmatpush2.bf16.msra.mxu0 0
    %4518 = vmatprep.subr.bf16.mxu0 0
    %4519 = vmatpush2.bf16.msra.mxu0 0
    %4520 = vmatprep.subr.bf16.mxu0 0
    %4521 = vmatpush2.bf16.msra.mxu0 0
    %4522 = vmatprep.subr.bf16.mxu0 0
    %4523 = vmatpush2.bf16.msra.mxu0 0
    %4524 = vmatprep.subr.bf16.mxu0 0
    %4525 = vmatpush2.bf16.msra.mxu0 0
    %4526 = vmatprep.subr.bf16.mxu0 0
    %4527 = vmatpush2.bf16.msra.mxu0 0
    %4528 = vmatprep.subr.bf16.mxu0 0
    %4529 = vmatpush2.bf16.msra.mxu0 0
    %4530 = vmatprep.mubr.bf16.mxu0 0
    %4531 = vmatmul.mubr.bf16.gmra.mxu0 %v4305
    %v4532 = vpop.f32.mrf.mxu0
    %v4533 = vadd.f32 0.0, %v4532
    %v4534 = vpop.f32.mrf.mxu0
    %v4535 = vadd.f32 0.0, %v4534
    %v4536 = vpop.f32.mrf.mxu0
    %v4537 = vpop.f32.mrf.mxu0
    %4538 = vdwg.mxu0
    %4539 = vmatprep.subr.bf16.mxu0 %v4465
    %4540 = vmatpush1.bf16.msra.mxu0 %v4464
    %4541 = vmatprep.subr.bf16.mxu0 %v4461
    %4542 = vmatpush1.bf16.msra.mxu0 %v4460
    %4543 = vmatprep.subr.bf16.mxu0 %v4457
    %4544 = vmatpush1.bf16.msra.mxu0 %v4456
    %4545 = vmatprep.subr.bf16.mxu0 %v4453
    %4546 = vmatpush1.bf16.msra.mxu0 %v4452
    %4547 = vmatprep.subr.bf16.mxu0 %v4449
    %4548 = vmatpush1.bf16.msra.mxu0 %v4448
    %4549 = vmatprep.subr.bf16.mxu0 %v4445
    %4550 = vmatpush1.bf16.msra.mxu0 %v4444
    %4551 = vmatprep.subr.bf16.mxu0 %v4441
    %4552 = vmatpush1.bf16.msra.mxu0 %v4440
    %4553 = vmatprep.subr.bf16.mxu0 %v4437
    %4554 = vmatpush1.bf16.msra.mxu0 %v4436
    %4555 = vmatprep.subr.bf16.mxu0 0
    %4556 = vmatpush2.bf16.msra.mxu0 0
    %4557 = vmatprep.subr.bf16.mxu0 0
    %4558 = vmatpush2.bf16.msra.mxu0 0
    %4559 = vmatprep.subr.bf16.mxu0 0
    %4560 = vmatpush2.bf16.msra.mxu0 0
    %4561 = vmatprep.subr.bf16.mxu0 0
    %4562 = vmatpush2.bf16.msra.mxu0 0
    %4563 = vmatprep.subr.bf16.mxu0 0
    %4564 = vmatpush2.bf16.msra.mxu0 0
    %4565 = vmatprep.subr.bf16.mxu0 0
    %4566 = vmatpush2.bf16.msra.mxu0 0
    %4567 = vmatprep.subr.bf16.mxu0 0
    %4568 = vmatpush2.bf16.msra.mxu0 0
    %4569 = vmatprep.subr.bf16.mxu0 0
    %4570 = vmatpush2.bf16.msra.mxu0 0
    %4571 = vmatprep.mubr.bf16.mxu0 0
    %4572 = vmatmul.mubr.bf16.gmra.mxu0 %v4305
    %v4573 = vpop.f32.mrf.mxu0
    %v4574 = vadd.f32 0.0, %v4573
    %v4575 = vpop.f32.mrf.mxu0
    %v4576 = vadd.f32 0.0, %v4575
    %v4577 = vpop.f32.mrf.mxu0
    %v4578 = vpop.f32.mrf.mxu0
    %4579 = vdwg.mxu0
    %v4584 = vcombine.low %v4533, %v4535
    %v4585 = vcombine.low %v4574, %v4576
    %v4587 = vunpack.c.l.s4 1983009808
    %v4588 = vunpack.c.0.s8 %v4587
    %v4589 = vlaneseq
    %v4590 = vshrl.u32 %v4589, 7
    %v4591 = vsub.s32 %v4588, %v4590
    %v4592 = vrot.slane %v4584, %v4591
    %v4594 = vunpack.c.l.s4 1983009808
    %v4595 = vunpack.c.0.s8 %v4594
    %v4596 = vlaneseq
    %v4597 = vshrl.u32 %v4596, 7
    %v4598 = vsub.s32 %v4595, %v4597
    %v4599 = vrot.slane %v4585, %v4598
    %v4600 = vcombine.low %v4592, %v4599
    %v4602 = vadd.f32 %v4304, %v4600
    %s4603 = scalar_lea.vmem [#allocation3], 16
    %v4604 = vld [vmem:[%s4603] sm:$0xff]
    %v4605 = vpack.c.bf16 %v4298, %v4298
    %v4606 = vld [vmem:[#allocation14] sm:$0xff]
    %v4607 = vld [vmem:[#allocation14 + $0x8] sm:$0xff]
    %v4608 = vld [vmem:[#allocation14 + $0x10] sm:$0xff]
    %v4609 = vld [vmem:[#allocation14 + $0x18] sm:$0xff]
    %v4610 = vld [vmem:[#allocation14 + $0x20] sm:$0xff]
    %v4611 = vld [vmem:[#allocation14 + $0x28] sm:$0xff]
    %v4612 = vld [vmem:[#allocation14 + $0x30] sm:$0xff]
    %v4613 = vld [vmem:[#allocation14 + $0x38] sm:$0xff]
    %v4614 = vld [vmem:[#allocation14 + $0x40] sm:$0xff]
    %v4615 = vld [vmem:[#allocation14 + $0x48] sm:$0xff]
    %v4616 = vld [vmem:[#allocation14 + $0x50] sm:$0xff]
    %v4617 = vld [vmem:[#allocation14 + $0x58] sm:$0xff]
    %v4618 = vld [vmem:[#allocation14 + $0x60] sm:$0xff]
    %v4619 = vld [vmem:[#allocation14 + $0x68] sm:$0xff]
    %v4620 = vld [vmem:[#allocation14 + $0x70] sm:$0xff]
    %v4621 = vld [vmem:[#allocation14 + $0x78] sm:$0xff]
    %v4622 = vld [vmem:[#allocation14 + $0x80] sm:$0xff]
    %v4623 = vld [vmem:[#allocation14 + $0x88] sm:$0xff]
    %v4624 = vld [vmem:[#allocation14 + $0x90] sm:$0xff]
    %v4625 = vld [vmem:[#allocation14 + $0x98] sm:$0xff]
    %v4626 = vld [vmem:[#allocation14 + $0xa0] sm:$0xff]
    %v4627 = vld [vmem:[#allocation14 + $0xa8] sm:$0xff]
    %v4628 = vld [vmem:[#allocation14 + $0xb0] sm:$0xff]
    %v4629 = vld [vmem:[#allocation14 + $0xb8] sm:$0xff]
    %v4630 = vld [vmem:[#allocation14 + $0xc0] sm:$0xff]
    %v4631 = vld [vmem:[#allocation14 + $0xc8] sm:$0xff]
    %v4632 = vld [vmem:[#allocation14 + $0xd0] sm:$0xff]
    %v4633 = vld [vmem:[#allocation14 + $0xd8] sm:$0xff]
    %v4634 = vld [vmem:[#allocation14 + $0xe0] sm:$0xff]
    %v4635 = vld [vmem:[#allocation14 + $0xe8] sm:$0xff]
    %v4636 = vld [vmem:[#allocation14 + $0xf0] sm:$0xff]
    %v4637 = vld [vmem:[#allocation14 + $0xf8] sm:$0xff]
    %v4670 = vunpack.c.l.b16 %v4606
    %v4671 = vunpack.c.h.b16 %v4606
    %v4672 = vunpack.c.l.b16 %v4607
    %v4673 = vunpack.c.h.b16 %v4607
    %v4674 = vunpack.c.l.b16 %v4608
    %v4675 = vunpack.c.h.b16 %v4608
    %v4676 = vunpack.c.l.b16 %v4609
    %v4677 = vunpack.c.h.b16 %v4609
    %v4678 = vunpack.c.l.b16 %v4610
    %v4679 = vunpack.c.h.b16 %v4610
    %v4680 = vunpack.c.l.b16 %v4611
    %v4681 = vunpack.c.h.b16 %v4611
    %v4682 = vunpack.c.l.b16 %v4612
    %v4683 = vunpack.c.h.b16 %v4612
    %v4684 = vunpack.c.l.b16 %v4613
    %v4685 = vunpack.c.h.b16 %v4613
    %v4686 = vunpack.c.l.b16 %v4614
    %v4687 = vunpack.c.h.b16 %v4614
    %v4688 = vunpack.c.l.b16 %v4615
    %v4689 = vunpack.c.h.b16 %v4615
    %v4690 = vunpack.c.l.b16 %v4616
    %v4691 = vunpack.c.h.b16 %v4616
    %v4692 = vunpack.c.l.b16 %v4617
    %v4693 = vunpack.c.h.b16 %v4617
    %v4694 = vunpack.c.l.b16 %v4618
    %v4695 = vunpack.c.h.b16 %v4618
    %v4696 = vunpack.c.l.b16 %v4619
    %v4697 = vunpack.c.h.b16 %v4619
    %v4698 = vunpack.c.l.b16 %v4620
    %v4699 = vunpack.c.h.b16 %v4620
    %v4700 = vunpack.c.l.b16 %v4621
    %v4701 = vunpack.c.h.b16 %v4621
    %v4702 = vunpack.c.l.b16 %v4622
    %v4703 = vunpack.c.h.b16 %v4622
    %v4704 = vunpack.c.l.b16 %v4623
    %v4705 = vunpack.c.h.b16 %v4623
    %v4706 = vunpack.c.l.b16 %v4624
    %v4707 = vunpack.c.h.b16 %v4624
    %v4708 = vunpack.c.l.b16 %v4625
    %v4709 = vunpack.c.h.b16 %v4625
    %v4710 = vunpack.c.l.b16 %v4626
    %v4711 = vunpack.c.h.b16 %v4626
    %v4712 = vunpack.c.l.b16 %v4627
    %v4713 = vunpack.c.h.b16 %v4627
    %v4714 = vunpack.c.l.b16 %v4628
    %v4715 = vunpack.c.h.b16 %v4628
    %v4716 = vunpack.c.l.b16 %v4629
    %v4717 = vunpack.c.h.b16 %v4629
    %v4718 = vunpack.c.l.b16 %v4630
    %v4719 = vunpack.c.h.b16 %v4630
    %v4720 = vunpack.c.l.b16 %v4631
    %v4721 = vunpack.c.h.b16 %v4631
    %v4722 = vunpack.c.l.b16 %v4632
    %v4723 = vunpack.c.h.b16 %v4632
    %v4724 = vunpack.c.l.b16 %v4633
    %v4725 = vunpack.c.h.b16 %v4633
    %v4726 = vunpack.c.l.b16 %v4634
    %v4727 = vunpack.c.h.b16 %v4634
    %v4728 = vunpack.c.l.b16 %v4635
    %v4729 = vunpack.c.h.b16 %v4635
    %v4730 = vunpack.c.l.b16 %v4636
    %v4731 = vunpack.c.h.b16 %v4636
    %v4732 = vunpack.c.l.b16 %v4637
    %v4733 = vunpack.c.h.b16 %v4637
    %v4734 = vpack.c.b16 %v4674, %v4670
    %v4735 = vpack.c.b16 %v4675, %v4671
    %v4736 = vpack.c.b16 %v4676, %v4672
    %v4737 = vpack.c.b16 %v4677, %v4673
    %v4738 = vpack.c.b16 %v4682, %v4678
    %v4739 = vpack.c.b16 %v4683, %v4679
    %v4740 = vpack.c.b16 %v4684, %v4680
    %v4741 = vpack.c.b16 %v4685, %v4681
    %v4742 = vpack.c.b16 %v4690, %v4686
    %v4743 = vpack.c.b16 %v4691, %v4687
    %v4744 = vpack.c.b16 %v4692, %v4688
    %v4745 = vpack.c.b16 %v4693, %v4689
    %v4746 = vpack.c.b16 %v4698, %v4694
    %v4747 = vpack.c.b16 %v4699, %v4695
    %v4748 = vpack.c.b16 %v4700, %v4696
    %v4749 = vpack.c.b16 %v4701, %v4697
    %v4750 = vpack.c.b16 %v4706, %v4702
    %v4751 = vpack.c.b16 %v4707, %v4703
    %v4752 = vpack.c.b16 %v4708, %v4704
    %v4753 = vpack.c.b16 %v4709, %v4705
    %v4754 = vpack.c.b16 %v4714, %v4710
    %v4755 = vpack.c.b16 %v4715, %v4711
    %v4756 = vpack.c.b16 %v4716, %v4712
    %v4757 = vpack.c.b16 %v4717, %v4713
    %v4758 = vpack.c.b16 %v4722, %v4718
    %v4759 = vpack.c.b16 %v4723, %v4719
    %v4760 = vpack.c.b16 %v4724, %v4720
    %v4761 = vpack.c.b16 %v4725, %v4721
    %v4762 = vpack.c.b16 %v4730, %v4726
    %v4763 = vpack.c.b16 %v4731, %v4727
    %v4764 = vpack.c.b16 %v4732, %v4728
    %v4765 = vpack.c.b16 %v4733, %v4729
    %4798 = vmatprep.subr.bf16.mxu0 %v4763
    %4799 = vmatpush1.bf16.msra.mxu0 %v4762
    %4800 = vmatprep.subr.bf16.mxu0 %v4759
    %4801 = vmatpush1.bf16.msra.mxu0 %v4758
    %4802 = vmatprep.subr.bf16.mxu0 %v4755
    %4803 = vmatpush1.bf16.msra.mxu0 %v4754
    %4804 = vmatprep.subr.bf16.mxu0 %v4751
    %4805 = vmatpush1.bf16.msra.mxu0 %v4750
    %4806 = vmatprep.subr.bf16.mxu0 %v4747
    %4807 = vmatpush1.bf16.msra.mxu0 %v4746
    %4808 = vmatprep.subr.bf16.mxu0 %v4743
    %4809 = vmatpush1.bf16.msra.mxu0 %v4742
    %4810 = vmatprep.subr.bf16.mxu0 %v4739
    %4811 = vmatpush1.bf16.msra.mxu0 %v4738
    %4812 = vmatprep.subr.bf16.mxu0 %v4735
    %4813 = vmatpush1.bf16.msra.mxu0 %v4734
    %4814 = vmatprep.subr.bf16.mxu0 0
    %4815 = vmatpush2.bf16.msra.mxu0 0
    %4816 = vmatprep.subr.bf16.mxu0 0
    %4817 = vmatpush2.bf16.msra.mxu0 0
    %4818 = vmatprep.subr.bf16.mxu0 0
    %4819 = vmatpush2.bf16.msra.mxu0 0
    %4820 = vmatprep.subr.bf16.mxu0 0
    %4821 = vmatpush2.bf16.msra.mxu0 0
    %4822 = vmatprep.subr.bf16.mxu0 0
    %4823 = vmatpush2.bf16.msra.mxu0 0
    %4824 = vmatprep.subr.bf16.mxu0 0
    %4825 = vmatpush2.bf16.msra.mxu0 0
    %4826 = vmatprep.subr.bf16.mxu0 0
    %4827 = vmatpush2.bf16.msra.mxu0 0
    %4828 = vmatprep.subr.bf16.mxu0 0
    %4829 = vmatpush2.bf16.msra.mxu0 0
    %4830 = vmatprep.mubr.bf16.mxu0 0
    %4831 = vmatmul.mubr.bf16.gmra.mxu0 %v4605
    %v4832 = vpop.f32.mrf.mxu0
    %v4833 = vadd.f32 0.0, %v4832
    %v4834 = vpop.f32.mrf.mxu0
    %v4835 = vadd.f32 0.0, %v4834
    %v4836 = vpop.f32.mrf.mxu0
    %v4837 = vpop.f32.mrf.mxu0
    %4838 = vdwg.mxu0
    %4839 = vmatprep.subr.bf16.mxu0 %v4765
    %4840 = vmatpush1.bf16.msra.mxu0 %v4764
    %4841 = vmatprep.subr.bf16.mxu0 %v4761
    %4842 = vmatpush1.bf16.msra.mxu0 %v4760
    %4843 = vmatprep.subr.bf16.mxu0 %v4757
    %4844 = vmatpush1.bf16.msra.mxu0 %v4756
    %4845 = vmatprep.subr.bf16.mxu0 %v4753
    %4846 = vmatpush1.bf16.msra.mxu0 %v4752
    %4847 = vmatprep.subr.bf16.mxu0 %v4749
    %4848 = vmatpush1.bf16.msra.mxu0 %v4748
    %4849 = vmatprep.subr.bf16.mxu0 %v4745
    %4850 = vmatpush1.bf16.msra.mxu0 %v4744
    %4851 = vmatprep.subr.bf16.mxu0 %v4741
    %4852 = vmatpush1.bf16.msra.mxu0 %v4740
    %4853 = vmatprep.subr.bf16.mxu0 %v4737
    %4854 = vmatpush1.bf16.msra.mxu0 %v4736
    %4855 = vmatprep.subr.bf16.mxu0 0
    %4856 = vmatpush2.bf16.msra.mxu0 0
    %4857 = vmatprep.subr.bf16.mxu0 0
    %4858 = vmatpush2.bf16.msra.mxu0 0
    %4859 = vmatprep.subr.bf16.mxu0 0
    %4860 = vmatpush2.bf16.msra.mxu0 0
    %4861 = vmatprep.subr.bf16.mxu0 0
    %4862 = vmatpush2.bf16.msra.mxu0 0
    %4863 = vmatprep.subr.bf16.mxu0 0
    %4864 = vmatpush2.bf16.msra.mxu0 0
    %4865 = vmatprep.subr.bf16.mxu0 0
    %4866 = vmatpush2.bf16.msra.mxu0 0
    %4867 = vmatprep.subr.bf16.mxu0 0
    %4868 = vmatpush2.bf16.msra.mxu0 0
    %4869 = vmatprep.subr.bf16.mxu0 0
    %4870 = vmatpush2.bf16.msra.mxu0 0
    %4871 = vmatprep.mubr.bf16.mxu0 0
    %4872 = vmatmul.mubr.bf16.gmra.mxu0 %v4605
    %v4873 = vpop.f32.mrf.mxu0
    %v4874 = vadd.f32 0.0, %v4873
    %v4875 = vpop.f32.mrf.mxu0
    %v4876 = vadd.f32 0.0, %v4875
    %v4877 = vpop.f32.mrf.mxu0
    %v4878 = vpop.f32.mrf.mxu0
    %4879 = vdwg.mxu0
    %v4884 = vcombine.low %v4833, %v4835
    %v4885 = vcombine.low %v4874, %v4876
    %v4887 = vunpack.c.l.s4 1983009808
    %v4888 = vunpack.c.0.s8 %v4887
    %v4889 = vlaneseq
    %v4890 = vshrl.u32 %v4889, 7
    %v4891 = vsub.s32 %v4888, %v4890
    %v4892 = vrot.slane %v4884, %v4891
    %v4894 = vunpack.c.l.s4 1983009808
    %v4895 = vunpack.c.0.s8 %v4894
    %v4896 = vlaneseq
    %v4897 = vshrl.u32 %v4896, 7
    %v4898 = vsub.s32 %v4895, %v4897
    %v4899 = vrot.slane %v4885, %v4898
    %v4900 = vcombine.low %v4892, %v4899
    %v4902 = vadd.f32 %v4604, %v4900
    %v4903 = vxor.u32 %v4602, 2147483648
    %v4904 = vmul.f32 %v4903, 1.442695
    %v4905 = vpow.pop %v4904
    %v4906 = vadd.f32 %v4905, 1.0
    %v4907 = vrcp.pop %v4906
    %v4908 = vmul.f32 1.0, %v4907
    %v4910 = vrot.slane %v4602, 2
    %v4912 = vxor.u32 %v4910, 2147483648
    %v4913 = vmul.f32 %v4912, 1.442695
    %v4914 = vpow.pop %v4913
    %v4915 = vadd.f32 %v4914, 1.0
    %v4916 = vrcp.pop %v4915
    %v4917 = vmul.f32 1.0, %v4916
    %v4918 = vrot.slane %v4602, 4
    %v4920 = vtanh.pop %v4918
    %v4921 = vrot.slane %v4602, 6
    %v4923 = vxor.u32 %v4921, 2147483648
    %v4924 = vmul.f32 %v4923, 1.442695
    %v4925 = vpow.pop %v4924
    %v4926 = vadd.f32 %v4925, 1.0
    %v4927 = vrcp.pop %v4926
    %v4928 = vmul.f32 1.0, %v4927
    %v4929 = vmul.f32 %v4917, %v4265
    %v4930 = vmul.f32 %v4908, %v4920
    %v4931 = vadd.f32 %v4929, %v4930
    %v4932 = vtanh.pop %v4931
    %v4933 = vmul.f32 %v4928, %v4932
    %v4934 = vxor.u32 %v4902, 2147483648
    %v4935 = vmul.f32 %v4934, 1.442695
    %v4936 = vpow.pop %v4935
    %v4937 = vadd.f32 %v4936, 1.0
    %v4938 = vrcp.pop %v4937
    %v4939 = vmul.f32 1.0, %v4938
    %v4941 = vrot.slane %v4902, 2
    %v4943 = vxor.u32 %v4941, 2147483648
    %v4944 = vmul.f32 %v4943, 1.442695
    %v4945 = vpow.pop %v4944
    %v4946 = vadd.f32 %v4945, 1.0
    %v4947 = vrcp.pop %v4946
    %v4948 = vmul.f32 1.0, %v4947
    %v4949 = vrot.slane %v4902, 4
    %v4951 = vtanh.pop %v4949
    %v4952 = vrot.slane %v4902, 6
    %v4954 = vxor.u32 %v4952, 2147483648
    %v4955 = vmul.f32 %v4954, 1.442695
    %v4956 = vpow.pop %v4955
    %v4957 = vadd.f32 %v4956, 1.0
    %v4958 = vrcp.pop %v4957
    %v4959 = vmul.f32 1.0, %v4958
    %v4960 = vmul.f32 %v4948, %v4296
    %v4961 = vmul.f32 %v4939, %v4951
    %v4962 = vadd.f32 %v4960, %v4961
    %v4963 = vtanh.pop %v4962
    %v4964 = vmul.f32 %v4959, %v4963
    %s4965 = scalar_lea.vmem [#allocation4], 10
    %4966 = vst [vmem:[%s4965] sm:$0x3] %v4933
    %s4967 = scalar_lea.vmem [#allocation5], 4
    %4968 = vst [vmem:[%s4967] sm:$0x3] %v4964
    %s4969 = scalar_lea.vmem [#allocation2], 48
    %v4970 = vld [vmem:[%s4969] sm:$0xff]
    %v4971 = vpack.c.bf16 %v4933, %v4933
    %v4972 = vld [vmem:[#allocation11] sm:$0xff]
    %v4973 = vld [vmem:[#allocation11 + $0x8] sm:$0xff]
    %v4974 = vld [vmem:[#allocation11 + $0x10] sm:$0xff]
    %v4975 = vld [vmem:[#allocation11 + $0x18] sm:$0xff]
    %v4976 = vld [vmem:[#allocation11 + $0x20] sm:$0xff]
    %v4977 = vld [vmem:[#allocation11 + $0x28] sm:$0xff]
    %v4978 = vld [vmem:[#allocation11 + $0x30] sm:$0xff]
    %v4979 = vld [vmem:[#allocation11 + $0x38] sm:$0xff]
    %v4980 = vld [vmem:[#allocation11 + $0x40] sm:$0xff]
    %v4981 = vld [vmem:[#allocation11 + $0x48] sm:$0xff]
    %v4982 = vld [vmem:[#allocation11 + $0x50] sm:$0xff]
    %v4983 = vld [vmem:[#allocation11 + $0x58] sm:$0xff]
    %v4984 = vld [vmem:[#allocation11 + $0x60] sm:$0xff]
    %v4985 = vld [vmem:[#allocation11 + $0x68] sm:$0xff]
    %v4986 = vld [vmem:[#allocation11 + $0x70] sm:$0xff]
    %v4987 = vld [vmem:[#allocation11 + $0x78] sm:$0xff]
    %v4988 = vld [vmem:[#allocation11 + $0x80] sm:$0xff]
    %v4989 = vld [vmem:[#allocation11 + $0x88] sm:$0xff]
    %v4990 = vld [vmem:[#allocation11 + $0x90] sm:$0xff]
    %v4991 = vld [vmem:[#allocation11 + $0x98] sm:$0xff]
    %v4992 = vld [vmem:[#allocation11 + $0xa0] sm:$0xff]
    %v4993 = vld [vmem:[#allocation11 + $0xa8] sm:$0xff]
    %v4994 = vld [vmem:[#allocation11 + $0xb0] sm:$0xff]
    %v4995 = vld [vmem:[#allocation11 + $0xb8] sm:$0xff]
    %v4996 = vld [vmem:[#allocation11 + $0xc0] sm:$0xff]
    %v4997 = vld [vmem:[#allocation11 + $0xc8] sm:$0xff]
    %v4998 = vld [vmem:[#allocation11 + $0xd0] sm:$0xff]
    %v4999 = vld [vmem:[#allocation11 + $0xd8] sm:$0xff]
    %v5000 = vld [vmem:[#allocation11 + $0xe0] sm:$0xff]
    %v5001 = vld [vmem:[#allocation11 + $0xe8] sm:$0xff]
    %v5002 = vld [vmem:[#allocation11 + $0xf0] sm:$0xff]
    %v5003 = vld [vmem:[#allocation11 + $0xf8] sm:$0xff]
    %v5036 = vunpack.c.l.b16 %v4972
    %v5037 = vunpack.c.h.b16 %v4972
    %v5038 = vunpack.c.l.b16 %v4973
    %v5039 = vunpack.c.h.b16 %v4973
    %v5040 = vunpack.c.l.b16 %v4974
    %v5041 = vunpack.c.h.b16 %v4974
    %v5042 = vunpack.c.l.b16 %v4975
    %v5043 = vunpack.c.h.b16 %v4975
    %v5044 = vunpack.c.l.b16 %v4976
    %v5045 = vunpack.c.h.b16 %v4976
    %v5046 = vunpack.c.l.b16 %v4977
    %v5047 = vunpack.c.h.b16 %v4977
    %v5048 = vunpack.c.l.b16 %v4978
    %v5049 = vunpack.c.h.b16 %v4978
    %v5050 = vunpack.c.l.b16 %v4979
    %v5051 = vunpack.c.h.b16 %v4979
    %v5052 = vunpack.c.l.b16 %v4980
    %v5053 = vunpack.c.h.b16 %v4980
    %v5054 = vunpack.c.l.b16 %v4981
    %v5055 = vunpack.c.h.b16 %v4981
    %v5056 = vunpack.c.l.b16 %v4982
    %v5057 = vunpack.c.h.b16 %v4982
    %v5058 = vunpack.c.l.b16 %v4983
    %v5059 = vunpack.c.h.b16 %v4983
    %v5060 = vunpack.c.l.b16 %v4984
    %v5061 = vunpack.c.h.b16 %v4984
    %v5062 = vunpack.c.l.b16 %v4985
    %v5063 = vunpack.c.h.b16 %v4985
    %v5064 = vunpack.c.l.b16 %v4986
    %v5065 = vunpack.c.h.b16 %v4986
    %v5066 = vunpack.c.l.b16 %v4987
    %v5067 = vunpack.c.h.b16 %v4987
    %v5068 = vunpack.c.l.b16 %v4988
    %v5069 = vunpack.c.h.b16 %v4988
    %v5070 = vunpack.c.l.b16 %v4989
    %v5071 = vunpack.c.h.b16 %v4989
    %v5072 = vunpack.c.l.b16 %v4990
    %v5073 = vunpack.c.h.b16 %v4990
    %v5074 = vunpack.c.l.b16 %v4991
    %v5075 = vunpack.c.h.b16 %v4991
    %v5076 = vunpack.c.l.b16 %v4992
    %v5077 = vunpack.c.h.b16 %v4992
    %v5078 = vunpack.c.l.b16 %v4993
    %v5079 = vunpack.c.h.b16 %v4993
    %v5080 = vunpack.c.l.b16 %v4994
    %v5081 = vunpack.c.h.b16 %v4994
    %v5082 = vunpack.c.l.b16 %v4995
    %v5083 = vunpack.c.h.b16 %v4995
    %v5084 = vunpack.c.l.b16 %v4996
    %v5085 = vunpack.c.h.b16 %v4996
    %v5086 = vunpack.c.l.b16 %v4997
    %v5087 = vunpack.c.h.b16 %v4997
    %v5088 = vunpack.c.l.b16 %v4998
    %v5089 = vunpack.c.h.b16 %v4998
    %v5090 = vunpack.c.l.b16 %v4999
    %v5091 = vunpack.c.h.b16 %v4999
    %v5092 = vunpack.c.l.b16 %v5000
    %v5093 = vunpack.c.h.b16 %v5000
    %v5094 = vunpack.c.l.b16 %v5001
    %v5095 = vunpack.c.h.b16 %v5001
    %v5096 = vunpack.c.l.b16 %v5002
    %v5097 = vunpack.c.h.b16 %v5002
    %v5098 = vunpack.c.l.b16 %v5003
    %v5099 = vunpack.c.h.b16 %v5003
    %v5100 = vpack.c.b16 %v5040, %v5036
    %v5101 = vpack.c.b16 %v5041, %v5037
    %v5102 = vpack.c.b16 %v5042, %v5038
    %v5103 = vpack.c.b16 %v5043, %v5039
    %v5104 = vpack.c.b16 %v5048, %v5044
    %v5105 = vpack.c.b16 %v5049, %v5045
    %v5106 = vpack.c.b16 %v5050, %v5046
    %v5107 = vpack.c.b16 %v5051, %v5047
    %v5108 = vpack.c.b16 %v5056, %v5052
    %v5109 = vpack.c.b16 %v5057, %v5053
    %v5110 = vpack.c.b16 %v5058, %v5054
    %v5111 = vpack.c.b16 %v5059, %v5055
    %v5112 = vpack.c.b16 %v5064, %v5060
    %v5113 = vpack.c.b16 %v5065, %v5061
    %v5114 = vpack.c.b16 %v5066, %v5062
    %v5115 = vpack.c.b16 %v5067, %v5063
    %v5116 = vpack.c.b16 %v5072, %v5068
    %v5117 = vpack.c.b16 %v5073, %v5069
    %v5118 = vpack.c.b16 %v5074, %v5070
    %v5119 = vpack.c.b16 %v5075, %v5071
    %v5120 = vpack.c.b16 %v5080, %v5076
    %v5121 = vpack.c.b16 %v5081, %v5077
    %v5122 = vpack.c.b16 %v5082, %v5078
    %v5123 = vpack.c.b16 %v5083, %v5079
    %v5124 = vpack.c.b16 %v5088, %v5084
    %v5125 = vpack.c.b16 %v5089, %v5085
    %v5126 = vpack.c.b16 %v5090, %v5086
    %v5127 = vpack.c.b16 %v5091, %v5087
    %v5128 = vpack.c.b16 %v5096, %v5092
    %v5129 = vpack.c.b16 %v5097, %v5093
    %v5130 = vpack.c.b16 %v5098, %v5094
    %v5131 = vpack.c.b16 %v5099, %v5095
    %5164 = vmatprep.subr.bf16.mxu0 %v5129
    %5165 = vmatpush1.bf16.msra.mxu0 %v5128
    %5166 = vmatprep.subr.bf16.mxu0 %v5125
    %5167 = vmatpush1.bf16.msra.mxu0 %v5124
    %5168 = vmatprep.subr.bf16.mxu0 %v5121
    %5169 = vmatpush1.bf16.msra.mxu0 %v5120
    %5170 = vmatprep.subr.bf16.mxu0 %v5117
    %5171 = vmatpush1.bf16.msra.mxu0 %v5116
    %5172 = vmatprep.subr.bf16.mxu0 %v5113
    %5173 = vmatpush1.bf16.msra.mxu0 %v5112
    %5174 = vmatprep.subr.bf16.mxu0 %v5109
    %5175 = vmatpush1.bf16.msra.mxu0 %v5108
    %5176 = vmatprep.subr.bf16.mxu0 %v5105
    %5177 = vmatpush1.bf16.msra.mxu0 %v5104
    %5178 = vmatprep.subr.bf16.mxu0 %v5101
    %5179 = vmatpush1.bf16.msra.mxu0 %v5100
    %5180 = vmatprep.subr.bf16.mxu0 0
    %5181 = vmatpush2.bf16.msra.mxu0 0
    %5182 = vmatprep.subr.bf16.mxu0 0
    %5183 = vmatpush2.bf16.msra.mxu0 0
    %5184 = vmatprep.subr.bf16.mxu0 0
    %5185 = vmatpush2.bf16.msra.mxu0 0
    %5186 = vmatprep.subr.bf16.mxu0 0
    %5187 = vmatpush2.bf16.msra.mxu0 0
    %5188 = vmatprep.subr.bf16.mxu0 0
    %5189 = vmatpush2.bf16.msra.mxu0 0
    %5190 = vmatprep.subr.bf16.mxu0 0
    %5191 = vmatpush2.bf16.msra.mxu0 0
    %5192 = vmatprep.subr.bf16.mxu0 0
    %5193 = vmatpush2.bf16.msra.mxu0 0
    %5194 = vmatprep.subr.bf16.mxu0 0
    %5195 = vmatpush2.bf16.msra.mxu0 0
    %5196 = vmatprep.mubr.bf16.mxu0 0
    %5197 = vmatmul.mubr.bf16.gmra.mxu0 %v4971
    %v5198 = vpop.f32.mrf.mxu0
    %v5199 = vadd.f32 0.0, %v5198
    %v5200 = vpop.f32.mrf.mxu0
    %v5201 = vadd.f32 0.0, %v5200
    %v5202 = vpop.f32.mrf.mxu0
    %v5203 = vpop.f32.mrf.mxu0
    %5204 = vdwg.mxu0
    %5205 = vmatprep.subr.bf16.mxu0 %v5131
    %5206 = vmatpush1.bf16.msra.mxu0 %v5130
    %5207 = vmatprep.subr.bf16.mxu0 %v5127
    %5208 = vmatpush1.bf16.msra.mxu0 %v5126
    %5209 = vmatprep.subr.bf16.mxu0 %v5123
    %5210 = vmatpush1.bf16.msra.mxu0 %v5122
    %5211 = vmatprep.subr.bf16.mxu0 %v5119
    %5212 = vmatpush1.bf16.msra.mxu0 %v5118
    %5213 = vmatprep.subr.bf16.mxu0 %v5115
    %5214 = vmatpush1.bf16.msra.mxu0 %v5114
    %5215 = vmatprep.subr.bf16.mxu0 %v5111
    %5216 = vmatpush1.bf16.msra.mxu0 %v5110
    %5217 = vmatprep.subr.bf16.mxu0 %v5107
    %5218 = vmatpush1.bf16.msra.mxu0 %v5106
    %5219 = vmatprep.subr.bf16.mxu0 %v5103
    %5220 = vmatpush1.bf16.msra.mxu0 %v5102
    %5221 = vmatprep.subr.bf16.mxu0 0
    %5222 = vmatpush2.bf16.msra.mxu0 0
    %5223 = vmatprep.subr.bf16.mxu0 0
    %5224 = vmatpush2.bf16.msra.mxu0 0
    %5225 = vmatprep.subr.bf16.mxu0 0
    %5226 = vmatpush2.bf16.msra.mxu0 0
    %5227 = vmatprep.subr.bf16.mxu0 0
    %5228 = vmatpush2.bf16.msra.mxu0 0
    %5229 = vmatprep.subr.bf16.mxu0 0
    %5230 = vmatpush2.bf16.msra.mxu0 0
    %5231 = vmatprep.subr.bf16.mxu0 0
    %5232 = vmatpush2.bf16.msra.mxu0 0
    %5233 = vmatprep.subr.bf16.mxu0 0
    %5234 = vmatpush2.bf16.msra.mxu0 0
    %5235 = vmatprep.subr.bf16.mxu0 0
    %5236 = vmatpush2.bf16.msra.mxu0 0
    %5237 = vmatprep.mubr.bf16.mxu0 0
    %5238 = vmatmul.mubr.bf16.gmra.mxu0 %v4971
    %v5239 = vpop.f32.mrf.mxu0
    %v5240 = vadd.f32 0.0, %v5239
    %v5241 = vpop.f32.mrf.mxu0
    %v5242 = vadd.f32 0.0, %v5241
    %v5243 = vpop.f32.mrf.mxu0
    %v5244 = vpop.f32.mrf.mxu0
    %5245 = vdwg.mxu0
    %v5250 = vcombine.low %v5199, %v5201
    %v5251 = vcombine.low %v5240, %v5242
    %v5253 = vunpack.c.l.s4 1983009808
    %v5254 = vunpack.c.0.s8 %v5253
    %v5255 = vlaneseq
    %v5256 = vshrl.u32 %v5255, 7
    %v5257 = vsub.s32 %v5254, %v5256
    %v5258 = vrot.slane %v5250, %v5257
    %v5260 = vunpack.c.l.s4 1983009808
    %v5261 = vunpack.c.0.s8 %v5260
    %v5262 = vlaneseq
    %v5263 = vshrl.u32 %v5262, 7
    %v5264 = vsub.s32 %v5261, %v5263
    %v5265 = vrot.slane %v5251, %v5264
    %v5266 = vcombine.low %v5258, %v5265
    %v5268 = vadd.f32 %v4970, %v5266
    %s5269 = scalar_lea.vmem [#allocation3], 8
    %v5270 = vld [vmem:[%s5269] sm:$0xff]
    %v5271 = vpack.c.bf16 %v4964, %v4964
    %v5272 = vld [vmem:[#allocation14] sm:$0xff]
    %v5273 = vld [vmem:[#allocation14 + $0x8] sm:$0xff]
    %v5274 = vld [vmem:[#allocation14 + $0x10] sm:$0xff]
    %v5275 = vld [vmem:[#allocation14 + $0x18] sm:$0xff]
    %v5276 = vld [vmem:[#allocation14 + $0x20] sm:$0xff]
    %v5277 = vld [vmem:[#allocation14 + $0x28] sm:$0xff]
    %v5278 = vld [vmem:[#allocation14 + $0x30] sm:$0xff]
    %v5279 = vld [vmem:[#allocation14 + $0x38] sm:$0xff]
    %v5280 = vld [vmem:[#allocation14 + $0x40] sm:$0xff]
    %v5281 = vld [vmem:[#allocation14 + $0x48] sm:$0xff]
    %v5282 = vld [vmem:[#allocation14 + $0x50] sm:$0xff]
    %v5283 = vld [vmem:[#allocation14 + $0x58] sm:$0xff]
    %v5284 = vld [vmem:[#allocation14 + $0x60] sm:$0xff]
    %v5285 = vld [vmem:[#allocation14 + $0x68] sm:$0xff]
    %v5286 = vld [vmem:[#allocation14 + $0x70] sm:$0xff]
    %v5287 = vld [vmem:[#allocation14 + $0x78] sm:$0xff]
    %v5288 = vld [vmem:[#allocation14 + $0x80] sm:$0xff]
    %v5289 = vld [vmem:[#allocation14 + $0x88] sm:$0xff]
    %v5290 = vld [vmem:[#allocation14 + $0x90] sm:$0xff]
    %v5291 = vld [vmem:[#allocation14 + $0x98] sm:$0xff]
    %v5292 = vld [vmem:[#allocation14 + $0xa0] sm:$0xff]
    %v5293 = vld [vmem:[#allocation14 + $0xa8] sm:$0xff]
    %v5294 = vld [vmem:[#allocation14 + $0xb0] sm:$0xff]
    %v5295 = vld [vmem:[#allocation14 + $0xb8] sm:$0xff]
    %v5296 = vld [vmem:[#allocation14 + $0xc0] sm:$0xff]
    %v5297 = vld [vmem:[#allocation14 + $0xc8] sm:$0xff]
    %v5298 = vld [vmem:[#allocation14 + $0xd0] sm:$0xff]
    %v5299 = vld [vmem:[#allocation14 + $0xd8] sm:$0xff]
    %v5300 = vld [vmem:[#allocation14 + $0xe0] sm:$0xff]
    %v5301 = vld [vmem:[#allocation14 + $0xe8] sm:$0xff]
    %v5302 = vld [vmem:[#allocation14 + $0xf0] sm:$0xff]
    %v5303 = vld [vmem:[#allocation14 + $0xf8] sm:$0xff]
    %v5336 = vunpack.c.l.b16 %v5272
    %v5337 = vunpack.c.h.b16 %v5272
    %v5338 = vunpack.c.l.b16 %v5273
    %v5339 = vunpack.c.h.b16 %v5273
    %v5340 = vunpack.c.l.b16 %v5274
    %v5341 = vunpack.c.h.b16 %v5274
    %v5342 = vunpack.c.l.b16 %v5275
    %v5343 = vunpack.c.h.b16 %v5275
    %v5344 = vunpack.c.l.b16 %v5276
    %v5345 = vunpack.c.h.b16 %v5276
    %v5346 = vunpack.c.l.b16 %v5277
    %v5347 = vunpack.c.h.b16 %v5277
    %v5348 = vunpack.c.l.b16 %v5278
    %v5349 = vunpack.c.h.b16 %v5278
    %v5350 = vunpack.c.l.b16 %v5279
    %v5351 = vunpack.c.h.b16 %v5279
    %v5352 = vunpack.c.l.b16 %v5280
    %v5353 = vunpack.c.h.b16 %v5280
    %v5354 = vunpack.c.l.b16 %v5281
    %v5355 = vunpack.c.h.b16 %v5281
    %v5356 = vunpack.c.l.b16 %v5282
    %v5357 = vunpack.c.h.b16 %v5282
    %v5358 = vunpack.c.l.b16 %v5283
    %v5359 = vunpack.c.h.b16 %v5283
    %v5360 = vunpack.c.l.b16 %v5284
    %v5361 = vunpack.c.h.b16 %v5284
    %v5362 = vunpack.c.l.b16 %v5285
    %v5363 = vunpack.c.h.b16 %v5285
    %v5364 = vunpack.c.l.b16 %v5286
    %v5365 = vunpack.c.h.b16 %v5286
    %v5366 = vunpack.c.l.b16 %v5287
    %v5367 = vunpack.c.h.b16 %v5287
    %v5368 = vunpack.c.l.b16 %v5288
    %v5369 = vunpack.c.h.b16 %v5288
    %v5370 = vunpack.c.l.b16 %v5289
    %v5371 = vunpack.c.h.b16 %v5289
    %v5372 = vunpack.c.l.b16 %v5290
    %v5373 = vunpack.c.h.b16 %v5290
    %v5374 = vunpack.c.l.b16 %v5291
    %v5375 = vunpack.c.h.b16 %v5291
    %v5376 = vunpack.c.l.b16 %v5292
    %v5377 = vunpack.c.h.b16 %v5292
    %v5378 = vunpack.c.l.b16 %v5293
    %v5379 = vunpack.c.h.b16 %v5293
    %v5380 = vunpack.c.l.b16 %v5294
    %v5381 = vunpack.c.h.b16 %v5294
    %v5382 = vunpack.c.l.b16 %v5295
    %v5383 = vunpack.c.h.b16 %v5295
    %v5384 = vunpack.c.l.b16 %v5296
    %v5385 = vunpack.c.h.b16 %v5296
    %v5386 = vunpack.c.l.b16 %v5297
    %v5387 = vunpack.c.h.b16 %v5297
    %v5388 = vunpack.c.l.b16 %v5298
    %v5389 = vunpack.c.h.b16 %v5298
    %v5390 = vunpack.c.l.b16 %v5299
    %v5391 = vunpack.c.h.b16 %v5299
    %v5392 = vunpack.c.l.b16 %v5300
    %v5393 = vunpack.c.h.b16 %v5300
    %v5394 = vunpack.c.l.b16 %v5301
    %v5395 = vunpack.c.h.b16 %v5301
    %v5396 = vunpack.c.l.b16 %v5302
    %v5397 = vunpack.c.h.b16 %v5302
    %v5398 = vunpack.c.l.b16 %v5303
    %v5399 = vunpack.c.h.b16 %v5303
    %v5400 = vpack.c.b16 %v5340, %v5336
    %v5401 = vpack.c.b16 %v5341, %v5337
    %v5402 = vpack.c.b16 %v5342, %v5338
    %v5403 = vpack.c.b16 %v5343, %v5339
    %v5404 = vpack.c.b16 %v5348, %v5344
    %v5405 = vpack.c.b16 %v5349, %v5345
    %v5406 = vpack.c.b16 %v5350, %v5346
    %v5407 = vpack.c.b16 %v5351, %v5347
    %v5408 = vpack.c.b16 %v5356, %v5352
    %v5409 = vpack.c.b16 %v5357, %v5353
    %v5410 = vpack.c.b16 %v5358, %v5354
    %v5411 = vpack.c.b16 %v5359, %v5355
    %v5412 = vpack.c.b16 %v5364, %v5360
    %v5413 = vpack.c.b16 %v5365, %v5361
    %v5414 = vpack.c.b16 %v5366, %v5362
    %v5415 = vpack.c.b16 %v5367, %v5363
    %v5416 = vpack.c.b16 %v5372, %v5368
    %v5417 = vpack.c.b16 %v5373, %v5369
    %v5418 = vpack.c.b16 %v5374, %v5370
    %v5419 = vpack.c.b16 %v5375, %v5371
    %v5420 = vpack.c.b16 %v5380, %v5376
    %v5421 = vpack.c.b16 %v5381, %v5377
    %v5422 = vpack.c.b16 %v5382, %v5378
    %v5423 = vpack.c.b16 %v5383, %v5379
    %v5424 = vpack.c.b16 %v5388, %v5384
    %v5425 = vpack.c.b16 %v5389, %v5385
    %v5426 = vpack.c.b16 %v5390, %v5386
    %v5427 = vpack.c.b16 %v5391, %v5387
    %v5428 = vpack.c.b16 %v5396, %v5392
    %v5429 = vpack.c.b16 %v5397, %v5393
    %v5430 = vpack.c.b16 %v5398, %v5394
    %v5431 = vpack.c.b16 %v5399, %v5395
    %5464 = vmatprep.subr.bf16.mxu0 %v5429
    %5465 = vmatpush1.bf16.msra.mxu0 %v5428
    %5466 = vmatprep.subr.bf16.mxu0 %v5425
    %5467 = vmatpush1.bf16.msra.mxu0 %v5424
    %5468 = vmatprep.subr.bf16.mxu0 %v5421
    %5469 = vmatpush1.bf16.msra.mxu0 %v5420
    %5470 = vmatprep.subr.bf16.mxu0 %v5417
    %5471 = vmatpush1.bf16.msra.mxu0 %v5416
    %5472 = vmatprep.subr.bf16.mxu0 %v5413
    %5473 = vmatpush1.bf16.msra.mxu0 %v5412
    %5474 = vmatprep.subr.bf16.mxu0 %v5409
    %5475 = vmatpush1.bf16.msra.mxu0 %v5408
    %5476 = vmatprep.subr.bf16.mxu0 %v5405
    %5477 = vmatpush1.bf16.msra.mxu0 %v5404
    %5478 = vmatprep.subr.bf16.mxu0 %v5401
    %5479 = vmatpush1.bf16.msra.mxu0 %v5400
    %5480 = vmatprep.subr.bf16.mxu0 0
    %5481 = vmatpush2.bf16.msra.mxu0 0
    %5482 = vmatprep.subr.bf16.mxu0 0
    %5483 = vmatpush2.bf16.msra.mxu0 0
    %5484 = vmatprep.subr.bf16.mxu0 0
    %5485 = vmatpush2.bf16.msra.mxu0 0
    %5486 = vmatprep.subr.bf16.mxu0 0
    %5487 = vmatpush2.bf16.msra.mxu0 0
    %5488 = vmatprep.subr.bf16.mxu0 0
    %5489 = vmatpush2.bf16.msra.mxu0 0
    %5490 = vmatprep.subr.bf16.mxu0 0
    %5491 = vmatpush2.bf16.msra.mxu0 0
    %5492 = vmatprep.subr.bf16.mxu0 0
    %5493 = vmatpush2.bf16.msra.mxu0 0
    %5494 = vmatprep.subr.bf16.mxu0 0
    %5495 = vmatpush2.bf16.msra.mxu0 0
    %5496 = vmatprep.mubr.bf16.mxu0 0
    %5497 = vmatmul.mubr.bf16.gmra.mxu0 %v5271
    %v5498 = vpop.f32.mrf.mxu0
    %v5499 = vadd.f32 0.0, %v5498
    %v5500 = vpop.f32.mrf.mxu0
    %v5501 = vadd.f32 0.0, %v5500
    %v5502 = vpop.f32.mrf.mxu0
    %v5503 = vpop.f32.mrf.mxu0
    %5504 = vdwg.mxu0
    %5505 = vmatprep.subr.bf16.mxu0 %v5431
    %5506 = vmatpush1.bf16.msra.mxu0 %v5430
    %5507 = vmatprep.subr.bf16.mxu0 %v5427
    %5508 = vmatpush1.bf16.msra.mxu0 %v5426
    %5509 = vmatprep.subr.bf16.mxu0 %v5423
    %5510 = vmatpush1.bf16.msra.mxu0 %v5422
    %5511 = vmatprep.subr.bf16.mxu0 %v5419
    %5512 = vmatpush1.bf16.msra.mxu0 %v5418
    %5513 = vmatprep.subr.bf16.mxu0 %v5415
    %5514 = vmatpush1.bf16.msra.mxu0 %v5414
    %5515 = vmatprep.subr.bf16.mxu0 %v5411
    %5516 = vmatpush1.bf16.msra.mxu0 %v5410
    %5517 = vmatprep.subr.bf16.mxu0 %v5407
    %5518 = vmatpush1.bf16.msra.mxu0 %v5406
    %5519 = vmatprep.subr.bf16.mxu0 %v5403
    %5520 = vmatpush1.bf16.msra.mxu0 %v5402
    %5521 = vmatprep.subr.bf16.mxu0 0
    %5522 = vmatpush2.bf16.msra.mxu0 0
    %5523 = vmatprep.subr.bf16.mxu0 0
    %5524 = vmatpush2.bf16.msra.mxu0 0
    %5525 = vmatprep.subr.bf16.mxu0 0
    %5526 = vmatpush2.bf16.msra.mxu0 0
    %5527 = vmatprep.subr.bf16.mxu0 0
    %5528 = vmatpush2.bf16.msra.mxu0 0
    %5529 = vmatprep.subr.bf16.mxu0 0
    %5530 = vmatpush2.bf16.msra.mxu0 0
    %5531 = vmatprep.subr.bf16.mxu0 0
    %5532 = vmatpush2.bf16.msra.mxu0 0
    %5533 = vmatprep.subr.bf16.mxu0 0
    %5534 = vmatpush2.bf16.msra.mxu0 0
    %5535 = vmatprep.subr.bf16.mxu0 0
    %5536 = vmatpush2.bf16.msra.mxu0 0
    %5537 = vmatprep.mubr.bf16.mxu0 0
    %5538 = vmatmul.mubr.bf16.gmra.mxu0 %v5271
    %v5539 = vpop.f32.mrf.mxu0
    %v5540 = vadd.f32 0.0, %v5539
    %v5541 = vpop.f32.mrf.mxu0
    %v5542 = vadd.f32 0.0, %v5541
    %v5543 = vpop.f32.mrf.mxu0
    %v5544 = vpop.f32.mrf.mxu0
    %5545 = vdwg.mxu0
    %v5550 = vcombine.low %v5499, %v5501
    %v5551 = vcombine.low %v5540, %v5542
    %v5553 = vunpack.c.l.s4 1983009808
    %v5554 = vunpack.c.0.s8 %v5553
    %v5555 = vlaneseq
    %v5556 = vshrl.u32 %v5555, 7
    %v5557 = vsub.s32 %v5554, %v5556
    %v5558 = vrot.slane %v5550, %v5557
    %v5560 = vunpack.c.l.s4 1983009808
    %v5561 = vunpack.c.0.s8 %v5560
    %v5562 = vlaneseq
    %v5563 = vshrl.u32 %v5562, 7
    %v5564 = vsub.s32 %v5561, %v5563
    %v5565 = vrot.slane %v5551, %v5564
    %v5566 = vcombine.low %v5558, %v5565
    %v5568 = vadd.f32 %v5270, %v5566
    %v5569 = vxor.u32 %v5268, 2147483648
    %v5570 = vmul.f32 %v5569, 1.442695
    %v5571 = vpow.pop %v5570
    %v5572 = vadd.f32 %v5571, 1.0
    %v5573 = vrcp.pop %v5572
    %v5574 = vmul.f32 1.0, %v5573
    %v5576 = vrot.slane %v5268, 2
    %v5578 = vxor.u32 %v5576, 2147483648
    %v5579 = vmul.f32 %v5578, 1.442695
    %v5580 = vpow.pop %v5579
    %v5581 = vadd.f32 %v5580, 1.0
    %v5582 = vrcp.pop %v5581
    %v5583 = vmul.f32 1.0, %v5582
    %v5584 = vrot.slane %v5268, 4
    %v5586 = vtanh.pop %v5584
    %v5587 = vrot.slane %v5268, 6
    %v5589 = vxor.u32 %v5587, 2147483648
    %v5590 = vmul.f32 %v5589, 1.442695
    %v5591 = vpow.pop %v5590
    %v5592 = vadd.f32 %v5591, 1.0
    %v5593 = vrcp.pop %v5592
    %v5594 = vmul.f32 1.0, %v5593
    %v5595 = vmul.f32 %v5583, %v4931
    %v5596 = vmul.f32 %v5574, %v5586
    %v5597 = vadd.f32 %v5595, %v5596
    %v5598 = vtanh.pop %v5597
    %v5599 = vmul.f32 %v5594, %v5598
    %v5600 = vxor.u32 %v5568, 2147483648
    %v5601 = vmul.f32 %v5600, 1.442695
    %v5602 = vpow.pop %v5601
    %v5603 = vadd.f32 %v5602, 1.0
    %v5604 = vrcp.pop %v5603
    %v5605 = vmul.f32 1.0, %v5604
    %v5607 = vrot.slane %v5568, 2
    %v5609 = vxor.u32 %v5607, 2147483648
    %v5610 = vmul.f32 %v5609, 1.442695
    %v5611 = vpow.pop %v5610
    %v5612 = vadd.f32 %v5611, 1.0
    %v5613 = vrcp.pop %v5612
    %v5614 = vmul.f32 1.0, %v5613
    %v5615 = vrot.slane %v5568, 4
    %v5617 = vtanh.pop %v5615
    %v5618 = vrot.slane %v5568, 6
    %v5620 = vxor.u32 %v5618, 2147483648
    %v5621 = vmul.f32 %v5620, 1.442695
    %v5622 = vpow.pop %v5621
    %v5623 = vadd.f32 %v5622, 1.0
    %v5624 = vrcp.pop %v5623
    %v5625 = vmul.f32 1.0, %v5624
    %v5626 = vmul.f32 %v5614, %v4962
    %v5627 = vmul.f32 %v5605, %v5617
    %v5628 = vadd.f32 %v5626, %v5627
    %v5629 = vtanh.pop %v5628
    %v5630 = vmul.f32 %v5625, %v5629
    %s5631 = scalar_lea.vmem [#allocation4], 12
    %5632 = vst [vmem:[%s5631] sm:$0x3] %v5599
    %s5633 = scalar_lea.vmem [#allocation5], 2
    %5634 = vst [vmem:[%s5633] sm:$0x3] %v5630
    %s5635 = scalar_lea.vmem [#allocation2], 56
    %v5636 = vld [vmem:[%s5635] sm:$0xff]
    %v5637 = vpack.c.bf16 %v5599, %v5599
    %v5638 = vld [vmem:[#allocation11] sm:$0xff]
    %v5639 = vld [vmem:[#allocation11 + $0x8] sm:$0xff]
    %v5640 = vld [vmem:[#allocation11 + $0x10] sm:$0xff]
    %v5641 = vld [vmem:[#allocation11 + $0x18] sm:$0xff]
    %v5642 = vld [vmem:[#allocation11 + $0x20] sm:$0xff]
    %v5643 = vld [vmem:[#allocation11 + $0x28] sm:$0xff]
    %v5644 = vld [vmem:[#allocation11 + $0x30] sm:$0xff]
    %v5645 = vld [vmem:[#allocation11 + $0x38] sm:$0xff]
    %v5646 = vld [vmem:[#allocation11 + $0x40] sm:$0xff]
    %v5647 = vld [vmem:[#allocation11 + $0x48] sm:$0xff]
    %v5648 = vld [vmem:[#allocation11 + $0x50] sm:$0xff]
    %v5649 = vld [vmem:[#allocation11 + $0x58] sm:$0xff]
    %v5650 = vld [vmem:[#allocation11 + $0x60] sm:$0xff]
    %v5651 = vld [vmem:[#allocation11 + $0x68] sm:$0xff]
    %v5652 = vld [vmem:[#allocation11 + $0x70] sm:$0xff]
    %v5653 = vld [vmem:[#allocation11 + $0x78] sm:$0xff]
    %v5654 = vld [vmem:[#allocation11 + $0x80] sm:$0xff]
    %v5655 = vld [vmem:[#allocation11 + $0x88] sm:$0xff]
    %v5656 = vld [vmem:[#allocation11 + $0x90] sm:$0xff]
    %v5657 = vld [vmem:[#allocation11 + $0x98] sm:$0xff]
    %v5658 = vld [vmem:[#allocation11 + $0xa0] sm:$0xff]
    %v5659 = vld [vmem:[#allocation11 + $0xa8] sm:$0xff]
    %v5660 = vld [vmem:[#allocation11 + $0xb0] sm:$0xff]
    %v5661 = vld [vmem:[#allocation11 + $0xb8] sm:$0xff]
    %v5662 = vld [vmem:[#allocation11 + $0xc0] sm:$0xff]
    %v5663 = vld [vmem:[#allocation11 + $0xc8] sm:$0xff]
    %v5664 = vld [vmem:[#allocation11 + $0xd0] sm:$0xff]
    %v5665 = vld [vmem:[#allocation11 + $0xd8] sm:$0xff]
    %v5666 = vld [vmem:[#allocation11 + $0xe0] sm:$0xff]
    %v5667 = vld [vmem:[#allocation11 + $0xe8] sm:$0xff]
    %v5668 = vld [vmem:[#allocation11 + $0xf0] sm:$0xff]
    %v5669 = vld [vmem:[#allocation11 + $0xf8] sm:$0xff]
    %v5702 = vunpack.c.l.b16 %v5638
    %v5703 = vunpack.c.h.b16 %v5638
    %v5704 = vunpack.c.l.b16 %v5639
    %v5705 = vunpack.c.h.b16 %v5639
    %v5706 = vunpack.c.l.b16 %v5640
    %v5707 = vunpack.c.h.b16 %v5640
    %v5708 = vunpack.c.l.b16 %v5641
    %v5709 = vunpack.c.h.b16 %v5641
    %v5710 = vunpack.c.l.b16 %v5642
    %v5711 = vunpack.c.h.b16 %v5642
    %v5712 = vunpack.c.l.b16 %v5643
    %v5713 = vunpack.c.h.b16 %v5643
    %v5714 = vunpack.c.l.b16 %v5644
    %v5715 = vunpack.c.h.b16 %v5644
    %v5716 = vunpack.c.l.b16 %v5645
    %v5717 = vunpack.c.h.b16 %v5645
    %v5718 = vunpack.c.l.b16 %v5646
    %v5719 = vunpack.c.h.b16 %v5646
    %v5720 = vunpack.c.l.b16 %v5647
    %v5721 = vunpack.c.h.b16 %v5647
    %v5722 = vunpack.c.l.b16 %v5648
    %v5723 = vunpack.c.h.b16 %v5648
    %v5724 = vunpack.c.l.b16 %v5649
    %v5725 = vunpack.c.h.b16 %v5649
    %v5726 = vunpack.c.l.b16 %v5650
    %v5727 = vunpack.c.h.b16 %v5650
    %v5728 = vunpack.c.l.b16 %v5651
    %v5729 = vunpack.c.h.b16 %v5651
    %v5730 = vunpack.c.l.b16 %v5652
    %v5731 = vunpack.c.h.b16 %v5652
    %v5732 = vunpack.c.l.b16 %v5653
    %v5733 = vunpack.c.h.b16 %v5653
    %v5734 = vunpack.c.l.b16 %v5654
    %v5735 = vunpack.c.h.b16 %v5654
    %v5736 = vunpack.c.l.b16 %v5655
    %v5737 = vunpack.c.h.b16 %v5655
    %v5738 = vunpack.c.l.b16 %v5656
    %v5739 = vunpack.c.h.b16 %v5656
    %v5740 = vunpack.c.l.b16 %v5657
    %v5741 = vunpack.c.h.b16 %v5657
    %v5742 = vunpack.c.l.b16 %v5658
    %v5743 = vunpack.c.h.b16 %v5658
    %v5744 = vunpack.c.l.b16 %v5659
    %v5745 = vunpack.c.h.b16 %v5659
    %v5746 = vunpack.c.l.b16 %v5660
    %v5747 = vunpack.c.h.b16 %v5660
    %v5748 = vunpack.c.l.b16 %v5661
    %v5749 = vunpack.c.h.b16 %v5661
    %v5750 = vunpack.c.l.b16 %v5662
    %v5751 = vunpack.c.h.b16 %v5662
    %v5752 = vunpack.c.l.b16 %v5663
    %v5753 = vunpack.c.h.b16 %v5663
    %v5754 = vunpack.c.l.b16 %v5664
    %v5755 = vunpack.c.h.b16 %v5664
    %v5756 = vunpack.c.l.b16 %v5665
    %v5757 = vunpack.c.h.b16 %v5665
    %v5758 = vunpack.c.l.b16 %v5666
    %v5759 = vunpack.c.h.b16 %v5666
    %v5760 = vunpack.c.l.b16 %v5667
    %v5761 = vunpack.c.h.b16 %v5667
    %v5762 = vunpack.c.l.b16 %v5668
    %v5763 = vunpack.c.h.b16 %v5668
    %v5764 = vunpack.c.l.b16 %v5669
    %v5765 = vunpack.c.h.b16 %v5669
    %v5766 = vpack.c.b16 %v5706, %v5702
    %v5767 = vpack.c.b16 %v5707, %v5703
    %v5768 = vpack.c.b16 %v5708, %v5704
    %v5769 = vpack.c.b16 %v5709, %v5705
    %v5770 = vpack.c.b16 %v5714, %v5710
    %v5771 = vpack.c.b16 %v5715, %v5711
    %v5772 = vpack.c.b16 %v5716, %v5712
    %v5773 = vpack.c.b16 %v5717, %v5713
    %v5774 = vpack.c.b16 %v5722, %v5718
    %v5775 = vpack.c.b16 %v5723, %v5719
    %v5776 = vpack.c.b16 %v5724, %v5720
    %v5777 = vpack.c.b16 %v5725, %v5721
    %v5778 = vpack.c.b16 %v5730, %v5726
    %v5779 = vpack.c.b16 %v5731, %v5727
    %v5780 = vpack.c.b16 %v5732, %v5728
    %v5781 = vpack.c.b16 %v5733, %v5729
    %v5782 = vpack.c.b16 %v5738, %v5734
    %v5783 = vpack.c.b16 %v5739, %v5735
    %v5784 = vpack.c.b16 %v5740, %v5736
    %v5785 = vpack.c.b16 %v5741, %v5737
    %v5786 = vpack.c.b16 %v5746, %v5742
    %v5787 = vpack.c.b16 %v5747, %v5743
    %v5788 = vpack.c.b16 %v5748, %v5744
    %v5789 = vpack.c.b16 %v5749, %v5745
    %v5790 = vpack.c.b16 %v5754, %v5750
    %v5791 = vpack.c.b16 %v5755, %v5751
    %v5792 = vpack.c.b16 %v5756, %v5752
    %v5793 = vpack.c.b16 %v5757, %v5753
    %v5794 = vpack.c.b16 %v5762, %v5758
    %v5795 = vpack.c.b16 %v5763, %v5759
    %v5796 = vpack.c.b16 %v5764, %v5760
    %v5797 = vpack.c.b16 %v5765, %v5761
    %5830 = vmatprep.subr.bf16.mxu0 %v5795
    %5831 = vmatpush1.bf16.msra.mxu0 %v5794
    %5832 = vmatprep.subr.bf16.mxu0 %v5791
    %5833 = vmatpush1.bf16.msra.mxu0 %v5790
    %5834 = vmatprep.subr.bf16.mxu0 %v5787
    %5835 = vmatpush1.bf16.msra.mxu0 %v5786
    %5836 = vmatprep.subr.bf16.mxu0 %v5783
    %5837 = vmatpush1.bf16.msra.mxu0 %v5782
    %5838 = vmatprep.subr.bf16.mxu0 %v5779
    %5839 = vmatpush1.bf16.msra.mxu0 %v5778
    %5840 = vmatprep.subr.bf16.mxu0 %v5775
    %5841 = vmatpush1.bf16.msra.mxu0 %v5774
    %5842 = vmatprep.subr.bf16.mxu0 %v5771
    %5843 = vmatpush1.bf16.msra.mxu0 %v5770
    %5844 = vmatprep.subr.bf16.mxu0 %v5767
    %5845 = vmatpush1.bf16.msra.mxu0 %v5766
    %5846 = vmatprep.subr.bf16.mxu0 0
    %5847 = vmatpush2.bf16.msra.mxu0 0
    %5848 = vmatprep.subr.bf16.mxu0 0
    %5849 = vmatpush2.bf16.msra.mxu0 0
    %5850 = vmatprep.subr.bf16.mxu0 0
    %5851 = vmatpush2.bf16.msra.mxu0 0
    %5852 = vmatprep.subr.bf16.mxu0 0
    %5853 = vmatpush2.bf16.msra.mxu0 0
    %5854 = vmatprep.subr.bf16.mxu0 0
    %5855 = vmatpush2.bf16.msra.mxu0 0
    %5856 = vmatprep.subr.bf16.mxu0 0
    %5857 = vmatpush2.bf16.msra.mxu0 0
    %5858 = vmatprep.subr.bf16.mxu0 0
    %5859 = vmatpush2.bf16.msra.mxu0 0
    %5860 = vmatprep.subr.bf16.mxu0 0
    %5861 = vmatpush2.bf16.msra.mxu0 0
    %5862 = vmatprep.mubr.bf16.mxu0 0
    %5863 = vmatmul.mubr.bf16.gmra.mxu0 %v5637
    %v5864 = vpop.f32.mrf.mxu0
    %v5865 = vadd.f32 0.0, %v5864
    %v5866 = vpop.f32.mrf.mxu0
    %v5867 = vadd.f32 0.0, %v5866
    %v5868 = vpop.f32.mrf.mxu0
    %v5869 = vpop.f32.mrf.mxu0
    %5870 = vdwg.mxu0
    %5871 = vmatprep.subr.bf16.mxu0 %v5797
    %5872 = vmatpush1.bf16.msra.mxu0 %v5796
    %5873 = vmatprep.subr.bf16.mxu0 %v5793
    %5874 = vmatpush1.bf16.msra.mxu0 %v5792
    %5875 = vmatprep.subr.bf16.mxu0 %v5789
    %5876 = vmatpush1.bf16.msra.mxu0 %v5788
    %5877 = vmatprep.subr.bf16.mxu0 %v5785
    %5878 = vmatpush1.bf16.msra.mxu0 %v5784
    %5879 = vmatprep.subr.bf16.mxu0 %v5781
    %5880 = vmatpush1.bf16.msra.mxu0 %v5780
    %5881 = vmatprep.subr.bf16.mxu0 %v5777
    %5882 = vmatpush1.bf16.msra.mxu0 %v5776
    %5883 = vmatprep.subr.bf16.mxu0 %v5773
    %5884 = vmatpush1.bf16.msra.mxu0 %v5772
    %5885 = vmatprep.subr.bf16.mxu0 %v5769
    %5886 = vmatpush1.bf16.msra.mxu0 %v5768
    %5887 = vmatprep.subr.bf16.mxu0 0
    %5888 = vmatpush2.bf16.msra.mxu0 0
    %5889 = vmatprep.subr.bf16.mxu0 0
    %5890 = vmatpush2.bf16.msra.mxu0 0
    %5891 = vmatprep.subr.bf16.mxu0 0
    %5892 = vmatpush2.bf16.msra.mxu0 0
    %5893 = vmatprep.subr.bf16.mxu0 0
    %5894 = vmatpush2.bf16.msra.mxu0 0
    %5895 = vmatprep.subr.bf16.mxu0 0
    %5896 = vmatpush2.bf16.msra.mxu0 0
    %5897 = vmatprep.subr.bf16.mxu0 0
    %5898 = vmatpush2.bf16.msra.mxu0 0
    %5899 = vmatprep.subr.bf16.mxu0 0
    %5900 = vmatpush2.bf16.msra.mxu0 0
    %5901 = vmatprep.subr.bf16.mxu0 0
    %5902 = vmatpush2.bf16.msra.mxu0 0
    %5903 = vmatprep.mubr.bf16.mxu0 0
    %5904 = vmatmul.mubr.bf16.gmra.mxu0 %v5637
    %v5905 = vpop.f32.mrf.mxu0
    %v5906 = vadd.f32 0.0, %v5905
    %v5907 = vpop.f32.mrf.mxu0
    %v5908 = vadd.f32 0.0, %v5907
    %v5909 = vpop.f32.mrf.mxu0
    %v5910 = vpop.f32.mrf.mxu0
    %5911 = vdwg.mxu0
    %v5916 = vcombine.low %v5865, %v5867
    %v5917 = vcombine.low %v5906, %v5908
    %v5919 = vunpack.c.l.s4 1983009808
    %v5920 = vunpack.c.0.s8 %v5919
    %v5921 = vlaneseq
    %v5922 = vshrl.u32 %v5921, 7
    %v5923 = vsub.s32 %v5920, %v5922
    %v5924 = vrot.slane %v5916, %v5923
    %v5926 = vunpack.c.l.s4 1983009808
    %v5927 = vunpack.c.0.s8 %v5926
    %v5928 = vlaneseq
    %v5929 = vshrl.u32 %v5928, 7
    %v5930 = vsub.s32 %v5927, %v5929
    %v5931 = vrot.slane %v5917, %v5930
    %v5932 = vcombine.low %v5924, %v5931
    %v5934 = vadd.f32 %v5636, %v5932
    %v5935 = vld [vmem:[#allocation3] sm:$0xff]
    %v5936 = vpack.c.bf16 %v5630, %v5630
    %v5937 = vld [vmem:[#allocation14] sm:$0xff]
    %v5938 = vld [vmem:[#allocation14 + $0x8] sm:$0xff]
    %v5939 = vld [vmem:[#allocation14 + $0x10] sm:$0xff]
    %v5940 = vld [vmem:[#allocation14 + $0x18] sm:$0xff]
    %v5941 = vld [vmem:[#allocation14 + $0x20] sm:$0xff]
    %v5942 = vld [vmem:[#allocation14 + $0x28] sm:$0xff]
    %v5943 = vld [vmem:[#allocation14 + $0x30] sm:$0xff]
    %v5944 = vld [vmem:[#allocation14 + $0x38] sm:$0xff]
    %v5945 = vld [vmem:[#allocation14 + $0x40] sm:$0xff]
    %v5946 = vld [vmem:[#allocation14 + $0x48] sm:$0xff]
    %v5947 = vld [vmem:[#allocation14 + $0x50] sm:$0xff]
    %v5948 = vld [vmem:[#allocation14 + $0x58] sm:$0xff]
    %v5949 = vld [vmem:[#allocation14 + $0x60] sm:$0xff]
    %v5950 = vld [vmem:[#allocation14 + $0x68] sm:$0xff]
    %v5951 = vld [vmem:[#allocation14 + $0x70] sm:$0xff]
    %v5952 = vld [vmem:[#allocation14 + $0x78] sm:$0xff]
    %v5953 = vld [vmem:[#allocation14 + $0x80] sm:$0xff]
    %v5954 = vld [vmem:[#allocation14 + $0x88] sm:$0xff]
    %v5955 = vld [vmem:[#allocation14 + $0x90] sm:$0xff]
    %v5956 = vld [vmem:[#allocation14 + $0x98] sm:$0xff]
    %v5957 = vld [vmem:[#allocation14 + $0xa0] sm:$0xff]
    %v5958 = vld [vmem:[#allocation14 + $0xa8] sm:$0xff]
    %v5959 = vld [vmem:[#allocation14 + $0xb0] sm:$0xff]
    %v5960 = vld [vmem:[#allocation14 + $0xb8] sm:$0xff]
    %v5961 = vld [vmem:[#allocation14 + $0xc0] sm:$0xff]
    %v5962 = vld [vmem:[#allocation14 + $0xc8] sm:$0xff]
    %v5963 = vld [vmem:[#allocation14 + $0xd0] sm:$0xff]
    %v5964 = vld [vmem:[#allocation14 + $0xd8] sm:$0xff]
    %v5965 = vld [vmem:[#allocation14 + $0xe0] sm:$0xff]
    %v5966 = vld [vmem:[#allocation14 + $0xe8] sm:$0xff]
    %v5967 = vld [vmem:[#allocation14 + $0xf0] sm:$0xff]
    %v5968 = vld [vmem:[#allocation14 + $0xf8] sm:$0xff]
    %v6001 = vunpack.c.l.b16 %v5937
    %v6002 = vunpack.c.h.b16 %v5937
    %v6003 = vunpack.c.l.b16 %v5938
    %v6004 = vunpack.c.h.b16 %v5938
    %v6005 = vunpack.c.l.b16 %v5939
    %v6006 = vunpack.c.h.b16 %v5939
    %v6007 = vunpack.c.l.b16 %v5940
    %v6008 = vunpack.c.h.b16 %v5940
    %v6009 = vunpack.c.l.b16 %v5941
    %v6010 = vunpack.c.h.b16 %v5941
    %v6011 = vunpack.c.l.b16 %v5942
    %v6012 = vunpack.c.h.b16 %v5942
    %v6013 = vunpack.c.l.b16 %v5943
    %v6014 = vunpack.c.h.b16 %v5943
    %v6015 = vunpack.c.l.b16 %v5944
    %v6016 = vunpack.c.h.b16 %v5944
    %v6017 = vunpack.c.l.b16 %v5945
    %v6018 = vunpack.c.h.b16 %v5945
    %v6019 = vunpack.c.l.b16 %v5946
    %v6020 = vunpack.c.h.b16 %v5946
    %v6021 = vunpack.c.l.b16 %v5947
    %v6022 = vunpack.c.h.b16 %v5947
    %v6023 = vunpack.c.l.b16 %v5948
    %v6024 = vunpack.c.h.b16 %v5948
    %v6025 = vunpack.c.l.b16 %v5949
    %v6026 = vunpack.c.h.b16 %v5949
    %v6027 = vunpack.c.l.b16 %v5950
    %v6028 = vunpack.c.h.b16 %v5950
    %v6029 = vunpack.c.l.b16 %v5951
    %v6030 = vunpack.c.h.b16 %v5951
    %v6031 = vunpack.c.l.b16 %v5952
    %v6032 = vunpack.c.h.b16 %v5952
    %v6033 = vunpack.c.l.b16 %v5953
    %v6034 = vunpack.c.h.b16 %v5953
    %v6035 = vunpack.c.l.b16 %v5954
    %v6036 = vunpack.c.h.b16 %v5954
    %v6037 = vunpack.c.l.b16 %v5955
    %v6038 = vunpack.c.h.b16 %v5955
    %v6039 = vunpack.c.l.b16 %v5956
    %v6040 = vunpack.c.h.b16 %v5956
    %v6041 = vunpack.c.l.b16 %v5957
    %v6042 = vunpack.c.h.b16 %v5957
    %v6043 = vunpack.c.l.b16 %v5958
    %v6044 = vunpack.c.h.b16 %v5958
    %v6045 = vunpack.c.l.b16 %v5959
    %v6046 = vunpack.c.h.b16 %v5959
    %v6047 = vunpack.c.l.b16 %v5960
    %v6048 = vunpack.c.h.b16 %v5960
    %v6049 = vunpack.c.l.b16 %v5961
    %v6050 = vunpack.c.h.b16 %v5961
    %v6051 = vunpack.c.l.b16 %v5962
    %v6052 = vunpack.c.h.b16 %v5962
    %v6053 = vunpack.c.l.b16 %v5963
    %v6054 = vunpack.c.h.b16 %v5963
    %v6055 = vunpack.c.l.b16 %v5964
    %v6056 = vunpack.c.h.b16 %v5964
    %v6057 = vunpack.c.l.b16 %v5965
    %v6058 = vunpack.c.h.b16 %v5965
    %v6059 = vunpack.c.l.b16 %v5966
    %v6060 = vunpack.c.h.b16 %v5966
    %v6061 = vunpack.c.l.b16 %v5967
    %v6062 = vunpack.c.h.b16 %v5967
    %v6063 = vunpack.c.l.b16 %v5968
    %v6064 = vunpack.c.h.b16 %v5968
    %v6065 = vpack.c.b16 %v6005, %v6001
    %v6066 = vpack.c.b16 %v6006, %v6002
    %v6067 = vpack.c.b16 %v6007, %v6003
    %v6068 = vpack.c.b16 %v6008, %v6004
    %v6069 = vpack.c.b16 %v6013, %v6009
    %v6070 = vpack.c.b16 %v6014, %v6010
    %v6071 = vpack.c.b16 %v6015, %v6011
    %v6072 = vpack.c.b16 %v6016, %v6012
    %v6073 = vpack.c.b16 %v6021, %v6017
    %v6074 = vpack.c.b16 %v6022, %v6018
    %v6075 = vpack.c.b16 %v6023, %v6019
    %v6076 = vpack.c.b16 %v6024, %v6020
    %v6077 = vpack.c.b16 %v6029, %v6025
    %v6078 = vpack.c.b16 %v6030, %v6026
    %v6079 = vpack.c.b16 %v6031, %v6027
    %v6080 = vpack.c.b16 %v6032, %v6028
    %v6081 = vpack.c.b16 %v6037, %v6033
    %v6082 = vpack.c.b16 %v6038, %v6034
    %v6083 = vpack.c.b16 %v6039, %v6035
    %v6084 = vpack.c.b16 %v6040, %v6036
    %v6085 = vpack.c.b16 %v6045, %v6041
    %v6086 = vpack.c.b16 %v6046, %v6042
    %v6087 = vpack.c.b16 %v6047, %v6043
    %v6088 = vpack.c.b16 %v6048, %v6044
    %v6089 = vpack.c.b16 %v6053, %v6049
    %v6090 = vpack.c.b16 %v6054, %v6050
    %v6091 = vpack.c.b16 %v6055, %v6051
    %v6092 = vpack.c.b16 %v6056, %v6052
    %v6093 = vpack.c.b16 %v6061, %v6057
    %v6094 = vpack.c.b16 %v6062, %v6058
    %v6095 = vpack.c.b16 %v6063, %v6059
    %v6096 = vpack.c.b16 %v6064, %v6060
    %6129 = vmatprep.subr.bf16.mxu0 %v6094
    %6130 = vmatpush1.bf16.msra.mxu0 %v6093
    %6131 = vmatprep.subr.bf16.mxu0 %v6090
    %6132 = vmatpush1.bf16.msra.mxu0 %v6089
    %6133 = vmatprep.subr.bf16.mxu0 %v6086
    %6134 = vmatpush1.bf16.msra.mxu0 %v6085
    %6135 = vmatprep.subr.bf16.mxu0 %v6082
    %6136 = vmatpush1.bf16.msra.mxu0 %v6081
    %6137 = vmatprep.subr.bf16.mxu0 %v6078
    %6138 = vmatpush1.bf16.msra.mxu0 %v6077
    %6139 = vmatprep.subr.bf16.mxu0 %v6074
    %6140 = vmatpush1.bf16.msra.mxu0 %v6073
    %6141 = vmatprep.subr.bf16.mxu0 %v6070
    %6142 = vmatpush1.bf16.msra.mxu0 %v6069
    %6143 = vmatprep.subr.bf16.mxu0 %v6066
    %6144 = vmatpush1.bf16.msra.mxu0 %v6065
    %6145 = vmatprep.subr.bf16.mxu0 0
    %6146 = vmatpush2.bf16.msra.mxu0 0
    %6147 = vmatprep.subr.bf16.mxu0 0
    %6148 = vmatpush2.bf16.msra.mxu0 0
    %6149 = vmatprep.subr.bf16.mxu0 0
    %6150 = vmatpush2.bf16.msra.mxu0 0
    %6151 = vmatprep.subr.bf16.mxu0 0
    %6152 = vmatpush2.bf16.msra.mxu0 0
    %6153 = vmatprep.subr.bf16.mxu0 0
    %6154 = vmatpush2.bf16.msra.mxu0 0
    %6155 = vmatprep.subr.bf16.mxu0 0
    %6156 = vmatpush2.bf16.msra.mxu0 0
    %6157 = vmatprep.subr.bf16.mxu0 0
    %6158 = vmatpush2.bf16.msra.mxu0 0
    %6159 = vmatprep.subr.bf16.mxu0 0
    %6160 = vmatpush2.bf16.msra.mxu0 0
    %6161 = vmatprep.mubr.bf16.mxu0 0
    %6162 = vmatmul.mubr.bf16.gmra.mxu0 %v5936
    %v6163 = vpop.f32.mrf.mxu0
    %v6164 = vadd.f32 0.0, %v6163
    %v6165 = vpop.f32.mrf.mxu0
    %v6166 = vadd.f32 0.0, %v6165
    %v6167 = vpop.f32.mrf.mxu0
    %v6168 = vpop.f32.mrf.mxu0
    %6169 = vdwg.mxu0
    %6170 = vmatprep.subr.bf16.mxu0 %v6096
    %6171 = vmatpush1.bf16.msra.mxu0 %v6095
    %6172 = vmatprep.subr.bf16.mxu0 %v6092
    %6173 = vmatpush1.bf16.msra.mxu0 %v6091
    %6174 = vmatprep.subr.bf16.mxu0 %v6088
    %6175 = vmatpush1.bf16.msra.mxu0 %v6087
    %6176 = vmatprep.subr.bf16.mxu0 %v6084
    %6177 = vmatpush1.bf16.msra.mxu0 %v6083
    %6178 = vmatprep.subr.bf16.mxu0 %v6080
    %6179 = vmatpush1.bf16.msra.mxu0 %v6079
    %6180 = vmatprep.subr.bf16.mxu0 %v6076
    %6181 = vmatpush1.bf16.msra.mxu0 %v6075
    %6182 = vmatprep.subr.bf16.mxu0 %v6072
    %6183 = vmatpush1.bf16.msra.mxu0 %v6071
    %6184 = vmatprep.subr.bf16.mxu0 %v6068
    %6185 = vmatpush1.bf16.msra.mxu0 %v6067
    %6186 = vmatprep.subr.bf16.mxu0 0
    %6187 = vmatpush2.bf16.msra.mxu0 0
    %6188 = vmatprep.subr.bf16.mxu0 0
    %6189 = vmatpush2.bf16.msra.mxu0 0
    %6190 = vmatprep.subr.bf16.mxu0 0
    %6191 = vmatpush2.bf16.msra.mxu0 0
    %6192 = vmatprep.subr.bf16.mxu0 0
    %6193 = vmatpush2.bf16.msra.mxu0 0
    %6194 = vmatprep.subr.bf16.mxu0 0
    %6195 = vmatpush2.bf16.msra.mxu0 0
    %6196 = vmatprep.subr.bf16.mxu0 0
    %6197 = vmatpush2.bf16.msra.mxu0 0
    %6198 = vmatprep.subr.bf16.mxu0 0
    %6199 = vmatpush2.bf16.msra.mxu0 0
    %6200 = vmatprep.subr.bf16.mxu0 0
    %6201 = vmatpush2.bf16.msra.mxu0 0
    %6202 = vmatprep.mubr.bf16.mxu0 0
    %6203 = vmatmul.mubr.bf16.gmra.mxu0 %v5936
    %v6204 = vpop.f32.mrf.mxu0
    %v6205 = vadd.f32 0.0, %v6204
    %v6206 = vpop.f32.mrf.mxu0
    %v6207 = vadd.f32 0.0, %v6206
    %v6208 = vpop.f32.mrf.mxu0
    %v6209 = vpop.f32.mrf.mxu0
    %6210 = vdwg.mxu0
    %v6215 = vcombine.low %v6164, %v6166
    %v6216 = vcombine.low %v6205, %v6207
    %v6218 = vunpack.c.l.s4 1983009808
    %v6219 = vunpack.c.0.s8 %v6218
    %v6220 = vlaneseq
    %v6221 = vshrl.u32 %v6220, 7
    %v6222 = vsub.s32 %v6219, %v6221
    %v6223 = vrot.slane %v6215, %v6222
    %v6225 = vunpack.c.l.s4 1983009808
    %v6226 = vunpack.c.0.s8 %v6225
    %v6227 = vlaneseq
    %v6228 = vshrl.u32 %v6227, 7
    %v6229 = vsub.s32 %v6226, %v6228
    %v6230 = vrot.slane %v6216, %v6229
    %v6231 = vcombine.low %v6223, %v6230
    %v6233 = vadd.f32 %v5935, %v6231
    %v6234 = vxor.u32 %v5934, 2147483648
    %v6235 = vmul.f32 %v6234, 1.442695
    %v6236 = vpow.pop %v6235
    %v6237 = vadd.f32 %v6236, 1.0
    %v6238 = vrcp.pop %v6237
    %v6239 = vmul.f32 1.0, %v6238
    %v6241 = vrot.slane %v5934, 2
    %v6243 = vxor.u32 %v6241, 2147483648
    %v6244 = vmul.f32 %v6243, 1.442695
    %v6245 = vpow.pop %v6244
    %v6246 = vadd.f32 %v6245, 1.0
    %v6247 = vrcp.pop %v6246
    %v6248 = vmul.f32 1.0, %v6247
    %v6249 = vrot.slane %v5934, 4
    %v6251 = vtanh.pop %v6249
    %v6252 = vrot.slane %v5934, 6
    %v6254 = vxor.u32 %v6252, 2147483648
    %v6255 = vmul.f32 %v6254, 1.442695
    %v6256 = vpow.pop %v6255
    %v6257 = vadd.f32 %v6256, 1.0
    %v6258 = vrcp.pop %v6257
    %v6259 = vmul.f32 1.0, %v6258
    %v6260 = vmul.f32 %v6248, %v5597
    %v6261 = vmul.f32 %v6239, %v6251
    %v6262 = vadd.f32 %v6260, %v6261
    %v6263 = vtanh.pop %v6262
    %v6264 = vmul.f32 %v6259, %v6263
    %v6265 = vxor.u32 %v6233, 2147483648
    %v6266 = vmul.f32 %v6265, 1.442695
    %v6267 = vpow.pop %v6266
    %v6268 = vadd.f32 %v6267, 1.0
    %v6269 = vrcp.pop %v6268
    %v6270 = vmul.f32 1.0, %v6269
    %v6272 = vrot.slane %v6233, 2
    %v6274 = vxor.u32 %v6272, 2147483648
    %v6275 = vmul.f32 %v6274, 1.442695
    %v6276 = vpow.pop %v6275
    %v6277 = vadd.f32 %v6276, 1.0
    %v6278 = vrcp.pop %v6277
    %v6279 = vmul.f32 1.0, %v6278
    %v6280 = vrot.slane %v6233, 4
    %v6282 = vtanh.pop %v6280
    %v6283 = vrot.slane %v6233, 6
    %v6285 = vxor.u32 %v6283, 2147483648
    %v6286 = vmul.f32 %v6285, 1.442695
    %v6287 = vpow.pop %v6286
    %v6288 = vadd.f32 %v6287, 1.0
    %v6289 = vrcp.pop %v6288
    %v6290 = vmul.f32 1.0, %v6289
    %v6291 = vmul.f32 %v6279, %v5628
    %v6292 = vmul.f32 %v6270, %v6282
    %v6293 = vadd.f32 %v6291, %v6292
    %v6294 = vtanh.pop %v6293
    %v6295 = vmul.f32 %v6290, %v6294
    %s6296 = scalar_lea.vmem [#allocation4], 14
    %6297 = vst [vmem:[%s6296] sm:$0x3] %v6264
    %6298 = vst [vmem:[#allocation5] sm:$0x3] %v6295
    %v6299 = vld [vmem:[#allocation4] sm:$0x3]
    %v6300 = vld [vmem:[#allocation4 + $0x2] sm:$0x3]
    %v6301 = vld [vmem:[#allocation4 + $0x4] sm:$0x3]
    %v6302 = vld [vmem:[#allocation4 + $0x6] sm:$0x3]
    %v6303 = vld [vmem:[#allocation4 + $0x8] sm:$0x3]
    %v6304 = vld [vmem:[#allocation4 + $0xa] sm:$0x3]
    %v6305 = vld [vmem:[#allocation4 + $0xc] sm:$0x3]
    %v6306 = vld [vmem:[#allocation4 + $0xe] sm:$0x3]
    %v6315 = vcombine.low %v6299, %v6300
    %v6316 = vcombine.low %v6301, %v6302
    %v6318 = vunpack.c.l.s4 1983009808
    %v6319 = vunpack.c.0.s8 %v6318
    %v6320 = vlaneseq
    %v6321 = vshrl.u32 %v6320, 7
    %v6322 = vsub.s32 %v6319, %v6321
    %v6323 = vrot.slane %v6315, %v6322
    %v6325 = vunpack.c.l.s4 1983009808
    %v6326 = vunpack.c.0.s8 %v6325
    %v6327 = vlaneseq
    %v6328 = vshrl.u32 %v6327, 7
    %v6329 = vsub.s32 %v6326, %v6328
    %v6330 = vrot.slane %v6316, %v6329
    %v6331 = vcombine.low %v6323, %v6330
    %v6332 = vcombine.low %v6303, %v6304
    %v6333 = vcombine.low %v6305, %v6306
    %v6335 = vunpack.c.l.s4 1983009808
    %v6336 = vunpack.c.0.s8 %v6335
    %v6337 = vlaneseq
    %v6338 = vshrl.u32 %v6337, 7
    %v6339 = vsub.s32 %v6336, %v6338
    %v6340 = vrot.slane %v6332, %v6339
    %v6342 = vunpack.c.l.s4 1983009808
    %v6343 = vunpack.c.0.s8 %v6342
    %v6344 = vlaneseq
    %v6345 = vshrl.u32 %v6344, 7
    %v6346 = vsub.s32 %v6343, %v6345
    %v6347 = vrot.slane %v6333, %v6346
    %v6348 = vcombine.low %v6340, %v6347
    %v6351 = vpack.c.bf16 %v6348, %v6331
    %v6352 = vld [vmem:[#allocation5] sm:$0x3]
    %v6353 = vld [vmem:[#allocation5 + $0x2] sm:$0x3]
    %v6354 = vld [vmem:[#allocation5 + $0x4] sm:$0x3]
    %v6355 = vld [vmem:[#allocation5 + $0x6] sm:$0x3]
    %v6356 = vld [vmem:[#allocation5 + $0x8] sm:$0x3]
    %v6357 = vld [vmem:[#allocation5 + $0xa] sm:$0x3]
    %v6358 = vld [vmem:[#allocation5 + $0xc] sm:$0x3]
    %v6359 = vld [vmem:[#allocation5 + $0xe] sm:$0x3]
    %v6368 = vcombine.low %v6352, %v6353
    %v6369 = vcombine.low %v6354, %v6355
    %v6371 = vunpack.c.l.s4 1983009808
    %v6372 = vunpack.c.0.s8 %v6371
    %v6373 = vlaneseq
    %v6374 = vshrl.u32 %v6373, 7
    %v6375 = vsub.s32 %v6372, %v6374
    %v6376 = vrot.slane %v6368, %v6375
    %v6378 = vunpack.c.l.s4 1983009808
    %v6379 = vunpack.c.0.s8 %v6378
    %v6380 = vlaneseq
    %v6381 = vshrl.u32 %v6380, 7
    %v6382 = vsub.s32 %v6379, %v6381
    %v6383 = vrot.slane %v6369, %v6382
    %v6384 = vcombine.low %v6376, %v6383
    %v6385 = vcombine.low %v6356, %v6357
    %v6386 = vcombine.low %v6358, %v6359
    %v6388 = vunpack.c.l.s4 1983009808
    %v6389 = vunpack.c.0.s8 %v6388
    %v6390 = vlaneseq
    %v6391 = vshrl.u32 %v6390, 7
    %v6392 = vsub.s32 %v6389, %v6391
    %v6393 = vrot.slane %v6385, %v6392
    %v6395 = vunpack.c.l.s4 1983009808
    %v6396 = vunpack.c.0.s8 %v6395
    %v6397 = vlaneseq
    %v6398 = vshrl.u32 %v6397, 7
    %v6399 = vsub.s32 %v6396, %v6398
    %v6400 = vrot.slane %v6386, %v6399
    %v6401 = vcombine.low %v6393, %v6400
    %v6404 = vpack.c.bf16 %v6401, %v6384
    %v6405 = vld [vmem:[#allocation15] sm:$0xf]
    %v6406 = vld [vmem:[#allocation15 + $0x4] sm:$0xf]
    %v6407 = vld [vmem:[#allocation15 + $0x8] sm:$0xf]
    %v6408 = vld [vmem:[#allocation15 + $0xc] sm:$0xf]
    %v6409 = vld [vmem:[#allocation15 + $0x10] sm:$0xf]
    %v6410 = vld [vmem:[#allocation15 + $0x14] sm:$0xf]
    %v6411 = vld [vmem:[#allocation15 + $0x18] sm:$0xf]
    %v6412 = vld [vmem:[#allocation15 + $0x1c] sm:$0xf]
    %v6413 = vld [vmem:[#allocation15 + $0x20] sm:$0xf]
    %v6414 = vld [vmem:[#allocation15 + $0x24] sm:$0xf]
    %v6415 = vld [vmem:[#allocation15 + $0x28] sm:$0xf]
    %v6416 = vld [vmem:[#allocation15 + $0x2c] sm:$0xf]
    %v6417 = vld [vmem:[#allocation15 + $0x30] sm:$0xf]
    %v6418 = vld [vmem:[#allocation15 + $0x34] sm:$0xf]
    %v6419 = vld [vmem:[#allocation15 + $0x38] sm:$0xf]
    %v6420 = vld [vmem:[#allocation15 + $0x3c] sm:$0xf]
    %v6421 = vld [vmem:[#allocation17] sm:$0xf]
    %v6422 = vld [vmem:[#allocation17 + $0x4] sm:$0xf]
    %v6423 = vld [vmem:[#allocation17 + $0x8] sm:$0xf]
    %v6424 = vld [vmem:[#allocation17 + $0xc] sm:$0xf]
    %v6425 = vld [vmem:[#allocation17 + $0x10] sm:$0xf]
    %v6426 = vld [vmem:[#allocation17 + $0x14] sm:$0xf]
    %v6427 = vld [vmem:[#allocation17 + $0x18] sm:$0xf]
    %v6428 = vld [vmem:[#allocation17 + $0x1c] sm:$0xf]
    %v6429 = vld [vmem:[#allocation17 + $0x20] sm:$0xf]
    %v6430 = vld [vmem:[#allocation17 + $0x24] sm:$0xf]
    %v6431 = vld [vmem:[#allocation17 + $0x28] sm:$0xf]
    %v6432 = vld [vmem:[#allocation17 + $0x2c] sm:$0xf]
    %v6433 = vld [vmem:[#allocation17 + $0x30] sm:$0xf]
    %v6434 = vld [vmem:[#allocation17 + $0x34] sm:$0xf]
    %v6435 = vld [vmem:[#allocation17 + $0x38] sm:$0xf]
    %v6436 = vld [vmem:[#allocation17 + $0x3c] sm:$0xf]
    %v6453 = vunpack.c.l.b16 %v6421
    %v6454 = vunpack.c.l.b16 %v6422
    %v6455 = vunpack.c.l.b16 %v6423
    %v6456 = vunpack.c.l.b16 %v6424
    %v6457 = vunpack.c.l.b16 %v6425
    %v6458 = vunpack.c.l.b16 %v6426
    %v6459 = vunpack.c.l.b16 %v6427
    %v6460 = vunpack.c.l.b16 %v6428
    %v6461 = vunpack.c.l.b16 %v6429
    %v6462 = vunpack.c.l.b16 %v6430
    %v6463 = vunpack.c.l.b16 %v6431
    %v6464 = vunpack.c.l.b16 %v6432
    %v6465 = vunpack.c.l.b16 %v6433
    %v6466 = vunpack.c.l.b16 %v6434
    %v6467 = vunpack.c.l.b16 %v6435
    %v6468 = vunpack.c.l.b16 %v6436
    %v6469 = vpack.c.b16 %v6454, %v6453
    %v6470 = vpack.c.b16 %v6456, %v6455
    %v6471 = vpack.c.b16 %v6458, %v6457
    %v6472 = vpack.c.b16 %v6460, %v6459
    %v6473 = vpack.c.b16 %v6462, %v6461
    %v6474 = vpack.c.b16 %v6464, %v6463
    %v6475 = vpack.c.b16 %v6466, %v6465
    %v6476 = vpack.c.b16 %v6468, %v6467
    %6485 = vmatprep.subr.bf16.mxu0 0
    %6486 = vmatpush1.bf16.msra.mxu0 %v6476
    %6487 = vmatprep.subr.bf16.mxu0 0
    %6488 = vmatpush1.bf16.msra.mxu0 %v6475
    %6489 = vmatprep.subr.bf16.mxu0 0
    %6490 = vmatpush1.bf16.msra.mxu0 %v6474
    %6491 = vmatprep.subr.bf16.mxu0 0
    %6492 = vmatpush1.bf16.msra.mxu0 %v6473
    %6493 = vmatprep.subr.bf16.mxu0 0
    %6494 = vmatpush1.bf16.msra.mxu0 %v6472
    %6495 = vmatprep.subr.bf16.mxu0 0
    %6496 = vmatpush1.bf16.msra.mxu0 %v6471
    %6497 = vmatprep.subr.bf16.mxu0 0
    %6498 = vmatpush1.bf16.msra.mxu0 %v6470
    %6499 = vmatprep.subr.bf16.mxu0 0
    %6500 = vmatpush1.bf16.msra.mxu0 %v6469
    %6501 = vmatprep.subr.bf16.mxu0 0
    %6502 = vmatpush2.bf16.msra.mxu0 0
    %6503 = vmatprep.subr.bf16.mxu0 0
    %6504 = vmatpush2.bf16.msra.mxu0 0
    %6505 = vmatprep.subr.bf16.mxu0 0
    %6506 = vmatpush2.bf16.msra.mxu0 0
    %6507 = vmatprep.subr.bf16.mxu0 0
    %6508 = vmatpush2.bf16.msra.mxu0 0
    %6509 = vmatprep.subr.bf16.mxu0 0
    %6510 = vmatpush2.bf16.msra.mxu0 0
    %6511 = vmatprep.subr.bf16.mxu0 0
    %6512 = vmatpush2.bf16.msra.mxu0 0
    %6513 = vmatprep.subr.bf16.mxu0 0
    %6514 = vmatpush2.bf16.msra.mxu0 0
    %6515 = vmatprep.subr.bf16.mxu0 0
    %6516 = vmatpush2.bf16.msra.mxu0 0
    %6517 = vmatprep.mubr.bf16.mxu0 0
    %6518 = vmatmul.mubr.bf16.gmra.mxu0 %v6404
    %v6519 = vpop.f32.mrf.mxu0
    %v6520 = vadd.f32 0.0, %v6519
    %v6521 = vpop.f32.mrf.mxu0
    %v6522 = vpop.f32.mrf.mxu0
    %v6523 = vadd.f32 0.0, %v6522
    %v6524 = vpop.f32.mrf.mxu0
    %6525 = vdwg.mxu0
    %v6542 = vunpack.c.l.b16 %v6405
    %v6543 = vunpack.c.l.b16 %v6406
    %v6544 = vunpack.c.l.b16 %v6407
    %v6545 = vunpack.c.l.b16 %v6408
    %v6546 = vunpack.c.l.b16 %v6409
    %v6547 = vunpack.c.l.b16 %v6410
    %v6548 = vunpack.c.l.b16 %v6411
    %v6549 = vunpack.c.l.b16 %v6412
    %v6550 = vunpack.c.l.b16 %v6413
    %v6551 = vunpack.c.l.b16 %v6414
    %v6552 = vunpack.c.l.b16 %v6415
    %v6553 = vunpack.c.l.b16 %v6416
    %v6554 = vunpack.c.l.b16 %v6417
    %v6555 = vunpack.c.l.b16 %v6418
    %v6556 = vunpack.c.l.b16 %v6419
    %v6557 = vunpack.c.l.b16 %v6420
    %v6558 = vpack.c.b16 %v6543, %v6542
    %v6559 = vpack.c.b16 %v6545, %v6544
    %v6560 = vpack.c.b16 %v6547, %v6546
    %v6561 = vpack.c.b16 %v6549, %v6548
    %v6562 = vpack.c.b16 %v6551, %v6550
    %v6563 = vpack.c.b16 %v6553, %v6552
    %v6564 = vpack.c.b16 %v6555, %v6554
    %v6565 = vpack.c.b16 %v6557, %v6556
    %6574 = vmatprep.subr.bf16.mxu0 0
    %6575 = vmatpush1.bf16.msra.mxu0 %v6565
    %6576 = vmatprep.subr.bf16.mxu0 0
    %6577 = vmatpush1.bf16.msra.mxu0 %v6564
    %6578 = vmatprep.subr.bf16.mxu0 0
    %6579 = vmatpush1.bf16.msra.mxu0 %v6563
    %6580 = vmatprep.subr.bf16.mxu0 0
    %6581 = vmatpush1.bf16.msra.mxu0 %v6562
    %6582 = vmatprep.subr.bf16.mxu0 0
    %6583 = vmatpush1.bf16.msra.mxu0 %v6561
    %6584 = vmatprep.subr.bf16.mxu0 0
    %6585 = vmatpush1.bf16.msra.mxu0 %v6560
    %6586 = vmatprep.subr.bf16.mxu0 0
    %6587 = vmatpush1.bf16.msra.mxu0 %v6559
    %6588 = vmatprep.subr.bf16.mxu0 0
    %6589 = vmatpush1.bf16.msra.mxu0 %v6558
    %6590 = vmatprep.subr.bf16.mxu0 0
    %6591 = vmatpush2.bf16.msra.mxu0 0
    %6592 = vmatprep.subr.bf16.mxu0 0
    %6593 = vmatpush2.bf16.msra.mxu0 0
    %6594 = vmatprep.subr.bf16.mxu0 0
    %6595 = vmatpush2.bf16.msra.mxu0 0
    %6596 = vmatprep.subr.bf16.mxu0 0
    %6597 = vmatpush2.bf16.msra.mxu0 0
    %6598 = vmatprep.subr.bf16.mxu0 0
    %6599 = vmatpush2.bf16.msra.mxu0 0
    %6600 = vmatprep.subr.bf16.mxu0 0
    %6601 = vmatpush2.bf16.msra.mxu0 0
    %6602 = vmatprep.subr.bf16.mxu0 0
    %6603 = vmatpush2.bf16.msra.mxu0 0
    %6604 = vmatprep.subr.bf16.mxu0 0
    %6605 = vmatpush2.bf16.msra.mxu0 0
    %6606 = vmatprep.mubr.bf16.mxu0 0
    %6607 = vmatmul.mubr.bf16.gmra.mxu0 %v6351
    %v6608 = vpop.f32.mrf.mxu0
    %v6609 = vadd.f32 %v6520, %v6608
    %v6610 = vpop.f32.mrf.mxu0
    %v6611 = vpop.f32.mrf.mxu0
    %v6612 = vadd.f32 %v6523, %v6611
    %v6613 = vpop.f32.mrf.mxu0
    %6614 = vdwg.mxu0
    %v6615 = vld [vmem:[%s9] sm:$0x1]
    %v6617 = vlaneseq
    %v6618 = vshrl.u32 %v6617, 7
    %v6619 = vsub.s32 0, %v6618
    %v6620 = vrot.slane %v6615, %v6619
    %v6622 = vadd.f32 %v6609, %v6620
    %v6623 = vadd.f32 %v6612, %v6620
    %v6626 = vcombine.high %v6622, %v6622
    %v6628 = vunpack.c.l.s4 1983009808
    %v6629 = vunpack.c.0.s8 %v6628
    %v6630 = vlaneseq
    %v6631 = vshrl.u32 %v6630, 7
    %v6632 = vsub.s32 %v6629, %v6631
    %v6633 = vrot.slane %v6622, %v6632
    %v6635 = vunpack.c.l.s4 1983009808
    %v6636 = vunpack.c.0.s8 %v6635
    %v6637 = vlaneseq
    %v6638 = vshrl.u32 %v6637, 7
    %v6639 = vsub.s32 %v6636, %v6638
    %v6640 = vrot.slane %v6626, %v6639
    %v6641 = vcombine.high %v6633, %v6633
    %v6642 = vcombine.high %v6640, %v6640
    %v6643 = vcombine.high %v6623, %v6623
    %v6645 = vunpack.c.l.s4 1983009808
    %v6646 = vunpack.c.0.s8 %v6645
    %v6647 = vlaneseq
    %v6648 = vshrl.u32 %v6647, 7
    %v6649 = vsub.s32 %v6646, %v6648
    %v6650 = vrot.slane %v6623, %v6649
    %v6652 = vunpack.c.l.s4 1983009808
    %v6653 = vunpack.c.0.s8 %v6652
    %v6654 = vlaneseq
    %v6655 = vshrl.u32 %v6654, 7
    %v6656 = vsub.s32 %v6653, %v6655
    %v6657 = vrot.slane %v6643, %v6656
    %v6658 = vcombine.high %v6650, %v6650
    %v6659 = vcombine.high %v6657, %v6657
    %6668 = vst [vmem:[#allocation18] sm:$0x3] %v6633
    %6669 = vst [vmem:[#allocation18 + $0x2] sm:$0x3] %v6641
    %6670 = vst [vmem:[#allocation18 + $0x4] sm:$0x3] %v6640
    %6671 = vst [vmem:[#allocation18 + $0x6] sm:$0x3] %v6642
    %6672 = vst [vmem:[#allocation18 + $0x8] sm:$0x3] %v6650
    %6673 = vst [vmem:[#allocation18 + $0xa] sm:$0x3] %v6658
    %6674 = vst [vmem:[#allocation18 + $0xc] sm:$0x3] %v6657
    %6675 = vst [vmem:[#allocation18 + $0xe] sm:$0x3] %v6659
    // Predicated region
    $region70: #{tpu_custom_call.1} parent=1 // pred_check
      _
    $region71: #{tpu_custom_call.1} parent=1 // pred_check_branch
      %6677 = sbr.rel (0) target = $region73
    $region72: #{tpu_custom_call.1} parent=1 // pred_region
      %s6679 = ssub.s32 256, 256
      %6680 = vsyncadd [#allocation8], %s6679
      %s6681 = sshll.u32 [#allocation18], 4
      %s6682 = int_to_ptr.vmem [resolvable:$true] %s6681
      %6687 = dma.vmem_to_hbm [thread:$0]  %s6682, 256, %s10, [#allocation8], 32, 32, 2
    $region73: #{tpu_custom_call.1} parent=1 // pred_fallthru
      _
    // Predicated region
    $region74: #{tpu_custom_call.1} parent=1 // pred_check
      _
    $region75: #{tpu_custom_call.1} parent=1 // pred_check_branch
      %6689 = sbr.rel (0) target = $region77
    $region76: #{tpu_custom_call.1} parent=1 // pred_region
      %6690 = dma.done [#allocation8], 256
    $region77: #{tpu_custom_call.1} parent=1 // pred_fallthru
      _
    %6691 = vsyncpa [#allocation7], 1
    %6692 = vsyncpa [#allocation10], 1
    %6693 = vsyncpa [#allocation13], 1
    %6694 = vsyncpa [#allocation16], 1
    %6695 = vsyncpa [#allocation8], 1

</llo_original>
